<compile_context>
chip_gen: v6e
topology: v6e:2x2x1
jax: 0.10.0
libtpu: 0.0.40
codegen_flags: <defaults>
</compile_context>

<pallas_src>
import functools

import jax
import jax.numpy as jnp
from jax import lax
from jax.experimental import pallas as pl
from jax.experimental.pallas import tpu as pltpu


def _convx2_kernel(x_ref, w1_ref, w2_ref, bn_ref, o_ref, *,
                   N, H, W, C0, C1, CP, matmul_dtype):
    """Fused (conv3x3 valid + BN(train) + ReLU) x2.

    x_ref  : [N, H, W, C0]    NHWC input (f32)
    w1_ref : [3, 3*C0, C1]    conv1 weights, (dy, dx*C0+ci, co) -- same (dy,dx,ci)
                              flattening the in-kernel im2col uses (both derived
                              from HWIO row-major order).
    w2_ref : [3, 3*C1, CP]    conv2 weights, output channels zero-padded to CP
    bn_ref : [4, CP]          rows = [gamma1, beta1, gamma2, beta2] (zero-padded)
    o_ref  : [N*(H-4)*(W-4), CP]   lane-dense f32 output (real channels = C2)
    """
    eps = 1e-5
    H1, W1 = H - 2, W - 2
    H2, W2 = H1 - 2, W1 - 2
    M1 = N * H1 * W1
    M2 = N * H2 * W2

    w1 = w1_ref[...]                                   # [3, 3*C0, C1]
    w2 = w2_ref[...]                                   # [3, 3*C1, CP]
    # Cast once before slicing: the 9 shifted-window relayouts then move the
    # narrow dtype instead of f32.
    x = x_ref[...].astype(matmul_dtype)                # [N, H, W, C0]

    # ---- conv1: 3 accumulating MXU dots over dy (K = 3*C0 each) --------------
    # (conv1 bias omitted: cancelled exactly by the BN mean subtraction below)
    acc1 = jnp.zeros((M1, C1), jnp.float32)
    for dy in range(3):
        cols = jnp.concatenate(
            [x[:, dy:dy + H1, dx:dx + W1, :] for dx in range(3)],
            axis=-1).reshape(M1, 3 * C0)
        acc1 = acc1 + jnp.dot(cols, w1[dy], preferred_element_type=jnp.float32)

    # ---- BN1 (batch stats, centered variance) + ReLU --------------------------
    g1 = bn_ref[0:1, :C1]
    be1 = bn_ref[1:2, :C1]
    m1 = jnp.sum(acc1, axis=0, keepdims=True) * (1.0 / M1)
    c1 = acc1 - m1
    var1 = jnp.sum(c1 * c1, axis=0, keepdims=True) * (1.0 / M1)
    y1 = jnp.maximum(c1 * (g1 * lax.rsqrt(var1 + eps)) + be1, 0.0)
    y1 = y1.reshape(N, H1, W1, C1).astype(matmul_dtype)

    # ---- conv2: same dy-split, output channels padded to CP (lane-dense) ------
    acc2 = jnp.zeros((M2, CP), jnp.float32)
    for dy in range(3):
        cols = jnp.concatenate(
            [y1[:, dy:dy + H2, dx:dx + W2, :] for dx in range(3)],
            axis=-1).reshape(M2, 3 * C1)
        acc2 = acc2 + jnp.dot(cols, w2[dy], preferred_element_type=jnp.float32)

    # ---- BN2 + ReLU, unmasked lane-dense store --------------------------------
    # Padded channels: acc2 == 0, gamma == beta == 0  ->  output 0 (no NaN/Inf).
    g2 = bn_ref[2:3, :]
    be2 = bn_ref[3:4, :]
    m2 = jnp.sum(acc2, axis=0, keepdims=True) * (1.0 / M2)
    c2 = acc2 - m2
    var2 = jnp.sum(c2 * c2, axis=0, keepdims=True) * (1.0 / M2)
    o_ref[...] = jnp.maximum(c2 * (g2 * lax.rsqrt(var2 + eps)) + be2, 0.0)


def convx2_forward(x_nchw, w1_hwio, g1, be1, w2_hwio, g2, be2,
                   *, matmul_dtype=jnp.bfloat16):
    """Wrapper: NCHW in, NCHW out (matches the PyTorch module).

    Conv biases are intentionally NOT inputs: with training-mode BatchNorm
    immediately after each conv, a per-channel bias is mathematically cancelled
    by the mean subtraction, so the kernel skips the broadcast+add passes and
    the extra DMAs.  (Only valid for train-mode BN -- do not reuse with
    running-stat eval BN.)
    """
    x = jnp.transpose(x_nchw, (0, 2, 3, 1)).astype(jnp.float32)   # NHWC
    N, H, W, C0 = x.shape
    C1 = w1_hwio.shape[-1]
    C2 = w2_hwio.shape[-1]
    H2, W2 = H - 4, W - 4
    # Pad the output/N dim of the second dot to a full lane width: free on the
    # MXU, and it makes every output store an unmasked vst.
    CP = ((max(C1, C2) + 127) // 128) * 128

    w1g = w1_hwio.reshape(3, 3 * C0, C1).astype(matmul_dtype)
    w2p = jnp.zeros((3, 3, C1, CP), jnp.float32).at[..., :C2].set(w2_hwio)
    w2g = w2p.reshape(3, 3 * C1, CP).astype(matmul_dtype)
    bn = (jnp.zeros((4, CP), jnp.float32)
          .at[0, :C1].set(g1.astype(jnp.float32))
          .at[1, :C1].set(be1.astype(jnp.float32))
          .at[2, :C2].set(g2.astype(jnp.float32))
          .at[3, :C2].set(be2.astype(jnp.float32)))

    vmem = pl.BlockSpec(memory_space=pltpu.MemorySpace.VMEM)
    out_pad = pl.pallas_call(
        functools.partial(_convx2_kernel, N=N, H=H, W=W, C0=C0, C1=C1, CP=CP,
                          matmul_dtype=matmul_dtype),
        out_shape=jax.ShapeDtypeStruct((N * H2 * W2, CP), jnp.float32),
        in_specs=[vmem] * 4,
        out_specs=vmem,
    )(x, w1g, w2g, bn)

    out_nhwc = out_pad[:, :C2].reshape(N, H2, W2, C2)
    return jnp.transpose(out_nhwc, (0, 3, 1, 2))                  # NCHW


def reference_forward(x_nchw, w1_hwio, b1, g1, be1, w2_hwio, b2, g2, be2):
    """Pure-JAX reference with the module's semantics (conv bias + train-mode BN)."""
    eps = 1e-5

    def conv_bn_relu(x, w_hwio, b, g, be):
        w_oihw = jnp.transpose(w_hwio, (3, 2, 0, 1))
        y = lax.conv_general_dilated(x, w_oihw, (1, 1), 'VALID',
                                     dimension_numbers=('NCHW', 'OIHW', 'NCHW'))
        y = y + b.reshape(1, -1, 1, 1)
        m = jnp.mean(y, axis=(0, 2, 3), keepdims=True)
        v = jnp.mean((y - m) ** 2, axis=(0, 2, 3), keepdims=True)
        y = (y - m) * lax.rsqrt(v + eps) * g.reshape(1, -1, 1, 1) \
            + be.reshape(1, -1, 1, 1)
        return jnp.maximum(y, 0.0)

    x = conv_bn_relu(x_nchw.astype(jnp.float32), w1_hwio, b1, g1, be1)
    x = conv_bn_relu(x, w2_hwio, b2, g2, be2)
    return x


if __name__ == "__main__":
    # channels = (4, 8, 16); input [N=2, C=4, H=16, W=16]
    C0, C1, C2 = 4, 8, 16
    key = jax.random.PRNGKey(0)
    kx, k1, kb1, k2, kb2, kg1, kbe1, kg2, kbe2 = jax.random.split(key, 9)

    x = jax.random.normal(kx, (2, C0, 16, 16), dtype=jnp.float32)

    # He-normal conv weights (fan_in = C_in * 3 * 3), HWIO layout.
    fan1, fan2 = C0 * 9, C1 * 9
    w1 = jax.random.normal(k1, (3, 3, C0, C1), jnp.float32) * jnp.sqrt(2.0 / fan1)
    w2 = jax.random.normal(k2, (3, 3, C1, C2), jnp.float32) * jnp.sqrt(2.0 / fan2)
    # Conv biases: used only by the reference (cancelled by train-mode BN).
    b1 = jax.random.uniform(kb1, (C1,), minval=-1.0, maxval=1.0) / jnp.sqrt(fan1)
    b2 = jax.random.uniform(kb2, (C2,), minval=-1.0, maxval=1.0) / jnp.sqrt(fan2)
    # Non-trivial BN affine params to exercise the fused scale/shift.
    g1 = 1.0 + 0.1 * jax.random.normal(kg1, (C1,), jnp.float32)
    be1 = 0.1 * jax.random.normal(kbe1, (C1,), jnp.float32)
    g2 = 1.0 + 0.1 * jax.random.normal(kg2, (C2,), jnp.float32)
    be2 = 0.1 * jax.random.normal(kbe2, (C2,), jnp.float32)

    ref = reference_forward(x, w1, b1, g1, be1, w2, b2, g2, be2)

    # f32 MXU path: must match the reference tightly (proves the semantics,
    # including the conv-bias / BN-mean cancellation and weight flattening order).
    out_f32 = jax.block_until_ready(
        convx2_forward(x, w1, g1, be1, w2, g2, be2, matmul_dtype=jnp.float32))
    assert out_f32.shape == (2, C2, 12, 12), out_f32.shape
    err_f32 = float(jnp.max(jnp.abs(out_f32 - ref)))
    assert jnp.allclose(out_f32, ref, atol=1e-4, rtol=1e-4), err_f32

    # Default bf16 MXU path (f32 accumulation): bf16 rounding feeds the BN batch
    # statistics, so the tolerance is intentionally loose.
    out_bf16 = jax.block_until_ready(convx2_forward(x, w1, g1, be1, w2, g2, be2))
    assert out_bf16.shape == (2, C2, 12, 12), out_bf16.shape
    assert bool(jnp.all(jnp.isfinite(out_bf16)))
    err_bf16 = float(jnp.max(jnp.abs(out_bf16 - ref)))
    assert jnp.allclose(out_bf16, ref, atol=2.5e-1, rtol=5e-2), err_bf16

    print("KERNEL_OK")
</pallas_src>

<mosaic_0001>
module attributes {stable_mosaic.version = 11 : i64} {
  func.func @_convx2_kernel(%arg0: memref<2x16x16x4xf32, #tpu.memory_space<vmem>>, %arg1: memref<3x12x8xf32, #tpu.memory_space<vmem>>, %arg2: memref<3x24x128xf32, #tpu.memory_space<vmem>>, %arg3: memref<4x128xf32, #tpu.memory_space<vmem>>, %arg4: memref<288x128xf32, #tpu.memory_space<vmem>>) attributes {dimension_semantics = [], scalar_prefetch = 0 : i64, scratch_operands = 0 : i64, tpu.core_type = #tpu.core_type<tc>} {
    %c0 = arith.constant 0 : index
    %c0_0 = arith.constant 0 : index
    %c0_1 = arith.constant 0 : index
    %0 = vector.load %arg1[%c0, %c0_0, %c0_1] : memref<3x12x8xf32, #tpu.memory_space<vmem>>, vector<3x12x8xf32>
    %c0_2 = arith.constant 0 : index
    %c0_3 = arith.constant 0 : index
    %c0_4 = arith.constant 0 : index
    %1 = vector.load %arg2[%c0_2, %c0_3, %c0_4] : memref<3x24x128xf32, #tpu.memory_space<vmem>>, vector<3x24x128xf32>
    %c0_5 = arith.constant 0 : index
    %c0_6 = arith.constant 0 : index
    %c0_7 = arith.constant 0 : index
    %c0_8 = arith.constant 0 : index
    %2 = vector.load %arg0[%c0_5, %c0_6, %c0_7, %c0_8] : memref<2x16x16x4xf32, #tpu.memory_space<vmem>>, vector<2x16x16x4xf32>
    %cst = arith.constant 0.000000e+00 : f32
    %3 = vector.broadcast %cst : f32 to vector<392x8xf32>
    %4 = vector.extract_strided_slice %2 {offsets = [0, 0, 0, 0], sizes = [2, 14, 14, 4], strides = [1, 1, 1, 1]} : vector<2x16x16x4xf32> to vector<2x14x14x4xf32>
    %5 = vector.extract_strided_slice %2 {offsets = [0, 0, 1, 0], sizes = [2, 14, 14, 4], strides = [1, 1, 1, 1]} : vector<2x16x16x4xf32> to vector<2x14x14x4xf32>
    %6 = vector.extract_strided_slice %2 {offsets = [0, 0, 2, 0], sizes = [2, 14, 14, 4], strides = [1, 1, 1, 1]} : vector<2x16x16x4xf32> to vector<2x14x14x4xf32>
    %7 = tpu.concatenate %4, %5, %6 in 3 : vector<2x14x14x4xf32>, vector<2x14x14x4xf32>, vector<2x14x14x4xf32> -> vector<2x14x14x12xf32>
    %8 = vector.shape_cast %7 : vector<2x14x14x12xf32> to vector<392x12xf32>
    %9 = vector.extract_strided_slice %0 {offsets = [0, 0, 0], sizes = [1, 12, 8], strides = [1, 1, 1]} : vector<3x12x8xf32> to vector<1x12x8xf32>
    %10 = vector.shape_cast %9 : vector<1x12x8xf32> to vector<12x8xf32>
    %cst_9 = arith.constant dense<0.000000e+00> : vector<392x8xf32>
    %11 = tpu.matmul %8, %10, %cst_9 {dimension_numbers = #tpu.dot_dimension_numbers<[1], [0], [0], [1], [0, 0, 1, 1], [], []>} : vector<392x12xf32>, vector<12x8xf32>, vector<392x8xf32> -> vector<392x8xf32>
    %12 = arith.addf %3, %11 : vector<392x8xf32>
    %13 = vector.extract_strided_slice %2 {offsets = [0, 1, 0, 0], sizes = [2, 14, 14, 4], strides = [1, 1, 1, 1]} : vector<2x16x16x4xf32> to vector<2x14x14x4xf32>
    %14 = vector.extract_strided_slice %2 {offsets = [0, 1, 1, 0], sizes = [2, 14, 14, 4], strides = [1, 1, 1, 1]} : vector<2x16x16x4xf32> to vector<2x14x14x4xf32>
    %15 = vector.extract_strided_slice %2 {offsets = [0, 1, 2, 0], sizes = [2, 14, 14, 4], strides = [1, 1, 1, 1]} : vector<2x16x16x4xf32> to vector<2x14x14x4xf32>
    %16 = tpu.concatenate %13, %14, %15 in 3 : vector<2x14x14x4xf32>, vector<2x14x14x4xf32>, vector<2x14x14x4xf32> -> vector<2x14x14x12xf32>
    %17 = vector.shape_cast %16 : vector<2x14x14x12xf32> to vector<392x12xf32>
    %18 = vector.extract_strided_slice %0 {offsets = [1, 0, 0], sizes = [1, 12, 8], strides = [1, 1, 1]} : vector<3x12x8xf32> to vector<1x12x8xf32>
    %19 = vector.shape_cast %18 : vector<1x12x8xf32> to vector<12x8xf32>
    %cst_10 = arith.constant dense<0.000000e+00> : vector<392x8xf32>
    %20 = tpu.matmul %17, %19, %cst_10 {dimension_numbers = #tpu.dot_dimension_numbers<[1], [0], [0], [1], [0, 0, 1, 1], [], []>} : vector<392x12xf32>, vector<12x8xf32>, vector<392x8xf32> -> vector<392x8xf32>
    %21 = arith.addf %12, %20 : vector<392x8xf32>
    %22 = vector.extract_strided_slice %2 {offsets = [0, 2, 0, 0], sizes = [2, 14, 14, 4], strides = [1, 1, 1, 1]} : vector<2x16x16x4xf32> to vector<2x14x14x4xf32>
    %23 = vector.extract_strided_slice %2 {offsets = [0, 2, 1, 0], sizes = [2, 14, 14, 4], strides = [1, 1, 1, 1]} : vector<2x16x16x4xf32> to vector<2x14x14x4xf32>
    %24 = vector.extract_strided_slice %2 {offsets = [0, 2, 2, 0], sizes = [2, 14, 14, 4], strides = [1, 1, 1, 1]} : vector<2x16x16x4xf32> to vector<2x14x14x4xf32>
    %25 = tpu.concatenate %22, %23, %24 in 3 : vector<2x14x14x4xf32>, vector<2x14x14x4xf32>, vector<2x14x14x4xf32> -> vector<2x14x14x12xf32>
    %26 = vector.shape_cast %25 : vector<2x14x14x12xf32> to vector<392x12xf32>
    %27 = vector.extract_strided_slice %0 {offsets = [2, 0, 0], sizes = [1, 12, 8], strides = [1, 1, 1]} : vector<3x12x8xf32> to vector<1x12x8xf32>
    %28 = vector.shape_cast %27 : vector<1x12x8xf32> to vector<12x8xf32>
    %cst_11 = arith.constant dense<0.000000e+00> : vector<392x8xf32>
    %29 = tpu.matmul %26, %28, %cst_11 {dimension_numbers = #tpu.dot_dimension_numbers<[1], [0], [0], [1], [0, 0, 1, 1], [], []>} : vector<392x12xf32>, vector<12x8xf32>, vector<392x8xf32> -> vector<392x8xf32>
    %30 = arith.addf %21, %29 : vector<392x8xf32>
    %c0_12 = arith.constant 0 : index
    %c0_13 = arith.constant 0 : index
    %31 = vector.load %arg3[%c0_12, %c0_13] : memref<4x128xf32, #tpu.memory_space<vmem>>, vector<1x8xf32>
    %c1 = arith.constant 1 : index
    %c0_14 = arith.constant 0 : index
    %32 = vector.load %arg3[%c1, %c0_14] : memref<4x128xf32, #tpu.memory_space<vmem>>, vector<1x8xf32>
    %cst_15 = arith.constant dense<0.000000e+00> : vector<8xf32>
    %33 = vector.multi_reduction <add>, %30, %cst_15 [0] : vector<392x8xf32> to vector<8xf32>
    %34 = vector.shape_cast %33 : vector<8xf32> to vector<1x8xf32>
    %cst_16 = arith.constant 0.00255102036 : f32
    %35 = vector.broadcast %cst_16 : f32 to vector<1x8xf32>
    %36 = arith.mulf %34, %35 : vector<1x8xf32>
    %37 = vector.broadcast %36 : vector<1x8xf32> to vector<392x8xf32>
    %38 = arith.subf %30, %37 : vector<392x8xf32>
    %39 = arith.mulf %38, %38 : vector<392x8xf32>
    %cst_17 = arith.constant dense<0.000000e+00> : vector<8xf32>
    %40 = vector.multi_reduction <add>, %39, %cst_17 [0] : vector<392x8xf32> to vector<8xf32>
    %41 = vector.shape_cast %40 : vector<8xf32> to vector<1x8xf32>
    %cst_18 = arith.constant 0.00255102036 : f32
    %42 = vector.broadcast %cst_18 : f32 to vector<1x8xf32>
    %43 = arith.mulf %41, %42 : vector<1x8xf32>
    %cst_19 = arith.constant 9.99999974E-6 : f32
    %44 = vector.broadcast %cst_19 : f32 to vector<1x8xf32>
    %45 = arith.addf %43, %44 : vector<1x8xf32>
    %46 = math.rsqrt %45 : vector<1x8xf32>
    %47 = arith.mulf %31, %46 : vector<1x8xf32>
    %48 = vector.broadcast %47 : vector<1x8xf32> to vector<392x8xf32>
    %49 = arith.mulf %38, %48 : vector<392x8xf32>
    %50 = vector.broadcast %32 : vector<1x8xf32> to vector<392x8xf32>
    %51 = arith.addf %49, %50 : vector<392x8xf32>
    %cst_20 = arith.constant 0.000000e+00 : f32
    %52 = vector.broadcast %cst_20 : f32 to vector<392x8xf32>
    %53 = arith.maximumf %51, %52 : vector<392x8xf32>
    %54 = vector.shape_cast %53 : vector<392x8xf32> to vector<2x14x14x8xf32>
    %cst_21 = arith.constant 0.000000e+00 : f32
    %55 = vector.broadcast %cst_21 : f32 to vector<288x128xf32>
    %56 = vector.extract_strided_slice %54 {offsets = [0, 0, 0, 0], sizes = [2, 12, 12, 8], strides = [1, 1, 1, 1]} : vector<2x14x14x8xf32> to vector<2x12x12x8xf32>
    %57 = vector.extract_strided_slice %54 {offsets = [0, 0, 1, 0], sizes = [2, 12, 12, 8], strides = [1, 1, 1, 1]} : vector<2x14x14x8xf32> to vector<2x12x12x8xf32>
    %58 = vector.extract_strided_slice %54 {offsets = [0, 0, 2, 0], sizes = [2, 12, 12, 8], strides = [1, 1, 1, 1]} : vector<2x14x14x8xf32> to vector<2x12x12x8xf32>
    %59 = tpu.concatenate %56, %57, %58 in 3 : vector<2x12x12x8xf32>, vector<2x12x12x8xf32>, vector<2x12x12x8xf32> -> vector<2x12x12x24xf32>
    %60 = vector.shape_cast %59 : vector<2x12x12x24xf32> to vector<288x24xf32>
    %61 = vector.extract_strided_slice %1 {offsets = [0, 0, 0], sizes = [1, 24, 128], strides = [1, 1, 1]} : vector<3x24x128xf32> to vector<1x24x128xf32>
    %62 = vector.shape_cast %61 : vector<1x24x128xf32> to vector<24x128xf32>
    %cst_22 = arith.constant dense<0.000000e+00> : vector<288x128xf32>
    %63 = tpu.matmul %60, %62, %cst_22 {dimension_numbers = #tpu.dot_dimension_numbers<[1], [0], [0], [1], [0, 0, 1, 1], [], []>} : vector<288x24xf32>, vector<24x128xf32>, vector<288x128xf32> -> vector<288x128xf32>
    %64 = arith.addf %55, %63 : vector<288x128xf32>
    %65 = vector.extract_strided_slice %54 {offsets = [0, 1, 0, 0], sizes = [2, 12, 12, 8], strides = [1, 1, 1, 1]} : vector<2x14x14x8xf32> to vector<2x12x12x8xf32>
    %66 = vector.extract_strided_slice %54 {offsets = [0, 1, 1, 0], sizes = [2, 12, 12, 8], strides = [1, 1, 1, 1]} : vector<2x14x14x8xf32> to vector<2x12x12x8xf32>
    %67 = vector.extract_strided_slice %54 {offsets = [0, 1, 2, 0], sizes = [2, 12, 12, 8], strides = [1, 1, 1, 1]} : vector<2x14x14x8xf32> to vector<2x12x12x8xf32>
    %68 = tpu.concatenate %65, %66, %67 in 3 : vector<2x12x12x8xf32>, vector<2x12x12x8xf32>, vector<2x12x12x8xf32> -> vector<2x12x12x24xf32>
    %69 = vector.shape_cast %68 : vector<2x12x12x24xf32> to vector<288x24xf32>
    %70 = vector.extract_strided_slice %1 {offsets = [1, 0, 0], sizes = [1, 24, 128], strides = [1, 1, 1]} : vector<3x24x128xf32> to vector<1x24x128xf32>
    %71 = vector.shape_cast %70 : vector<1x24x128xf32> to vector<24x128xf32>
    %cst_23 = arith.constant dense<0.000000e+00> : vector<288x128xf32>
    %72 = tpu.matmul %69, %71, %cst_23 {dimension_numbers = #tpu.dot_dimension_numbers<[1], [0], [0], [1], [0, 0, 1, 1], [], []>} : vector<288x24xf32>, vector<24x128xf32>, vector<288x128xf32> -> vector<288x128xf32>
    %73 = arith.addf %64, %72 : vector<288x128xf32>
    %74 = vector.extract_strided_slice %54 {offsets = [0, 2, 0, 0], sizes = [2, 12, 12, 8], strides = [1, 1, 1, 1]} : vector<2x14x14x8xf32> to vector<2x12x12x8xf32>
    %75 = vector.extract_strided_slice %54 {offsets = [0, 2, 1, 0], sizes = [2, 12, 12, 8], strides = [1, 1, 1, 1]} : vector<2x14x14x8xf32> to vector<2x12x12x8xf32>
    %76 = vector.extract_strided_slice %54 {offsets = [0, 2, 2, 0], sizes = [2, 12, 12, 8], strides = [1, 1, 1, 1]} : vector<2x14x14x8xf32> to vector<2x12x12x8xf32>
    %77 = tpu.concatenate %74, %75, %76 in 3 : vector<2x12x12x8xf32>, vector<2x12x12x8xf32>, vector<2x12x12x8xf32> -> vector<2x12x12x24xf32>
    %78 = vector.shape_cast %77 : vector<2x12x12x24xf32> to vector<288x24xf32>
    %79 = vector.extract_strided_slice %1 {offsets = [2, 0, 0], sizes = [1, 24, 128], strides = [1, 1, 1]} : vector<3x24x128xf32> to vector<1x24x128xf32>
    %80 = vector.shape_cast %79 : vector<1x24x128xf32> to vector<24x128xf32>
    %cst_24 = arith.constant dense<0.000000e+00> : vector<288x128xf32>
    %81 = tpu.matmul %78, %80, %cst_24 {dimension_numbers = #tpu.dot_dimension_numbers<[1], [0], [0], [1], [0, 0, 1, 1], [], []>} : vector<288x24xf32>, vector<24x128xf32>, vector<288x128xf32> -> vector<288x128xf32>
    %82 = arith.addf %73, %81 : vector<288x128xf32>
    %c2 = arith.constant 2 : index
    %c0_25 = arith.constant 0 : index
    %83 = vector.load %arg3[%c2, %c0_25] : memref<4x128xf32, #tpu.memory_space<vmem>>, vector<1x128xf32>
    %c3 = arith.constant 3 : index
    %c0_26 = arith.constant 0 : index
    %84 = vector.load %arg3[%c3, %c0_26] : memref<4x128xf32, #tpu.memory_space<vmem>>, vector<1x128xf32>
    %cst_27 = arith.constant dense<0.000000e+00> : vector<128xf32>
    %85 = vector.multi_reduction <add>, %82, %cst_27 [0] : vector<288x128xf32> to vector<128xf32>
    %86 = vector.shape_cast %85 : vector<128xf32> to vector<1x128xf32>
    %cst_28 = arith.constant 0.00347222225 : f32
    %87 = vector.broadcast %cst_28 : f32 to vector<1x128xf32>
    %88 = arith.mulf %86, %87 : vector<1x128xf32>
    %89 = vector.broadcast %88 : vector<1x128xf32> to vector<288x128xf32>
    %90 = arith.subf %82, %89 : vector<288x128xf32>
    %91 = arith.mulf %90, %90 : vector<288x128xf32>
    %cst_29 = arith.constant dense<0.000000e+00> : vector<128xf32>
    %92 = vector.multi_reduction <add>, %91, %cst_29 [0] : vector<288x128xf32> to vector<128xf32>
    %93 = vector.shape_cast %92 : vector<128xf32> to vector<1x128xf32>
    %cst_30 = arith.constant 0.00347222225 : f32
    %94 = vector.broadcast %cst_30 : f32 to vector<1x128xf32>
    %95 = arith.mulf %93, %94 : vector<1x128xf32>
    %cst_31 = arith.constant 9.99999974E-6 : f32
    %96 = vector.broadcast %cst_31 : f32 to vector<1x128xf32>
    %97 = arith.addf %95, %96 : vector<1x128xf32>
    %98 = math.rsqrt %97 : vector<1x128xf32>
    %99 = arith.mulf %83, %98 : vector<1x128xf32>
    %100 = vector.broadcast %99 : vector<1x128xf32> to vector<288x128xf32>
    %101 = arith.mulf %90, %100 : vector<288x128xf32>
    %102 = vector.broadcast %84 : vector<1x128xf32> to vector<288x128xf32>
    %103 = arith.addf %101, %102 : vector<288x128xf32>
    %cst_32 = arith.constant 0.000000e+00 : f32
    %104 = vector.broadcast %cst_32 : f32 to vector<288x128xf32>
    %105 = arith.maximumf %103, %104 : vector<288x128xf32>
    %c0_33 = arith.constant 0 : index
    %c0_34 = arith.constant 0 : index
    %106 = vector.load %arg4[%c0_33, %c0_34] : memref<288x128xf32, #tpu.memory_space<vmem>>, vector<288x128xf32>
    tpu.vector_store %arg4[%c0_33, %c0_34], %105 {strides = array<i32>} : memref<288x128xf32, #tpu.memory_space<vmem>>, vector<288x128xf32>,
    return
  }
}

</mosaic_0001>

<llo_original>
// kernel: tpu_custom_call.1
$region0: #{tpu_custom_call.1}
  #allocation0 [shape = 'u32[]', space=smem, size = 0x4, offset = 0x4, fixed_abs, tag = 'smem constant byte address 0x4 - core index']
  #allocation1 [shape = 'u32[144,128]{1,0:T(1,128)}', space=vmem, size = 0x12000, scoped, tag = 'internal scratch']
  %s0 = inlined_call_operand.vmem [shape: f32[2,16,16,4], index: 0, kind: input, shape index: {}]
  %s1 = inlined_call_operand.vmem [shape: f32[3,12,8], index: 1, kind: input, shape index: {}]
  %s2 = inlined_call_operand.vmem [shape: f32[3,24,128], index: 2, kind: input, shape index: {}]
  %s3 = inlined_call_operand.vmem [shape: f32[4,128], index: 3, kind: input, shape index: {}]
  %s4 = inlined_call_operand.hbm [shape: f32[288,128], index: 4, kind: output, shape index: {}]
  %s5 = sld [smem:[#allocation0]]
  $region26: #{tpu_custom_call.1} parent=0
    _
  %s7 = ssub.s32 1, %s5
  %s8 = scalar_select 0, %s7, %s5
  $region1: #{tpu_custom_call.1} parent=0
    #allocation2 [shape = 'u8[147456]{0}', space=vmem, size = 0x24000, scoped, tag = 'output window, operand 0, single buffered']
    #allocation3 [shape = 's32[1]{0}', space=sflag, size = 0x4, scoped, tag = 'scoped memory for tpu_custom_call.1']
    %9 = vsyncpa [#allocation3], 0
    // Predicated region
    $region2: #{tpu_custom_call.1} parent=1 // pred_check
      _
    $region3: #{tpu_custom_call.1} parent=1 // pred_check_branch
      %11 = sbr.rel (0) target = $region5
    $region4: #{tpu_custom_call.1} parent=1 // pred_region
      _
    $region5: #{tpu_custom_call.1} parent=1 // pred_fallthru
      _
    // Predicated region
    $region6: #{tpu_custom_call.1} parent=1 // pred_check
      _
    $region7: #{tpu_custom_call.1} parent=1 // pred_check_branch
      %13 = sbr.rel (0) target = $region9
    $region8: #{tpu_custom_call.1} parent=1 // pred_region
      _
    $region9: #{tpu_custom_call.1} parent=1 // pred_fallthru
      _
    // Predicated region
    $region10: #{tpu_custom_call.1} parent=1 // pred_check
      _
    $region11: #{tpu_custom_call.1} parent=1 // pred_check_branch
      %15 = sbr.rel (0) target = $region13
    $region12: #{tpu_custom_call.1} parent=1 // pred_region
      _
    $region13: #{tpu_custom_call.1} parent=1 // pred_fallthru
      _
    // Predicated region
    $region14: #{tpu_custom_call.1} parent=1 // pred_check
      _
    $region15: #{tpu_custom_call.1} parent=1 // pred_check_branch
      %17 = sbr.rel (0) target = $region17
    $region16: #{tpu_custom_call.1} parent=1 // pred_region
      _
    $region17: #{tpu_custom_call.1} parent=1 // pred_fallthru
      _
    %v18 = vld [vmem:[%s1] sm:$0xff]
    %v19 = vld [vmem:[%s1 + $0x8] sm:$0xf]
    %v20 = vld [vmem:[%s1 + $0x10] sm:$0xff]
    %v21 = vld [vmem:[%s1 + $0x18] sm:$0xf]
    %v22 = vld [vmem:[%s1 + $0x20] sm:$0xff]
    %v23 = vld [vmem:[%s1 + $0x28] sm:$0xf]
    %v24 = vld [vmem:[%s2] sm:$0xff]
    %v25 = vld [vmem:[%s2 + $0x8] sm:$0xff]
    %v26 = vld [vmem:[%s2 + $0x10] sm:$0xff]
    %v27 = vld [vmem:[%s2 + $0x18] sm:$0xff]
    %v28 = vld [vmem:[%s2 + $0x20] sm:$0xff]
    %v29 = vld [vmem:[%s2 + $0x28] sm:$0xff]
    %v30 = vld [vmem:[%s2 + $0x30] sm:$0xff]
    %v31 = vld [vmem:[%s2 + $0x38] sm:$0xff]
    %v32 = vld [vmem:[%s2 + $0x40] sm:$0xff]
    %v33 = vld [vmem:[%s0] sm:$0xff]
    %v34 = vld [vmem:[%s0 + $0x8] sm:$0xff]
    %v35 = vld [vmem:[%s0 + $0x10] sm:$0xff]
    %v36 = vld [vmem:[%s0 + $0x18] sm:$0xff]
    %v37 = vld [vmem:[%s0 + $0x20] sm:$0xff]
    %v38 = vld [vmem:[%s0 + $0x28] sm:$0xff]
    %v39 = vld [vmem:[%s0 + $0x30] sm:$0xff]
    %v40 = vld [vmem:[%s0 + $0x38] sm:$0xff]
    %v41 = vld [vmem:[%s0 + $0x40] sm:$0xff]
    %v42 = vld [vmem:[%s0 + $0x48] sm:$0xff]
    %v43 = vld [vmem:[%s0 + $0x50] sm:$0xff]
    %v44 = vld [vmem:[%s0 + $0x58] sm:$0xff]
    %v45 = vld [vmem:[%s0 + $0x60] sm:$0xff]
    %v46 = vld [vmem:[%s0 + $0x68] sm:$0xff]
    %v47 = vld [vmem:[%s0 + $0x70] sm:$0xff]
    %v48 = vld [vmem:[%s0 + $0x78] sm:$0xff]
    %v49 = vld [vmem:[%s0 + $0x80] sm:$0xff]
    %v50 = vld [vmem:[%s0 + $0x88] sm:$0xff]
    %v51 = vld [vmem:[%s0 + $0x90] sm:$0xff]
    %v52 = vld [vmem:[%s0 + $0x98] sm:$0xff]
    %v53 = vld [vmem:[%s0 + $0xa0] sm:$0xff]
    %v54 = vld [vmem:[%s0 + $0xa8] sm:$0xff]
    %v55 = vld [vmem:[%s0 + $0xb0] sm:$0xff]
    %v56 = vld [vmem:[%s0 + $0xb8] sm:$0xff]
    %v57 = vld [vmem:[%s0 + $0xc0] sm:$0xff]
    %v58 = vld [vmem:[%s0 + $0xc8] sm:$0xff]
    %v59 = vld [vmem:[%s0 + $0xd0] sm:$0xff]
    %v60 = vld [vmem:[%s0 + $0xd8] sm:$0xff]
    %v61 = vld [vmem:[%s0 + $0xe0] sm:$0xff]
    %v62 = vld [vmem:[%s0 + $0xe8] sm:$0xff]
    %v63 = vld [vmem:[%s0 + $0xf0] sm:$0xff]
    %v64 = vld [vmem:[%s0 + $0xf8] sm:$0xff]
    %v65 = vld [vmem:[%s0 + $0x100] sm:$0xff]
    %v66 = vld [vmem:[%s0 + $0x108] sm:$0xff]
    %v67 = vld [vmem:[%s0 + $0x110] sm:$0xff]
    %v68 = vld [vmem:[%s0 + $0x118] sm:$0xff]
    %v69 = vld [vmem:[%s0 + $0x120] sm:$0xff]
    %v70 = vld [vmem:[%s0 + $0x128] sm:$0xff]
    %v71 = vld [vmem:[%s0 + $0x130] sm:$0xff]
    %v72 = vld [vmem:[%s0 + $0x138] sm:$0xff]
    %v73 = vld [vmem:[%s0 + $0x140] sm:$0xff]
    %v74 = vld [vmem:[%s0 + $0x148] sm:$0xff]
    %v75 = vld [vmem:[%s0 + $0x150] sm:$0xff]
    %v76 = vld [vmem:[%s0 + $0x158] sm:$0xff]
    %v77 = vld [vmem:[%s0 + $0x160] sm:$0xff]
    %v78 = vld [vmem:[%s0 + $0x168] sm:$0xff]
    %v79 = vld [vmem:[%s0 + $0x170] sm:$0xff]
    %v80 = vld [vmem:[%s0 + $0x178] sm:$0xff]
    %v81 = vld [vmem:[%s0 + $0x180] sm:$0xff]
    %v82 = vld [vmem:[%s0 + $0x188] sm:$0xff]
    %v83 = vld [vmem:[%s0 + $0x190] sm:$0xff]
    %v84 = vld [vmem:[%s0 + $0x198] sm:$0xff]
    %v85 = vld [vmem:[%s0 + $0x1a0] sm:$0xff]
    %v86 = vld [vmem:[%s0 + $0x1a8] sm:$0xff]
    %v87 = vld [vmem:[%s0 + $0x1b0] sm:$0xff]
    %v88 = vld [vmem:[%s0 + $0x1b8] sm:$0xff]
    %v89 = vld [vmem:[%s0 + $0x1c0] sm:$0xff]
    %v90 = vld [vmem:[%s0 + $0x1c8] sm:$0xff]
    %v91 = vld [vmem:[%s0 + $0x1d0] sm:$0xff]
    %v92 = vld [vmem:[%s0 + $0x1d8] sm:$0xff]
    %v93 = vld [vmem:[%s0 + $0x1e0] sm:$0xff]
    %v94 = vld [vmem:[%s0 + $0x1e8] sm:$0xff]
    %v95 = vld [vmem:[%s0 + $0x1f0] sm:$0xff]
    %v96 = vld [vmem:[%s0 + $0x1f8] sm:$0xff]
    %vm153 = vcmask 1046528
    %v154 = vrot.slane %v33, 1
    %v155 = vrot.slane %v34, 1
    %v156 = vsel %vm153, %v154, %v155
    %v157 = vrot.slane %v35, 1
    %v158 = vrot.slane %v36, 1
    %v159 = vsel %vm153, %v157, %v158
    %v160 = vrot.slane %v37, 1
    %v161 = vrot.slane %v38, 1
    %v162 = vsel %vm153, %v160, %v161
    %v163 = vrot.slane %v39, 1
    %v164 = vrot.slane %v40, 1
    %v165 = vsel %vm153, %v163, %v164
    %v166 = vrot.slane %v41, 1
    %v167 = vrot.slane %v42, 1
    %v168 = vsel %vm153, %v166, %v167
    %v169 = vrot.slane %v43, 1
    %v170 = vrot.slane %v44, 1
    %v171 = vsel %vm153, %v169, %v170
    %v172 = vrot.slane %v45, 1
    %v173 = vrot.slane %v46, 1
    %v174 = vsel %vm153, %v172, %v173
    %v175 = vrot.slane %v47, 1
    %v176 = vrot.slane %v48, 1
    %v177 = vsel %vm153, %v175, %v176
    %v178 = vrot.slane %v49, 1
    %v179 = vrot.slane %v50, 1
    %v180 = vsel %vm153, %v178, %v179
    %v181 = vrot.slane %v51, 1
    %v182 = vrot.slane %v52, 1
    %v183 = vsel %vm153, %v181, %v182
    %v184 = vrot.slane %v53, 1
    %v185 = vrot.slane %v54, 1
    %v186 = vsel %vm153, %v184, %v185
    %v187 = vrot.slane %v55, 1
    %v188 = vrot.slane %v56, 1
    %v189 = vsel %vm153, %v187, %v188
    %v190 = vrot.slane %v57, 1
    %v191 = vrot.slane %v58, 1
    %v192 = vsel %vm153, %v190, %v191
    %v193 = vrot.slane %v59, 1
    %v194 = vrot.slane %v60, 1
    %v195 = vsel %vm153, %v193, %v194
    %v196 = vrot.slane %v65, 1
    %v197 = vrot.slane %v66, 1
    %v198 = vsel %vm153, %v196, %v197
    %v199 = vrot.slane %v67, 1
    %v200 = vrot.slane %v68, 1
    %v201 = vsel %vm153, %v199, %v200
    %v202 = vrot.slane %v69, 1
    %v203 = vrot.slane %v70, 1
    %v204 = vsel %vm153, %v202, %v203
    %v205 = vrot.slane %v71, 1
    %v206 = vrot.slane %v72, 1
    %v207 = vsel %vm153, %v205, %v206
    %v208 = vrot.slane %v73, 1
    %v209 = vrot.slane %v74, 1
    %v210 = vsel %vm153, %v208, %v209
    %v211 = vrot.slane %v75, 1
    %v212 = vrot.slane %v76, 1
    %v213 = vsel %vm153, %v211, %v212
    %v214 = vrot.slane %v77, 1
    %v215 = vrot.slane %v78, 1
    %v216 = vsel %vm153, %v214, %v215
    %v217 = vrot.slane %v79, 1
    %v218 = vrot.slane %v80, 1
    %v219 = vsel %vm153, %v217, %v218
    %v220 = vrot.slane %v81, 1
    %v221 = vrot.slane %v82, 1
    %v222 = vsel %vm153, %v220, %v221
    %v223 = vrot.slane %v83, 1
    %v224 = vrot.slane %v84, 1
    %v225 = vsel %vm153, %v223, %v224
    %v226 = vrot.slane %v85, 1
    %v227 = vrot.slane %v86, 1
    %v228 = vsel %vm153, %v226, %v227
    %v229 = vrot.slane %v87, 1
    %v230 = vrot.slane %v88, 1
    %v231 = vsel %vm153, %v229, %v230
    %v232 = vrot.slane %v89, 1
    %v233 = vrot.slane %v90, 1
    %v234 = vsel %vm153, %v232, %v233
    %v235 = vrot.slane %v91, 1
    %v236 = vrot.slane %v92, 1
    %v237 = vsel %vm153, %v235, %v236
    %238 = vrot.lane.b32.xlu0 %v156, 4
    %v239 = vpop.permute.xlu0 %238
    %240 = vrot.lane.b32.xlu0 %v155, 4
    %v241 = vpop.permute.xlu0 %240
    %242 = vrot.lane.b32.xlu0 %v159, 4
    %v243 = vpop.permute.xlu0 %242
    %244 = vrot.lane.b32.xlu0 %v158, 4
    %v245 = vpop.permute.xlu0 %244
    %246 = vrot.lane.b32.xlu0 %v162, 4
    %v247 = vpop.permute.xlu0 %246
    %248 = vrot.lane.b32.xlu0 %v161, 4
    %v249 = vpop.permute.xlu0 %248
    %250 = vrot.lane.b32.xlu0 %v165, 4
    %v251 = vpop.permute.xlu0 %250
    %252 = vrot.lane.b32.xlu0 %v164, 4
    %v253 = vpop.permute.xlu0 %252
    %254 = vrot.lane.b32.xlu0 %v168, 4
    %v255 = vpop.permute.xlu0 %254
    %256 = vrot.lane.b32.xlu0 %v167, 4
    %v257 = vpop.permute.xlu0 %256
    %258 = vrot.lane.b32.xlu0 %v171, 4
    %v259 = vpop.permute.xlu0 %258
    %260 = vrot.lane.b32.xlu0 %v170, 4
    %v261 = vpop.permute.xlu0 %260
    %262 = vrot.lane.b32.xlu0 %v174, 4
    %v263 = vpop.permute.xlu0 %262
    %264 = vrot.lane.b32.xlu0 %v173, 4
    %v265 = vpop.permute.xlu0 %264
    %266 = vrot.lane.b32.xlu0 %v177, 4
    %v267 = vpop.permute.xlu0 %266
    %268 = vrot.lane.b32.xlu0 %v176, 4
    %v269 = vpop.permute.xlu0 %268
    %270 = vrot.lane.b32.xlu0 %v180, 4
    %v271 = vpop.permute.xlu0 %270
    %272 = vrot.lane.b32.xlu0 %v179, 4
    %v273 = vpop.permute.xlu0 %272
    %274 = vrot.lane.b32.xlu0 %v183, 4
    %v275 = vpop.permute.xlu0 %274
    %276 = vrot.lane.b32.xlu0 %v182, 4
    %v277 = vpop.permute.xlu0 %276
    %278 = vrot.lane.b32.xlu0 %v186, 4
    %v279 = vpop.permute.xlu0 %278
    %280 = vrot.lane.b32.xlu0 %v185, 4
    %v281 = vpop.permute.xlu0 %280
    %282 = vrot.lane.b32.xlu0 %v189, 4
    %v283 = vpop.permute.xlu0 %282
    %284 = vrot.lane.b32.xlu0 %v188, 4
    %v285 = vpop.permute.xlu0 %284
    %286 = vrot.lane.b32.xlu0 %v192, 4
    %v287 = vpop.permute.xlu0 %286
    %288 = vrot.lane.b32.xlu0 %v191, 4
    %v289 = vpop.permute.xlu0 %288
    %290 = vrot.lane.b32.xlu0 %v195, 4
    %v291 = vpop.permute.xlu0 %290
    %292 = vrot.lane.b32.xlu0 %v194, 4
    %v293 = vpop.permute.xlu0 %292
    %294 = vrot.lane.b32.xlu0 %v198, 4
    %v295 = vpop.permute.xlu0 %294
    %296 = vrot.lane.b32.xlu0 %v197, 4
    %v297 = vpop.permute.xlu0 %296
    %298 = vrot.lane.b32.xlu0 %v201, 4
    %v299 = vpop.permute.xlu0 %298
    %300 = vrot.lane.b32.xlu0 %v200, 4
    %v301 = vpop.permute.xlu0 %300
    %302 = vrot.lane.b32.xlu0 %v204, 4
    %v303 = vpop.permute.xlu0 %302
    %304 = vrot.lane.b32.xlu0 %v203, 4
    %v305 = vpop.permute.xlu0 %304
    %306 = vrot.lane.b32.xlu0 %v207, 4
    %v307 = vpop.permute.xlu0 %306
    %308 = vrot.lane.b32.xlu0 %v206, 4
    %v309 = vpop.permute.xlu0 %308
    %310 = vrot.lane.b32.xlu0 %v210, 4
    %v311 = vpop.permute.xlu0 %310
    %312 = vrot.lane.b32.xlu0 %v209, 4
    %v313 = vpop.permute.xlu0 %312
    %314 = vrot.lane.b32.xlu0 %v213, 4
    %v315 = vpop.permute.xlu0 %314
    %316 = vrot.lane.b32.xlu0 %v212, 4
    %v317 = vpop.permute.xlu0 %316
    %318 = vrot.lane.b32.xlu0 %v216, 4
    %v319 = vpop.permute.xlu0 %318
    %320 = vrot.lane.b32.xlu0 %v215, 4
    %v321 = vpop.permute.xlu0 %320
    %322 = vrot.lane.b32.xlu0 %v219, 4
    %v323 = vpop.permute.xlu0 %322
    %324 = vrot.lane.b32.xlu0 %v218, 4
    %v325 = vpop.permute.xlu0 %324
    %326 = vrot.lane.b32.xlu0 %v222, 4
    %v327 = vpop.permute.xlu0 %326
    %328 = vrot.lane.b32.xlu0 %v221, 4
    %v329 = vpop.permute.xlu0 %328
    %330 = vrot.lane.b32.xlu0 %v225, 4
    %v331 = vpop.permute.xlu0 %330
    %332 = vrot.lane.b32.xlu0 %v224, 4
    %v333 = vpop.permute.xlu0 %332
    %334 = vrot.lane.b32.xlu0 %v228, 4
    %v335 = vpop.permute.xlu0 %334
    %336 = vrot.lane.b32.xlu0 %v227, 4
    %v337 = vpop.permute.xlu0 %336
    %338 = vrot.lane.b32.xlu0 %v231, 4
    %v339 = vpop.permute.xlu0 %338
    %340 = vrot.lane.b32.xlu0 %v230, 4
    %v341 = vpop.permute.xlu0 %340
    %342 = vrot.lane.b32.xlu0 %v234, 4
    %v343 = vpop.permute.xlu0 %342
    %344 = vrot.lane.b32.xlu0 %v233, 4
    %v345 = vpop.permute.xlu0 %344
    %346 = vrot.lane.b32.xlu0 %v237, 4
    %v347 = vpop.permute.xlu0 %346
    %348 = vrot.lane.b32.xlu0 %v236, 4
    %v349 = vpop.permute.xlu0 %348
    %vm406 = vcmask 1045504
    %v407 = vrot.slane %v33, 2
    %v408 = vrot.slane %v34, 2
    %v409 = vsel %vm406, %v407, %v408
    %v410 = vrot.slane %v35, 2
    %v411 = vrot.slane %v36, 2
    %v412 = vsel %vm406, %v410, %v411
    %v413 = vrot.slane %v37, 2
    %v414 = vrot.slane %v38, 2
    %v415 = vsel %vm406, %v413, %v414
    %v416 = vrot.slane %v39, 2
    %v417 = vrot.slane %v40, 2
    %v418 = vsel %vm406, %v416, %v417
    %v419 = vrot.slane %v41, 2
    %v420 = vrot.slane %v42, 2
    %v421 = vsel %vm406, %v419, %v420
    %v422 = vrot.slane %v43, 2
    %v423 = vrot.slane %v44, 2
    %v424 = vsel %vm406, %v422, %v423
    %v425 = vrot.slane %v45, 2
    %v426 = vrot.slane %v46, 2
    %v427 = vsel %vm406, %v425, %v426
    %v428 = vrot.slane %v47, 2
    %v429 = vrot.slane %v48, 2
    %v430 = vsel %vm406, %v428, %v429
    %v431 = vrot.slane %v49, 2
    %v432 = vrot.slane %v50, 2
    %v433 = vsel %vm406, %v431, %v432
    %v434 = vrot.slane %v51, 2
    %v435 = vrot.slane %v52, 2
    %v436 = vsel %vm406, %v434, %v435
    %v437 = vrot.slane %v53, 2
    %v438 = vrot.slane %v54, 2
    %v439 = vsel %vm406, %v437, %v438
    %v440 = vrot.slane %v55, 2
    %v441 = vrot.slane %v56, 2
    %v442 = vsel %vm406, %v440, %v441
    %v443 = vrot.slane %v57, 2
    %v444 = vrot.slane %v58, 2
    %v445 = vsel %vm406, %v443, %v444
    %v446 = vrot.slane %v59, 2
    %v447 = vrot.slane %v60, 2
    %v448 = vsel %vm406, %v446, %v447
    %v449 = vrot.slane %v65, 2
    %v450 = vrot.slane %v66, 2
    %v451 = vsel %vm406, %v449, %v450
    %v452 = vrot.slane %v67, 2
    %v453 = vrot.slane %v68, 2
    %v454 = vsel %vm406, %v452, %v453
    %v455 = vrot.slane %v69, 2
    %v456 = vrot.slane %v70, 2
    %v457 = vsel %vm406, %v455, %v456
    %v458 = vrot.slane %v71, 2
    %v459 = vrot.slane %v72, 2
    %v460 = vsel %vm406, %v458, %v459
    %v461 = vrot.slane %v73, 2
    %v462 = vrot.slane %v74, 2
    %v463 = vsel %vm406, %v461, %v462
    %v464 = vrot.slane %v75, 2
    %v465 = vrot.slane %v76, 2
    %v466 = vsel %vm406, %v464, %v465
    %v467 = vrot.slane %v77, 2
    %v468 = vrot.slane %v78, 2
    %v469 = vsel %vm406, %v467, %v468
    %v470 = vrot.slane %v79, 2
    %v471 = vrot.slane %v80, 2
    %v472 = vsel %vm406, %v470, %v471
    %v473 = vrot.slane %v81, 2
    %v474 = vrot.slane %v82, 2
    %v475 = vsel %vm406, %v473, %v474
    %v476 = vrot.slane %v83, 2
    %v477 = vrot.slane %v84, 2
    %v478 = vsel %vm406, %v476, %v477
    %v479 = vrot.slane %v85, 2
    %v480 = vrot.slane %v86, 2
    %v481 = vsel %vm406, %v479, %v480
    %v482 = vrot.slane %v87, 2
    %v483 = vrot.slane %v88, 2
    %v484 = vsel %vm406, %v482, %v483
    %v485 = vrot.slane %v89, 2
    %v486 = vrot.slane %v90, 2
    %v487 = vsel %vm406, %v485, %v486
    %v488 = vrot.slane %v91, 2
    %v489 = vrot.slane %v92, 2
    %v490 = vsel %vm406, %v488, %v489
    %491 = vrot.lane.b32.xlu0 %v409, 8
    %v492 = vpop.permute.xlu0 %491
    %493 = vrot.lane.b32.xlu0 %v408, 8
    %v494 = vpop.permute.xlu0 %493
    %495 = vrot.lane.b32.xlu0 %v412, 8
    %v496 = vpop.permute.xlu0 %495
    %497 = vrot.lane.b32.xlu0 %v411, 8
    %v498 = vpop.permute.xlu0 %497
    %499 = vrot.lane.b32.xlu0 %v415, 8
    %v500 = vpop.permute.xlu0 %499
    %501 = vrot.lane.b32.xlu0 %v414, 8
    %v502 = vpop.permute.xlu0 %501
    %503 = vrot.lane.b32.xlu0 %v418, 8
    %v504 = vpop.permute.xlu0 %503
    %505 = vrot.lane.b32.xlu0 %v417, 8
    %v506 = vpop.permute.xlu0 %505
    %507 = vrot.lane.b32.xlu0 %v421, 8
    %v508 = vpop.permute.xlu0 %507
    %509 = vrot.lane.b32.xlu0 %v420, 8
    %v510 = vpop.permute.xlu0 %509
    %511 = vrot.lane.b32.xlu0 %v424, 8
    %v512 = vpop.permute.xlu0 %511
    %513 = vrot.lane.b32.xlu0 %v423, 8
    %v514 = vpop.permute.xlu0 %513
    %515 = vrot.lane.b32.xlu0 %v427, 8
    %v516 = vpop.permute.xlu0 %515
    %517 = vrot.lane.b32.xlu0 %v426, 8
    %v518 = vpop.permute.xlu0 %517
    %519 = vrot.lane.b32.xlu0 %v430, 8
    %v520 = vpop.permute.xlu0 %519
    %521 = vrot.lane.b32.xlu0 %v429, 8
    %v522 = vpop.permute.xlu0 %521
    %523 = vrot.lane.b32.xlu0 %v433, 8
    %v524 = vpop.permute.xlu0 %523
    %525 = vrot.lane.b32.xlu0 %v432, 8
    %v526 = vpop.permute.xlu0 %525
    %527 = vrot.lane.b32.xlu0 %v436, 8
    %v528 = vpop.permute.xlu0 %527
    %529 = vrot.lane.b32.xlu0 %v435, 8
    %v530 = vpop.permute.xlu0 %529
    %531 = vrot.lane.b32.xlu0 %v439, 8
    %v532 = vpop.permute.xlu0 %531
    %533 = vrot.lane.b32.xlu0 %v438, 8
    %v534 = vpop.permute.xlu0 %533
    %535 = vrot.lane.b32.xlu0 %v442, 8
    %v536 = vpop.permute.xlu0 %535
    %537 = vrot.lane.b32.xlu0 %v441, 8
    %v538 = vpop.permute.xlu0 %537
    %539 = vrot.lane.b32.xlu0 %v445, 8
    %v540 = vpop.permute.xlu0 %539
    %541 = vrot.lane.b32.xlu0 %v444, 8
    %v542 = vpop.permute.xlu0 %541
    %543 = vrot.lane.b32.xlu0 %v448, 8
    %v544 = vpop.permute.xlu0 %543
    %545 = vrot.lane.b32.xlu0 %v447, 8
    %v546 = vpop.permute.xlu0 %545
    %547 = vrot.lane.b32.xlu0 %v451, 8
    %v548 = vpop.permute.xlu0 %547
    %549 = vrot.lane.b32.xlu0 %v450, 8
    %v550 = vpop.permute.xlu0 %549
    %551 = vrot.lane.b32.xlu0 %v454, 8
    %v552 = vpop.permute.xlu0 %551
    %553 = vrot.lane.b32.xlu0 %v453, 8
    %v554 = vpop.permute.xlu0 %553
    %555 = vrot.lane.b32.xlu0 %v457, 8
    %v556 = vpop.permute.xlu0 %555
    %557 = vrot.lane.b32.xlu0 %v456, 8
    %v558 = vpop.permute.xlu0 %557
    %559 = vrot.lane.b32.xlu0 %v460, 8
    %v560 = vpop.permute.xlu0 %559
    %561 = vrot.lane.b32.xlu0 %v459, 8
    %v562 = vpop.permute.xlu0 %561
    %563 = vrot.lane.b32.xlu0 %v463, 8
    %v564 = vpop.permute.xlu0 %563
    %565 = vrot.lane.b32.xlu0 %v462, 8
    %v566 = vpop.permute.xlu0 %565
    %567 = vrot.lane.b32.xlu0 %v466, 8
    %v568 = vpop.permute.xlu0 %567
    %569 = vrot.lane.b32.xlu0 %v465, 8
    %v570 = vpop.permute.xlu0 %569
    %571 = vrot.lane.b32.xlu0 %v469, 8
    %v572 = vpop.permute.xlu0 %571
    %573 = vrot.lane.b32.xlu0 %v468, 8
    %v574 = vpop.permute.xlu0 %573
    %575 = vrot.lane.b32.xlu0 %v472, 8
    %v576 = vpop.permute.xlu0 %575
    %577 = vrot.lane.b32.xlu0 %v471, 8
    %v578 = vpop.permute.xlu0 %577
    %579 = vrot.lane.b32.xlu0 %v475, 8
    %v580 = vpop.permute.xlu0 %579
    %581 = vrot.lane.b32.xlu0 %v474, 8
    %v582 = vpop.permute.xlu0 %581
    %583 = vrot.lane.b32.xlu0 %v478, 8
    %v584 = vpop.permute.xlu0 %583
    %585 = vrot.lane.b32.xlu0 %v477, 8
    %v586 = vpop.permute.xlu0 %585
    %587 = vrot.lane.b32.xlu0 %v481, 8
    %v588 = vpop.permute.xlu0 %587
    %589 = vrot.lane.b32.xlu0 %v480, 8
    %v590 = vpop.permute.xlu0 %589
    %591 = vrot.lane.b32.xlu0 %v484, 8
    %v592 = vpop.permute.xlu0 %591
    %593 = vrot.lane.b32.xlu0 %v483, 8
    %v594 = vpop.permute.xlu0 %593
    %595 = vrot.lane.b32.xlu0 %v487, 8
    %v596 = vpop.permute.xlu0 %595
    %597 = vrot.lane.b32.xlu0 %v486, 8
    %v598 = vpop.permute.xlu0 %597
    %599 = vrot.lane.b32.xlu0 %v490, 8
    %v600 = vpop.permute.xlu0 %599
    %601 = vrot.lane.b32.xlu0 %v489, 8
    %v602 = vpop.permute.xlu0 %601
    %vm659 = vcmask 31744
    %v660 = vsel %vm659, %v33, %v239
    %v661 = vsel %vm659, %v34, %v241
    %v662 = vsel %vm659, %v35, %v243
    %v663 = vsel %vm659, %v36, %v245
    %v664 = vsel %vm659, %v37, %v247
    %v665 = vsel %vm659, %v38, %v249
    %v666 = vsel %vm659, %v39, %v251
    %v667 = vsel %vm659, %v40, %v253
    %v668 = vsel %vm659, %v41, %v255
    %v669 = vsel %vm659, %v42, %v257
    %v670 = vsel %vm659, %v43, %v259
    %v671 = vsel %vm659, %v44, %v261
    %v672 = vsel %vm659, %v45, %v263
    %v673 = vsel %vm659, %v46, %v265
    %v674 = vsel %vm659, %v47, %v267
    %v675 = vsel %vm659, %v48, %v269
    %v676 = vsel %vm659, %v49, %v271
    %v677 = vsel %vm659, %v50, %v273
    %v678 = vsel %vm659, %v51, %v275
    %v679 = vsel %vm659, %v52, %v277
    %v680 = vsel %vm659, %v53, %v279
    %v681 = vsel %vm659, %v54, %v281
    %v682 = vsel %vm659, %v55, %v283
    %v683 = vsel %vm659, %v56, %v285
    %v684 = vsel %vm659, %v57, %v287
    %v685 = vsel %vm659, %v58, %v289
    %v686 = vsel %vm659, %v59, %v291
    %v687 = vsel %vm659, %v60, %v293
    %v688 = vsel %vm659, %v65, %v295
    %v689 = vsel %vm659, %v66, %v297
    %v690 = vsel %vm659, %v67, %v299
    %v691 = vsel %vm659, %v68, %v301
    %v692 = vsel %vm659, %v69, %v303
    %v693 = vsel %vm659, %v70, %v305
    %v694 = vsel %vm659, %v71, %v307
    %v695 = vsel %vm659, %v72, %v309
    %v696 = vsel %vm659, %v73, %v311
    %v697 = vsel %vm659, %v74, %v313
    %v698 = vsel %vm659, %v75, %v315
    %v699 = vsel %vm659, %v76, %v317
    %v700 = vsel %vm659, %v77, %v319
    %v701 = vsel %vm659, %v78, %v321
    %v702 = vsel %vm659, %v79, %v323
    %v703 = vsel %vm659, %v80, %v325
    %v704 = vsel %vm659, %v81, %v327
    %v705 = vsel %vm659, %v82, %v329
    %v706 = vsel %vm659, %v83, %v331
    %v707 = vsel %vm659, %v84, %v333
    %v708 = vsel %vm659, %v85, %v335
    %v709 = vsel %vm659, %v86, %v337
    %v710 = vsel %vm659, %v87, %v339
    %v711 = vsel %vm659, %v88, %v341
    %v712 = vsel %vm659, %v89, %v343
    %v713 = vsel %vm659, %v90, %v345
    %v714 = vsel %vm659, %v91, %v347
    %v715 = vsel %vm659, %v92, %v349
    %vm716 = vcmask 64512
    %v717 = vsel %vm716, %v660, %v492
    %v718 = vsel %vm716, %v661, %v494
    %v719 = vsel %vm716, %v662, %v496
    %v720 = vsel %vm716, %v663, %v498
    %v721 = vsel %vm716, %v664, %v500
    %v722 = vsel %vm716, %v665, %v502
    %v723 = vsel %vm716, %v666, %v504
    %v724 = vsel %vm716, %v667, %v506
    %v725 = vsel %vm716, %v668, %v508
    %v726 = vsel %vm716, %v669, %v510
    %v727 = vsel %vm716, %v670, %v512
    %v728 = vsel %vm716, %v671, %v514
    %v729 = vsel %vm716, %v672, %v516
    %v730 = vsel %vm716, %v673, %v518
    %v731 = vsel %vm716, %v674, %v520
    %v732 = vsel %vm716, %v675, %v522
    %v733 = vsel %vm716, %v676, %v524
    %v734 = vsel %vm716, %v677, %v526
    %v735 = vsel %vm716, %v678, %v528
    %v736 = vsel %vm716, %v679, %v530
    %v737 = vsel %vm716, %v680, %v532
    %v738 = vsel %vm716, %v681, %v534
    %v739 = vsel %vm716, %v682, %v536
    %v740 = vsel %vm716, %v683, %v538
    %v741 = vsel %vm716, %v684, %v540
    %v742 = vsel %vm716, %v685, %v542
    %v743 = vsel %vm716, %v686, %v544
    %v744 = vsel %vm716, %v687, %v546
    %v745 = vsel %vm716, %v688, %v548
    %v746 = vsel %vm716, %v689, %v550
    %v747 = vsel %vm716, %v690, %v552
    %v748 = vsel %vm716, %v691, %v554
    %v749 = vsel %vm716, %v692, %v556
    %v750 = vsel %vm716, %v693, %v558
    %v751 = vsel %vm716, %v694, %v560
    %v752 = vsel %vm716, %v695, %v562
    %v753 = vsel %vm716, %v696, %v564
    %v754 = vsel %vm716, %v697, %v566
    %v755 = vsel %vm716, %v698, %v568
    %v756 = vsel %vm716, %v699, %v570
    %v757 = vsel %vm716, %v700, %v572
    %v758 = vsel %vm716, %v701, %v574
    %v759 = vsel %vm716, %v702, %v576
    %v760 = vsel %vm716, %v703, %v578
    %v761 = vsel %vm716, %v704, %v580
    %v762 = vsel %vm716, %v705, %v582
    %v763 = vsel %vm716, %v706, %v584
    %v764 = vsel %vm716, %v707, %v586
    %v765 = vsel %vm716, %v708, %v588
    %v766 = vsel %vm716, %v709, %v590
    %v767 = vsel %vm716, %v710, %v592
    %v768 = vsel %vm716, %v711, %v594
    %v769 = vsel %vm716, %v712, %v596
    %v770 = vsel %vm716, %v713, %v598
    %v771 = vsel %vm716, %v714, %v600
    %v772 = vsel %vm716, %v715, %v602
    %v829 = vcombine.high %v717, %v717
    %v831 = vunpack.c.l.s4 1983009808
    %v832 = vunpack.c.0.s8 %v831
    %v833 = vlaneseq
    %v834 = vshrl.u32 %v833, 7
    %v835 = vsub.s32 %v832, %v834
    %v836 = vrot.slane %v717, %v835
    %v838 = vunpack.c.l.s4 1983009808
    %v839 = vunpack.c.0.s8 %v838
    %v840 = vlaneseq
    %v841 = vshrl.u32 %v840, 7
    %v842 = vsub.s32 %v839, %v841
    %v843 = vrot.slane %v829, %v842
    %v844 = vcombine.high %v836, %v836
    %v845 = vcombine.high %v843, %v843
    %v846 = vcombine.high %v718, %v718
    %v848 = vunpack.c.l.s4 1983009808
    %v849 = vunpack.c.0.s8 %v848
    %v850 = vlaneseq
    %v851 = vshrl.u32 %v850, 7
    %v852 = vsub.s32 %v849, %v851
    %v853 = vrot.slane %v718, %v852
    %v855 = vunpack.c.l.s4 1983009808
    %v856 = vunpack.c.0.s8 %v855
    %v857 = vlaneseq
    %v858 = vshrl.u32 %v857, 7
    %v859 = vsub.s32 %v856, %v858
    %v860 = vrot.slane %v846, %v859
    %v861 = vcombine.high %v853, %v853
    %v862 = vcombine.high %v719, %v719
    %v864 = vunpack.c.l.s4 1983009808
    %v865 = vunpack.c.0.s8 %v864
    %v866 = vlaneseq
    %v867 = vshrl.u32 %v866, 7
    %v868 = vsub.s32 %v865, %v867
    %v869 = vrot.slane %v719, %v868
    %v871 = vunpack.c.l.s4 1983009808
    %v872 = vunpack.c.0.s8 %v871
    %v873 = vlaneseq
    %v874 = vshrl.u32 %v873, 7
    %v875 = vsub.s32 %v872, %v874
    %v876 = vrot.slane %v862, %v875
    %v877 = vcombine.high %v869, %v869
    %v878 = vcombine.high %v876, %v876
    %v879 = vcombine.high %v720, %v720
    %v881 = vunpack.c.l.s4 1983009808
    %v882 = vunpack.c.0.s8 %v881
    %v883 = vlaneseq
    %v884 = vshrl.u32 %v883, 7
    %v885 = vsub.s32 %v882, %v884
    %v886 = vrot.slane %v720, %v885
    %v888 = vunpack.c.l.s4 1983009808
    %v889 = vunpack.c.0.s8 %v888
    %v890 = vlaneseq
    %v891 = vshrl.u32 %v890, 7
    %v892 = vsub.s32 %v889, %v891
    %v893 = vrot.slane %v879, %v892
    %v894 = vcombine.high %v886, %v886
    %v895 = vcombine.high %v721, %v721
    %v897 = vunpack.c.l.s4 1983009808
    %v898 = vunpack.c.0.s8 %v897
    %v899 = vlaneseq
    %v900 = vshrl.u32 %v899, 7
    %v901 = vsub.s32 %v898, %v900
    %v902 = vrot.slane %v721, %v901
    %v904 = vunpack.c.l.s4 1983009808
    %v905 = vunpack.c.0.s8 %v904
    %v906 = vlaneseq
    %v907 = vshrl.u32 %v906, 7
    %v908 = vsub.s32 %v905, %v907
    %v909 = vrot.slane %v895, %v908
    %v910 = vcombine.high %v902, %v902
    %v911 = vcombine.high %v909, %v909
    %v912 = vcombine.high %v722, %v722
    %v914 = vunpack.c.l.s4 1983009808
    %v915 = vunpack.c.0.s8 %v914
    %v916 = vlaneseq
    %v917 = vshrl.u32 %v916, 7
    %v918 = vsub.s32 %v915, %v917
    %v919 = vrot.slane %v722, %v918
    %v921 = vunpack.c.l.s4 1983009808
    %v922 = vunpack.c.0.s8 %v921
    %v923 = vlaneseq
    %v924 = vshrl.u32 %v923, 7
    %v925 = vsub.s32 %v922, %v924
    %v926 = vrot.slane %v912, %v925
    %v927 = vcombine.high %v919, %v919
    %v928 = vcombine.high %v723, %v723
    %v930 = vunpack.c.l.s4 1983009808
    %v931 = vunpack.c.0.s8 %v930
    %v932 = vlaneseq
    %v933 = vshrl.u32 %v932, 7
    %v934 = vsub.s32 %v931, %v933
    %v935 = vrot.slane %v723, %v934
    %v937 = vunpack.c.l.s4 1983009808
    %v938 = vunpack.c.0.s8 %v937
    %v939 = vlaneseq
    %v940 = vshrl.u32 %v939, 7
    %v941 = vsub.s32 %v938, %v940
    %v942 = vrot.slane %v928, %v941
    %v943 = vcombine.high %v935, %v935
    %v944 = vcombine.high %v942, %v942
    %v945 = vcombine.high %v724, %v724
    %v947 = vunpack.c.l.s4 1983009808
    %v948 = vunpack.c.0.s8 %v947
    %v949 = vlaneseq
    %v950 = vshrl.u32 %v949, 7
    %v951 = vsub.s32 %v948, %v950
    %v952 = vrot.slane %v724, %v951
    %v954 = vunpack.c.l.s4 1983009808
    %v955 = vunpack.c.0.s8 %v954
    %v956 = vlaneseq
    %v957 = vshrl.u32 %v956, 7
    %v958 = vsub.s32 %v955, %v957
    %v959 = vrot.slane %v945, %v958
    %v960 = vcombine.high %v952, %v952
    %v961 = vcombine.high %v725, %v725
    %v963 = vunpack.c.l.s4 1983009808
    %v964 = vunpack.c.0.s8 %v963
    %v965 = vlaneseq
    %v966 = vshrl.u32 %v965, 7
    %v967 = vsub.s32 %v964, %v966
    %v968 = vrot.slane %v725, %v967
    %v970 = vunpack.c.l.s4 1983009808
    %v971 = vunpack.c.0.s8 %v970
    %v972 = vlaneseq
    %v973 = vshrl.u32 %v972, 7
    %v974 = vsub.s32 %v971, %v973
    %v975 = vrot.slane %v961, %v974
    %v976 = vcombine.high %v968, %v968
    %v977 = vcombine.high %v975, %v975
    %v978 = vcombine.high %v726, %v726
    %v980 = vunpack.c.l.s4 1983009808
    %v981 = vunpack.c.0.s8 %v980
    %v982 = vlaneseq
    %v983 = vshrl.u32 %v982, 7
    %v984 = vsub.s32 %v981, %v983
    %v985 = vrot.slane %v726, %v984
    %v987 = vunpack.c.l.s4 1983009808
    %v988 = vunpack.c.0.s8 %v987
    %v989 = vlaneseq
    %v990 = vshrl.u32 %v989, 7
    %v991 = vsub.s32 %v988, %v990
    %v992 = vrot.slane %v978, %v991
    %v993 = vcombine.high %v985, %v985
    %v994 = vcombine.high %v727, %v727
    %v996 = vunpack.c.l.s4 1983009808
    %v997 = vunpack.c.0.s8 %v996
    %v998 = vlaneseq
    %v999 = vshrl.u32 %v998, 7
    %v1000 = vsub.s32 %v997, %v999
    %v1001 = vrot.slane %v727, %v1000
    %v1003 = vunpack.c.l.s4 1983009808
    %v1004 = vunpack.c.0.s8 %v1003
    %v1005 = vlaneseq
    %v1006 = vshrl.u32 %v1005, 7
    %v1007 = vsub.s32 %v1004, %v1006
    %v1008 = vrot.slane %v994, %v1007
    %v1009 = vcombine.high %v1001, %v1001
    %v1010 = vcombine.high %v1008, %v1008
    %v1011 = vcombine.high %v728, %v728
    %v1013 = vunpack.c.l.s4 1983009808
    %v1014 = vunpack.c.0.s8 %v1013
    %v1015 = vlaneseq
    %v1016 = vshrl.u32 %v1015, 7
    %v1017 = vsub.s32 %v1014, %v1016
    %v1018 = vrot.slane %v728, %v1017
    %v1020 = vunpack.c.l.s4 1983009808
    %v1021 = vunpack.c.0.s8 %v1020
    %v1022 = vlaneseq
    %v1023 = vshrl.u32 %v1022, 7
    %v1024 = vsub.s32 %v1021, %v1023
    %v1025 = vrot.slane %v1011, %v1024
    %v1026 = vcombine.high %v1018, %v1018
    %v1027 = vcombine.high %v729, %v729
    %v1029 = vunpack.c.l.s4 1983009808
    %v1030 = vunpack.c.0.s8 %v1029
    %v1031 = vlaneseq
    %v1032 = vshrl.u32 %v1031, 7
    %v1033 = vsub.s32 %v1030, %v1032
    %v1034 = vrot.slane %v729, %v1033
    %v1036 = vunpack.c.l.s4 1983009808
    %v1037 = vunpack.c.0.s8 %v1036
    %v1038 = vlaneseq
    %v1039 = vshrl.u32 %v1038, 7
    %v1040 = vsub.s32 %v1037, %v1039
    %v1041 = vrot.slane %v1027, %v1040
    %v1042 = vcombine.high %v1034, %v1034
    %v1043 = vcombine.high %v1041, %v1041
    %v1044 = vcombine.high %v730, %v730
    %v1046 = vunpack.c.l.s4 1983009808
    %v1047 = vunpack.c.0.s8 %v1046
    %v1048 = vlaneseq
    %v1049 = vshrl.u32 %v1048, 7
    %v1050 = vsub.s32 %v1047, %v1049
    %v1051 = vrot.slane %v730, %v1050
    %v1053 = vunpack.c.l.s4 1983009808
    %v1054 = vunpack.c.0.s8 %v1053
    %v1055 = vlaneseq
    %v1056 = vshrl.u32 %v1055, 7
    %v1057 = vsub.s32 %v1054, %v1056
    %v1058 = vrot.slane %v1044, %v1057
    %v1059 = vcombine.high %v1051, %v1051
    %v1060 = vcombine.high %v731, %v731
    %v1062 = vunpack.c.l.s4 1983009808
    %v1063 = vunpack.c.0.s8 %v1062
    %v1064 = vlaneseq
    %v1065 = vshrl.u32 %v1064, 7
    %v1066 = vsub.s32 %v1063, %v1065
    %v1067 = vrot.slane %v731, %v1066
    %v1069 = vunpack.c.l.s4 1983009808
    %v1070 = vunpack.c.0.s8 %v1069
    %v1071 = vlaneseq
    %v1072 = vshrl.u32 %v1071, 7
    %v1073 = vsub.s32 %v1070, %v1072
    %v1074 = vrot.slane %v1060, %v1073
    %v1075 = vcombine.high %v1067, %v1067
    %v1076 = vcombine.high %v1074, %v1074
    %v1077 = vcombine.high %v732, %v732
    %v1079 = vunpack.c.l.s4 1983009808
    %v1080 = vunpack.c.0.s8 %v1079
    %v1081 = vlaneseq
    %v1082 = vshrl.u32 %v1081, 7
    %v1083 = vsub.s32 %v1080, %v1082
    %v1084 = vrot.slane %v732, %v1083
    %v1086 = vunpack.c.l.s4 1983009808
    %v1087 = vunpack.c.0.s8 %v1086
    %v1088 = vlaneseq
    %v1089 = vshrl.u32 %v1088, 7
    %v1090 = vsub.s32 %v1087, %v1089
    %v1091 = vrot.slane %v1077, %v1090
    %v1092 = vcombine.high %v1084, %v1084
    %v1093 = vcombine.high %v733, %v733
    %v1095 = vunpack.c.l.s4 1983009808
    %v1096 = vunpack.c.0.s8 %v1095
    %v1097 = vlaneseq
    %v1098 = vshrl.u32 %v1097, 7
    %v1099 = vsub.s32 %v1096, %v1098
    %v1100 = vrot.slane %v733, %v1099
    %v1102 = vunpack.c.l.s4 1983009808
    %v1103 = vunpack.c.0.s8 %v1102
    %v1104 = vlaneseq
    %v1105 = vshrl.u32 %v1104, 7
    %v1106 = vsub.s32 %v1103, %v1105
    %v1107 = vrot.slane %v1093, %v1106
    %v1108 = vcombine.high %v1100, %v1100
    %v1109 = vcombine.high %v1107, %v1107
    %v1110 = vcombine.high %v734, %v734
    %v1112 = vunpack.c.l.s4 1983009808
    %v1113 = vunpack.c.0.s8 %v1112
    %v1114 = vlaneseq
    %v1115 = vshrl.u32 %v1114, 7
    %v1116 = vsub.s32 %v1113, %v1115
    %v1117 = vrot.slane %v734, %v1116
    %v1119 = vunpack.c.l.s4 1983009808
    %v1120 = vunpack.c.0.s8 %v1119
    %v1121 = vlaneseq
    %v1122 = vshrl.u32 %v1121, 7
    %v1123 = vsub.s32 %v1120, %v1122
    %v1124 = vrot.slane %v1110, %v1123
    %v1125 = vcombine.high %v1117, %v1117
    %v1126 = vcombine.high %v735, %v735
    %v1128 = vunpack.c.l.s4 1983009808
    %v1129 = vunpack.c.0.s8 %v1128
    %v1130 = vlaneseq
    %v1131 = vshrl.u32 %v1130, 7
    %v1132 = vsub.s32 %v1129, %v1131
    %v1133 = vrot.slane %v735, %v1132
    %v1135 = vunpack.c.l.s4 1983009808
    %v1136 = vunpack.c.0.s8 %v1135
    %v1137 = vlaneseq
    %v1138 = vshrl.u32 %v1137, 7
    %v1139 = vsub.s32 %v1136, %v1138
    %v1140 = vrot.slane %v1126, %v1139
    %v1141 = vcombine.high %v1133, %v1133
    %v1142 = vcombine.high %v1140, %v1140
    %v1143 = vcombine.high %v736, %v736
    %v1145 = vunpack.c.l.s4 1983009808
    %v1146 = vunpack.c.0.s8 %v1145
    %v1147 = vlaneseq
    %v1148 = vshrl.u32 %v1147, 7
    %v1149 = vsub.s32 %v1146, %v1148
    %v1150 = vrot.slane %v736, %v1149
    %v1152 = vunpack.c.l.s4 1983009808
    %v1153 = vunpack.c.0.s8 %v1152
    %v1154 = vlaneseq
    %v1155 = vshrl.u32 %v1154, 7
    %v1156 = vsub.s32 %v1153, %v1155
    %v1157 = vrot.slane %v1143, %v1156
    %v1158 = vcombine.high %v1150, %v1150
    %v1159 = vcombine.high %v737, %v737
    %v1161 = vunpack.c.l.s4 1983009808
    %v1162 = vunpack.c.0.s8 %v1161
    %v1163 = vlaneseq
    %v1164 = vshrl.u32 %v1163, 7
    %v1165 = vsub.s32 %v1162, %v1164
    %v1166 = vrot.slane %v737, %v1165
    %v1168 = vunpack.c.l.s4 1983009808
    %v1169 = vunpack.c.0.s8 %v1168
    %v1170 = vlaneseq
    %v1171 = vshrl.u32 %v1170, 7
    %v1172 = vsub.s32 %v1169, %v1171
    %v1173 = vrot.slane %v1159, %v1172
    %v1174 = vcombine.high %v1166, %v1166
    %v1175 = vcombine.high %v1173, %v1173
    %v1176 = vcombine.high %v738, %v738
    %v1178 = vunpack.c.l.s4 1983009808
    %v1179 = vunpack.c.0.s8 %v1178
    %v1180 = vlaneseq
    %v1181 = vshrl.u32 %v1180, 7
    %v1182 = vsub.s32 %v1179, %v1181
    %v1183 = vrot.slane %v738, %v1182
    %v1185 = vunpack.c.l.s4 1983009808
    %v1186 = vunpack.c.0.s8 %v1185
    %v1187 = vlaneseq
    %v1188 = vshrl.u32 %v1187, 7
    %v1189 = vsub.s32 %v1186, %v1188
    %v1190 = vrot.slane %v1176, %v1189
    %v1191 = vcombine.high %v1183, %v1183
    %v1192 = vcombine.high %v739, %v739
    %v1194 = vunpack.c.l.s4 1983009808
    %v1195 = vunpack.c.0.s8 %v1194
    %v1196 = vlaneseq
    %v1197 = vshrl.u32 %v1196, 7
    %v1198 = vsub.s32 %v1195, %v1197
    %v1199 = vrot.slane %v739, %v1198
    %v1201 = vunpack.c.l.s4 1983009808
    %v1202 = vunpack.c.0.s8 %v1201
    %v1203 = vlaneseq
    %v1204 = vshrl.u32 %v1203, 7
    %v1205 = vsub.s32 %v1202, %v1204
    %v1206 = vrot.slane %v1192, %v1205
    %v1207 = vcombine.high %v1199, %v1199
    %v1208 = vcombine.high %v1206, %v1206
    %v1209 = vcombine.high %v740, %v740
    %v1211 = vunpack.c.l.s4 1983009808
    %v1212 = vunpack.c.0.s8 %v1211
    %v1213 = vlaneseq
    %v1214 = vshrl.u32 %v1213, 7
    %v1215 = vsub.s32 %v1212, %v1214
    %v1216 = vrot.slane %v740, %v1215
    %v1218 = vunpack.c.l.s4 1983009808
    %v1219 = vunpack.c.0.s8 %v1218
    %v1220 = vlaneseq
    %v1221 = vshrl.u32 %v1220, 7
    %v1222 = vsub.s32 %v1219, %v1221
    %v1223 = vrot.slane %v1209, %v1222
    %v1224 = vcombine.high %v1216, %v1216
    %v1225 = vcombine.high %v741, %v741
    %v1227 = vunpack.c.l.s4 1983009808
    %v1228 = vunpack.c.0.s8 %v1227
    %v1229 = vlaneseq
    %v1230 = vshrl.u32 %v1229, 7
    %v1231 = vsub.s32 %v1228, %v1230
    %v1232 = vrot.slane %v741, %v1231
    %v1234 = vunpack.c.l.s4 1983009808
    %v1235 = vunpack.c.0.s8 %v1234
    %v1236 = vlaneseq
    %v1237 = vshrl.u32 %v1236, 7
    %v1238 = vsub.s32 %v1235, %v1237
    %v1239 = vrot.slane %v1225, %v1238
    %v1240 = vcombine.high %v1232, %v1232
    %v1241 = vcombine.high %v1239, %v1239
    %v1242 = vcombine.high %v742, %v742
    %v1244 = vunpack.c.l.s4 1983009808
    %v1245 = vunpack.c.0.s8 %v1244
    %v1246 = vlaneseq
    %v1247 = vshrl.u32 %v1246, 7
    %v1248 = vsub.s32 %v1245, %v1247
    %v1249 = vrot.slane %v742, %v1248
    %v1251 = vunpack.c.l.s4 1983009808
    %v1252 = vunpack.c.0.s8 %v1251
    %v1253 = vlaneseq
    %v1254 = vshrl.u32 %v1253, 7
    %v1255 = vsub.s32 %v1252, %v1254
    %v1256 = vrot.slane %v1242, %v1255
    %v1257 = vcombine.high %v1249, %v1249
    %v1258 = vcombine.high %v743, %v743
    %v1260 = vunpack.c.l.s4 1983009808
    %v1261 = vunpack.c.0.s8 %v1260
    %v1262 = vlaneseq
    %v1263 = vshrl.u32 %v1262, 7
    %v1264 = vsub.s32 %v1261, %v1263
    %v1265 = vrot.slane %v743, %v1264
    %v1267 = vunpack.c.l.s4 1983009808
    %v1268 = vunpack.c.0.s8 %v1267
    %v1269 = vlaneseq
    %v1270 = vshrl.u32 %v1269, 7
    %v1271 = vsub.s32 %v1268, %v1270
    %v1272 = vrot.slane %v1258, %v1271
    %v1273 = vcombine.high %v1265, %v1265
    %v1274 = vcombine.high %v1272, %v1272
    %v1275 = vcombine.high %v744, %v744
    %v1277 = vunpack.c.l.s4 1983009808
    %v1278 = vunpack.c.0.s8 %v1277
    %v1279 = vlaneseq
    %v1280 = vshrl.u32 %v1279, 7
    %v1281 = vsub.s32 %v1278, %v1280
    %v1282 = vrot.slane %v744, %v1281
    %v1284 = vunpack.c.l.s4 1983009808
    %v1285 = vunpack.c.0.s8 %v1284
    %v1286 = vlaneseq
    %v1287 = vshrl.u32 %v1286, 7
    %v1288 = vsub.s32 %v1285, %v1287
    %v1289 = vrot.slane %v1275, %v1288
    %v1290 = vcombine.high %v1282, %v1282
    %v1291 = vcombine.high %v745, %v745
    %v1293 = vunpack.c.l.s4 1983009808
    %v1294 = vunpack.c.0.s8 %v1293
    %v1295 = vlaneseq
    %v1296 = vshrl.u32 %v1295, 7
    %v1297 = vsub.s32 %v1294, %v1296
    %v1298 = vrot.slane %v745, %v1297
    %v1300 = vunpack.c.l.s4 1983009808
    %v1301 = vunpack.c.0.s8 %v1300
    %v1302 = vlaneseq
    %v1303 = vshrl.u32 %v1302, 7
    %v1304 = vsub.s32 %v1301, %v1303
    %v1305 = vrot.slane %v1291, %v1304
    %v1306 = vcombine.high %v1298, %v1298
    %v1307 = vcombine.high %v1305, %v1305
    %v1308 = vcombine.high %v746, %v746
    %v1310 = vunpack.c.l.s4 1983009808
    %v1311 = vunpack.c.0.s8 %v1310
    %v1312 = vlaneseq
    %v1313 = vshrl.u32 %v1312, 7
    %v1314 = vsub.s32 %v1311, %v1313
    %v1315 = vrot.slane %v746, %v1314
    %v1317 = vunpack.c.l.s4 1983009808
    %v1318 = vunpack.c.0.s8 %v1317
    %v1319 = vlaneseq
    %v1320 = vshrl.u32 %v1319, 7
    %v1321 = vsub.s32 %v1318, %v1320
    %v1322 = vrot.slane %v1308, %v1321
    %v1323 = vcombine.high %v1315, %v1315
    %v1324 = vcombine.high %v747, %v747
    %v1326 = vunpack.c.l.s4 1983009808
    %v1327 = vunpack.c.0.s8 %v1326
    %v1328 = vlaneseq
    %v1329 = vshrl.u32 %v1328, 7
    %v1330 = vsub.s32 %v1327, %v1329
    %v1331 = vrot.slane %v747, %v1330
    %v1333 = vunpack.c.l.s4 1983009808
    %v1334 = vunpack.c.0.s8 %v1333
    %v1335 = vlaneseq
    %v1336 = vshrl.u32 %v1335, 7
    %v1337 = vsub.s32 %v1334, %v1336
    %v1338 = vrot.slane %v1324, %v1337
    %v1339 = vcombine.high %v1331, %v1331
    %v1340 = vcombine.high %v1338, %v1338
    %v1341 = vcombine.high %v748, %v748
    %v1343 = vunpack.c.l.s4 1983009808
    %v1344 = vunpack.c.0.s8 %v1343
    %v1345 = vlaneseq
    %v1346 = vshrl.u32 %v1345, 7
    %v1347 = vsub.s32 %v1344, %v1346
    %v1348 = vrot.slane %v748, %v1347
    %v1350 = vunpack.c.l.s4 1983009808
    %v1351 = vunpack.c.0.s8 %v1350
    %v1352 = vlaneseq
    %v1353 = vshrl.u32 %v1352, 7
    %v1354 = vsub.s32 %v1351, %v1353
    %v1355 = vrot.slane %v1341, %v1354
    %v1356 = vcombine.high %v1348, %v1348
    %v1357 = vcombine.high %v749, %v749
    %v1359 = vunpack.c.l.s4 1983009808
    %v1360 = vunpack.c.0.s8 %v1359
    %v1361 = vlaneseq
    %v1362 = vshrl.u32 %v1361, 7
    %v1363 = vsub.s32 %v1360, %v1362
    %v1364 = vrot.slane %v749, %v1363
    %v1366 = vunpack.c.l.s4 1983009808
    %v1367 = vunpack.c.0.s8 %v1366
    %v1368 = vlaneseq
    %v1369 = vshrl.u32 %v1368, 7
    %v1370 = vsub.s32 %v1367, %v1369
    %v1371 = vrot.slane %v1357, %v1370
    %v1372 = vcombine.high %v1364, %v1364
    %v1373 = vcombine.high %v1371, %v1371
    %v1374 = vcombine.high %v750, %v750
    %v1376 = vunpack.c.l.s4 1983009808
    %v1377 = vunpack.c.0.s8 %v1376
    %v1378 = vlaneseq
    %v1379 = vshrl.u32 %v1378, 7
    %v1380 = vsub.s32 %v1377, %v1379
    %v1381 = vrot.slane %v750, %v1380
    %v1383 = vunpack.c.l.s4 1983009808
    %v1384 = vunpack.c.0.s8 %v1383
    %v1385 = vlaneseq
    %v1386 = vshrl.u32 %v1385, 7
    %v1387 = vsub.s32 %v1384, %v1386
    %v1388 = vrot.slane %v1374, %v1387
    %v1389 = vcombine.high %v1381, %v1381
    %v1390 = vcombine.high %v751, %v751
    %v1392 = vunpack.c.l.s4 1983009808
    %v1393 = vunpack.c.0.s8 %v1392
    %v1394 = vlaneseq
    %v1395 = vshrl.u32 %v1394, 7
    %v1396 = vsub.s32 %v1393, %v1395
    %v1397 = vrot.slane %v751, %v1396
    %v1399 = vunpack.c.l.s4 1983009808
    %v1400 = vunpack.c.0.s8 %v1399
    %v1401 = vlaneseq
    %v1402 = vshrl.u32 %v1401, 7
    %v1403 = vsub.s32 %v1400, %v1402
    %v1404 = vrot.slane %v1390, %v1403
    %v1405 = vcombine.high %v1397, %v1397
    %v1406 = vcombine.high %v1404, %v1404
    %v1407 = vcombine.high %v752, %v752
    %v1409 = vunpack.c.l.s4 1983009808
    %v1410 = vunpack.c.0.s8 %v1409
    %v1411 = vlaneseq
    %v1412 = vshrl.u32 %v1411, 7
    %v1413 = vsub.s32 %v1410, %v1412
    %v1414 = vrot.slane %v752, %v1413
    %v1416 = vunpack.c.l.s4 1983009808
    %v1417 = vunpack.c.0.s8 %v1416
    %v1418 = vlaneseq
    %v1419 = vshrl.u32 %v1418, 7
    %v1420 = vsub.s32 %v1417, %v1419
    %v1421 = vrot.slane %v1407, %v1420
    %v1422 = vcombine.high %v1414, %v1414
    %v1423 = vcombine.high %v753, %v753
    %v1425 = vunpack.c.l.s4 1983009808
    %v1426 = vunpack.c.0.s8 %v1425
    %v1427 = vlaneseq
    %v1428 = vshrl.u32 %v1427, 7
    %v1429 = vsub.s32 %v1426, %v1428
    %v1430 = vrot.slane %v753, %v1429
    %v1432 = vunpack.c.l.s4 1983009808
    %v1433 = vunpack.c.0.s8 %v1432
    %v1434 = vlaneseq
    %v1435 = vshrl.u32 %v1434, 7
    %v1436 = vsub.s32 %v1433, %v1435
    %v1437 = vrot.slane %v1423, %v1436
    %v1438 = vcombine.high %v1430, %v1430
    %v1439 = vcombine.high %v1437, %v1437
    %v1440 = vcombine.high %v754, %v754
    %v1442 = vunpack.c.l.s4 1983009808
    %v1443 = vunpack.c.0.s8 %v1442
    %v1444 = vlaneseq
    %v1445 = vshrl.u32 %v1444, 7
    %v1446 = vsub.s32 %v1443, %v1445
    %v1447 = vrot.slane %v754, %v1446
    %v1449 = vunpack.c.l.s4 1983009808
    %v1450 = vunpack.c.0.s8 %v1449
    %v1451 = vlaneseq
    %v1452 = vshrl.u32 %v1451, 7
    %v1453 = vsub.s32 %v1450, %v1452
    %v1454 = vrot.slane %v1440, %v1453
    %v1455 = vcombine.high %v1447, %v1447
    %v1456 = vcombine.high %v755, %v755
    %v1458 = vunpack.c.l.s4 1983009808
    %v1459 = vunpack.c.0.s8 %v1458
    %v1460 = vlaneseq
    %v1461 = vshrl.u32 %v1460, 7
    %v1462 = vsub.s32 %v1459, %v1461
    %v1463 = vrot.slane %v755, %v1462
    %v1465 = vunpack.c.l.s4 1983009808
    %v1466 = vunpack.c.0.s8 %v1465
    %v1467 = vlaneseq
    %v1468 = vshrl.u32 %v1467, 7
    %v1469 = vsub.s32 %v1466, %v1468
    %v1470 = vrot.slane %v1456, %v1469
    %v1471 = vcombine.high %v1463, %v1463
    %v1472 = vcombine.high %v1470, %v1470
    %v1473 = vcombine.high %v756, %v756
    %v1475 = vunpack.c.l.s4 1983009808
    %v1476 = vunpack.c.0.s8 %v1475
    %v1477 = vlaneseq
    %v1478 = vshrl.u32 %v1477, 7
    %v1479 = vsub.s32 %v1476, %v1478
    %v1480 = vrot.slane %v756, %v1479
    %v1482 = vunpack.c.l.s4 1983009808
    %v1483 = vunpack.c.0.s8 %v1482
    %v1484 = vlaneseq
    %v1485 = vshrl.u32 %v1484, 7
    %v1486 = vsub.s32 %v1483, %v1485
    %v1487 = vrot.slane %v1473, %v1486
    %v1488 = vcombine.high %v1480, %v1480
    %v1489 = vcombine.high %v757, %v757
    %v1491 = vunpack.c.l.s4 1983009808
    %v1492 = vunpack.c.0.s8 %v1491
    %v1493 = vlaneseq
    %v1494 = vshrl.u32 %v1493, 7
    %v1495 = vsub.s32 %v1492, %v1494
    %v1496 = vrot.slane %v757, %v1495
    %v1498 = vunpack.c.l.s4 1983009808
    %v1499 = vunpack.c.0.s8 %v1498
    %v1500 = vlaneseq
    %v1501 = vshrl.u32 %v1500, 7
    %v1502 = vsub.s32 %v1499, %v1501
    %v1503 = vrot.slane %v1489, %v1502
    %v1504 = vcombine.high %v1496, %v1496
    %v1505 = vcombine.high %v1503, %v1503
    %v1506 = vcombine.high %v758, %v758
    %v1508 = vunpack.c.l.s4 1983009808
    %v1509 = vunpack.c.0.s8 %v1508
    %v1510 = vlaneseq
    %v1511 = vshrl.u32 %v1510, 7
    %v1512 = vsub.s32 %v1509, %v1511
    %v1513 = vrot.slane %v758, %v1512
    %v1515 = vunpack.c.l.s4 1983009808
    %v1516 = vunpack.c.0.s8 %v1515
    %v1517 = vlaneseq
    %v1518 = vshrl.u32 %v1517, 7
    %v1519 = vsub.s32 %v1516, %v1518
    %v1520 = vrot.slane %v1506, %v1519
    %v1521 = vcombine.high %v1513, %v1513
    %v1522 = vcombine.high %v759, %v759
    %v1524 = vunpack.c.l.s4 1983009808
    %v1525 = vunpack.c.0.s8 %v1524
    %v1526 = vlaneseq
    %v1527 = vshrl.u32 %v1526, 7
    %v1528 = vsub.s32 %v1525, %v1527
    %v1529 = vrot.slane %v759, %v1528
    %v1531 = vunpack.c.l.s4 1983009808
    %v1532 = vunpack.c.0.s8 %v1531
    %v1533 = vlaneseq
    %v1534 = vshrl.u32 %v1533, 7
    %v1535 = vsub.s32 %v1532, %v1534
    %v1536 = vrot.slane %v1522, %v1535
    %v1537 = vcombine.high %v1529, %v1529
    %v1538 = vcombine.high %v1536, %v1536
    %v1539 = vcombine.high %v760, %v760
    %v1541 = vunpack.c.l.s4 1983009808
    %v1542 = vunpack.c.0.s8 %v1541
    %v1543 = vlaneseq
    %v1544 = vshrl.u32 %v1543, 7
    %v1545 = vsub.s32 %v1542, %v1544
    %v1546 = vrot.slane %v760, %v1545
    %v1548 = vunpack.c.l.s4 1983009808
    %v1549 = vunpack.c.0.s8 %v1548
    %v1550 = vlaneseq
    %v1551 = vshrl.u32 %v1550, 7
    %v1552 = vsub.s32 %v1549, %v1551
    %v1553 = vrot.slane %v1539, %v1552
    %v1554 = vcombine.high %v1546, %v1546
    %v1555 = vcombine.high %v761, %v761
    %v1557 = vunpack.c.l.s4 1983009808
    %v1558 = vunpack.c.0.s8 %v1557
    %v1559 = vlaneseq
    %v1560 = vshrl.u32 %v1559, 7
    %v1561 = vsub.s32 %v1558, %v1560
    %v1562 = vrot.slane %v761, %v1561
    %v1564 = vunpack.c.l.s4 1983009808
    %v1565 = vunpack.c.0.s8 %v1564
    %v1566 = vlaneseq
    %v1567 = vshrl.u32 %v1566, 7
    %v1568 = vsub.s32 %v1565, %v1567
    %v1569 = vrot.slane %v1555, %v1568
    %v1570 = vcombine.high %v1562, %v1562
    %v1571 = vcombine.high %v1569, %v1569
    %v1572 = vcombine.high %v762, %v762
    %v1574 = vunpack.c.l.s4 1983009808
    %v1575 = vunpack.c.0.s8 %v1574
    %v1576 = vlaneseq
    %v1577 = vshrl.u32 %v1576, 7
    %v1578 = vsub.s32 %v1575, %v1577
    %v1579 = vrot.slane %v762, %v1578
    %v1581 = vunpack.c.l.s4 1983009808
    %v1582 = vunpack.c.0.s8 %v1581
    %v1583 = vlaneseq
    %v1584 = vshrl.u32 %v1583, 7
    %v1585 = vsub.s32 %v1582, %v1584
    %v1586 = vrot.slane %v1572, %v1585
    %v1587 = vcombine.high %v1579, %v1579
    %v1588 = vcombine.high %v763, %v763
    %v1590 = vunpack.c.l.s4 1983009808
    %v1591 = vunpack.c.0.s8 %v1590
    %v1592 = vlaneseq
    %v1593 = vshrl.u32 %v1592, 7
    %v1594 = vsub.s32 %v1591, %v1593
    %v1595 = vrot.slane %v763, %v1594
    %v1597 = vunpack.c.l.s4 1983009808
    %v1598 = vunpack.c.0.s8 %v1597
    %v1599 = vlaneseq
    %v1600 = vshrl.u32 %v1599, 7
    %v1601 = vsub.s32 %v1598, %v1600
    %v1602 = vrot.slane %v1588, %v1601
    %v1603 = vcombine.high %v1595, %v1595
    %v1604 = vcombine.high %v1602, %v1602
    %v1605 = vcombine.high %v764, %v764
    %v1607 = vunpack.c.l.s4 1983009808
    %v1608 = vunpack.c.0.s8 %v1607
    %v1609 = vlaneseq
    %v1610 = vshrl.u32 %v1609, 7
    %v1611 = vsub.s32 %v1608, %v1610
    %v1612 = vrot.slane %v764, %v1611
    %v1614 = vunpack.c.l.s4 1983009808
    %v1615 = vunpack.c.0.s8 %v1614
    %v1616 = vlaneseq
    %v1617 = vshrl.u32 %v1616, 7
    %v1618 = vsub.s32 %v1615, %v1617
    %v1619 = vrot.slane %v1605, %v1618
    %v1620 = vcombine.high %v1612, %v1612
    %v1621 = vcombine.high %v765, %v765
    %v1623 = vunpack.c.l.s4 1983009808
    %v1624 = vunpack.c.0.s8 %v1623
    %v1625 = vlaneseq
    %v1626 = vshrl.u32 %v1625, 7
    %v1627 = vsub.s32 %v1624, %v1626
    %v1628 = vrot.slane %v765, %v1627
    %v1630 = vunpack.c.l.s4 1983009808
    %v1631 = vunpack.c.0.s8 %v1630
    %v1632 = vlaneseq
    %v1633 = vshrl.u32 %v1632, 7
    %v1634 = vsub.s32 %v1631, %v1633
    %v1635 = vrot.slane %v1621, %v1634
    %v1636 = vcombine.high %v1628, %v1628
    %v1637 = vcombine.high %v1635, %v1635
    %v1638 = vcombine.high %v766, %v766
    %v1640 = vunpack.c.l.s4 1983009808
    %v1641 = vunpack.c.0.s8 %v1640
    %v1642 = vlaneseq
    %v1643 = vshrl.u32 %v1642, 7
    %v1644 = vsub.s32 %v1641, %v1643
    %v1645 = vrot.slane %v766, %v1644
    %v1647 = vunpack.c.l.s4 1983009808
    %v1648 = vunpack.c.0.s8 %v1647
    %v1649 = vlaneseq
    %v1650 = vshrl.u32 %v1649, 7
    %v1651 = vsub.s32 %v1648, %v1650
    %v1652 = vrot.slane %v1638, %v1651
    %v1653 = vcombine.high %v1645, %v1645
    %v1654 = vcombine.high %v767, %v767
    %v1656 = vunpack.c.l.s4 1983009808
    %v1657 = vunpack.c.0.s8 %v1656
    %v1658 = vlaneseq
    %v1659 = vshrl.u32 %v1658, 7
    %v1660 = vsub.s32 %v1657, %v1659
    %v1661 = vrot.slane %v767, %v1660
    %v1663 = vunpack.c.l.s4 1983009808
    %v1664 = vunpack.c.0.s8 %v1663
    %v1665 = vlaneseq
    %v1666 = vshrl.u32 %v1665, 7
    %v1667 = vsub.s32 %v1664, %v1666
    %v1668 = vrot.slane %v1654, %v1667
    %v1669 = vcombine.high %v1661, %v1661
    %v1670 = vcombine.high %v1668, %v1668
    %v1671 = vcombine.high %v768, %v768
    %v1673 = vunpack.c.l.s4 1983009808
    %v1674 = vunpack.c.0.s8 %v1673
    %v1675 = vlaneseq
    %v1676 = vshrl.u32 %v1675, 7
    %v1677 = vsub.s32 %v1674, %v1676
    %v1678 = vrot.slane %v768, %v1677
    %v1680 = vunpack.c.l.s4 1983009808
    %v1681 = vunpack.c.0.s8 %v1680
    %v1682 = vlaneseq
    %v1683 = vshrl.u32 %v1682, 7
    %v1684 = vsub.s32 %v1681, %v1683
    %v1685 = vrot.slane %v1671, %v1684
    %v1686 = vcombine.high %v1678, %v1678
    %v1687 = vcombine.high %v769, %v769
    %v1689 = vunpack.c.l.s4 1983009808
    %v1690 = vunpack.c.0.s8 %v1689
    %v1691 = vlaneseq
    %v1692 = vshrl.u32 %v1691, 7
    %v1693 = vsub.s32 %v1690, %v1692
    %v1694 = vrot.slane %v769, %v1693
    %v1696 = vunpack.c.l.s4 1983009808
    %v1697 = vunpack.c.0.s8 %v1696
    %v1698 = vlaneseq
    %v1699 = vshrl.u32 %v1698, 7
    %v1700 = vsub.s32 %v1697, %v1699
    %v1701 = vrot.slane %v1687, %v1700
    %v1702 = vcombine.high %v1694, %v1694
    %v1703 = vcombine.high %v1701, %v1701
    %v1704 = vcombine.high %v770, %v770
    %v1706 = vunpack.c.l.s4 1983009808
    %v1707 = vunpack.c.0.s8 %v1706
    %v1708 = vlaneseq
    %v1709 = vshrl.u32 %v1708, 7
    %v1710 = vsub.s32 %v1707, %v1709
    %v1711 = vrot.slane %v770, %v1710
    %v1713 = vunpack.c.l.s4 1983009808
    %v1714 = vunpack.c.0.s8 %v1713
    %v1715 = vlaneseq
    %v1716 = vshrl.u32 %v1715, 7
    %v1717 = vsub.s32 %v1714, %v1716
    %v1718 = vrot.slane %v1704, %v1717
    %v1719 = vcombine.high %v1711, %v1711
    %v1720 = vcombine.high %v771, %v771
    %v1722 = vunpack.c.l.s4 1983009808
    %v1723 = vunpack.c.0.s8 %v1722
    %v1724 = vlaneseq
    %v1725 = vshrl.u32 %v1724, 7
    %v1726 = vsub.s32 %v1723, %v1725
    %v1727 = vrot.slane %v771, %v1726
    %v1729 = vunpack.c.l.s4 1983009808
    %v1730 = vunpack.c.0.s8 %v1729
    %v1731 = vlaneseq
    %v1732 = vshrl.u32 %v1731, 7
    %v1733 = vsub.s32 %v1730, %v1732
    %v1734 = vrot.slane %v1720, %v1733
    %v1735 = vcombine.high %v1727, %v1727
    %v1736 = vcombine.high %v1734, %v1734
    %v1737 = vcombine.high %v772, %v772
    %v1739 = vunpack.c.l.s4 1983009808
    %v1740 = vunpack.c.0.s8 %v1739
    %v1741 = vlaneseq
    %v1742 = vshrl.u32 %v1741, 7
    %v1743 = vsub.s32 %v1740, %v1742
    %v1744 = vrot.slane %v772, %v1743
    %v1746 = vunpack.c.l.s4 1983009808
    %v1747 = vunpack.c.0.s8 %v1746
    %v1748 = vlaneseq
    %v1749 = vshrl.u32 %v1748, 7
    %v1750 = vsub.s32 %v1747, %v1749
    %v1751 = vrot.slane %v1737, %v1750
    %v1752 = vcombine.high %v1744, %v1744
    %v1757 = vrot.slane %v61, 1
    %v1758 = vrot.slane %v62, 1
    %v1759 = vsel %vm153, %v1757, %v1758
    %v1760 = vrot.slane %v93, 1
    %v1761 = vrot.slane %v94, 1
    %v1762 = vsel %vm153, %v1760, %v1761
    %1763 = vrot.lane.b32.xlu0 %v1759, 4
    %v1764 = vpop.permute.xlu0 %1763
    %1765 = vrot.lane.b32.xlu0 %v1758, 4
    %v1766 = vpop.permute.xlu0 %1765
    %1767 = vrot.lane.b32.xlu0 %v1762, 4
    %v1768 = vpop.permute.xlu0 %1767
    %1769 = vrot.lane.b32.xlu0 %v1761, 4
    %v1770 = vpop.permute.xlu0 %1769
    %v1775 = vrot.slane %v61, 2
    %v1776 = vrot.slane %v62, 2
    %v1777 = vsel %vm406, %v1775, %v1776
    %v1778 = vrot.slane %v93, 2
    %v1779 = vrot.slane %v94, 2
    %v1780 = vsel %vm406, %v1778, %v1779
    %1781 = vrot.lane.b32.xlu0 %v1777, 8
    %v1782 = vpop.permute.xlu0 %1781
    %1783 = vrot.lane.b32.xlu0 %v1776, 8
    %v1784 = vpop.permute.xlu0 %1783
    %1785 = vrot.lane.b32.xlu0 %v1780, 8
    %v1786 = vpop.permute.xlu0 %1785
    %1787 = vrot.lane.b32.xlu0 %v1779, 8
    %v1788 = vpop.permute.xlu0 %1787
    %v1793 = vsel %vm659, %v61, %v1764
    %v1794 = vsel %vm659, %v62, %v1766
    %v1795 = vsel %vm659, %v93, %v1768
    %v1796 = vsel %vm659, %v94, %v1770
    %v1797 = vsel %vm716, %v1793, %v1782
    %v1798 = vsel %vm716, %v1794, %v1784
    %v1799 = vsel %vm716, %v1795, %v1786
    %v1800 = vsel %vm716, %v1796, %v1788
    %v1805 = vcombine.high %v1797, %v1797
    %v1807 = vunpack.c.l.s4 1983009808
    %v1808 = vunpack.c.0.s8 %v1807
    %v1809 = vlaneseq
    %v1810 = vshrl.u32 %v1809, 7
    %v1811 = vsub.s32 %v1808, %v1810
    %v1812 = vrot.slane %v1797, %v1811
    %v1814 = vunpack.c.l.s4 1983009808
    %v1815 = vunpack.c.0.s8 %v1814
    %v1816 = vlaneseq
    %v1817 = vshrl.u32 %v1816, 7
    %v1818 = vsub.s32 %v1815, %v1817
    %v1819 = vrot.slane %v1805, %v1818
    %v1820 = vcombine.high %v1812, %v1812
    %v1821 = vcombine.high %v1819, %v1819
    %v1822 = vcombine.high %v1798, %v1798
    %v1824 = vunpack.c.l.s4 1983009808
    %v1825 = vunpack.c.0.s8 %v1824
    %v1826 = vlaneseq
    %v1827 = vshrl.u32 %v1826, 7
    %v1828 = vsub.s32 %v1825, %v1827
    %v1829 = vrot.slane %v1798, %v1828
    %v1831 = vunpack.c.l.s4 1983009808
    %v1832 = vunpack.c.0.s8 %v1831
    %v1833 = vlaneseq
    %v1834 = vshrl.u32 %v1833, 7
    %v1835 = vsub.s32 %v1832, %v1834
    %v1836 = vrot.slane %v1822, %v1835
    %v1837 = vcombine.high %v1829, %v1829
    %v1838 = vcombine.high %v1799, %v1799
    %v1840 = vunpack.c.l.s4 1983009808
    %v1841 = vunpack.c.0.s8 %v1840
    %v1842 = vlaneseq
    %v1843 = vshrl.u32 %v1842, 7
    %v1844 = vsub.s32 %v1841, %v1843
    %v1845 = vrot.slane %v1799, %v1844
    %v1847 = vunpack.c.l.s4 1983009808
    %v1848 = vunpack.c.0.s8 %v1847
    %v1849 = vlaneseq
    %v1850 = vshrl.u32 %v1849, 7
    %v1851 = vsub.s32 %v1848, %v1850
    %v1852 = vrot.slane %v1838, %v1851
    %v1853 = vcombine.high %v1845, %v1845
    %v1854 = vcombine.high %v1852, %v1852
    %v1855 = vcombine.high %v1800, %v1800
    %v1857 = vunpack.c.l.s4 1983009808
    %v1858 = vunpack.c.0.s8 %v1857
    %v1859 = vlaneseq
    %v1860 = vshrl.u32 %v1859, 7
    %v1861 = vsub.s32 %v1858, %v1860
    %v1862 = vrot.slane %v1800, %v1861
    %v1864 = vunpack.c.l.s4 1983009808
    %v1865 = vunpack.c.0.s8 %v1864
    %v1866 = vlaneseq
    %v1867 = vshrl.u32 %v1866, 7
    %v1868 = vsub.s32 %v1865, %v1867
    %v1869 = vrot.slane %v1855, %v1868
    %v1870 = vcombine.high %v1862, %v1862
    %v1871 = vcombine.low %v869, %v877
    %v1872 = vcombine.low %v876, %v878
    %v1874 = vunpack.c.l.s4 1983009808
    %v1875 = vunpack.c.0.s8 %v1874
    %v1876 = vlaneseq
    %v1877 = vshrl.u32 %v1876, 7
    %v1878 = vsub.s32 %v1875, %v1877
    %v1879 = vrot.slane %v1871, %v1878
    %v1881 = vunpack.c.l.s4 1983009808
    %v1882 = vunpack.c.0.s8 %v1881
    %v1883 = vlaneseq
    %v1884 = vshrl.u32 %v1883, 7
    %v1885 = vsub.s32 %v1882, %v1884
    %v1886 = vrot.slane %v1872, %v1885
    %v1887 = vcombine.low %v1879, %v1886
    %v1888 = vcombine.low %v886, %v894
    %v1889 = vcombine.low %v893, %v902
    %v1891 = vunpack.c.l.s4 1983009808
    %v1892 = vunpack.c.0.s8 %v1891
    %v1893 = vlaneseq
    %v1894 = vshrl.u32 %v1893, 7
    %v1895 = vsub.s32 %v1892, %v1894
    %v1896 = vrot.slane %v1888, %v1895
    %v1898 = vunpack.c.l.s4 1983009808
    %v1899 = vunpack.c.0.s8 %v1898
    %v1900 = vlaneseq
    %v1901 = vshrl.u32 %v1900, 7
    %v1902 = vsub.s32 %v1899, %v1901
    %v1903 = vrot.slane %v1889, %v1902
    %v1904 = vcombine.low %v1896, %v1903
    %v1905 = vcombine.low %v910, %v909
    %v1906 = vcombine.low %v911, %v919
    %v1908 = vunpack.c.l.s4 1983009808
    %v1909 = vunpack.c.0.s8 %v1908
    %v1910 = vlaneseq
    %v1911 = vshrl.u32 %v1910, 7
    %v1912 = vsub.s32 %v1909, %v1911
    %v1913 = vrot.slane %v1905, %v1912
    %v1915 = vunpack.c.l.s4 1983009808
    %v1916 = vunpack.c.0.s8 %v1915
    %v1917 = vlaneseq
    %v1918 = vshrl.u32 %v1917, 7
    %v1919 = vsub.s32 %v1916, %v1918
    %v1920 = vrot.slane %v1906, %v1919
    %v1921 = vcombine.low %v1913, %v1920
    %v1922 = vcombine.low %v927, %v926
    %v1923 = vcombine.low %v935, %v943
    %v1925 = vunpack.c.l.s4 1983009808
    %v1926 = vunpack.c.0.s8 %v1925
    %v1927 = vlaneseq
    %v1928 = vshrl.u32 %v1927, 7
    %v1929 = vsub.s32 %v1926, %v1928
    %v1930 = vrot.slane %v1922, %v1929
    %v1932 = vunpack.c.l.s4 1983009808
    %v1933 = vunpack.c.0.s8 %v1932
    %v1934 = vlaneseq
    %v1935 = vshrl.u32 %v1934, 7
    %v1936 = vsub.s32 %v1933, %v1935
    %v1937 = vrot.slane %v1923, %v1936
    %v1938 = vcombine.low %v1930, %v1937
    %v1939 = vcombine.low %v942, %v944
    %v1940 = vcombine.low %v952, %v960
    %v1942 = vunpack.c.l.s4 1983009808
    %v1943 = vunpack.c.0.s8 %v1942
    %v1944 = vlaneseq
    %v1945 = vshrl.u32 %v1944, 7
    %v1946 = vsub.s32 %v1943, %v1945
    %v1947 = vrot.slane %v1939, %v1946
    %v1949 = vunpack.c.l.s4 1983009808
    %v1950 = vunpack.c.0.s8 %v1949
    %v1951 = vlaneseq
    %v1952 = vshrl.u32 %v1951, 7
    %v1953 = vsub.s32 %v1950, %v1952
    %v1954 = vrot.slane %v1940, %v1953
    %v1955 = vcombine.low %v1947, %v1954
    %v1956 = vcombine.low %v959, %v968
    %v1957 = vcombine.low %v976, %v975
    %v1959 = vunpack.c.l.s4 1983009808
    %v1960 = vunpack.c.0.s8 %v1959
    %v1961 = vlaneseq
    %v1962 = vshrl.u32 %v1961, 7
    %v1963 = vsub.s32 %v1960, %v1962
    %v1964 = vrot.slane %v1956, %v1963
    %v1966 = vunpack.c.l.s4 1983009808
    %v1967 = vunpack.c.0.s8 %v1966
    %v1968 = vlaneseq
    %v1969 = vshrl.u32 %v1968, 7
    %v1970 = vsub.s32 %v1967, %v1969
    %v1971 = vrot.slane %v1957, %v1970
    %v1972 = vcombine.low %v1964, %v1971
    %v1973 = vcombine.low %v977, %v985
    %v1974 = vcombine.low %v993, %v992
    %v1976 = vunpack.c.l.s4 1983009808
    %v1977 = vunpack.c.0.s8 %v1976
    %v1978 = vlaneseq
    %v1979 = vshrl.u32 %v1978, 7
    %v1980 = vsub.s32 %v1977, %v1979
    %v1981 = vrot.slane %v1973, %v1980
    %v1983 = vunpack.c.l.s4 1983009808
    %v1984 = vunpack.c.0.s8 %v1983
    %v1985 = vlaneseq
    %v1986 = vshrl.u32 %v1985, 7
    %v1987 = vsub.s32 %v1984, %v1986
    %v1988 = vrot.slane %v1974, %v1987
    %v1989 = vcombine.low %v1981, %v1988
    %v1990 = vcombine.low %v1001, %v1009
    %v1991 = vcombine.low %v1008, %v1010
    %v1993 = vunpack.c.l.s4 1983009808
    %v1994 = vunpack.c.0.s8 %v1993
    %v1995 = vlaneseq
    %v1996 = vshrl.u32 %v1995, 7
    %v1997 = vsub.s32 %v1994, %v1996
    %v1998 = vrot.slane %v1990, %v1997
    %v2000 = vunpack.c.l.s4 1983009808
    %v2001 = vunpack.c.0.s8 %v2000
    %v2002 = vlaneseq
    %v2003 = vshrl.u32 %v2002, 7
    %v2004 = vsub.s32 %v2001, %v2003
    %v2005 = vrot.slane %v1991, %v2004
    %v2006 = vcombine.low %v1998, %v2005
    %v2007 = vcombine.low %v1018, %v1026
    %v2008 = vcombine.low %v1025, %v1034
    %v2010 = vunpack.c.l.s4 1983009808
    %v2011 = vunpack.c.0.s8 %v2010
    %v2012 = vlaneseq
    %v2013 = vshrl.u32 %v2012, 7
    %v2014 = vsub.s32 %v2011, %v2013
    %v2015 = vrot.slane %v2007, %v2014
    %v2017 = vunpack.c.l.s4 1983009808
    %v2018 = vunpack.c.0.s8 %v2017
    %v2019 = vlaneseq
    %v2020 = vshrl.u32 %v2019, 7
    %v2021 = vsub.s32 %v2018, %v2020
    %v2022 = vrot.slane %v2008, %v2021
    %v2023 = vcombine.low %v2015, %v2022
    %v2024 = vcombine.low %v1042, %v1041
    %v2025 = vcombine.low %v1043, %v1051
    %v2027 = vunpack.c.l.s4 1983009808
    %v2028 = vunpack.c.0.s8 %v2027
    %v2029 = vlaneseq
    %v2030 = vshrl.u32 %v2029, 7
    %v2031 = vsub.s32 %v2028, %v2030
    %v2032 = vrot.slane %v2024, %v2031
    %v2034 = vunpack.c.l.s4 1983009808
    %v2035 = vunpack.c.0.s8 %v2034
    %v2036 = vlaneseq
    %v2037 = vshrl.u32 %v2036, 7
    %v2038 = vsub.s32 %v2035, %v2037
    %v2039 = vrot.slane %v2025, %v2038
    %v2040 = vcombine.low %v2032, %v2039
    %v2041 = vcombine.low %v1059, %v1058
    %v2042 = vcombine.low %v1067, %v1075
    %v2044 = vunpack.c.l.s4 1983009808
    %v2045 = vunpack.c.0.s8 %v2044
    %v2046 = vlaneseq
    %v2047 = vshrl.u32 %v2046, 7
    %v2048 = vsub.s32 %v2045, %v2047
    %v2049 = vrot.slane %v2041, %v2048
    %v2051 = vunpack.c.l.s4 1983009808
    %v2052 = vunpack.c.0.s8 %v2051
    %v2053 = vlaneseq
    %v2054 = vshrl.u32 %v2053, 7
    %v2055 = vsub.s32 %v2052, %v2054
    %v2056 = vrot.slane %v2042, %v2055
    %v2057 = vcombine.low %v2049, %v2056
    %v2058 = vcombine.low %v1074, %v1076
    %v2059 = vcombine.low %v1084, %v1092
    %v2061 = vunpack.c.l.s4 1983009808
    %v2062 = vunpack.c.0.s8 %v2061
    %v2063 = vlaneseq
    %v2064 = vshrl.u32 %v2063, 7
    %v2065 = vsub.s32 %v2062, %v2064
    %v2066 = vrot.slane %v2058, %v2065
    %v2068 = vunpack.c.l.s4 1983009808
    %v2069 = vunpack.c.0.s8 %v2068
    %v2070 = vlaneseq
    %v2071 = vshrl.u32 %v2070, 7
    %v2072 = vsub.s32 %v2069, %v2071
    %v2073 = vrot.slane %v2059, %v2072
    %v2074 = vcombine.low %v2066, %v2073
    %v2075 = vcombine.low %v1091, %v1100
    %v2076 = vcombine.low %v1108, %v1107
    %v2078 = vunpack.c.l.s4 1983009808
    %v2079 = vunpack.c.0.s8 %v2078
    %v2080 = vlaneseq
    %v2081 = vshrl.u32 %v2080, 7
    %v2082 = vsub.s32 %v2079, %v2081
    %v2083 = vrot.slane %v2075, %v2082
    %v2085 = vunpack.c.l.s4 1983009808
    %v2086 = vunpack.c.0.s8 %v2085
    %v2087 = vlaneseq
    %v2088 = vshrl.u32 %v2087, 7
    %v2089 = vsub.s32 %v2086, %v2088
    %v2090 = vrot.slane %v2076, %v2089
    %v2091 = vcombine.low %v2083, %v2090
    %v2092 = vcombine.low %v1109, %v1117
    %v2093 = vcombine.low %v1125, %v1124
    %v2095 = vunpack.c.l.s4 1983009808
    %v2096 = vunpack.c.0.s8 %v2095
    %v2097 = vlaneseq
    %v2098 = vshrl.u32 %v2097, 7
    %v2099 = vsub.s32 %v2096, %v2098
    %v2100 = vrot.slane %v2092, %v2099
    %v2102 = vunpack.c.l.s4 1983009808
    %v2103 = vunpack.c.0.s8 %v2102
    %v2104 = vlaneseq
    %v2105 = vshrl.u32 %v2104, 7
    %v2106 = vsub.s32 %v2103, %v2105
    %v2107 = vrot.slane %v2093, %v2106
    %v2108 = vcombine.low %v2100, %v2107
    %v2109 = vcombine.low %v1133, %v1141
    %v2110 = vcombine.low %v1140, %v1142
    %v2112 = vunpack.c.l.s4 1983009808
    %v2113 = vunpack.c.0.s8 %v2112
    %v2114 = vlaneseq
    %v2115 = vshrl.u32 %v2114, 7
    %v2116 = vsub.s32 %v2113, %v2115
    %v2117 = vrot.slane %v2109, %v2116
    %v2119 = vunpack.c.l.s4 1983009808
    %v2120 = vunpack.c.0.s8 %v2119
    %v2121 = vlaneseq
    %v2122 = vshrl.u32 %v2121, 7
    %v2123 = vsub.s32 %v2120, %v2122
    %v2124 = vrot.slane %v2110, %v2123
    %v2125 = vcombine.low %v2117, %v2124
    %v2126 = vcombine.low %v1150, %v1158
    %v2127 = vcombine.low %v1157, %v1166
    %v2129 = vunpack.c.l.s4 1983009808
    %v2130 = vunpack.c.0.s8 %v2129
    %v2131 = vlaneseq
    %v2132 = vshrl.u32 %v2131, 7
    %v2133 = vsub.s32 %v2130, %v2132
    %v2134 = vrot.slane %v2126, %v2133
    %v2136 = vunpack.c.l.s4 1983009808
    %v2137 = vunpack.c.0.s8 %v2136
    %v2138 = vlaneseq
    %v2139 = vshrl.u32 %v2138, 7
    %v2140 = vsub.s32 %v2137, %v2139
    %v2141 = vrot.slane %v2127, %v2140
    %v2142 = vcombine.low %v2134, %v2141
    %v2143 = vcombine.low %v1174, %v1173
    %v2144 = vcombine.low %v1175, %v1183
    %v2146 = vunpack.c.l.s4 1983009808
    %v2147 = vunpack.c.0.s8 %v2146
    %v2148 = vlaneseq
    %v2149 = vshrl.u32 %v2148, 7
    %v2150 = vsub.s32 %v2147, %v2149
    %v2151 = vrot.slane %v2143, %v2150
    %v2153 = vunpack.c.l.s4 1983009808
    %v2154 = vunpack.c.0.s8 %v2153
    %v2155 = vlaneseq
    %v2156 = vshrl.u32 %v2155, 7
    %v2157 = vsub.s32 %v2154, %v2156
    %v2158 = vrot.slane %v2144, %v2157
    %v2159 = vcombine.low %v2151, %v2158
    %v2160 = vcombine.low %v1191, %v1190
    %v2161 = vcombine.low %v1199, %v1207
    %v2163 = vunpack.c.l.s4 1983009808
    %v2164 = vunpack.c.0.s8 %v2163
    %v2165 = vlaneseq
    %v2166 = vshrl.u32 %v2165, 7
    %v2167 = vsub.s32 %v2164, %v2166
    %v2168 = vrot.slane %v2160, %v2167
    %v2170 = vunpack.c.l.s4 1983009808
    %v2171 = vunpack.c.0.s8 %v2170
    %v2172 = vlaneseq
    %v2173 = vshrl.u32 %v2172, 7
    %v2174 = vsub.s32 %v2171, %v2173
    %v2175 = vrot.slane %v2161, %v2174
    %v2176 = vcombine.low %v2168, %v2175
    %v2177 = vcombine.low %v1206, %v1208
    %v2178 = vcombine.low %v1216, %v1224
    %v2180 = vunpack.c.l.s4 1983009808
    %v2181 = vunpack.c.0.s8 %v2180
    %v2182 = vlaneseq
    %v2183 = vshrl.u32 %v2182, 7
    %v2184 = vsub.s32 %v2181, %v2183
    %v2185 = vrot.slane %v2177, %v2184
    %v2187 = vunpack.c.l.s4 1983009808
    %v2188 = vunpack.c.0.s8 %v2187
    %v2189 = vlaneseq
    %v2190 = vshrl.u32 %v2189, 7
    %v2191 = vsub.s32 %v2188, %v2190
    %v2192 = vrot.slane %v2178, %v2191
    %v2193 = vcombine.low %v2185, %v2192
    %v2194 = vcombine.low %v1223, %v1232
    %v2195 = vcombine.low %v1240, %v1239
    %v2197 = vunpack.c.l.s4 1983009808
    %v2198 = vunpack.c.0.s8 %v2197
    %v2199 = vlaneseq
    %v2200 = vshrl.u32 %v2199, 7
    %v2201 = vsub.s32 %v2198, %v2200
    %v2202 = vrot.slane %v2194, %v2201
    %v2204 = vunpack.c.l.s4 1983009808
    %v2205 = vunpack.c.0.s8 %v2204
    %v2206 = vlaneseq
    %v2207 = vshrl.u32 %v2206, 7
    %v2208 = vsub.s32 %v2205, %v2207
    %v2209 = vrot.slane %v2195, %v2208
    %v2210 = vcombine.low %v2202, %v2209
    %v2211 = vcombine.low %v1241, %v1249
    %v2212 = vcombine.low %v1257, %v1256
    %v2214 = vunpack.c.l.s4 1983009808
    %v2215 = vunpack.c.0.s8 %v2214
    %v2216 = vlaneseq
    %v2217 = vshrl.u32 %v2216, 7
    %v2218 = vsub.s32 %v2215, %v2217
    %v2219 = vrot.slane %v2211, %v2218
    %v2221 = vunpack.c.l.s4 1983009808
    %v2222 = vunpack.c.0.s8 %v2221
    %v2223 = vlaneseq
    %v2224 = vshrl.u32 %v2223, 7
    %v2225 = vsub.s32 %v2222, %v2224
    %v2226 = vrot.slane %v2212, %v2225
    %v2227 = vcombine.low %v2219, %v2226
    %v2228 = vcombine.low %v1265, %v1273
    %v2229 = vcombine.low %v1272, %v1274
    %v2231 = vunpack.c.l.s4 1983009808
    %v2232 = vunpack.c.0.s8 %v2231
    %v2233 = vlaneseq
    %v2234 = vshrl.u32 %v2233, 7
    %v2235 = vsub.s32 %v2232, %v2234
    %v2236 = vrot.slane %v2228, %v2235
    %v2238 = vunpack.c.l.s4 1983009808
    %v2239 = vunpack.c.0.s8 %v2238
    %v2240 = vlaneseq
    %v2241 = vshrl.u32 %v2240, 7
    %v2242 = vsub.s32 %v2239, %v2241
    %v2243 = vrot.slane %v2229, %v2242
    %v2244 = vcombine.low %v2236, %v2243
    %v2245 = vcombine.low %v1282, %v1290
    %v2246 = vcombine.low %v1289, %v1812
    %v2248 = vunpack.c.l.s4 1983009808
    %v2249 = vunpack.c.0.s8 %v2248
    %v2250 = vlaneseq
    %v2251 = vshrl.u32 %v2250, 7
    %v2252 = vsub.s32 %v2249, %v2251
    %v2253 = vrot.slane %v2245, %v2252
    %v2255 = vunpack.c.l.s4 1983009808
    %v2256 = vunpack.c.0.s8 %v2255
    %v2257 = vlaneseq
    %v2258 = vshrl.u32 %v2257, 7
    %v2259 = vsub.s32 %v2256, %v2258
    %v2260 = vrot.slane %v2246, %v2259
    %v2261 = vcombine.low %v2253, %v2260
    %v2262 = vcombine.low %v1820, %v1819
    %v2263 = vcombine.low %v1821, %v1829
    %v2265 = vunpack.c.l.s4 1983009808
    %v2266 = vunpack.c.0.s8 %v2265
    %v2267 = vlaneseq
    %v2268 = vshrl.u32 %v2267, 7
    %v2269 = vsub.s32 %v2266, %v2268
    %v2270 = vrot.slane %v2262, %v2269
    %v2272 = vunpack.c.l.s4 1983009808
    %v2273 = vunpack.c.0.s8 %v2272
    %v2274 = vlaneseq
    %v2275 = vshrl.u32 %v2274, 7
    %v2276 = vsub.s32 %v2273, %v2275
    %v2277 = vrot.slane %v2263, %v2276
    %v2278 = vcombine.low %v2270, %v2277
    %v2279 = vcombine.low %v1837, %v1836
    %v2280 = vcombine.low %v1331, %v1339
    %v2282 = vunpack.c.l.s4 1983009808
    %v2283 = vunpack.c.0.s8 %v2282
    %v2284 = vlaneseq
    %v2285 = vshrl.u32 %v2284, 7
    %v2286 = vsub.s32 %v2283, %v2285
    %v2287 = vrot.slane %v2279, %v2286
    %v2289 = vunpack.c.l.s4 1983009808
    %v2290 = vunpack.c.0.s8 %v2289
    %v2291 = vlaneseq
    %v2292 = vshrl.u32 %v2291, 7
    %v2293 = vsub.s32 %v2290, %v2292
    %v2294 = vrot.slane %v2280, %v2293
    %v2295 = vcombine.low %v2287, %v2294
    %v2296 = vcombine.low %v1338, %v1340
    %v2297 = vcombine.low %v1348, %v1356
    %v2299 = vunpack.c.l.s4 1983009808
    %v2300 = vunpack.c.0.s8 %v2299
    %v2301 = vlaneseq
    %v2302 = vshrl.u32 %v2301, 7
    %v2303 = vsub.s32 %v2300, %v2302
    %v2304 = vrot.slane %v2296, %v2303
    %v2306 = vunpack.c.l.s4 1983009808
    %v2307 = vunpack.c.0.s8 %v2306
    %v2308 = vlaneseq
    %v2309 = vshrl.u32 %v2308, 7
    %v2310 = vsub.s32 %v2307, %v2309
    %v2311 = vrot.slane %v2297, %v2310
    %v2312 = vcombine.low %v2304, %v2311
    %v2313 = vcombine.low %v1355, %v1364
    %v2314 = vcombine.low %v1372, %v1371
    %v2316 = vunpack.c.l.s4 1983009808
    %v2317 = vunpack.c.0.s8 %v2316
    %v2318 = vlaneseq
    %v2319 = vshrl.u32 %v2318, 7
    %v2320 = vsub.s32 %v2317, %v2319
    %v2321 = vrot.slane %v2313, %v2320
    %v2323 = vunpack.c.l.s4 1983009808
    %v2324 = vunpack.c.0.s8 %v2323
    %v2325 = vlaneseq
    %v2326 = vshrl.u32 %v2325, 7
    %v2327 = vsub.s32 %v2324, %v2326
    %v2328 = vrot.slane %v2314, %v2327
    %v2329 = vcombine.low %v2321, %v2328
    %v2330 = vcombine.low %v1373, %v1381
    %v2331 = vcombine.low %v1389, %v1388
    %v2333 = vunpack.c.l.s4 1983009808
    %v2334 = vunpack.c.0.s8 %v2333
    %v2335 = vlaneseq
    %v2336 = vshrl.u32 %v2335, 7
    %v2337 = vsub.s32 %v2334, %v2336
    %v2338 = vrot.slane %v2330, %v2337
    %v2340 = vunpack.c.l.s4 1983009808
    %v2341 = vunpack.c.0.s8 %v2340
    %v2342 = vlaneseq
    %v2343 = vshrl.u32 %v2342, 7
    %v2344 = vsub.s32 %v2341, %v2343
    %v2345 = vrot.slane %v2331, %v2344
    %v2346 = vcombine.low %v2338, %v2345
    %v2347 = vcombine.low %v1397, %v1405
    %v2348 = vcombine.low %v1404, %v1406
    %v2350 = vunpack.c.l.s4 1983009808
    %v2351 = vunpack.c.0.s8 %v2350
    %v2352 = vlaneseq
    %v2353 = vshrl.u32 %v2352, 7
    %v2354 = vsub.s32 %v2351, %v2353
    %v2355 = vrot.slane %v2347, %v2354
    %v2357 = vunpack.c.l.s4 1983009808
    %v2358 = vunpack.c.0.s8 %v2357
    %v2359 = vlaneseq
    %v2360 = vshrl.u32 %v2359, 7
    %v2361 = vsub.s32 %v2358, %v2360
    %v2362 = vrot.slane %v2348, %v2361
    %v2363 = vcombine.low %v2355, %v2362
    %v2364 = vcombine.low %v1414, %v1422
    %v2365 = vcombine.low %v1421, %v1430
    %v2367 = vunpack.c.l.s4 1983009808
    %v2368 = vunpack.c.0.s8 %v2367
    %v2369 = vlaneseq
    %v2370 = vshrl.u32 %v2369, 7
    %v2371 = vsub.s32 %v2368, %v2370
    %v2372 = vrot.slane %v2364, %v2371
    %v2374 = vunpack.c.l.s4 1983009808
    %v2375 = vunpack.c.0.s8 %v2374
    %v2376 = vlaneseq
    %v2377 = vshrl.u32 %v2376, 7
    %v2378 = vsub.s32 %v2375, %v2377
    %v2379 = vrot.slane %v2365, %v2378
    %v2380 = vcombine.low %v2372, %v2379
    %v2381 = vcombine.low %v1438, %v1437
    %v2382 = vcombine.low %v1439, %v1447
    %v2384 = vunpack.c.l.s4 1983009808
    %v2385 = vunpack.c.0.s8 %v2384
    %v2386 = vlaneseq
    %v2387 = vshrl.u32 %v2386, 7
    %v2388 = vsub.s32 %v2385, %v2387
    %v2389 = vrot.slane %v2381, %v2388
    %v2391 = vunpack.c.l.s4 1983009808
    %v2392 = vunpack.c.0.s8 %v2391
    %v2393 = vlaneseq
    %v2394 = vshrl.u32 %v2393, 7
    %v2395 = vsub.s32 %v2392, %v2394
    %v2396 = vrot.slane %v2382, %v2395
    %v2397 = vcombine.low %v2389, %v2396
    %v2398 = vcombine.low %v1455, %v1454
    %v2399 = vcombine.low %v1463, %v1471
    %v2401 = vunpack.c.l.s4 1983009808
    %v2402 = vunpack.c.0.s8 %v2401
    %v2403 = vlaneseq
    %v2404 = vshrl.u32 %v2403, 7
    %v2405 = vsub.s32 %v2402, %v2404
    %v2406 = vrot.slane %v2398, %v2405
    %v2408 = vunpack.c.l.s4 1983009808
    %v2409 = vunpack.c.0.s8 %v2408
    %v2410 = vlaneseq
    %v2411 = vshrl.u32 %v2410, 7
    %v2412 = vsub.s32 %v2409, %v2411
    %v2413 = vrot.slane %v2399, %v2412
    %v2414 = vcombine.low %v2406, %v2413
    %v2415 = vcombine.low %v1470, %v1472
    %v2416 = vcombine.low %v1480, %v1488
    %v2418 = vunpack.c.l.s4 1983009808
    %v2419 = vunpack.c.0.s8 %v2418
    %v2420 = vlaneseq
    %v2421 = vshrl.u32 %v2420, 7
    %v2422 = vsub.s32 %v2419, %v2421
    %v2423 = vrot.slane %v2415, %v2422
    %v2425 = vunpack.c.l.s4 1983009808
    %v2426 = vunpack.c.0.s8 %v2425
    %v2427 = vlaneseq
    %v2428 = vshrl.u32 %v2427, 7
    %v2429 = vsub.s32 %v2426, %v2428
    %v2430 = vrot.slane %v2416, %v2429
    %v2431 = vcombine.low %v2423, %v2430
    %v2432 = vcombine.low %v1487, %v1496
    %v2433 = vcombine.low %v1504, %v1503
    %v2435 = vunpack.c.l.s4 1983009808
    %v2436 = vunpack.c.0.s8 %v2435
    %v2437 = vlaneseq
    %v2438 = vshrl.u32 %v2437, 7
    %v2439 = vsub.s32 %v2436, %v2438
    %v2440 = vrot.slane %v2432, %v2439
    %v2442 = vunpack.c.l.s4 1983009808
    %v2443 = vunpack.c.0.s8 %v2442
    %v2444 = vlaneseq
    %v2445 = vshrl.u32 %v2444, 7
    %v2446 = vsub.s32 %v2443, %v2445
    %v2447 = vrot.slane %v2433, %v2446
    %v2448 = vcombine.low %v2440, %v2447
    %v2449 = vcombine.low %v1505, %v1513
    %v2450 = vcombine.low %v1521, %v1520
    %v2452 = vunpack.c.l.s4 1983009808
    %v2453 = vunpack.c.0.s8 %v2452
    %v2454 = vlaneseq
    %v2455 = vshrl.u32 %v2454, 7
    %v2456 = vsub.s32 %v2453, %v2455
    %v2457 = vrot.slane %v2449, %v2456
    %v2459 = vunpack.c.l.s4 1983009808
    %v2460 = vunpack.c.0.s8 %v2459
    %v2461 = vlaneseq
    %v2462 = vshrl.u32 %v2461, 7
    %v2463 = vsub.s32 %v2460, %v2462
    %v2464 = vrot.slane %v2450, %v2463
    %v2465 = vcombine.low %v2457, %v2464
    %v2466 = vcombine.low %v1529, %v1537
    %v2467 = vcombine.low %v1536, %v1538
    %v2469 = vunpack.c.l.s4 1983009808
    %v2470 = vunpack.c.0.s8 %v2469
    %v2471 = vlaneseq
    %v2472 = vshrl.u32 %v2471, 7
    %v2473 = vsub.s32 %v2470, %v2472
    %v2474 = vrot.slane %v2466, %v2473
    %v2476 = vunpack.c.l.s4 1983009808
    %v2477 = vunpack.c.0.s8 %v2476
    %v2478 = vlaneseq
    %v2479 = vshrl.u32 %v2478, 7
    %v2480 = vsub.s32 %v2477, %v2479
    %v2481 = vrot.slane %v2467, %v2480
    %v2482 = vcombine.low %v2474, %v2481
    %v2483 = vcombine.low %v1546, %v1554
    %v2484 = vcombine.low %v1553, %v1562
    %v2486 = vunpack.c.l.s4 1983009808
    %v2487 = vunpack.c.0.s8 %v2486
    %v2488 = vlaneseq
    %v2489 = vshrl.u32 %v2488, 7
    %v2490 = vsub.s32 %v2487, %v2489
    %v2491 = vrot.slane %v2483, %v2490
    %v2493 = vunpack.c.l.s4 1983009808
    %v2494 = vunpack.c.0.s8 %v2493
    %v2495 = vlaneseq
    %v2496 = vshrl.u32 %v2495, 7
    %v2497 = vsub.s32 %v2494, %v2496
    %v2498 = vrot.slane %v2484, %v2497
    %v2499 = vcombine.low %v2491, %v2498
    %v2500 = vcombine.low %v1570, %v1569
    %v2501 = vcombine.low %v1571, %v1579
    %v2503 = vunpack.c.l.s4 1983009808
    %v2504 = vunpack.c.0.s8 %v2503
    %v2505 = vlaneseq
    %v2506 = vshrl.u32 %v2505, 7
    %v2507 = vsub.s32 %v2504, %v2506
    %v2508 = vrot.slane %v2500, %v2507
    %v2510 = vunpack.c.l.s4 1983009808
    %v2511 = vunpack.c.0.s8 %v2510
    %v2512 = vlaneseq
    %v2513 = vshrl.u32 %v2512, 7
    %v2514 = vsub.s32 %v2511, %v2513
    %v2515 = vrot.slane %v2501, %v2514
    %v2516 = vcombine.low %v2508, %v2515
    %v2517 = vcombine.low %v1587, %v1586
    %v2518 = vcombine.low %v1595, %v1603
    %v2520 = vunpack.c.l.s4 1983009808
    %v2521 = vunpack.c.0.s8 %v2520
    %v2522 = vlaneseq
    %v2523 = vshrl.u32 %v2522, 7
    %v2524 = vsub.s32 %v2521, %v2523
    %v2525 = vrot.slane %v2517, %v2524
    %v2527 = vunpack.c.l.s4 1983009808
    %v2528 = vunpack.c.0.s8 %v2527
    %v2529 = vlaneseq
    %v2530 = vshrl.u32 %v2529, 7
    %v2531 = vsub.s32 %v2528, %v2530
    %v2532 = vrot.slane %v2518, %v2531
    %v2533 = vcombine.low %v2525, %v2532
    %v2534 = vcombine.low %v1602, %v1604
    %v2535 = vcombine.low %v1612, %v1620
    %v2537 = vunpack.c.l.s4 1983009808
    %v2538 = vunpack.c.0.s8 %v2537
    %v2539 = vlaneseq
    %v2540 = vshrl.u32 %v2539, 7
    %v2541 = vsub.s32 %v2538, %v2540
    %v2542 = vrot.slane %v2534, %v2541
    %v2544 = vunpack.c.l.s4 1983009808
    %v2545 = vunpack.c.0.s8 %v2544
    %v2546 = vlaneseq
    %v2547 = vshrl.u32 %v2546, 7
    %v2548 = vsub.s32 %v2545, %v2547
    %v2549 = vrot.slane %v2535, %v2548
    %v2550 = vcombine.low %v2542, %v2549
    %v2551 = vcombine.low %v1619, %v1628
    %v2552 = vcombine.low %v1636, %v1635
    %v2554 = vunpack.c.l.s4 1983009808
    %v2555 = vunpack.c.0.s8 %v2554
    %v2556 = vlaneseq
    %v2557 = vshrl.u32 %v2556, 7
    %v2558 = vsub.s32 %v2555, %v2557
    %v2559 = vrot.slane %v2551, %v2558
    %v2561 = vunpack.c.l.s4 1983009808
    %v2562 = vunpack.c.0.s8 %v2561
    %v2563 = vlaneseq
    %v2564 = vshrl.u32 %v2563, 7
    %v2565 = vsub.s32 %v2562, %v2564
    %v2566 = vrot.slane %v2552, %v2565
    %v2567 = vcombine.low %v2559, %v2566
    %v2568 = vcombine.low %v1637, %v1645
    %v2569 = vcombine.low %v1653, %v1652
    %v2571 = vunpack.c.l.s4 1983009808
    %v2572 = vunpack.c.0.s8 %v2571
    %v2573 = vlaneseq
    %v2574 = vshrl.u32 %v2573, 7
    %v2575 = vsub.s32 %v2572, %v2574
    %v2576 = vrot.slane %v2568, %v2575
    %v2578 = vunpack.c.l.s4 1983009808
    %v2579 = vunpack.c.0.s8 %v2578
    %v2580 = vlaneseq
    %v2581 = vshrl.u32 %v2580, 7
    %v2582 = vsub.s32 %v2579, %v2581
    %v2583 = vrot.slane %v2569, %v2582
    %v2584 = vcombine.low %v2576, %v2583
    %v2585 = vcombine.low %v1661, %v1669
    %v2586 = vcombine.low %v1668, %v1670
    %v2588 = vunpack.c.l.s4 1983009808
    %v2589 = vunpack.c.0.s8 %v2588
    %v2590 = vlaneseq
    %v2591 = vshrl.u32 %v2590, 7
    %v2592 = vsub.s32 %v2589, %v2591
    %v2593 = vrot.slane %v2585, %v2592
    %v2595 = vunpack.c.l.s4 1983009808
    %v2596 = vunpack.c.0.s8 %v2595
    %v2597 = vlaneseq
    %v2598 = vshrl.u32 %v2597, 7
    %v2599 = vsub.s32 %v2596, %v2598
    %v2600 = vrot.slane %v2586, %v2599
    %v2601 = vcombine.low %v2593, %v2600
    %v2602 = vcombine.low %v1678, %v1686
    %v2603 = vcombine.low %v1685, %v1694
    %v2605 = vunpack.c.l.s4 1983009808
    %v2606 = vunpack.c.0.s8 %v2605
    %v2607 = vlaneseq
    %v2608 = vshrl.u32 %v2607, 7
    %v2609 = vsub.s32 %v2606, %v2608
    %v2610 = vrot.slane %v2602, %v2609
    %v2612 = vunpack.c.l.s4 1983009808
    %v2613 = vunpack.c.0.s8 %v2612
    %v2614 = vlaneseq
    %v2615 = vshrl.u32 %v2614, 7
    %v2616 = vsub.s32 %v2613, %v2615
    %v2617 = vrot.slane %v2603, %v2616
    %v2618 = vcombine.low %v2610, %v2617
    %v2619 = vcombine.low %v1702, %v1701
    %v2620 = vcombine.low %v1703, %v1711
    %v2622 = vunpack.c.l.s4 1983009808
    %v2623 = vunpack.c.0.s8 %v2622
    %v2624 = vlaneseq
    %v2625 = vshrl.u32 %v2624, 7
    %v2626 = vsub.s32 %v2623, %v2625
    %v2627 = vrot.slane %v2619, %v2626
    %v2629 = vunpack.c.l.s4 1983009808
    %v2630 = vunpack.c.0.s8 %v2629
    %v2631 = vlaneseq
    %v2632 = vshrl.u32 %v2631, 7
    %v2633 = vsub.s32 %v2630, %v2632
    %v2634 = vrot.slane %v2620, %v2633
    %v2635 = vcombine.low %v2627, %v2634
    %v2636 = vcombine.low %v1719, %v1718
    %v2637 = vcombine.low %v1727, %v1735
    %v2639 = vunpack.c.l.s4 1983009808
    %v2640 = vunpack.c.0.s8 %v2639
    %v2641 = vlaneseq
    %v2642 = vshrl.u32 %v2641, 7
    %v2643 = vsub.s32 %v2640, %v2642
    %v2644 = vrot.slane %v2636, %v2643
    %v2646 = vunpack.c.l.s4 1983009808
    %v2647 = vunpack.c.0.s8 %v2646
    %v2648 = vlaneseq
    %v2649 = vshrl.u32 %v2648, 7
    %v2650 = vsub.s32 %v2647, %v2649
    %v2651 = vrot.slane %v2637, %v2650
    %v2652 = vcombine.low %v2644, %v2651
    %v2653 = vcombine.low %v1734, %v1736
    %v2654 = vcombine.low %v1744, %v1752
    %v2656 = vunpack.c.l.s4 1983009808
    %v2657 = vunpack.c.0.s8 %v2656
    %v2658 = vlaneseq
    %v2659 = vshrl.u32 %v2658, 7
    %v2660 = vsub.s32 %v2657, %v2659
    %v2661 = vrot.slane %v2653, %v2660
    %v2663 = vunpack.c.l.s4 1983009808
    %v2664 = vunpack.c.0.s8 %v2663
    %v2665 = vlaneseq
    %v2666 = vshrl.u32 %v2665, 7
    %v2667 = vsub.s32 %v2664, %v2666
    %v2668 = vrot.slane %v2654, %v2667
    %v2669 = vcombine.low %v2661, %v2668
    %v2670 = vcombine.low %v1751, %v1845
    %v2671 = vcombine.low %v1853, %v1852
    %v2673 = vunpack.c.l.s4 1983009808
    %v2674 = vunpack.c.0.s8 %v2673
    %v2675 = vlaneseq
    %v2676 = vshrl.u32 %v2675, 7
    %v2677 = vsub.s32 %v2674, %v2676
    %v2678 = vrot.slane %v2670, %v2677
    %v2680 = vunpack.c.l.s4 1983009808
    %v2681 = vunpack.c.0.s8 %v2680
    %v2682 = vlaneseq
    %v2683 = vshrl.u32 %v2682, 7
    %v2684 = vsub.s32 %v2681, %v2683
    %v2685 = vrot.slane %v2671, %v2684
    %v2686 = vcombine.low %v2678, %v2685
    %v2687 = vcombine.low %v1854, %v1862
    %v2688 = vcombine.low %v1870, %v1869
    %v2690 = vunpack.c.l.s4 1983009808
    %v2691 = vunpack.c.0.s8 %v2690
    %v2692 = vlaneseq
    %v2693 = vshrl.u32 %v2692, 7
    %v2694 = vsub.s32 %v2691, %v2693
    %v2695 = vrot.slane %v2687, %v2694
    %v2697 = vunpack.c.l.s4 1983009808
    %v2698 = vunpack.c.0.s8 %v2697
    %v2699 = vlaneseq
    %v2700 = vshrl.u32 %v2699, 7
    %v2701 = vsub.s32 %v2698, %v2700
    %v2702 = vrot.slane %v2688, %v2701
    %v2703 = vcombine.low %v2695, %v2702
    %vm2704 = vcmask 97280
    %v2705 = vsel %vm2704, %v1887, 0
    %v2707 = vsel %vm2704, %v1904, 0
    %v2709 = vsel %vm2704, %v1921, 0
    %v2711 = vsel %vm2704, %v1938, 0
    %v2713 = vsel %vm2704, %v1955, 0
    %v2715 = vsel %vm2704, %v1972, 0
    %v2717 = vsel %vm2704, %v1989, 0
    %v2719 = vsel %vm2704, %v2006, 0
    %v2721 = vsel %vm2704, %v2023, 0
    %v2723 = vsel %vm2704, %v2040, 0
    %v2725 = vsel %vm2704, %v2057, 0
    %v2727 = vsel %vm2704, %v2074, 0
    %v2729 = vsel %vm2704, %v2091, 0
    %v2731 = vsel %vm2704, %v2108, 0
    %v2733 = vsel %vm2704, %v2125, 0
    %v2735 = vsel %vm2704, %v2142, 0
    %v2737 = vsel %vm2704, %v2159, 0
    %v2739 = vsel %vm2704, %v2176, 0
    %v2741 = vsel %vm2704, %v2193, 0
    %v2743 = vsel %vm2704, %v2210, 0
    %v2745 = vsel %vm2704, %v2227, 0
    %v2747 = vsel %vm2704, %v2244, 0
    %v2749 = vsel %vm2704, %v2261, 0
    %v2751 = vsel %vm2704, %v2278, 0
    %v2753 = vsel %vm2704, %v2295, 0
    %v2755 = vsel %vm2704, %v2312, 0
    %v2757 = vsel %vm2704, %v2329, 0
    %v2759 = vsel %vm2704, %v2346, 0
    %v2761 = vsel %vm2704, %v2363, 0
    %v2763 = vsel %vm2704, %v2380, 0
    %v2765 = vsel %vm2704, %v2397, 0
    %v2767 = vsel %vm2704, %v2414, 0
    %v2769 = vsel %vm2704, %v2431, 0
    %v2771 = vsel %vm2704, %v2448, 0
    %v2773 = vsel %vm2704, %v2465, 0
    %v2775 = vsel %vm2704, %v2482, 0
    %v2777 = vsel %vm2704, %v2499, 0
    %v2779 = vsel %vm2704, %v2516, 0
    %v2781 = vsel %vm2704, %v2533, 0
    %v2783 = vsel %vm2704, %v2550, 0
    %v2785 = vsel %vm2704, %v2567, 0
    %v2787 = vsel %vm2704, %v2584, 0
    %v2789 = vsel %vm2704, %v2601, 0
    %v2791 = vsel %vm2704, %v2618, 0
    %v2793 = vsel %vm2704, %v2635, 0
    %v2795 = vsel %vm2704, %v2652, 0
    %v2797 = vsel %vm2704, %v2669, 0
    %v2799 = vsel %vm2704, %v2686, 0
    %v2801 = vsel %vm2704, %v2703, 0
    %vm2803 = vcmask 1043456
    %v2805 = vsel %vm2803, %v21, 0
    %2807 = vmatprep.subr.mxu0 0.0
    %2808 = vmatpush1.msra.mxu0 0.0
    %2809 = vmatprep.subr.mxu0 0.0
    %2810 = vmatpush1.msra.mxu0 0.0
    %2811 = vmatprep.subr.mxu0 0.0
    %2812 = vmatpush1.msra.mxu0 0.0
    %2813 = vmatprep.subr.mxu0 0.0
    %2814 = vmatpush1.msra.mxu0 0.0
    %2815 = vmatprep.subr.mxu0 0.0
    %2816 = vmatpush1.msra.mxu0 0.0
    %2817 = vmatprep.subr.mxu0 0.0
    %2818 = vmatpush1.msra.mxu0 0.0
    %2819 = vmatprep.subr.mxu0 0.0
    %2820 = vmatpush1.msra.mxu0 0.0
    %2821 = vmatprep.subr.mxu0 0.0
    %2822 = vmatpush1.msra.mxu0 0.0
    %2823 = vmatprep.subr.mxu0 0.0
    %2824 = vmatpush1.msra.mxu0 0.0
    %2825 = vmatprep.subr.mxu0 0.0
    %2826 = vmatpush1.msra.mxu0 0.0
    %2827 = vmatprep.subr.mxu0 0.0
    %2828 = vmatpush1.msra.mxu0 0.0
    %2829 = vmatprep.subr.mxu0 0.0
    %2830 = vmatpush1.msra.mxu0 0.0
    %2831 = vmatprep.subr.mxu0 0.0
    %2832 = vmatpush1.msra.mxu0 0.0
    %2833 = vmatprep.subr.mxu0 0.0
    %2834 = vmatpush1.msra.mxu0 0.0
    %2835 = vmatprep.subr.mxu0 0.0
    %2836 = vmatpush1.msra.mxu0 %v2805
    %2837 = vmatprep.subr.mxu0 0.0
    %2838 = vmatpush1.msra.mxu0 %v20
    %2839 = vmatprep.subr.mxu0 0.0
    %2840 = vmatpush2.msra.mxu0 0.0
    %2841 = vmatprep.subr.mxu0 0.0
    %2842 = vmatpush2.msra.mxu0 0.0
    %2843 = vmatprep.subr.mxu0 0.0
    %2844 = vmatpush2.msra.mxu0 0.0
    %2845 = vmatprep.subr.mxu0 0.0
    %2846 = vmatpush2.msra.mxu0 0.0
    %2847 = vmatprep.subr.mxu0 0.0
    %2848 = vmatpush2.msra.mxu0 0.0
    %2849 = vmatprep.subr.mxu0 0.0
    %2850 = vmatpush2.msra.mxu0 0.0
    %2851 = vmatprep.subr.mxu0 0.0
    %2852 = vmatpush2.msra.mxu0 0.0
    %2853 = vmatprep.subr.mxu0 0.0
    %2854 = vmatpush2.msra.mxu0 0.0
    %2855 = vmatprep.subr.mxu0 0.0
    %2856 = vmatpush2.msra.mxu0 0.0
    %2857 = vmatprep.subr.mxu0 0.0
    %2858 = vmatpush2.msra.mxu0 0.0
    %2859 = vmatprep.subr.mxu0 0.0
    %2860 = vmatpush2.msra.mxu0 0.0
    %2861 = vmatprep.subr.mxu0 0.0
    %2862 = vmatpush2.msra.mxu0 0.0
    %2863 = vmatprep.subr.mxu0 0.0
    %2864 = vmatpush2.msra.mxu0 0.0
    %2865 = vmatprep.subr.mxu0 0.0
    %2866 = vmatpush2.msra.mxu0 0.0
    %2867 = vmatprep.subr.mxu0 0.0
    %2868 = vmatpush2.msra.mxu0 0.0
    %2869 = vmatprep.subr.mxu0 0.0
    %2870 = vmatpush2.msra.mxu0 0.0
    %2871 = vmatprep.mubr.f32.mxu0 0.0
    %2872 = vmatmul.mubr.f32.gmra.mxu0 %v2705
    %v2873 = vpop.f32.mrf.mxu0
    %v2874 = vadd.f32 0.0, %v2873
    %v2875 = vpop.f32.mrf.mxu0
    %2876 = vmatprep.mubr.f32.mxu0 0.0
    %2877 = vmatmul.mubr.f32.gmra.mxu0 %v2707
    %v2878 = vpop.f32.mrf.mxu0
    %v2879 = vadd.f32 0.0, %v2878
    %v2880 = vpop.f32.mrf.mxu0
    %2881 = vmatprep.mubr.f32.mxu0 0.0
    %2882 = vmatmul.mubr.f32.gmra.mxu0 %v2709
    %v2883 = vpop.f32.mrf.mxu0
    %v2884 = vadd.f32 0.0, %v2883
    %v2885 = vpop.f32.mrf.mxu0
    %2886 = vmatprep.mubr.f32.mxu0 0.0
    %2887 = vmatmul.mubr.f32.gmra.mxu0 %v2711
    %v2888 = vpop.f32.mrf.mxu0
    %v2889 = vadd.f32 0.0, %v2888
    %v2890 = vpop.f32.mrf.mxu0
    %2891 = vmatprep.mubr.f32.mxu0 0.0
    %2892 = vmatmul.mubr.f32.gmra.mxu0 %v2713
    %v2893 = vpop.f32.mrf.mxu0
    %v2894 = vadd.f32 0.0, %v2893
    %v2895 = vpop.f32.mrf.mxu0
    %2896 = vmatprep.mubr.f32.mxu0 0.0
    %2897 = vmatmul.mubr.f32.gmra.mxu0 %v2715
    %v2898 = vpop.f32.mrf.mxu0
    %v2899 = vadd.f32 0.0, %v2898
    %v2900 = vpop.f32.mrf.mxu0
    %2901 = vmatprep.mubr.f32.mxu0 0.0
    %2902 = vmatmul.mubr.f32.gmra.mxu0 %v2717
    %v2903 = vpop.f32.mrf.mxu0
    %v2904 = vadd.f32 0.0, %v2903
    %v2905 = vpop.f32.mrf.mxu0
    %2906 = vmatprep.mubr.f32.mxu0 0.0
    %2907 = vmatmul.mubr.f32.gmra.mxu0 %v2719
    %v2908 = vpop.f32.mrf.mxu0
    %v2909 = vadd.f32 0.0, %v2908
    %v2910 = vpop.f32.mrf.mxu0
    %2911 = vmatprep.mubr.f32.mxu0 0.0
    %2912 = vmatmul.mubr.f32.gmra.mxu0 %v2721
    %v2913 = vpop.f32.mrf.mxu0
    %v2914 = vadd.f32 0.0, %v2913
    %v2915 = vpop.f32.mrf.mxu0
    %2916 = vmatprep.mubr.f32.mxu0 0.0
    %2917 = vmatmul.mubr.f32.gmra.mxu0 %v2723
    %v2918 = vpop.f32.mrf.mxu0
    %v2919 = vadd.f32 0.0, %v2918
    %v2920 = vpop.f32.mrf.mxu0
    %2921 = vmatprep.mubr.f32.mxu0 0.0
    %2922 = vmatmul.mubr.f32.gmra.mxu0 %v2725
    %v2923 = vpop.f32.mrf.mxu0
    %v2924 = vadd.f32 0.0, %v2923
    %v2925 = vpop.f32.mrf.mxu0
    %2926 = vmatprep.mubr.f32.mxu0 0.0
    %2927 = vmatmul.mubr.f32.gmra.mxu0 %v2727
    %v2928 = vpop.f32.mrf.mxu0
    %v2929 = vadd.f32 0.0, %v2928
    %v2930 = vpop.f32.mrf.mxu0
    %2931 = vmatprep.mubr.f32.mxu0 0.0
    %2932 = vmatmul.mubr.f32.gmra.mxu0 %v2729
    %v2933 = vpop.f32.mrf.mxu0
    %v2934 = vadd.f32 0.0, %v2933
    %v2935 = vpop.f32.mrf.mxu0
    %2936 = vmatprep.mubr.f32.mxu0 0.0
    %2937 = vmatmul.mubr.f32.gmra.mxu0 %v2731
    %v2938 = vpop.f32.mrf.mxu0
    %v2939 = vadd.f32 0.0, %v2938
    %v2940 = vpop.f32.mrf.mxu0
    %2941 = vmatprep.mubr.f32.mxu0 0.0
    %2942 = vmatmul.mubr.f32.gmra.mxu0 %v2733
    %v2943 = vpop.f32.mrf.mxu0
    %v2944 = vadd.f32 0.0, %v2943
    %v2945 = vpop.f32.mrf.mxu0
    %2946 = vmatprep.mubr.f32.mxu0 0.0
    %2947 = vmatmul.mubr.f32.gmra.mxu0 %v2735
    %v2948 = vpop.f32.mrf.mxu0
    %v2949 = vadd.f32 0.0, %v2948
    %v2950 = vpop.f32.mrf.mxu0
    %2951 = vmatprep.mubr.f32.mxu0 0.0
    %2952 = vmatmul.mubr.f32.gmra.mxu0 %v2737
    %v2953 = vpop.f32.mrf.mxu0
    %v2954 = vadd.f32 0.0, %v2953
    %v2955 = vpop.f32.mrf.mxu0
    %2956 = vmatprep.mubr.f32.mxu0 0.0
    %2957 = vmatmul.mubr.f32.gmra.mxu0 %v2739
    %v2958 = vpop.f32.mrf.mxu0
    %v2959 = vadd.f32 0.0, %v2958
    %v2960 = vpop.f32.mrf.mxu0
    %2961 = vmatprep.mubr.f32.mxu0 0.0
    %2962 = vmatmul.mubr.f32.gmra.mxu0 %v2741
    %v2963 = vpop.f32.mrf.mxu0
    %v2964 = vadd.f32 0.0, %v2963
    %v2965 = vpop.f32.mrf.mxu0
    %2966 = vmatprep.mubr.f32.mxu0 0.0
    %2967 = vmatmul.mubr.f32.gmra.mxu0 %v2743
    %v2968 = vpop.f32.mrf.mxu0
    %v2969 = vadd.f32 0.0, %v2968
    %v2970 = vpop.f32.mrf.mxu0
    %2971 = vmatprep.mubr.f32.mxu0 0.0
    %2972 = vmatmul.mubr.f32.gmra.mxu0 %v2745
    %v2973 = vpop.f32.mrf.mxu0
    %v2974 = vadd.f32 0.0, %v2973
    %v2975 = vpop.f32.mrf.mxu0
    %2976 = vmatprep.mubr.f32.mxu0 0.0
    %2977 = vmatmul.mubr.f32.gmra.mxu0 %v2747
    %v2978 = vpop.f32.mrf.mxu0
    %v2979 = vadd.f32 0.0, %v2978
    %v2980 = vpop.f32.mrf.mxu0
    %2981 = vmatprep.mubr.f32.mxu0 0.0
    %2982 = vmatmul.mubr.f32.gmra.mxu0 %v2749
    %v2983 = vpop.f32.mrf.mxu0
    %v2984 = vadd.f32 0.0, %v2983
    %v2985 = vpop.f32.mrf.mxu0
    %2986 = vmatprep.mubr.f32.mxu0 0.0
    %2987 = vmatmul.mubr.f32.gmra.mxu0 %v2751
    %v2988 = vpop.f32.mrf.mxu0
    %v2989 = vadd.f32 0.0, %v2988
    %v2990 = vpop.f32.mrf.mxu0
    %2991 = vmatprep.mubr.f32.mxu0 0.0
    %2992 = vmatmul.mubr.f32.gmra.mxu0 %v2753
    %v2993 = vpop.f32.mrf.mxu0
    %v2994 = vadd.f32 0.0, %v2993
    %v2995 = vpop.f32.mrf.mxu0
    %2996 = vmatprep.mubr.f32.mxu0 0.0
    %2997 = vmatmul.mubr.f32.gmra.mxu0 %v2755
    %v2998 = vpop.f32.mrf.mxu0
    %v2999 = vadd.f32 0.0, %v2998
    %v3000 = vpop.f32.mrf.mxu0
    %3001 = vmatprep.mubr.f32.mxu0 0.0
    %3002 = vmatmul.mubr.f32.gmra.mxu0 %v2757
    %v3003 = vpop.f32.mrf.mxu0
    %v3004 = vadd.f32 0.0, %v3003
    %v3005 = vpop.f32.mrf.mxu0
    %3006 = vmatprep.mubr.f32.mxu0 0.0
    %3007 = vmatmul.mubr.f32.gmra.mxu0 %v2759
    %v3008 = vpop.f32.mrf.mxu0
    %v3009 = vadd.f32 0.0, %v3008
    %v3010 = vpop.f32.mrf.mxu0
    %3011 = vmatprep.mubr.f32.mxu0 0.0
    %3012 = vmatmul.mubr.f32.gmra.mxu0 %v2761
    %v3013 = vpop.f32.mrf.mxu0
    %v3014 = vadd.f32 0.0, %v3013
    %v3015 = vpop.f32.mrf.mxu0
    %3016 = vmatprep.mubr.f32.mxu0 0.0
    %3017 = vmatmul.mubr.f32.gmra.mxu0 %v2763
    %v3018 = vpop.f32.mrf.mxu0
    %v3019 = vadd.f32 0.0, %v3018
    %v3020 = vpop.f32.mrf.mxu0
    %3021 = vmatprep.mubr.f32.mxu0 0.0
    %3022 = vmatmul.mubr.f32.gmra.mxu0 %v2765
    %v3023 = vpop.f32.mrf.mxu0
    %v3024 = vadd.f32 0.0, %v3023
    %v3025 = vpop.f32.mrf.mxu0
    %3026 = vmatprep.mubr.f32.mxu0 0.0
    %3027 = vmatmul.mubr.f32.gmra.mxu0 %v2767
    %v3028 = vpop.f32.mrf.mxu0
    %v3029 = vadd.f32 0.0, %v3028
    %v3030 = vpop.f32.mrf.mxu0
    %3031 = vmatprep.mubr.f32.mxu0 0.0
    %3032 = vmatmul.mubr.f32.gmra.mxu0 %v2769
    %v3033 = vpop.f32.mrf.mxu0
    %v3034 = vadd.f32 0.0, %v3033
    %v3035 = vpop.f32.mrf.mxu0
    %3036 = vmatprep.mubr.f32.mxu0 0.0
    %3037 = vmatmul.mubr.f32.gmra.mxu0 %v2771
    %v3038 = vpop.f32.mrf.mxu0
    %v3039 = vadd.f32 0.0, %v3038
    %v3040 = vpop.f32.mrf.mxu0
    %3041 = vmatprep.mubr.f32.mxu0 0.0
    %3042 = vmatmul.mubr.f32.gmra.mxu0 %v2773
    %v3043 = vpop.f32.mrf.mxu0
    %v3044 = vadd.f32 0.0, %v3043
    %v3045 = vpop.f32.mrf.mxu0
    %3046 = vmatprep.mubr.f32.mxu0 0.0
    %3047 = vmatmul.mubr.f32.gmra.mxu0 %v2775
    %v3048 = vpop.f32.mrf.mxu0
    %v3049 = vadd.f32 0.0, %v3048
    %v3050 = vpop.f32.mrf.mxu0
    %3051 = vmatprep.mubr.f32.mxu0 0.0
    %3052 = vmatmul.mubr.f32.gmra.mxu0 %v2777
    %v3053 = vpop.f32.mrf.mxu0
    %v3054 = vadd.f32 0.0, %v3053
    %v3055 = vpop.f32.mrf.mxu0
    %3056 = vmatprep.mubr.f32.mxu0 0.0
    %3057 = vmatmul.mubr.f32.gmra.mxu0 %v2779
    %v3058 = vpop.f32.mrf.mxu0
    %v3059 = vadd.f32 0.0, %v3058
    %v3060 = vpop.f32.mrf.mxu0
    %3061 = vmatprep.mubr.f32.mxu0 0.0
    %3062 = vmatmul.mubr.f32.gmra.mxu0 %v2781
    %v3063 = vpop.f32.mrf.mxu0
    %v3064 = vadd.f32 0.0, %v3063
    %v3065 = vpop.f32.mrf.mxu0
    %3066 = vmatprep.mubr.f32.mxu0 0.0
    %3067 = vmatmul.mubr.f32.gmra.mxu0 %v2783
    %v3068 = vpop.f32.mrf.mxu0
    %v3069 = vadd.f32 0.0, %v3068
    %v3070 = vpop.f32.mrf.mxu0
    %3071 = vmatprep.mubr.f32.mxu0 0.0
    %3072 = vmatmul.mubr.f32.gmra.mxu0 %v2785
    %v3073 = vpop.f32.mrf.mxu0
    %v3074 = vadd.f32 0.0, %v3073
    %v3075 = vpop.f32.mrf.mxu0
    %3076 = vmatprep.mubr.f32.mxu0 0.0
    %3077 = vmatmul.mubr.f32.gmra.mxu0 %v2787
    %v3078 = vpop.f32.mrf.mxu0
    %v3079 = vadd.f32 0.0, %v3078
    %v3080 = vpop.f32.mrf.mxu0
    %3081 = vmatprep.mubr.f32.mxu0 0.0
    %3082 = vmatmul.mubr.f32.gmra.mxu0 %v2789
    %v3083 = vpop.f32.mrf.mxu0
    %v3084 = vadd.f32 0.0, %v3083
    %v3085 = vpop.f32.mrf.mxu0
    %3086 = vmatprep.mubr.f32.mxu0 0.0
    %3087 = vmatmul.mubr.f32.gmra.mxu0 %v2791
    %v3088 = vpop.f32.mrf.mxu0
    %v3089 = vadd.f32 0.0, %v3088
    %v3090 = vpop.f32.mrf.mxu0
    %3091 = vmatprep.mubr.f32.mxu0 0.0
    %3092 = vmatmul.mubr.f32.gmra.mxu0 %v2793
    %v3093 = vpop.f32.mrf.mxu0
    %v3094 = vadd.f32 0.0, %v3093
    %v3095 = vpop.f32.mrf.mxu0
    %3096 = vmatprep.mubr.f32.mxu0 0.0
    %3097 = vmatmul.mubr.f32.gmra.mxu0 %v2795
    %v3098 = vpop.f32.mrf.mxu0
    %v3099 = vadd.f32 0.0, %v3098
    %v3100 = vpop.f32.mrf.mxu0
    %3101 = vmatprep.mubr.f32.mxu0 0.0
    %3102 = vmatmul.mubr.f32.gmra.mxu0 %v2797
    %v3103 = vpop.f32.mrf.mxu0
    %v3104 = vadd.f32 0.0, %v3103
    %v3105 = vpop.f32.mrf.mxu0
    %3106 = vmatprep.mubr.f32.mxu0 0.0
    %3107 = vmatmul.mubr.f32.gmra.mxu0 %v2799
    %v3108 = vpop.f32.mrf.mxu0
    %v3109 = vadd.f32 0.0, %v3108
    %v3110 = vpop.f32.mrf.mxu0
    %3111 = vmatprep.mubr.f32.mxu0 0.0
    %3112 = vmatmul.mubr.f32.gmra.mxu0 %v2801
    %v3113 = vpop.f32.mrf.mxu0
    %v3114 = vadd.f32 0.0, %v3113
    %v3115 = vpop.f32.mrf.mxu0
    %3116 = vdwg.mxu0
    %v3117 = vcombine.low %v836, %v844
    %v3118 = vcombine.low %v843, %v845
    %v3120 = vunpack.c.l.s4 1983009808
    %v3121 = vunpack.c.0.s8 %v3120
    %v3122 = vlaneseq
    %v3123 = vshrl.u32 %v3122, 7
    %v3124 = vsub.s32 %v3121, %v3123
    %v3125 = vrot.slane %v3117, %v3124
    %v3127 = vunpack.c.l.s4 1983009808
    %v3128 = vunpack.c.0.s8 %v3127
    %v3129 = vlaneseq
    %v3130 = vshrl.u32 %v3129, 7
    %v3131 = vsub.s32 %v3128, %v3130
    %v3132 = vrot.slane %v3118, %v3131
    %v3133 = vcombine.low %v3125, %v3132
    %v3134 = vcombine.low %v853, %v861
    %v3135 = vcombine.low %v860, %v869
    %v3137 = vunpack.c.l.s4 1983009808
    %v3138 = vunpack.c.0.s8 %v3137
    %v3139 = vlaneseq
    %v3140 = vshrl.u32 %v3139, 7
    %v3141 = vsub.s32 %v3138, %v3140
    %v3142 = vrot.slane %v3134, %v3141
    %v3144 = vunpack.c.l.s4 1983009808
    %v3145 = vunpack.c.0.s8 %v3144
    %v3146 = vlaneseq
    %v3147 = vshrl.u32 %v3146, 7
    %v3148 = vsub.s32 %v3145, %v3147
    %v3149 = vrot.slane %v3135, %v3148
    %v3150 = vcombine.low %v3142, %v3149
    %v3151 = vcombine.low %v877, %v876
    %v3152 = vcombine.low %v878, %v886
    %v3154 = vunpack.c.l.s4 1983009808
    %v3155 = vunpack.c.0.s8 %v3154
    %v3156 = vlaneseq
    %v3157 = vshrl.u32 %v3156, 7
    %v3158 = vsub.s32 %v3155, %v3157
    %v3159 = vrot.slane %v3151, %v3158
    %v3161 = vunpack.c.l.s4 1983009808
    %v3162 = vunpack.c.0.s8 %v3161
    %v3163 = vlaneseq
    %v3164 = vshrl.u32 %v3163, 7
    %v3165 = vsub.s32 %v3162, %v3164
    %v3166 = vrot.slane %v3152, %v3165
    %v3167 = vcombine.low %v3159, %v3166
    %v3168 = vcombine.low %v894, %v893
    %v3169 = vcombine.low %v902, %v910
    %v3171 = vunpack.c.l.s4 1983009808
    %v3172 = vunpack.c.0.s8 %v3171
    %v3173 = vlaneseq
    %v3174 = vshrl.u32 %v3173, 7
    %v3175 = vsub.s32 %v3172, %v3174
    %v3176 = vrot.slane %v3168, %v3175
    %v3178 = vunpack.c.l.s4 1983009808
    %v3179 = vunpack.c.0.s8 %v3178
    %v3180 = vlaneseq
    %v3181 = vshrl.u32 %v3180, 7
    %v3182 = vsub.s32 %v3179, %v3181
    %v3183 = vrot.slane %v3169, %v3182
    %v3184 = vcombine.low %v3176, %v3183
    %v3185 = vcombine.low %v909, %v911
    %v3186 = vcombine.low %v919, %v927
    %v3188 = vunpack.c.l.s4 1983009808
    %v3189 = vunpack.c.0.s8 %v3188
    %v3190 = vlaneseq
    %v3191 = vshrl.u32 %v3190, 7
    %v3192 = vsub.s32 %v3189, %v3191
    %v3193 = vrot.slane %v3185, %v3192
    %v3195 = vunpack.c.l.s4 1983009808
    %v3196 = vunpack.c.0.s8 %v3195
    %v3197 = vlaneseq
    %v3198 = vshrl.u32 %v3197, 7
    %v3199 = vsub.s32 %v3196, %v3198
    %v3200 = vrot.slane %v3186, %v3199
    %v3201 = vcombine.low %v3193, %v3200
    %v3202 = vcombine.low %v926, %v935
    %v3203 = vcombine.low %v943, %v942
    %v3205 = vunpack.c.l.s4 1983009808
    %v3206 = vunpack.c.0.s8 %v3205
    %v3207 = vlaneseq
    %v3208 = vshrl.u32 %v3207, 7
    %v3209 = vsub.s32 %v3206, %v3208
    %v3210 = vrot.slane %v3202, %v3209
    %v3212 = vunpack.c.l.s4 1983009808
    %v3213 = vunpack.c.0.s8 %v3212
    %v3214 = vlaneseq
    %v3215 = vshrl.u32 %v3214, 7
    %v3216 = vsub.s32 %v3213, %v3215
    %v3217 = vrot.slane %v3203, %v3216
    %v3218 = vcombine.low %v3210, %v3217
    %v3219 = vcombine.low %v944, %v952
    %v3220 = vcombine.low %v960, %v959
    %v3222 = vunpack.c.l.s4 1983009808
    %v3223 = vunpack.c.0.s8 %v3222
    %v3224 = vlaneseq
    %v3225 = vshrl.u32 %v3224, 7
    %v3226 = vsub.s32 %v3223, %v3225
    %v3227 = vrot.slane %v3219, %v3226
    %v3229 = vunpack.c.l.s4 1983009808
    %v3230 = vunpack.c.0.s8 %v3229
    %v3231 = vlaneseq
    %v3232 = vshrl.u32 %v3231, 7
    %v3233 = vsub.s32 %v3230, %v3232
    %v3234 = vrot.slane %v3220, %v3233
    %v3235 = vcombine.low %v3227, %v3234
    %v3236 = vcombine.low %v968, %v976
    %v3237 = vcombine.low %v975, %v977
    %v3239 = vunpack.c.l.s4 1983009808
    %v3240 = vunpack.c.0.s8 %v3239
    %v3241 = vlaneseq
    %v3242 = vshrl.u32 %v3241, 7
    %v3243 = vsub.s32 %v3240, %v3242
    %v3244 = vrot.slane %v3236, %v3243
    %v3246 = vunpack.c.l.s4 1983009808
    %v3247 = vunpack.c.0.s8 %v3246
    %v3248 = vlaneseq
    %v3249 = vshrl.u32 %v3248, 7
    %v3250 = vsub.s32 %v3247, %v3249
    %v3251 = vrot.slane %v3237, %v3250
    %v3252 = vcombine.low %v3244, %v3251
    %v3253 = vcombine.low %v985, %v993
    %v3254 = vcombine.low %v992, %v1001
    %v3256 = vunpack.c.l.s4 1983009808
    %v3257 = vunpack.c.0.s8 %v3256
    %v3258 = vlaneseq
    %v3259 = vshrl.u32 %v3258, 7
    %v3260 = vsub.s32 %v3257, %v3259
    %v3261 = vrot.slane %v3253, %v3260
    %v3263 = vunpack.c.l.s4 1983009808
    %v3264 = vunpack.c.0.s8 %v3263
    %v3265 = vlaneseq
    %v3266 = vshrl.u32 %v3265, 7
    %v3267 = vsub.s32 %v3264, %v3266
    %v3268 = vrot.slane %v3254, %v3267
    %v3269 = vcombine.low %v3261, %v3268
    %v3270 = vcombine.low %v1009, %v1008
    %v3271 = vcombine.low %v1010, %v1018
    %v3273 = vunpack.c.l.s4 1983009808
    %v3274 = vunpack.c.0.s8 %v3273
    %v3275 = vlaneseq
    %v3276 = vshrl.u32 %v3275, 7
    %v3277 = vsub.s32 %v3274, %v3276
    %v3278 = vrot.slane %v3270, %v3277
    %v3280 = vunpack.c.l.s4 1983009808
    %v3281 = vunpack.c.0.s8 %v3280
    %v3282 = vlaneseq
    %v3283 = vshrl.u32 %v3282, 7
    %v3284 = vsub.s32 %v3281, %v3283
    %v3285 = vrot.slane %v3271, %v3284
    %v3286 = vcombine.low %v3278, %v3285
    %v3287 = vcombine.low %v1026, %v1025
    %v3288 = vcombine.low %v1034, %v1042
    %v3290 = vunpack.c.l.s4 1983009808
    %v3291 = vunpack.c.0.s8 %v3290
    %v3292 = vlaneseq
    %v3293 = vshrl.u32 %v3292, 7
    %v3294 = vsub.s32 %v3291, %v3293
    %v3295 = vrot.slane %v3287, %v3294
    %v3297 = vunpack.c.l.s4 1983009808
    %v3298 = vunpack.c.0.s8 %v3297
    %v3299 = vlaneseq
    %v3300 = vshrl.u32 %v3299, 7
    %v3301 = vsub.s32 %v3298, %v3300
    %v3302 = vrot.slane %v3288, %v3301
    %v3303 = vcombine.low %v3295, %v3302
    %v3304 = vcombine.low %v1041, %v1043
    %v3305 = vcombine.low %v1051, %v1059
    %v3307 = vunpack.c.l.s4 1983009808
    %v3308 = vunpack.c.0.s8 %v3307
    %v3309 = vlaneseq
    %v3310 = vshrl.u32 %v3309, 7
    %v3311 = vsub.s32 %v3308, %v3310
    %v3312 = vrot.slane %v3304, %v3311
    %v3314 = vunpack.c.l.s4 1983009808
    %v3315 = vunpack.c.0.s8 %v3314
    %v3316 = vlaneseq
    %v3317 = vshrl.u32 %v3316, 7
    %v3318 = vsub.s32 %v3315, %v3317
    %v3319 = vrot.slane %v3305, %v3318
    %v3320 = vcombine.low %v3312, %v3319
    %v3321 = vcombine.low %v1058, %v1067
    %v3322 = vcombine.low %v1075, %v1074
    %v3324 = vunpack.c.l.s4 1983009808
    %v3325 = vunpack.c.0.s8 %v3324
    %v3326 = vlaneseq
    %v3327 = vshrl.u32 %v3326, 7
    %v3328 = vsub.s32 %v3325, %v3327
    %v3329 = vrot.slane %v3321, %v3328
    %v3331 = vunpack.c.l.s4 1983009808
    %v3332 = vunpack.c.0.s8 %v3331
    %v3333 = vlaneseq
    %v3334 = vshrl.u32 %v3333, 7
    %v3335 = vsub.s32 %v3332, %v3334
    %v3336 = vrot.slane %v3322, %v3335
    %v3337 = vcombine.low %v3329, %v3336
    %v3338 = vcombine.low %v1076, %v1084
    %v3339 = vcombine.low %v1092, %v1091
    %v3341 = vunpack.c.l.s4 1983009808
    %v3342 = vunpack.c.0.s8 %v3341
    %v3343 = vlaneseq
    %v3344 = vshrl.u32 %v3343, 7
    %v3345 = vsub.s32 %v3342, %v3344
    %v3346 = vrot.slane %v3338, %v3345
    %v3348 = vunpack.c.l.s4 1983009808
    %v3349 = vunpack.c.0.s8 %v3348
    %v3350 = vlaneseq
    %v3351 = vshrl.u32 %v3350, 7
    %v3352 = vsub.s32 %v3349, %v3351
    %v3353 = vrot.slane %v3339, %v3352
    %v3354 = vcombine.low %v3346, %v3353
    %v3355 = vcombine.low %v1100, %v1108
    %v3356 = vcombine.low %v1107, %v1109
    %v3358 = vunpack.c.l.s4 1983009808
    %v3359 = vunpack.c.0.s8 %v3358
    %v3360 = vlaneseq
    %v3361 = vshrl.u32 %v3360, 7
    %v3362 = vsub.s32 %v3359, %v3361
    %v3363 = vrot.slane %v3355, %v3362
    %v3365 = vunpack.c.l.s4 1983009808
    %v3366 = vunpack.c.0.s8 %v3365
    %v3367 = vlaneseq
    %v3368 = vshrl.u32 %v3367, 7
    %v3369 = vsub.s32 %v3366, %v3368
    %v3370 = vrot.slane %v3356, %v3369
    %v3371 = vcombine.low %v3363, %v3370
    %v3372 = vcombine.low %v1117, %v1125
    %v3373 = vcombine.low %v1124, %v1133
    %v3375 = vunpack.c.l.s4 1983009808
    %v3376 = vunpack.c.0.s8 %v3375
    %v3377 = vlaneseq
    %v3378 = vshrl.u32 %v3377, 7
    %v3379 = vsub.s32 %v3376, %v3378
    %v3380 = vrot.slane %v3372, %v3379
    %v3382 = vunpack.c.l.s4 1983009808
    %v3383 = vunpack.c.0.s8 %v3382
    %v3384 = vlaneseq
    %v3385 = vshrl.u32 %v3384, 7
    %v3386 = vsub.s32 %v3383, %v3385
    %v3387 = vrot.slane %v3373, %v3386
    %v3388 = vcombine.low %v3380, %v3387
    %v3389 = vcombine.low %v1141, %v1140
    %v3390 = vcombine.low %v1142, %v1150
    %v3392 = vunpack.c.l.s4 1983009808
    %v3393 = vunpack.c.0.s8 %v3392
    %v3394 = vlaneseq
    %v3395 = vshrl.u32 %v3394, 7
    %v3396 = vsub.s32 %v3393, %v3395
    %v3397 = vrot.slane %v3389, %v3396
    %v3399 = vunpack.c.l.s4 1983009808
    %v3400 = vunpack.c.0.s8 %v3399
    %v3401 = vlaneseq
    %v3402 = vshrl.u32 %v3401, 7
    %v3403 = vsub.s32 %v3400, %v3402
    %v3404 = vrot.slane %v3390, %v3403
    %v3405 = vcombine.low %v3397, %v3404
    %v3406 = vcombine.low %v1158, %v1157
    %v3407 = vcombine.low %v1166, %v1174
    %v3409 = vunpack.c.l.s4 1983009808
    %v3410 = vunpack.c.0.s8 %v3409
    %v3411 = vlaneseq
    %v3412 = vshrl.u32 %v3411, 7
    %v3413 = vsub.s32 %v3410, %v3412
    %v3414 = vrot.slane %v3406, %v3413
    %v3416 = vunpack.c.l.s4 1983009808
    %v3417 = vunpack.c.0.s8 %v3416
    %v3418 = vlaneseq
    %v3419 = vshrl.u32 %v3418, 7
    %v3420 = vsub.s32 %v3417, %v3419
    %v3421 = vrot.slane %v3407, %v3420
    %v3422 = vcombine.low %v3414, %v3421
    %v3423 = vcombine.low %v1173, %v1175
    %v3424 = vcombine.low %v1183, %v1191
    %v3426 = vunpack.c.l.s4 1983009808
    %v3427 = vunpack.c.0.s8 %v3426
    %v3428 = vlaneseq
    %v3429 = vshrl.u32 %v3428, 7
    %v3430 = vsub.s32 %v3427, %v3429
    %v3431 = vrot.slane %v3423, %v3430
    %v3433 = vunpack.c.l.s4 1983009808
    %v3434 = vunpack.c.0.s8 %v3433
    %v3435 = vlaneseq
    %v3436 = vshrl.u32 %v3435, 7
    %v3437 = vsub.s32 %v3434, %v3436
    %v3438 = vrot.slane %v3424, %v3437
    %v3439 = vcombine.low %v3431, %v3438
    %v3440 = vcombine.low %v1190, %v1199
    %v3441 = vcombine.low %v1207, %v1206
    %v3443 = vunpack.c.l.s4 1983009808
    %v3444 = vunpack.c.0.s8 %v3443
    %v3445 = vlaneseq
    %v3446 = vshrl.u32 %v3445, 7
    %v3447 = vsub.s32 %v3444, %v3446
    %v3448 = vrot.slane %v3440, %v3447
    %v3450 = vunpack.c.l.s4 1983009808
    %v3451 = vunpack.c.0.s8 %v3450
    %v3452 = vlaneseq
    %v3453 = vshrl.u32 %v3452, 7
    %v3454 = vsub.s32 %v3451, %v3453
    %v3455 = vrot.slane %v3441, %v3454
    %v3456 = vcombine.low %v3448, %v3455
    %v3457 = vcombine.low %v1208, %v1216
    %v3458 = vcombine.low %v1224, %v1223
    %v3460 = vunpack.c.l.s4 1983009808
    %v3461 = vunpack.c.0.s8 %v3460
    %v3462 = vlaneseq
    %v3463 = vshrl.u32 %v3462, 7
    %v3464 = vsub.s32 %v3461, %v3463
    %v3465 = vrot.slane %v3457, %v3464
    %v3467 = vunpack.c.l.s4 1983009808
    %v3468 = vunpack.c.0.s8 %v3467
    %v3469 = vlaneseq
    %v3470 = vshrl.u32 %v3469, 7
    %v3471 = vsub.s32 %v3468, %v3470
    %v3472 = vrot.slane %v3458, %v3471
    %v3473 = vcombine.low %v3465, %v3472
    %v3474 = vcombine.low %v1232, %v1240
    %v3475 = vcombine.low %v1239, %v1241
    %v3477 = vunpack.c.l.s4 1983009808
    %v3478 = vunpack.c.0.s8 %v3477
    %v3479 = vlaneseq
    %v3480 = vshrl.u32 %v3479, 7
    %v3481 = vsub.s32 %v3478, %v3480
    %v3482 = vrot.slane %v3474, %v3481
    %v3484 = vunpack.c.l.s4 1983009808
    %v3485 = vunpack.c.0.s8 %v3484
    %v3486 = vlaneseq
    %v3487 = vshrl.u32 %v3486, 7
    %v3488 = vsub.s32 %v3485, %v3487
    %v3489 = vrot.slane %v3475, %v3488
    %v3490 = vcombine.low %v3482, %v3489
    %v3491 = vcombine.low %v1249, %v1257
    %v3492 = vcombine.low %v1256, %v1265
    %v3494 = vunpack.c.l.s4 1983009808
    %v3495 = vunpack.c.0.s8 %v3494
    %v3496 = vlaneseq
    %v3497 = vshrl.u32 %v3496, 7
    %v3498 = vsub.s32 %v3495, %v3497
    %v3499 = vrot.slane %v3491, %v3498
    %v3501 = vunpack.c.l.s4 1983009808
    %v3502 = vunpack.c.0.s8 %v3501
    %v3503 = vlaneseq
    %v3504 = vshrl.u32 %v3503, 7
    %v3505 = vsub.s32 %v3502, %v3504
    %v3506 = vrot.slane %v3492, %v3505
    %v3507 = vcombine.low %v3499, %v3506
    %v3508 = vcombine.low %v1273, %v1272
    %v3509 = vcombine.low %v1274, %v1282
    %v3511 = vunpack.c.l.s4 1983009808
    %v3512 = vunpack.c.0.s8 %v3511
    %v3513 = vlaneseq
    %v3514 = vshrl.u32 %v3513, 7
    %v3515 = vsub.s32 %v3512, %v3514
    %v3516 = vrot.slane %v3508, %v3515
    %v3518 = vunpack.c.l.s4 1983009808
    %v3519 = vunpack.c.0.s8 %v3518
    %v3520 = vlaneseq
    %v3521 = vshrl.u32 %v3520, 7
    %v3522 = vsub.s32 %v3519, %v3521
    %v3523 = vrot.slane %v3509, %v3522
    %v3524 = vcombine.low %v3516, %v3523
    %v3525 = vcombine.low %v1290, %v1289
    %v3526 = vcombine.low %v1298, %v1306
    %v3528 = vunpack.c.l.s4 1983009808
    %v3529 = vunpack.c.0.s8 %v3528
    %v3530 = vlaneseq
    %v3531 = vshrl.u32 %v3530, 7
    %v3532 = vsub.s32 %v3529, %v3531
    %v3533 = vrot.slane %v3525, %v3532
    %v3535 = vunpack.c.l.s4 1983009808
    %v3536 = vunpack.c.0.s8 %v3535
    %v3537 = vlaneseq
    %v3538 = vshrl.u32 %v3537, 7
    %v3539 = vsub.s32 %v3536, %v3538
    %v3540 = vrot.slane %v3526, %v3539
    %v3541 = vcombine.low %v3533, %v3540
    %v3542 = vcombine.low %v1305, %v1307
    %v3543 = vcombine.low %v1315, %v1323
    %v3545 = vunpack.c.l.s4 1983009808
    %v3546 = vunpack.c.0.s8 %v3545
    %v3547 = vlaneseq
    %v3548 = vshrl.u32 %v3547, 7
    %v3549 = vsub.s32 %v3546, %v3548
    %v3550 = vrot.slane %v3542, %v3549
    %v3552 = vunpack.c.l.s4 1983009808
    %v3553 = vunpack.c.0.s8 %v3552
    %v3554 = vlaneseq
    %v3555 = vshrl.u32 %v3554, 7
    %v3556 = vsub.s32 %v3553, %v3555
    %v3557 = vrot.slane %v3543, %v3556
    %v3558 = vcombine.low %v3550, %v3557
    %v3559 = vcombine.low %v1322, %v1331
    %v3560 = vcombine.low %v1339, %v1338
    %v3562 = vunpack.c.l.s4 1983009808
    %v3563 = vunpack.c.0.s8 %v3562
    %v3564 = vlaneseq
    %v3565 = vshrl.u32 %v3564, 7
    %v3566 = vsub.s32 %v3563, %v3565
    %v3567 = vrot.slane %v3559, %v3566
    %v3569 = vunpack.c.l.s4 1983009808
    %v3570 = vunpack.c.0.s8 %v3569
    %v3571 = vlaneseq
    %v3572 = vshrl.u32 %v3571, 7
    %v3573 = vsub.s32 %v3570, %v3572
    %v3574 = vrot.slane %v3560, %v3573
    %v3575 = vcombine.low %v3567, %v3574
    %v3576 = vcombine.low %v1340, %v1348
    %v3577 = vcombine.low %v1356, %v1355
    %v3579 = vunpack.c.l.s4 1983009808
    %v3580 = vunpack.c.0.s8 %v3579
    %v3581 = vlaneseq
    %v3582 = vshrl.u32 %v3581, 7
    %v3583 = vsub.s32 %v3580, %v3582
    %v3584 = vrot.slane %v3576, %v3583
    %v3586 = vunpack.c.l.s4 1983009808
    %v3587 = vunpack.c.0.s8 %v3586
    %v3588 = vlaneseq
    %v3589 = vshrl.u32 %v3588, 7
    %v3590 = vsub.s32 %v3587, %v3589
    %v3591 = vrot.slane %v3577, %v3590
    %v3592 = vcombine.low %v3584, %v3591
    %v3593 = vcombine.low %v1364, %v1372
    %v3594 = vcombine.low %v1371, %v1373
    %v3596 = vunpack.c.l.s4 1983009808
    %v3597 = vunpack.c.0.s8 %v3596
    %v3598 = vlaneseq
    %v3599 = vshrl.u32 %v3598, 7
    %v3600 = vsub.s32 %v3597, %v3599
    %v3601 = vrot.slane %v3593, %v3600
    %v3603 = vunpack.c.l.s4 1983009808
    %v3604 = vunpack.c.0.s8 %v3603
    %v3605 = vlaneseq
    %v3606 = vshrl.u32 %v3605, 7
    %v3607 = vsub.s32 %v3604, %v3606
    %v3608 = vrot.slane %v3594, %v3607
    %v3609 = vcombine.low %v3601, %v3608
    %v3610 = vcombine.low %v1381, %v1389
    %v3611 = vcombine.low %v1388, %v1397
    %v3613 = vunpack.c.l.s4 1983009808
    %v3614 = vunpack.c.0.s8 %v3613
    %v3615 = vlaneseq
    %v3616 = vshrl.u32 %v3615, 7
    %v3617 = vsub.s32 %v3614, %v3616
    %v3618 = vrot.slane %v3610, %v3617
    %v3620 = vunpack.c.l.s4 1983009808
    %v3621 = vunpack.c.0.s8 %v3620
    %v3622 = vlaneseq
    %v3623 = vshrl.u32 %v3622, 7
    %v3624 = vsub.s32 %v3621, %v3623
    %v3625 = vrot.slane %v3611, %v3624
    %v3626 = vcombine.low %v3618, %v3625
    %v3627 = vcombine.low %v1405, %v1404
    %v3628 = vcombine.low %v1406, %v1414
    %v3630 = vunpack.c.l.s4 1983009808
    %v3631 = vunpack.c.0.s8 %v3630
    %v3632 = vlaneseq
    %v3633 = vshrl.u32 %v3632, 7
    %v3634 = vsub.s32 %v3631, %v3633
    %v3635 = vrot.slane %v3627, %v3634
    %v3637 = vunpack.c.l.s4 1983009808
    %v3638 = vunpack.c.0.s8 %v3637
    %v3639 = vlaneseq
    %v3640 = vshrl.u32 %v3639, 7
    %v3641 = vsub.s32 %v3638, %v3640
    %v3642 = vrot.slane %v3628, %v3641
    %v3643 = vcombine.low %v3635, %v3642
    %v3644 = vcombine.low %v1422, %v1421
    %v3645 = vcombine.low %v1430, %v1438
    %v3647 = vunpack.c.l.s4 1983009808
    %v3648 = vunpack.c.0.s8 %v3647
    %v3649 = vlaneseq
    %v3650 = vshrl.u32 %v3649, 7
    %v3651 = vsub.s32 %v3648, %v3650
    %v3652 = vrot.slane %v3644, %v3651
    %v3654 = vunpack.c.l.s4 1983009808
    %v3655 = vunpack.c.0.s8 %v3654
    %v3656 = vlaneseq
    %v3657 = vshrl.u32 %v3656, 7
    %v3658 = vsub.s32 %v3655, %v3657
    %v3659 = vrot.slane %v3645, %v3658
    %v3660 = vcombine.low %v3652, %v3659
    %v3661 = vcombine.low %v1437, %v1439
    %v3662 = vcombine.low %v1447, %v1455
    %v3664 = vunpack.c.l.s4 1983009808
    %v3665 = vunpack.c.0.s8 %v3664
    %v3666 = vlaneseq
    %v3667 = vshrl.u32 %v3666, 7
    %v3668 = vsub.s32 %v3665, %v3667
    %v3669 = vrot.slane %v3661, %v3668
    %v3671 = vunpack.c.l.s4 1983009808
    %v3672 = vunpack.c.0.s8 %v3671
    %v3673 = vlaneseq
    %v3674 = vshrl.u32 %v3673, 7
    %v3675 = vsub.s32 %v3672, %v3674
    %v3676 = vrot.slane %v3662, %v3675
    %v3677 = vcombine.low %v3669, %v3676
    %v3678 = vcombine.low %v1454, %v1463
    %v3679 = vcombine.low %v1471, %v1470
    %v3681 = vunpack.c.l.s4 1983009808
    %v3682 = vunpack.c.0.s8 %v3681
    %v3683 = vlaneseq
    %v3684 = vshrl.u32 %v3683, 7
    %v3685 = vsub.s32 %v3682, %v3684
    %v3686 = vrot.slane %v3678, %v3685
    %v3688 = vunpack.c.l.s4 1983009808
    %v3689 = vunpack.c.0.s8 %v3688
    %v3690 = vlaneseq
    %v3691 = vshrl.u32 %v3690, 7
    %v3692 = vsub.s32 %v3689, %v3691
    %v3693 = vrot.slane %v3679, %v3692
    %v3694 = vcombine.low %v3686, %v3693
    %v3695 = vcombine.low %v1472, %v1480
    %v3696 = vcombine.low %v1488, %v1487
    %v3698 = vunpack.c.l.s4 1983009808
    %v3699 = vunpack.c.0.s8 %v3698
    %v3700 = vlaneseq
    %v3701 = vshrl.u32 %v3700, 7
    %v3702 = vsub.s32 %v3699, %v3701
    %v3703 = vrot.slane %v3695, %v3702
    %v3705 = vunpack.c.l.s4 1983009808
    %v3706 = vunpack.c.0.s8 %v3705
    %v3707 = vlaneseq
    %v3708 = vshrl.u32 %v3707, 7
    %v3709 = vsub.s32 %v3706, %v3708
    %v3710 = vrot.slane %v3696, %v3709
    %v3711 = vcombine.low %v3703, %v3710
    %v3712 = vcombine.low %v1496, %v1504
    %v3713 = vcombine.low %v1503, %v1505
    %v3715 = vunpack.c.l.s4 1983009808
    %v3716 = vunpack.c.0.s8 %v3715
    %v3717 = vlaneseq
    %v3718 = vshrl.u32 %v3717, 7
    %v3719 = vsub.s32 %v3716, %v3718
    %v3720 = vrot.slane %v3712, %v3719
    %v3722 = vunpack.c.l.s4 1983009808
    %v3723 = vunpack.c.0.s8 %v3722
    %v3724 = vlaneseq
    %v3725 = vshrl.u32 %v3724, 7
    %v3726 = vsub.s32 %v3723, %v3725
    %v3727 = vrot.slane %v3713, %v3726
    %v3728 = vcombine.low %v3720, %v3727
    %v3729 = vcombine.low %v1513, %v1521
    %v3730 = vcombine.low %v1520, %v1529
    %v3732 = vunpack.c.l.s4 1983009808
    %v3733 = vunpack.c.0.s8 %v3732
    %v3734 = vlaneseq
    %v3735 = vshrl.u32 %v3734, 7
    %v3736 = vsub.s32 %v3733, %v3735
    %v3737 = vrot.slane %v3729, %v3736
    %v3739 = vunpack.c.l.s4 1983009808
    %v3740 = vunpack.c.0.s8 %v3739
    %v3741 = vlaneseq
    %v3742 = vshrl.u32 %v3741, 7
    %v3743 = vsub.s32 %v3740, %v3742
    %v3744 = vrot.slane %v3730, %v3743
    %v3745 = vcombine.low %v3737, %v3744
    %v3746 = vcombine.low %v1537, %v1536
    %v3747 = vcombine.low %v1538, %v1546
    %v3749 = vunpack.c.l.s4 1983009808
    %v3750 = vunpack.c.0.s8 %v3749
    %v3751 = vlaneseq
    %v3752 = vshrl.u32 %v3751, 7
    %v3753 = vsub.s32 %v3750, %v3752
    %v3754 = vrot.slane %v3746, %v3753
    %v3756 = vunpack.c.l.s4 1983009808
    %v3757 = vunpack.c.0.s8 %v3756
    %v3758 = vlaneseq
    %v3759 = vshrl.u32 %v3758, 7
    %v3760 = vsub.s32 %v3757, %v3759
    %v3761 = vrot.slane %v3747, %v3760
    %v3762 = vcombine.low %v3754, %v3761
    %v3763 = vcombine.low %v1554, %v1553
    %v3764 = vcombine.low %v1562, %v1570
    %v3766 = vunpack.c.l.s4 1983009808
    %v3767 = vunpack.c.0.s8 %v3766
    %v3768 = vlaneseq
    %v3769 = vshrl.u32 %v3768, 7
    %v3770 = vsub.s32 %v3767, %v3769
    %v3771 = vrot.slane %v3763, %v3770
    %v3773 = vunpack.c.l.s4 1983009808
    %v3774 = vunpack.c.0.s8 %v3773
    %v3775 = vlaneseq
    %v3776 = vshrl.u32 %v3775, 7
    %v3777 = vsub.s32 %v3774, %v3776
    %v3778 = vrot.slane %v3764, %v3777
    %v3779 = vcombine.low %v3771, %v3778
    %v3780 = vcombine.low %v1569, %v1571
    %v3781 = vcombine.low %v1579, %v1587
    %v3783 = vunpack.c.l.s4 1983009808
    %v3784 = vunpack.c.0.s8 %v3783
    %v3785 = vlaneseq
    %v3786 = vshrl.u32 %v3785, 7
    %v3787 = vsub.s32 %v3784, %v3786
    %v3788 = vrot.slane %v3780, %v3787
    %v3790 = vunpack.c.l.s4 1983009808
    %v3791 = vunpack.c.0.s8 %v3790
    %v3792 = vlaneseq
    %v3793 = vshrl.u32 %v3792, 7
    %v3794 = vsub.s32 %v3791, %v3793
    %v3795 = vrot.slane %v3781, %v3794
    %v3796 = vcombine.low %v3788, %v3795
    %v3797 = vcombine.low %v1586, %v1595
    %v3798 = vcombine.low %v1603, %v1602
    %v3800 = vunpack.c.l.s4 1983009808
    %v3801 = vunpack.c.0.s8 %v3800
    %v3802 = vlaneseq
    %v3803 = vshrl.u32 %v3802, 7
    %v3804 = vsub.s32 %v3801, %v3803
    %v3805 = vrot.slane %v3797, %v3804
    %v3807 = vunpack.c.l.s4 1983009808
    %v3808 = vunpack.c.0.s8 %v3807
    %v3809 = vlaneseq
    %v3810 = vshrl.u32 %v3809, 7
    %v3811 = vsub.s32 %v3808, %v3810
    %v3812 = vrot.slane %v3798, %v3811
    %v3813 = vcombine.low %v3805, %v3812
    %v3814 = vcombine.low %v1604, %v1612
    %v3815 = vcombine.low %v1620, %v1619
    %v3817 = vunpack.c.l.s4 1983009808
    %v3818 = vunpack.c.0.s8 %v3817
    %v3819 = vlaneseq
    %v3820 = vshrl.u32 %v3819, 7
    %v3821 = vsub.s32 %v3818, %v3820
    %v3822 = vrot.slane %v3814, %v3821
    %v3824 = vunpack.c.l.s4 1983009808
    %v3825 = vunpack.c.0.s8 %v3824
    %v3826 = vlaneseq
    %v3827 = vshrl.u32 %v3826, 7
    %v3828 = vsub.s32 %v3825, %v3827
    %v3829 = vrot.slane %v3815, %v3828
    %v3830 = vcombine.low %v3822, %v3829
    %v3831 = vcombine.low %v1628, %v1636
    %v3832 = vcombine.low %v1635, %v1637
    %v3834 = vunpack.c.l.s4 1983009808
    %v3835 = vunpack.c.0.s8 %v3834
    %v3836 = vlaneseq
    %v3837 = vshrl.u32 %v3836, 7
    %v3838 = vsub.s32 %v3835, %v3837
    %v3839 = vrot.slane %v3831, %v3838
    %v3841 = vunpack.c.l.s4 1983009808
    %v3842 = vunpack.c.0.s8 %v3841
    %v3843 = vlaneseq
    %v3844 = vshrl.u32 %v3843, 7
    %v3845 = vsub.s32 %v3842, %v3844
    %v3846 = vrot.slane %v3832, %v3845
    %v3847 = vcombine.low %v3839, %v3846
    %v3848 = vcombine.low %v1645, %v1653
    %v3849 = vcombine.low %v1652, %v1661
    %v3851 = vunpack.c.l.s4 1983009808
    %v3852 = vunpack.c.0.s8 %v3851
    %v3853 = vlaneseq
    %v3854 = vshrl.u32 %v3853, 7
    %v3855 = vsub.s32 %v3852, %v3854
    %v3856 = vrot.slane %v3848, %v3855
    %v3858 = vunpack.c.l.s4 1983009808
    %v3859 = vunpack.c.0.s8 %v3858
    %v3860 = vlaneseq
    %v3861 = vshrl.u32 %v3860, 7
    %v3862 = vsub.s32 %v3859, %v3861
    %v3863 = vrot.slane %v3849, %v3862
    %v3864 = vcombine.low %v3856, %v3863
    %v3865 = vcombine.low %v1669, %v1668
    %v3866 = vcombine.low %v1670, %v1678
    %v3868 = vunpack.c.l.s4 1983009808
    %v3869 = vunpack.c.0.s8 %v3868
    %v3870 = vlaneseq
    %v3871 = vshrl.u32 %v3870, 7
    %v3872 = vsub.s32 %v3869, %v3871
    %v3873 = vrot.slane %v3865, %v3872
    %v3875 = vunpack.c.l.s4 1983009808
    %v3876 = vunpack.c.0.s8 %v3875
    %v3877 = vlaneseq
    %v3878 = vshrl.u32 %v3877, 7
    %v3879 = vsub.s32 %v3876, %v3878
    %v3880 = vrot.slane %v3866, %v3879
    %v3881 = vcombine.low %v3873, %v3880
    %v3882 = vcombine.low %v1686, %v1685
    %v3883 = vcombine.low %v1694, %v1702
    %v3885 = vunpack.c.l.s4 1983009808
    %v3886 = vunpack.c.0.s8 %v3885
    %v3887 = vlaneseq
    %v3888 = vshrl.u32 %v3887, 7
    %v3889 = vsub.s32 %v3886, %v3888
    %v3890 = vrot.slane %v3882, %v3889
    %v3892 = vunpack.c.l.s4 1983009808
    %v3893 = vunpack.c.0.s8 %v3892
    %v3894 = vlaneseq
    %v3895 = vshrl.u32 %v3894, 7
    %v3896 = vsub.s32 %v3893, %v3895
    %v3897 = vrot.slane %v3883, %v3896
    %v3898 = vcombine.low %v3890, %v3897
    %v3899 = vcombine.low %v1701, %v1703
    %v3900 = vcombine.low %v1711, %v1719
    %v3902 = vunpack.c.l.s4 1983009808
    %v3903 = vunpack.c.0.s8 %v3902
    %v3904 = vlaneseq
    %v3905 = vshrl.u32 %v3904, 7
    %v3906 = vsub.s32 %v3903, %v3905
    %v3907 = vrot.slane %v3899, %v3906
    %v3909 = vunpack.c.l.s4 1983009808
    %v3910 = vunpack.c.0.s8 %v3909
    %v3911 = vlaneseq
    %v3912 = vshrl.u32 %v3911, 7
    %v3913 = vsub.s32 %v3910, %v3912
    %v3914 = vrot.slane %v3900, %v3913
    %v3915 = vcombine.low %v3907, %v3914
    %v3916 = vcombine.low %v1718, %v1727
    %v3917 = vcombine.low %v1735, %v1734
    %v3919 = vunpack.c.l.s4 1983009808
    %v3920 = vunpack.c.0.s8 %v3919
    %v3921 = vlaneseq
    %v3922 = vshrl.u32 %v3921, 7
    %v3923 = vsub.s32 %v3920, %v3922
    %v3924 = vrot.slane %v3916, %v3923
    %v3926 = vunpack.c.l.s4 1983009808
    %v3927 = vunpack.c.0.s8 %v3926
    %v3928 = vlaneseq
    %v3929 = vshrl.u32 %v3928, 7
    %v3930 = vsub.s32 %v3927, %v3929
    %v3931 = vrot.slane %v3917, %v3930
    %v3932 = vcombine.low %v3924, %v3931
    %v3933 = vcombine.low %v1736, %v1744
    %v3934 = vcombine.low %v1752, %v1751
    %v3936 = vunpack.c.l.s4 1983009808
    %v3937 = vunpack.c.0.s8 %v3936
    %v3938 = vlaneseq
    %v3939 = vshrl.u32 %v3938, 7
    %v3940 = vsub.s32 %v3937, %v3939
    %v3941 = vrot.slane %v3933, %v3940
    %v3943 = vunpack.c.l.s4 1983009808
    %v3944 = vunpack.c.0.s8 %v3943
    %v3945 = vlaneseq
    %v3946 = vshrl.u32 %v3945, 7
    %v3947 = vsub.s32 %v3944, %v3946
    %v3948 = vrot.slane %v3934, %v3947
    %v3949 = vcombine.low %v3941, %v3948
    %v3950 = vsel %vm2704, %v3133, 0
    %v3952 = vsel %vm2704, %v3150, 0
    %v3954 = vsel %vm2704, %v3167, 0
    %v3956 = vsel %vm2704, %v3184, 0
    %v3958 = vsel %vm2704, %v3201, 0
    %v3960 = vsel %vm2704, %v3218, 0
    %v3962 = vsel %vm2704, %v3235, 0
    %v3964 = vsel %vm2704, %v3252, 0
    %v3966 = vsel %vm2704, %v3269, 0
    %v3968 = vsel %vm2704, %v3286, 0
    %v3970 = vsel %vm2704, %v3303, 0
    %v3972 = vsel %vm2704, %v3320, 0
    %v3974 = vsel %vm2704, %v3337, 0
    %v3976 = vsel %vm2704, %v3354, 0
    %v3978 = vsel %vm2704, %v3371, 0
    %v3980 = vsel %vm2704, %v3388, 0
    %v3982 = vsel %vm2704, %v3405, 0
    %v3984 = vsel %vm2704, %v3422, 0
    %v3986 = vsel %vm2704, %v3439, 0
    %v3988 = vsel %vm2704, %v3456, 0
    %v3990 = vsel %vm2704, %v3473, 0
    %v3992 = vsel %vm2704, %v3490, 0
    %v3994 = vsel %vm2704, %v3507, 0
    %v3996 = vsel %vm2704, %v3524, 0
    %v3998 = vsel %vm2704, %v3541, 0
    %v4000 = vsel %vm2704, %v3558, 0
    %v4002 = vsel %vm2704, %v3575, 0
    %v4004 = vsel %vm2704, %v3592, 0
    %v4006 = vsel %vm2704, %v3609, 0
    %v4008 = vsel %vm2704, %v3626, 0
    %v4010 = vsel %vm2704, %v3643, 0
    %v4012 = vsel %vm2704, %v3660, 0
    %v4014 = vsel %vm2704, %v3677, 0
    %v4016 = vsel %vm2704, %v3694, 0
    %v4018 = vsel %vm2704, %v3711, 0
    %v4020 = vsel %vm2704, %v3728, 0
    %v4022 = vsel %vm2704, %v3745, 0
    %v4024 = vsel %vm2704, %v3762, 0
    %v4026 = vsel %vm2704, %v3779, 0
    %v4028 = vsel %vm2704, %v3796, 0
    %v4030 = vsel %vm2704, %v3813, 0
    %v4032 = vsel %vm2704, %v3830, 0
    %v4034 = vsel %vm2704, %v3847, 0
    %v4036 = vsel %vm2704, %v3864, 0
    %v4038 = vsel %vm2704, %v3881, 0
    %v4040 = vsel %vm2704, %v3898, 0
    %v4042 = vsel %vm2704, %v3915, 0
    %v4044 = vsel %vm2704, %v3932, 0
    %v4046 = vsel %vm2704, %v3949, 0
    %v4049 = vsel %vm2803, %v19, 0
    %4051 = vmatprep.subr.mxu0 0.0
    %4052 = vmatpush1.msra.mxu0 0.0
    %4053 = vmatprep.subr.mxu0 0.0
    %4054 = vmatpush1.msra.mxu0 0.0
    %4055 = vmatprep.subr.mxu0 0.0
    %4056 = vmatpush1.msra.mxu0 0.0
    %4057 = vmatprep.subr.mxu0 0.0
    %4058 = vmatpush1.msra.mxu0 0.0
    %4059 = vmatprep.subr.mxu0 0.0
    %4060 = vmatpush1.msra.mxu0 0.0
    %4061 = vmatprep.subr.mxu0 0.0
    %4062 = vmatpush1.msra.mxu0 0.0
    %4063 = vmatprep.subr.mxu0 0.0
    %4064 = vmatpush1.msra.mxu0 0.0
    %4065 = vmatprep.subr.mxu0 0.0
    %4066 = vmatpush1.msra.mxu0 0.0
    %4067 = vmatprep.subr.mxu0 0.0
    %4068 = vmatpush1.msra.mxu0 0.0
    %4069 = vmatprep.subr.mxu0 0.0
    %4070 = vmatpush1.msra.mxu0 0.0
    %4071 = vmatprep.subr.mxu0 0.0
    %4072 = vmatpush1.msra.mxu0 0.0
    %4073 = vmatprep.subr.mxu0 0.0
    %4074 = vmatpush1.msra.mxu0 0.0
    %4075 = vmatprep.subr.mxu0 0.0
    %4076 = vmatpush1.msra.mxu0 0.0
    %4077 = vmatprep.subr.mxu0 0.0
    %4078 = vmatpush1.msra.mxu0 0.0
    %4079 = vmatprep.subr.mxu0 0.0
    %4080 = vmatpush1.msra.mxu0 %v4049
    %4081 = vmatprep.subr.mxu0 0.0
    %4082 = vmatpush1.msra.mxu0 %v18
    %4083 = vmatprep.subr.mxu0 0.0
    %4084 = vmatpush2.msra.mxu0 0.0
    %4085 = vmatprep.subr.mxu0 0.0
    %4086 = vmatpush2.msra.mxu0 0.0
    %4087 = vmatprep.subr.mxu0 0.0
    %4088 = vmatpush2.msra.mxu0 0.0
    %4089 = vmatprep.subr.mxu0 0.0
    %4090 = vmatpush2.msra.mxu0 0.0
    %4091 = vmatprep.subr.mxu0 0.0
    %4092 = vmatpush2.msra.mxu0 0.0
    %4093 = vmatprep.subr.mxu0 0.0
    %4094 = vmatpush2.msra.mxu0 0.0
    %4095 = vmatprep.subr.mxu0 0.0
    %4096 = vmatpush2.msra.mxu0 0.0
    %4097 = vmatprep.subr.mxu0 0.0
    %4098 = vmatpush2.msra.mxu0 0.0
    %4099 = vmatprep.subr.mxu0 0.0
    %4100 = vmatpush2.msra.mxu0 0.0
    %4101 = vmatprep.subr.mxu0 0.0
    %4102 = vmatpush2.msra.mxu0 0.0
    %4103 = vmatprep.subr.mxu0 0.0
    %4104 = vmatpush2.msra.mxu0 0.0
    %4105 = vmatprep.subr.mxu0 0.0
    %4106 = vmatpush2.msra.mxu0 0.0
    %4107 = vmatprep.subr.mxu0 0.0
    %4108 = vmatpush2.msra.mxu0 0.0
    %4109 = vmatprep.subr.mxu0 0.0
    %4110 = vmatpush2.msra.mxu0 0.0
    %4111 = vmatprep.subr.mxu0 0.0
    %4112 = vmatpush2.msra.mxu0 0.0
    %4113 = vmatprep.subr.mxu0 0.0
    %4114 = vmatpush2.msra.mxu0 0.0
    %4115 = vmatprep.mubr.f32.mxu0 0.0
    %4116 = vmatmul.mubr.f32.gmra.mxu0 %v3950
    %v4117 = vpop.f32.mrf.mxu0
    %v4118 = vadd.f32 %v2874, %v4117
    %v4119 = vpop.f32.mrf.mxu0
    %4120 = vmatprep.mubr.f32.mxu0 0.0
    %4121 = vmatmul.mubr.f32.gmra.mxu0 %v3952
    %v4122 = vpop.f32.mrf.mxu0
    %v4123 = vadd.f32 %v2879, %v4122
    %v4124 = vpop.f32.mrf.mxu0
    %4125 = vmatprep.mubr.f32.mxu0 0.0
    %4126 = vmatmul.mubr.f32.gmra.mxu0 %v3954
    %v4127 = vpop.f32.mrf.mxu0
    %v4128 = vadd.f32 %v2884, %v4127
    %v4129 = vpop.f32.mrf.mxu0
    %4130 = vmatprep.mubr.f32.mxu0 0.0
    %4131 = vmatmul.mubr.f32.gmra.mxu0 %v3956
    %v4132 = vpop.f32.mrf.mxu0
    %v4133 = vadd.f32 %v2889, %v4132
    %v4134 = vpop.f32.mrf.mxu0
    %4135 = vmatprep.mubr.f32.mxu0 0.0
    %4136 = vmatmul.mubr.f32.gmra.mxu0 %v3958
    %v4137 = vpop.f32.mrf.mxu0
    %v4138 = vadd.f32 %v2894, %v4137
    %v4139 = vpop.f32.mrf.mxu0
    %4140 = vmatprep.mubr.f32.mxu0 0.0
    %4141 = vmatmul.mubr.f32.gmra.mxu0 %v3960
    %v4142 = vpop.f32.mrf.mxu0
    %v4143 = vadd.f32 %v2899, %v4142
    %v4144 = vpop.f32.mrf.mxu0
    %4145 = vmatprep.mubr.f32.mxu0 0.0
    %4146 = vmatmul.mubr.f32.gmra.mxu0 %v3962
    %v4147 = vpop.f32.mrf.mxu0
    %v4148 = vadd.f32 %v2904, %v4147
    %v4149 = vpop.f32.mrf.mxu0
    %4150 = vmatprep.mubr.f32.mxu0 0.0
    %4151 = vmatmul.mubr.f32.gmra.mxu0 %v3964
    %v4152 = vpop.f32.mrf.mxu0
    %v4153 = vadd.f32 %v2909, %v4152
    %v4154 = vpop.f32.mrf.mxu0
    %4155 = vmatprep.mubr.f32.mxu0 0.0
    %4156 = vmatmul.mubr.f32.gmra.mxu0 %v3966
    %v4157 = vpop.f32.mrf.mxu0
    %v4158 = vadd.f32 %v2914, %v4157
    %v4159 = vpop.f32.mrf.mxu0
    %4160 = vmatprep.mubr.f32.mxu0 0.0
    %4161 = vmatmul.mubr.f32.gmra.mxu0 %v3968
    %v4162 = vpop.f32.mrf.mxu0
    %v4163 = vadd.f32 %v2919, %v4162
    %v4164 = vpop.f32.mrf.mxu0
    %4165 = vmatprep.mubr.f32.mxu0 0.0
    %4166 = vmatmul.mubr.f32.gmra.mxu0 %v3970
    %v4167 = vpop.f32.mrf.mxu0
    %v4168 = vadd.f32 %v2924, %v4167
    %v4169 = vpop.f32.mrf.mxu0
    %4170 = vmatprep.mubr.f32.mxu0 0.0
    %4171 = vmatmul.mubr.f32.gmra.mxu0 %v3972
    %v4172 = vpop.f32.mrf.mxu0
    %v4173 = vadd.f32 %v2929, %v4172
    %v4174 = vpop.f32.mrf.mxu0
    %4175 = vmatprep.mubr.f32.mxu0 0.0
    %4176 = vmatmul.mubr.f32.gmra.mxu0 %v3974
    %v4177 = vpop.f32.mrf.mxu0
    %v4178 = vadd.f32 %v2934, %v4177
    %v4179 = vpop.f32.mrf.mxu0
    %4180 = vmatprep.mubr.f32.mxu0 0.0
    %4181 = vmatmul.mubr.f32.gmra.mxu0 %v3976
    %v4182 = vpop.f32.mrf.mxu0
    %v4183 = vadd.f32 %v2939, %v4182
    %v4184 = vpop.f32.mrf.mxu0
    %4185 = vmatprep.mubr.f32.mxu0 0.0
    %4186 = vmatmul.mubr.f32.gmra.mxu0 %v3978
    %v4187 = vpop.f32.mrf.mxu0
    %v4188 = vadd.f32 %v2944, %v4187
    %v4189 = vpop.f32.mrf.mxu0
    %4190 = vmatprep.mubr.f32.mxu0 0.0
    %4191 = vmatmul.mubr.f32.gmra.mxu0 %v3980
    %v4192 = vpop.f32.mrf.mxu0
    %v4193 = vadd.f32 %v2949, %v4192
    %v4194 = vpop.f32.mrf.mxu0
    %4195 = vmatprep.mubr.f32.mxu0 0.0
    %4196 = vmatmul.mubr.f32.gmra.mxu0 %v3982
    %v4197 = vpop.f32.mrf.mxu0
    %v4198 = vadd.f32 %v2954, %v4197
    %v4199 = vpop.f32.mrf.mxu0
    %4200 = vmatprep.mubr.f32.mxu0 0.0
    %4201 = vmatmul.mubr.f32.gmra.mxu0 %v3984
    %v4202 = vpop.f32.mrf.mxu0
    %v4203 = vadd.f32 %v2959, %v4202
    %v4204 = vpop.f32.mrf.mxu0
    %4205 = vmatprep.mubr.f32.mxu0 0.0
    %4206 = vmatmul.mubr.f32.gmra.mxu0 %v3986
    %v4207 = vpop.f32.mrf.mxu0
    %v4208 = vadd.f32 %v2964, %v4207
    %v4209 = vpop.f32.mrf.mxu0
    %4210 = vmatprep.mubr.f32.mxu0 0.0
    %4211 = vmatmul.mubr.f32.gmra.mxu0 %v3988
    %v4212 = vpop.f32.mrf.mxu0
    %v4213 = vadd.f32 %v2969, %v4212
    %v4214 = vpop.f32.mrf.mxu0
    %4215 = vmatprep.mubr.f32.mxu0 0.0
    %4216 = vmatmul.mubr.f32.gmra.mxu0 %v3990
    %v4217 = vpop.f32.mrf.mxu0
    %v4218 = vadd.f32 %v2974, %v4217
    %v4219 = vpop.f32.mrf.mxu0
    %4220 = vmatprep.mubr.f32.mxu0 0.0
    %4221 = vmatmul.mubr.f32.gmra.mxu0 %v3992
    %v4222 = vpop.f32.mrf.mxu0
    %v4223 = vadd.f32 %v2979, %v4222
    %v4224 = vpop.f32.mrf.mxu0
    %4225 = vmatprep.mubr.f32.mxu0 0.0
    %4226 = vmatmul.mubr.f32.gmra.mxu0 %v3994
    %v4227 = vpop.f32.mrf.mxu0
    %v4228 = vadd.f32 %v2984, %v4227
    %v4229 = vpop.f32.mrf.mxu0
    %4230 = vmatprep.mubr.f32.mxu0 0.0
    %4231 = vmatmul.mubr.f32.gmra.mxu0 %v3996
    %v4232 = vpop.f32.mrf.mxu0
    %v4233 = vadd.f32 %v2989, %v4232
    %v4234 = vpop.f32.mrf.mxu0
    %4235 = vmatprep.mubr.f32.mxu0 0.0
    %4236 = vmatmul.mubr.f32.gmra.mxu0 %v3998
    %v4237 = vpop.f32.mrf.mxu0
    %v4238 = vadd.f32 %v2994, %v4237
    %v4239 = vpop.f32.mrf.mxu0
    %4240 = vmatprep.mubr.f32.mxu0 0.0
    %4241 = vmatmul.mubr.f32.gmra.mxu0 %v4000
    %v4242 = vpop.f32.mrf.mxu0
    %v4243 = vadd.f32 %v2999, %v4242
    %v4244 = vpop.f32.mrf.mxu0
    %4245 = vmatprep.mubr.f32.mxu0 0.0
    %4246 = vmatmul.mubr.f32.gmra.mxu0 %v4002
    %v4247 = vpop.f32.mrf.mxu0
    %v4248 = vadd.f32 %v3004, %v4247
    %v4249 = vpop.f32.mrf.mxu0
    %4250 = vmatprep.mubr.f32.mxu0 0.0
    %4251 = vmatmul.mubr.f32.gmra.mxu0 %v4004
    %v4252 = vpop.f32.mrf.mxu0
    %v4253 = vadd.f32 %v3009, %v4252
    %v4254 = vpop.f32.mrf.mxu0
    %4255 = vmatprep.mubr.f32.mxu0 0.0
    %4256 = vmatmul.mubr.f32.gmra.mxu0 %v4006
    %v4257 = vpop.f32.mrf.mxu0
    %v4258 = vadd.f32 %v3014, %v4257
    %v4259 = vpop.f32.mrf.mxu0
    %4260 = vmatprep.mubr.f32.mxu0 0.0
    %4261 = vmatmul.mubr.f32.gmra.mxu0 %v4008
    %v4262 = vpop.f32.mrf.mxu0
    %v4263 = vadd.f32 %v3019, %v4262
    %v4264 = vpop.f32.mrf.mxu0
    %4265 = vmatprep.mubr.f32.mxu0 0.0
    %4266 = vmatmul.mubr.f32.gmra.mxu0 %v4010
    %v4267 = vpop.f32.mrf.mxu0
    %v4268 = vadd.f32 %v3024, %v4267
    %v4269 = vpop.f32.mrf.mxu0
    %4270 = vmatprep.mubr.f32.mxu0 0.0
    %4271 = vmatmul.mubr.f32.gmra.mxu0 %v4012
    %v4272 = vpop.f32.mrf.mxu0
    %v4273 = vadd.f32 %v3029, %v4272
    %v4274 = vpop.f32.mrf.mxu0
    %4275 = vmatprep.mubr.f32.mxu0 0.0
    %4276 = vmatmul.mubr.f32.gmra.mxu0 %v4014
    %v4277 = vpop.f32.mrf.mxu0
    %v4278 = vadd.f32 %v3034, %v4277
    %v4279 = vpop.f32.mrf.mxu0
    %4280 = vmatprep.mubr.f32.mxu0 0.0
    %4281 = vmatmul.mubr.f32.gmra.mxu0 %v4016
    %v4282 = vpop.f32.mrf.mxu0
    %v4283 = vadd.f32 %v3039, %v4282
    %v4284 = vpop.f32.mrf.mxu0
    %4285 = vmatprep.mubr.f32.mxu0 0.0
    %4286 = vmatmul.mubr.f32.gmra.mxu0 %v4018
    %v4287 = vpop.f32.mrf.mxu0
    %v4288 = vadd.f32 %v3044, %v4287
    %v4289 = vpop.f32.mrf.mxu0
    %4290 = vmatprep.mubr.f32.mxu0 0.0
    %4291 = vmatmul.mubr.f32.gmra.mxu0 %v4020
    %v4292 = vpop.f32.mrf.mxu0
    %v4293 = vadd.f32 %v3049, %v4292
    %v4294 = vpop.f32.mrf.mxu0
    %4295 = vmatprep.mubr.f32.mxu0 0.0
    %4296 = vmatmul.mubr.f32.gmra.mxu0 %v4022
    %v4297 = vpop.f32.mrf.mxu0
    %v4298 = vadd.f32 %v3054, %v4297
    %v4299 = vpop.f32.mrf.mxu0
    %4300 = vmatprep.mubr.f32.mxu0 0.0
    %4301 = vmatmul.mubr.f32.gmra.mxu0 %v4024
    %v4302 = vpop.f32.mrf.mxu0
    %v4303 = vadd.f32 %v3059, %v4302
    %v4304 = vpop.f32.mrf.mxu0
    %4305 = vmatprep.mubr.f32.mxu0 0.0
    %4306 = vmatmul.mubr.f32.gmra.mxu0 %v4026
    %v4307 = vpop.f32.mrf.mxu0
    %v4308 = vadd.f32 %v3064, %v4307
    %v4309 = vpop.f32.mrf.mxu0
    %4310 = vmatprep.mubr.f32.mxu0 0.0
    %4311 = vmatmul.mubr.f32.gmra.mxu0 %v4028
    %v4312 = vpop.f32.mrf.mxu0
    %v4313 = vadd.f32 %v3069, %v4312
    %v4314 = vpop.f32.mrf.mxu0
    %4315 = vmatprep.mubr.f32.mxu0 0.0
    %4316 = vmatmul.mubr.f32.gmra.mxu0 %v4030
    %v4317 = vpop.f32.mrf.mxu0
    %v4318 = vadd.f32 %v3074, %v4317
    %v4319 = vpop.f32.mrf.mxu0
    %4320 = vmatprep.mubr.f32.mxu0 0.0
    %4321 = vmatmul.mubr.f32.gmra.mxu0 %v4032
    %v4322 = vpop.f32.mrf.mxu0
    %v4323 = vadd.f32 %v3079, %v4322
    %v4324 = vpop.f32.mrf.mxu0
    %4325 = vmatprep.mubr.f32.mxu0 0.0
    %4326 = vmatmul.mubr.f32.gmra.mxu0 %v4034
    %v4327 = vpop.f32.mrf.mxu0
    %v4328 = vadd.f32 %v3084, %v4327
    %v4329 = vpop.f32.mrf.mxu0
    %4330 = vmatprep.mubr.f32.mxu0 0.0
    %4331 = vmatmul.mubr.f32.gmra.mxu0 %v4036
    %v4332 = vpop.f32.mrf.mxu0
    %v4333 = vadd.f32 %v3089, %v4332
    %v4334 = vpop.f32.mrf.mxu0
    %4335 = vmatprep.mubr.f32.mxu0 0.0
    %4336 = vmatmul.mubr.f32.gmra.mxu0 %v4038
    %v4337 = vpop.f32.mrf.mxu0
    %v4338 = vadd.f32 %v3094, %v4337
    %v4339 = vpop.f32.mrf.mxu0
    %4340 = vmatprep.mubr.f32.mxu0 0.0
    %4341 = vmatmul.mubr.f32.gmra.mxu0 %v4040
    %v4342 = vpop.f32.mrf.mxu0
    %v4343 = vadd.f32 %v3099, %v4342
    %v4344 = vpop.f32.mrf.mxu0
    %4345 = vmatprep.mubr.f32.mxu0 0.0
    %4346 = vmatmul.mubr.f32.gmra.mxu0 %v4042
    %v4347 = vpop.f32.mrf.mxu0
    %v4348 = vadd.f32 %v3104, %v4347
    %v4349 = vpop.f32.mrf.mxu0
    %4350 = vmatprep.mubr.f32.mxu0 0.0
    %4351 = vmatmul.mubr.f32.gmra.mxu0 %v4044
    %v4352 = vpop.f32.mrf.mxu0
    %v4353 = vadd.f32 %v3109, %v4352
    %v4354 = vpop.f32.mrf.mxu0
    %4355 = vmatprep.mubr.f32.mxu0 0.0
    %4356 = vmatmul.mubr.f32.gmra.mxu0 %v4046
    %v4357 = vpop.f32.mrf.mxu0
    %v4358 = vadd.f32 %v3114, %v4357
    %v4359 = vpop.f32.mrf.mxu0
    %4360 = vdwg.mxu0
    %v4365 = vrot.slane %v63, 1
    %v4366 = vrot.slane %v64, 1
    %v4367 = vsel %vm153, %v4365, %v4366
    %v4368 = vrot.slane %v95, 1
    %v4369 = vrot.slane %v96, 1
    %v4370 = vsel %vm153, %v4368, %v4369
    %4371 = vrot.lane.b32.xlu0 %v4367, 4
    %v4372 = vpop.permute.xlu0 %4371
    %4373 = vrot.lane.b32.xlu0 %v4366, 4
    %v4374 = vpop.permute.xlu0 %4373
    %4375 = vrot.lane.b32.xlu0 %v4370, 4
    %v4376 = vpop.permute.xlu0 %4375
    %4377 = vrot.lane.b32.xlu0 %v4369, 4
    %v4378 = vpop.permute.xlu0 %4377
    %v4383 = vrot.slane %v63, 2
    %v4384 = vrot.slane %v64, 2
    %v4385 = vsel %vm406, %v4383, %v4384
    %v4386 = vrot.slane %v95, 2
    %v4387 = vrot.slane %v96, 2
    %v4388 = vsel %vm406, %v4386, %v4387
    %4389 = vrot.lane.b32.xlu0 %v4385, 8
    %v4390 = vpop.permute.xlu0 %4389
    %4391 = vrot.lane.b32.xlu0 %v4384, 8
    %v4392 = vpop.permute.xlu0 %4391
    %4393 = vrot.lane.b32.xlu0 %v4388, 8
    %v4394 = vpop.permute.xlu0 %4393
    %4395 = vrot.lane.b32.xlu0 %v4387, 8
    %v4396 = vpop.permute.xlu0 %4395
    %v4401 = vsel %vm659, %v63, %v4372
    %v4402 = vsel %vm659, %v64, %v4374
    %v4403 = vsel %vm659, %v95, %v4376
    %v4404 = vsel %vm659, %v96, %v4378
    %v4405 = vsel %vm716, %v4401, %v4390
    %v4406 = vsel %vm716, %v4402, %v4392
    %v4407 = vsel %vm716, %v4403, %v4394
    %v4408 = vsel %vm716, %v4404, %v4396
    %v4413 = vcombine.high %v4405, %v4405
    %v4415 = vunpack.c.l.s4 1983009808
    %v4416 = vunpack.c.0.s8 %v4415
    %v4417 = vlaneseq
    %v4418 = vshrl.u32 %v4417, 7
    %v4419 = vsub.s32 %v4416, %v4418
    %v4420 = vrot.slane %v4405, %v4419
    %v4422 = vunpack.c.l.s4 1983009808
    %v4423 = vunpack.c.0.s8 %v4422
    %v4424 = vlaneseq
    %v4425 = vshrl.u32 %v4424, 7
    %v4426 = vsub.s32 %v4423, %v4425
    %v4427 = vrot.slane %v4413, %v4426
    %v4428 = vcombine.high %v4420, %v4420
    %v4429 = vcombine.high %v4427, %v4427
    %v4430 = vcombine.high %v4406, %v4406
    %v4432 = vunpack.c.l.s4 1983009808
    %v4433 = vunpack.c.0.s8 %v4432
    %v4434 = vlaneseq
    %v4435 = vshrl.u32 %v4434, 7
    %v4436 = vsub.s32 %v4433, %v4435
    %v4437 = vrot.slane %v4406, %v4436
    %v4439 = vunpack.c.l.s4 1983009808
    %v4440 = vunpack.c.0.s8 %v4439
    %v4441 = vlaneseq
    %v4442 = vshrl.u32 %v4441, 7
    %v4443 = vsub.s32 %v4440, %v4442
    %v4444 = vrot.slane %v4430, %v4443
    %v4445 = vcombine.high %v4437, %v4437
    %v4446 = vcombine.high %v4407, %v4407
    %v4448 = vunpack.c.l.s4 1983009808
    %v4449 = vunpack.c.0.s8 %v4448
    %v4450 = vlaneseq
    %v4451 = vshrl.u32 %v4450, 7
    %v4452 = vsub.s32 %v4449, %v4451
    %v4453 = vrot.slane %v4407, %v4452
    %v4455 = vunpack.c.l.s4 1983009808
    %v4456 = vunpack.c.0.s8 %v4455
    %v4457 = vlaneseq
    %v4458 = vshrl.u32 %v4457, 7
    %v4459 = vsub.s32 %v4456, %v4458
    %v4460 = vrot.slane %v4446, %v4459
    %v4461 = vcombine.high %v4453, %v4453
    %v4462 = vcombine.high %v4460, %v4460
    %v4463 = vcombine.high %v4408, %v4408
    %v4465 = vunpack.c.l.s4 1983009808
    %v4466 = vunpack.c.0.s8 %v4465
    %v4467 = vlaneseq
    %v4468 = vshrl.u32 %v4467, 7
    %v4469 = vsub.s32 %v4466, %v4468
    %v4470 = vrot.slane %v4408, %v4469
    %v4472 = vunpack.c.l.s4 1983009808
    %v4473 = vunpack.c.0.s8 %v4472
    %v4474 = vlaneseq
    %v4475 = vshrl.u32 %v4474, 7
    %v4476 = vsub.s32 %v4473, %v4475
    %v4477 = vrot.slane %v4463, %v4476
    %v4478 = vcombine.high %v4470, %v4470
    %v4479 = vcombine.low %v3183, %v3193
    %v4480 = vcombine.low %v3200, %v3210
    %v4481 = vcombine.low %v3217, %v3227
    %v4482 = vcombine.low %v3234, %v3244
    %v4483 = vcombine.low %v3251, %v3261
    %v4484 = vcombine.low %v3268, %v3278
    %v4485 = vcombine.low %v3285, %v3295
    %v4486 = vcombine.low %v3302, %v3312
    %v4487 = vcombine.low %v3319, %v3329
    %v4488 = vcombine.low %v3336, %v3346
    %v4489 = vcombine.low %v3353, %v3363
    %v4490 = vcombine.low %v3370, %v3380
    %v4491 = vcombine.low %v3387, %v3397
    %v4492 = vcombine.low %v3404, %v3414
    %v4493 = vcombine.low %v3421, %v3431
    %v4494 = vcombine.low %v3438, %v3448
    %v4495 = vcombine.low %v3455, %v3465
    %v4496 = vcombine.low %v3472, %v3482
    %v4497 = vcombine.low %v3489, %v3499
    %v4498 = vcombine.low %v3506, %v3516
    %v4499 = vcombine.low %v3523, %v3533
    %v4500 = vcombine.low %v1812, %v1820
    %v4501 = vcombine.low %v1819, %v1821
    %v4503 = vunpack.c.l.s4 1983009808
    %v4504 = vunpack.c.0.s8 %v4503
    %v4505 = vlaneseq
    %v4506 = vshrl.u32 %v4505, 7
    %v4507 = vsub.s32 %v4504, %v4506
    %v4508 = vrot.slane %v4500, %v4507
    %v4510 = vunpack.c.l.s4 1983009808
    %v4511 = vunpack.c.0.s8 %v4510
    %v4512 = vlaneseq
    %v4513 = vshrl.u32 %v4512, 7
    %v4514 = vsub.s32 %v4511, %v4513
    %v4515 = vrot.slane %v4501, %v4514
    %v4516 = vcombine.low %v4508, %v4515
    %v4517 = vcombine.low %v1829, %v1837
    %v4518 = vcombine.low %v1836, %v4420
    %v4520 = vunpack.c.l.s4 1983009808
    %v4521 = vunpack.c.0.s8 %v4520
    %v4522 = vlaneseq
    %v4523 = vshrl.u32 %v4522, 7
    %v4524 = vsub.s32 %v4521, %v4523
    %v4525 = vrot.slane %v4517, %v4524
    %v4527 = vunpack.c.l.s4 1983009808
    %v4528 = vunpack.c.0.s8 %v4527
    %v4529 = vlaneseq
    %v4530 = vshrl.u32 %v4529, 7
    %v4531 = vsub.s32 %v4528, %v4530
    %v4532 = vrot.slane %v4518, %v4531
    %v4533 = vcombine.low %v4525, %v4532
    %v4534 = vcombine.low %v4428, %v4427
    %v4535 = vcombine.low %v4429, %v4437
    %v4537 = vunpack.c.l.s4 1983009808
    %v4538 = vunpack.c.0.s8 %v4537
    %v4539 = vlaneseq
    %v4540 = vshrl.u32 %v4539, 7
    %v4541 = vsub.s32 %v4538, %v4540
    %v4542 = vrot.slane %v4534, %v4541
    %v4544 = vunpack.c.l.s4 1983009808
    %v4545 = vunpack.c.0.s8 %v4544
    %v4546 = vlaneseq
    %v4547 = vshrl.u32 %v4546, 7
    %v4548 = vsub.s32 %v4545, %v4547
    %v4549 = vrot.slane %v4535, %v4548
    %v4550 = vcombine.low %v4542, %v4549
    %v4551 = vcombine.low %v4445, %v4444
    %v4553 = vunpack.c.l.s4 1983009808
    %v4554 = vunpack.c.0.s8 %v4553
    %v4555 = vlaneseq
    %v4556 = vshrl.u32 %v4555, 7
    %v4557 = vsub.s32 %v4554, %v4556
    %v4558 = vrot.slane %v4551, %v4557
    %v4559 = vcombine.low %v4558, %v3601
    %v4560 = vcombine.low %v3608, %v3618
    %v4561 = vcombine.low %v3625, %v3635
    %v4562 = vcombine.low %v3642, %v3652
    %v4563 = vcombine.low %v3659, %v3669
    %v4564 = vcombine.low %v3676, %v3686
    %v4565 = vcombine.low %v3693, %v3703
    %v4566 = vcombine.low %v3710, %v3720
    %v4567 = vcombine.low %v3727, %v3737
    %v4568 = vcombine.low %v3744, %v3754
    %v4569 = vcombine.low %v3761, %v3771
    %v4570 = vcombine.low %v3778, %v3788
    %v4571 = vcombine.low %v3795, %v3805
    %v4572 = vcombine.low %v3812, %v3822
    %v4573 = vcombine.low %v3829, %v3839
    %v4574 = vcombine.low %v3846, %v3856
    %v4575 = vcombine.low %v3863, %v3873
    %v4576 = vcombine.low %v3880, %v3890
    %v4577 = vcombine.low %v3897, %v3907
    %v4578 = vcombine.low %v3914, %v3924
    %v4579 = vcombine.low %v3931, %v3941
    %v4580 = vcombine.low %v1845, %v1853
    %v4582 = vunpack.c.l.s4 1983009808
    %v4583 = vunpack.c.0.s8 %v4582
    %v4584 = vlaneseq
    %v4585 = vshrl.u32 %v4584, 7
    %v4586 = vsub.s32 %v4583, %v4585
    %v4587 = vrot.slane %v4580, %v4586
    %v4588 = vcombine.low %v3948, %v4587
    %v4589 = vcombine.low %v1852, %v1854
    %v4590 = vcombine.low %v1862, %v1870
    %v4592 = vunpack.c.l.s4 1983009808
    %v4593 = vunpack.c.0.s8 %v4592
    %v4594 = vlaneseq
    %v4595 = vshrl.u32 %v4594, 7
    %v4596 = vsub.s32 %v4593, %v4595
    %v4597 = vrot.slane %v4589, %v4596
    %v4599 = vunpack.c.l.s4 1983009808
    %v4600 = vunpack.c.0.s8 %v4599
    %v4601 = vlaneseq
    %v4602 = vshrl.u32 %v4601, 7
    %v4603 = vsub.s32 %v4600, %v4602
    %v4604 = vrot.slane %v4590, %v4603
    %v4605 = vcombine.low %v4597, %v4604
    %v4606 = vcombine.low %v1869, %v4453
    %v4607 = vcombine.low %v4461, %v4460
    %v4609 = vunpack.c.l.s4 1983009808
    %v4610 = vunpack.c.0.s8 %v4609
    %v4611 = vlaneseq
    %v4612 = vshrl.u32 %v4611, 7
    %v4613 = vsub.s32 %v4610, %v4612
    %v4614 = vrot.slane %v4606, %v4613
    %v4616 = vunpack.c.l.s4 1983009808
    %v4617 = vunpack.c.0.s8 %v4616
    %v4618 = vlaneseq
    %v4619 = vshrl.u32 %v4618, 7
    %v4620 = vsub.s32 %v4617, %v4619
    %v4621 = vrot.slane %v4607, %v4620
    %v4622 = vcombine.low %v4614, %v4621
    %v4623 = vcombine.low %v4462, %v4470
    %v4624 = vcombine.low %v4478, %v4477
    %v4626 = vunpack.c.l.s4 1983009808
    %v4627 = vunpack.c.0.s8 %v4626
    %v4628 = vlaneseq
    %v4629 = vshrl.u32 %v4628, 7
    %v4630 = vsub.s32 %v4627, %v4629
    %v4631 = vrot.slane %v4623, %v4630
    %v4633 = vunpack.c.l.s4 1983009808
    %v4634 = vunpack.c.0.s8 %v4633
    %v4635 = vlaneseq
    %v4636 = vshrl.u32 %v4635, 7
    %v4637 = vsub.s32 %v4634, %v4636
    %v4638 = vrot.slane %v4624, %v4637
    %v4639 = vcombine.low %v4631, %v4638
    %v4640 = vsel %vm2704, %v4479, 0
    %v4642 = vsel %vm2704, %v4480, 0
    %v4644 = vsel %vm2704, %v4481, 0
    %v4646 = vsel %vm2704, %v4482, 0
    %v4648 = vsel %vm2704, %v4483, 0
    %v4650 = vsel %vm2704, %v4484, 0
    %v4652 = vsel %vm2704, %v4485, 0
    %v4654 = vsel %vm2704, %v4486, 0
    %v4656 = vsel %vm2704, %v4487, 0
    %v4658 = vsel %vm2704, %v4488, 0
    %v4660 = vsel %vm2704, %v4489, 0
    %v4662 = vsel %vm2704, %v4490, 0
    %v4664 = vsel %vm2704, %v4491, 0
    %v4666 = vsel %vm2704, %v4492, 0
    %v4668 = vsel %vm2704, %v4493, 0
    %v4670 = vsel %vm2704, %v4494, 0
    %v4672 = vsel %vm2704, %v4495, 0
    %v4674 = vsel %vm2704, %v4496, 0
    %v4676 = vsel %vm2704, %v4497, 0
    %v4678 = vsel %vm2704, %v4498, 0
    %v4680 = vsel %vm2704, %v4499, 0
    %v4682 = vsel %vm2704, %v4516, 0
    %v4684 = vsel %vm2704, %v4533, 0
    %v4686 = vsel %vm2704, %v4550, 0
    %v4688 = vsel %vm2704, %v4559, 0
    %v4690 = vsel %vm2704, %v4560, 0
    %v4692 = vsel %vm2704, %v4561, 0
    %v4694 = vsel %vm2704, %v4562, 0
    %v4696 = vsel %vm2704, %v4563, 0
    %v4698 = vsel %vm2704, %v4564, 0
    %v4700 = vsel %vm2704, %v4565, 0
    %v4702 = vsel %vm2704, %v4566, 0
    %v4704 = vsel %vm2704, %v4567, 0
    %v4706 = vsel %vm2704, %v4568, 0
    %v4708 = vsel %vm2704, %v4569, 0
    %v4710 = vsel %vm2704, %v4570, 0
    %v4712 = vsel %vm2704, %v4571, 0
    %v4714 = vsel %vm2704, %v4572, 0
    %v4716 = vsel %vm2704, %v4573, 0
    %v4718 = vsel %vm2704, %v4574, 0
    %v4720 = vsel %vm2704, %v4575, 0
    %v4722 = vsel %vm2704, %v4576, 0
    %v4724 = vsel %vm2704, %v4577, 0
    %v4726 = vsel %vm2704, %v4578, 0
    %v4728 = vsel %vm2704, %v4579, 0
    %v4730 = vsel %vm2704, %v4588, 0
    %v4732 = vsel %vm2704, %v4605, 0
    %v4734 = vsel %vm2704, %v4622, 0
    %v4736 = vsel %vm2704, %v4639, 0
    %v4739 = vsel %vm2803, %v23, 0
    %4741 = vmatprep.subr.mxu0 0.0
    %4742 = vmatpush1.msra.mxu0 0.0
    %4743 = vmatprep.subr.mxu0 0.0
    %4744 = vmatpush1.msra.mxu0 0.0
    %4745 = vmatprep.subr.mxu0 0.0
    %4746 = vmatpush1.msra.mxu0 0.0
    %4747 = vmatprep.subr.mxu0 0.0
    %4748 = vmatpush1.msra.mxu0 0.0
    %4749 = vmatprep.subr.mxu0 0.0
    %4750 = vmatpush1.msra.mxu0 0.0
    %4751 = vmatprep.subr.mxu0 0.0
    %4752 = vmatpush1.msra.mxu0 0.0
    %4753 = vmatprep.subr.mxu0 0.0
    %4754 = vmatpush1.msra.mxu0 0.0
    %4755 = vmatprep.subr.mxu0 0.0
    %4756 = vmatpush1.msra.mxu0 0.0
    %4757 = vmatprep.subr.mxu0 0.0
    %4758 = vmatpush1.msra.mxu0 0.0
    %4759 = vmatprep.subr.mxu0 0.0
    %4760 = vmatpush1.msra.mxu0 0.0
    %4761 = vmatprep.subr.mxu0 0.0
    %4762 = vmatpush1.msra.mxu0 0.0
    %4763 = vmatprep.subr.mxu0 0.0
    %4764 = vmatpush1.msra.mxu0 0.0
    %4765 = vmatprep.subr.mxu0 0.0
    %4766 = vmatpush1.msra.mxu0 0.0
    %4767 = vmatprep.subr.mxu0 0.0
    %4768 = vmatpush1.msra.mxu0 0.0
    %4769 = vmatprep.subr.mxu0 0.0
    %4770 = vmatpush1.msra.mxu0 %v4739
    %4771 = vmatprep.subr.mxu0 0.0
    %4772 = vmatpush1.msra.mxu0 %v22
    %4773 = vmatprep.subr.mxu0 0.0
    %4774 = vmatpush2.msra.mxu0 0.0
    %4775 = vmatprep.subr.mxu0 0.0
    %4776 = vmatpush2.msra.mxu0 0.0
    %4777 = vmatprep.subr.mxu0 0.0
    %4778 = vmatpush2.msra.mxu0 0.0
    %4779 = vmatprep.subr.mxu0 0.0
    %4780 = vmatpush2.msra.mxu0 0.0
    %4781 = vmatprep.subr.mxu0 0.0
    %4782 = vmatpush2.msra.mxu0 0.0
    %4783 = vmatprep.subr.mxu0 0.0
    %4784 = vmatpush2.msra.mxu0 0.0
    %4785 = vmatprep.subr.mxu0 0.0
    %4786 = vmatpush2.msra.mxu0 0.0
    %4787 = vmatprep.subr.mxu0 0.0
    %4788 = vmatpush2.msra.mxu0 0.0
    %4789 = vmatprep.subr.mxu0 0.0
    %4790 = vmatpush2.msra.mxu0 0.0
    %4791 = vmatprep.subr.mxu0 0.0
    %4792 = vmatpush2.msra.mxu0 0.0
    %4793 = vmatprep.subr.mxu0 0.0
    %4794 = vmatpush2.msra.mxu0 0.0
    %4795 = vmatprep.subr.mxu0 0.0
    %4796 = vmatpush2.msra.mxu0 0.0
    %4797 = vmatprep.subr.mxu0 0.0
    %4798 = vmatpush2.msra.mxu0 0.0
    %4799 = vmatprep.subr.mxu0 0.0
    %4800 = vmatpush2.msra.mxu0 0.0
    %4801 = vmatprep.subr.mxu0 0.0
    %4802 = vmatpush2.msra.mxu0 0.0
    %4803 = vmatprep.subr.mxu0 0.0
    %4804 = vmatpush2.msra.mxu0 0.0
    %4805 = vmatprep.mubr.f32.mxu0 0.0
    %4806 = vmatmul.mubr.f32.gmra.mxu0 %v4640
    %v4807 = vpop.f32.mrf.mxu0
    %v4808 = vadd.f32 0.0, %v4807
    %v4809 = vpop.f32.mrf.mxu0
    %4810 = vmatprep.mubr.f32.mxu0 0.0
    %4811 = vmatmul.mubr.f32.gmra.mxu0 %v4642
    %v4812 = vpop.f32.mrf.mxu0
    %v4813 = vadd.f32 0.0, %v4812
    %v4814 = vpop.f32.mrf.mxu0
    %4815 = vmatprep.mubr.f32.mxu0 0.0
    %4816 = vmatmul.mubr.f32.gmra.mxu0 %v4644
    %v4817 = vpop.f32.mrf.mxu0
    %v4818 = vadd.f32 0.0, %v4817
    %v4819 = vpop.f32.mrf.mxu0
    %4820 = vmatprep.mubr.f32.mxu0 0.0
    %4821 = vmatmul.mubr.f32.gmra.mxu0 %v4646
    %v4822 = vpop.f32.mrf.mxu0
    %v4823 = vadd.f32 0.0, %v4822
    %v4824 = vpop.f32.mrf.mxu0
    %4825 = vmatprep.mubr.f32.mxu0 0.0
    %4826 = vmatmul.mubr.f32.gmra.mxu0 %v4648
    %v4827 = vpop.f32.mrf.mxu0
    %v4828 = vadd.f32 0.0, %v4827
    %v4829 = vpop.f32.mrf.mxu0
    %4830 = vmatprep.mubr.f32.mxu0 0.0
    %4831 = vmatmul.mubr.f32.gmra.mxu0 %v4650
    %v4832 = vpop.f32.mrf.mxu0
    %v4833 = vadd.f32 0.0, %v4832
    %v4834 = vpop.f32.mrf.mxu0
    %4835 = vmatprep.mubr.f32.mxu0 0.0
    %4836 = vmatmul.mubr.f32.gmra.mxu0 %v4652
    %v4837 = vpop.f32.mrf.mxu0
    %v4838 = vadd.f32 0.0, %v4837
    %v4839 = vpop.f32.mrf.mxu0
    %4840 = vmatprep.mubr.f32.mxu0 0.0
    %4841 = vmatmul.mubr.f32.gmra.mxu0 %v4654
    %v4842 = vpop.f32.mrf.mxu0
    %v4843 = vadd.f32 0.0, %v4842
    %v4844 = vpop.f32.mrf.mxu0
    %4845 = vmatprep.mubr.f32.mxu0 0.0
    %4846 = vmatmul.mubr.f32.gmra.mxu0 %v4656
    %v4847 = vpop.f32.mrf.mxu0
    %v4848 = vadd.f32 0.0, %v4847
    %v4849 = vpop.f32.mrf.mxu0
    %4850 = vmatprep.mubr.f32.mxu0 0.0
    %4851 = vmatmul.mubr.f32.gmra.mxu0 %v4658
    %v4852 = vpop.f32.mrf.mxu0
    %v4853 = vadd.f32 0.0, %v4852
    %v4854 = vpop.f32.mrf.mxu0
    %4855 = vmatprep.mubr.f32.mxu0 0.0
    %4856 = vmatmul.mubr.f32.gmra.mxu0 %v4660
    %v4857 = vpop.f32.mrf.mxu0
    %v4858 = vadd.f32 0.0, %v4857
    %v4859 = vpop.f32.mrf.mxu0
    %4860 = vmatprep.mubr.f32.mxu0 0.0
    %4861 = vmatmul.mubr.f32.gmra.mxu0 %v4662
    %v4862 = vpop.f32.mrf.mxu0
    %v4863 = vadd.f32 0.0, %v4862
    %v4864 = vpop.f32.mrf.mxu0
    %4865 = vmatprep.mubr.f32.mxu0 0.0
    %4866 = vmatmul.mubr.f32.gmra.mxu0 %v4664
    %v4867 = vpop.f32.mrf.mxu0
    %v4868 = vadd.f32 0.0, %v4867
    %v4869 = vpop.f32.mrf.mxu0
    %4870 = vmatprep.mubr.f32.mxu0 0.0
    %4871 = vmatmul.mubr.f32.gmra.mxu0 %v4666
    %v4872 = vpop.f32.mrf.mxu0
    %v4873 = vadd.f32 0.0, %v4872
    %v4874 = vpop.f32.mrf.mxu0
    %4875 = vmatprep.mubr.f32.mxu0 0.0
    %4876 = vmatmul.mubr.f32.gmra.mxu0 %v4668
    %v4877 = vpop.f32.mrf.mxu0
    %v4878 = vadd.f32 0.0, %v4877
    %v4879 = vpop.f32.mrf.mxu0
    %4880 = vmatprep.mubr.f32.mxu0 0.0
    %4881 = vmatmul.mubr.f32.gmra.mxu0 %v4670
    %v4882 = vpop.f32.mrf.mxu0
    %v4883 = vadd.f32 0.0, %v4882
    %v4884 = vpop.f32.mrf.mxu0
    %4885 = vmatprep.mubr.f32.mxu0 0.0
    %4886 = vmatmul.mubr.f32.gmra.mxu0 %v4672
    %v4887 = vpop.f32.mrf.mxu0
    %v4888 = vadd.f32 0.0, %v4887
    %v4889 = vpop.f32.mrf.mxu0
    %4890 = vmatprep.mubr.f32.mxu0 0.0
    %4891 = vmatmul.mubr.f32.gmra.mxu0 %v4674
    %v4892 = vpop.f32.mrf.mxu0
    %v4893 = vadd.f32 0.0, %v4892
    %v4894 = vpop.f32.mrf.mxu0
    %4895 = vmatprep.mubr.f32.mxu0 0.0
    %4896 = vmatmul.mubr.f32.gmra.mxu0 %v4676
    %v4897 = vpop.f32.mrf.mxu0
    %v4898 = vadd.f32 0.0, %v4897
    %v4899 = vpop.f32.mrf.mxu0
    %4900 = vmatprep.mubr.f32.mxu0 0.0
    %4901 = vmatmul.mubr.f32.gmra.mxu0 %v4678
    %v4902 = vpop.f32.mrf.mxu0
    %v4903 = vadd.f32 0.0, %v4902
    %v4904 = vpop.f32.mrf.mxu0
    %4905 = vmatprep.mubr.f32.mxu0 0.0
    %4906 = vmatmul.mubr.f32.gmra.mxu0 %v4680
    %v4907 = vpop.f32.mrf.mxu0
    %v4908 = vadd.f32 0.0, %v4907
    %v4909 = vpop.f32.mrf.mxu0
    %4910 = vmatprep.mubr.f32.mxu0 0.0
    %4911 = vmatmul.mubr.f32.gmra.mxu0 %v4682
    %v4912 = vpop.f32.mrf.mxu0
    %v4913 = vadd.f32 0.0, %v4912
    %v4914 = vpop.f32.mrf.mxu0
    %4915 = vmatprep.mubr.f32.mxu0 0.0
    %4916 = vmatmul.mubr.f32.gmra.mxu0 %v4684
    %v4917 = vpop.f32.mrf.mxu0
    %v4918 = vadd.f32 0.0, %v4917
    %v4919 = vpop.f32.mrf.mxu0
    %4920 = vmatprep.mubr.f32.mxu0 0.0
    %4921 = vmatmul.mubr.f32.gmra.mxu0 %v4686
    %v4922 = vpop.f32.mrf.mxu0
    %v4923 = vadd.f32 0.0, %v4922
    %v4924 = vpop.f32.mrf.mxu0
    %4925 = vmatprep.mubr.f32.mxu0 0.0
    %4926 = vmatmul.mubr.f32.gmra.mxu0 %v4688
    %v4927 = vpop.f32.mrf.mxu0
    %v4928 = vadd.f32 0.0, %v4927
    %v4929 = vpop.f32.mrf.mxu0
    %4930 = vmatprep.mubr.f32.mxu0 0.0
    %4931 = vmatmul.mubr.f32.gmra.mxu0 %v4690
    %v4932 = vpop.f32.mrf.mxu0
    %v4933 = vadd.f32 0.0, %v4932
    %v4934 = vpop.f32.mrf.mxu0
    %4935 = vmatprep.mubr.f32.mxu0 0.0
    %4936 = vmatmul.mubr.f32.gmra.mxu0 %v4692
    %v4937 = vpop.f32.mrf.mxu0
    %v4938 = vadd.f32 0.0, %v4937
    %v4939 = vpop.f32.mrf.mxu0
    %4940 = vmatprep.mubr.f32.mxu0 0.0
    %4941 = vmatmul.mubr.f32.gmra.mxu0 %v4694
    %v4942 = vpop.f32.mrf.mxu0
    %v4943 = vadd.f32 0.0, %v4942
    %v4944 = vpop.f32.mrf.mxu0
    %4945 = vmatprep.mubr.f32.mxu0 0.0
    %4946 = vmatmul.mubr.f32.gmra.mxu0 %v4696
    %v4947 = vpop.f32.mrf.mxu0
    %v4948 = vadd.f32 0.0, %v4947
    %v4949 = vpop.f32.mrf.mxu0
    %4950 = vmatprep.mubr.f32.mxu0 0.0
    %4951 = vmatmul.mubr.f32.gmra.mxu0 %v4698
    %v4952 = vpop.f32.mrf.mxu0
    %v4953 = vadd.f32 0.0, %v4952
    %v4954 = vpop.f32.mrf.mxu0
    %4955 = vmatprep.mubr.f32.mxu0 0.0
    %4956 = vmatmul.mubr.f32.gmra.mxu0 %v4700
    %v4957 = vpop.f32.mrf.mxu0
    %v4958 = vadd.f32 0.0, %v4957
    %v4959 = vpop.f32.mrf.mxu0
    %4960 = vmatprep.mubr.f32.mxu0 0.0
    %4961 = vmatmul.mubr.f32.gmra.mxu0 %v4702
    %v4962 = vpop.f32.mrf.mxu0
    %v4963 = vadd.f32 0.0, %v4962
    %v4964 = vpop.f32.mrf.mxu0
    %4965 = vmatprep.mubr.f32.mxu0 0.0
    %4966 = vmatmul.mubr.f32.gmra.mxu0 %v4704
    %v4967 = vpop.f32.mrf.mxu0
    %v4968 = vadd.f32 0.0, %v4967
    %v4969 = vpop.f32.mrf.mxu0
    %4970 = vmatprep.mubr.f32.mxu0 0.0
    %4971 = vmatmul.mubr.f32.gmra.mxu0 %v4706
    %v4972 = vpop.f32.mrf.mxu0
    %v4973 = vadd.f32 0.0, %v4972
    %v4974 = vpop.f32.mrf.mxu0
    %4975 = vmatprep.mubr.f32.mxu0 0.0
    %4976 = vmatmul.mubr.f32.gmra.mxu0 %v4708
    %v4977 = vpop.f32.mrf.mxu0
    %v4978 = vadd.f32 0.0, %v4977
    %v4979 = vpop.f32.mrf.mxu0
    %4980 = vmatprep.mubr.f32.mxu0 0.0
    %4981 = vmatmul.mubr.f32.gmra.mxu0 %v4710
    %v4982 = vpop.f32.mrf.mxu0
    %v4983 = vadd.f32 0.0, %v4982
    %v4984 = vpop.f32.mrf.mxu0
    %4985 = vmatprep.mubr.f32.mxu0 0.0
    %4986 = vmatmul.mubr.f32.gmra.mxu0 %v4712
    %v4987 = vpop.f32.mrf.mxu0
    %v4988 = vadd.f32 0.0, %v4987
    %v4989 = vpop.f32.mrf.mxu0
    %4990 = vmatprep.mubr.f32.mxu0 0.0
    %4991 = vmatmul.mubr.f32.gmra.mxu0 %v4714
    %v4992 = vpop.f32.mrf.mxu0
    %v4993 = vadd.f32 0.0, %v4992
    %v4994 = vpop.f32.mrf.mxu0
    %4995 = vmatprep.mubr.f32.mxu0 0.0
    %4996 = vmatmul.mubr.f32.gmra.mxu0 %v4716
    %v4997 = vpop.f32.mrf.mxu0
    %v4998 = vadd.f32 0.0, %v4997
    %v4999 = vpop.f32.mrf.mxu0
    %5000 = vmatprep.mubr.f32.mxu0 0.0
    %5001 = vmatmul.mubr.f32.gmra.mxu0 %v4718
    %v5002 = vpop.f32.mrf.mxu0
    %v5003 = vadd.f32 0.0, %v5002
    %v5004 = vpop.f32.mrf.mxu0
    %5005 = vmatprep.mubr.f32.mxu0 0.0
    %5006 = vmatmul.mubr.f32.gmra.mxu0 %v4720
    %v5007 = vpop.f32.mrf.mxu0
    %v5008 = vadd.f32 0.0, %v5007
    %v5009 = vpop.f32.mrf.mxu0
    %5010 = vmatprep.mubr.f32.mxu0 0.0
    %5011 = vmatmul.mubr.f32.gmra.mxu0 %v4722
    %v5012 = vpop.f32.mrf.mxu0
    %v5013 = vadd.f32 0.0, %v5012
    %v5014 = vpop.f32.mrf.mxu0
    %5015 = vmatprep.mubr.f32.mxu0 0.0
    %5016 = vmatmul.mubr.f32.gmra.mxu0 %v4724
    %v5017 = vpop.f32.mrf.mxu0
    %v5018 = vadd.f32 0.0, %v5017
    %v5019 = vpop.f32.mrf.mxu0
    %5020 = vmatprep.mubr.f32.mxu0 0.0
    %5021 = vmatmul.mubr.f32.gmra.mxu0 %v4726
    %v5022 = vpop.f32.mrf.mxu0
    %v5023 = vadd.f32 0.0, %v5022
    %v5024 = vpop.f32.mrf.mxu0
    %5025 = vmatprep.mubr.f32.mxu0 0.0
    %5026 = vmatmul.mubr.f32.gmra.mxu0 %v4728
    %v5027 = vpop.f32.mrf.mxu0
    %v5028 = vadd.f32 0.0, %v5027
    %v5029 = vpop.f32.mrf.mxu0
    %5030 = vmatprep.mubr.f32.mxu0 0.0
    %5031 = vmatmul.mubr.f32.gmra.mxu0 %v4730
    %v5032 = vpop.f32.mrf.mxu0
    %v5033 = vadd.f32 0.0, %v5032
    %v5034 = vpop.f32.mrf.mxu0
    %5035 = vmatprep.mubr.f32.mxu0 0.0
    %5036 = vmatmul.mubr.f32.gmra.mxu0 %v4732
    %v5037 = vpop.f32.mrf.mxu0
    %v5038 = vadd.f32 0.0, %v5037
    %v5039 = vpop.f32.mrf.mxu0
    %5040 = vmatprep.mubr.f32.mxu0 0.0
    %5041 = vmatmul.mubr.f32.gmra.mxu0 %v4734
    %v5042 = vpop.f32.mrf.mxu0
    %v5043 = vadd.f32 0.0, %v5042
    %v5044 = vpop.f32.mrf.mxu0
    %5045 = vmatprep.mubr.f32.mxu0 0.0
    %5046 = vmatmul.mubr.f32.gmra.mxu0 %v4736
    %v5047 = vpop.f32.mrf.mxu0
    %v5048 = vadd.f32 0.0, %v5047
    %v5049 = vpop.f32.mrf.mxu0
    %5050 = vdwg.mxu0
    %v5051 = vadd.f32 %v4118, %v4808
    %v5052 = vadd.f32 %v4123, %v4813
    %v5053 = vadd.f32 %v4128, %v4818
    %v5054 = vadd.f32 %v4133, %v4823
    %v5055 = vadd.f32 %v4138, %v4828
    %v5056 = vadd.f32 %v4143, %v4833
    %v5057 = vadd.f32 %v4148, %v4838
    %v5058 = vadd.f32 %v4153, %v4843
    %v5059 = vadd.f32 %v4158, %v4848
    %v5060 = vadd.f32 %v4163, %v4853
    %v5061 = vadd.f32 %v4168, %v4858
    %v5062 = vadd.f32 %v4173, %v4863
    %v5063 = vadd.f32 %v4178, %v4868
    %v5064 = vadd.f32 %v4183, %v4873
    %v5065 = vadd.f32 %v4188, %v4878
    %v5066 = vadd.f32 %v4193, %v4883
    %v5067 = vadd.f32 %v4198, %v4888
    %v5068 = vadd.f32 %v4203, %v4893
    %v5069 = vadd.f32 %v4208, %v4898
    %v5070 = vadd.f32 %v4213, %v4903
    %v5071 = vadd.f32 %v4218, %v4908
    %v5072 = vadd.f32 %v4223, %v4913
    %v5073 = vadd.f32 %v4228, %v4918
    %v5074 = vadd.f32 %v4233, %v4923
    %v5075 = vadd.f32 %v4238, %v4928
    %v5076 = vadd.f32 %v4243, %v4933
    %v5077 = vadd.f32 %v4248, %v4938
    %v5078 = vadd.f32 %v4253, %v4943
    %v5079 = vadd.f32 %v4258, %v4948
    %v5080 = vadd.f32 %v4263, %v4953
    %v5081 = vadd.f32 %v4268, %v4958
    %v5082 = vadd.f32 %v4273, %v4963
    %v5083 = vadd.f32 %v4278, %v4968
    %v5084 = vadd.f32 %v4283, %v4973
    %v5085 = vadd.f32 %v4288, %v4978
    %v5086 = vadd.f32 %v4293, %v4983
    %v5087 = vadd.f32 %v4298, %v4988
    %v5088 = vadd.f32 %v4303, %v4993
    %v5089 = vadd.f32 %v4308, %v4998
    %v5090 = vadd.f32 %v4313, %v5003
    %v5091 = vadd.f32 %v4318, %v5008
    %v5092 = vadd.f32 %v4323, %v5013
    %v5093 = vadd.f32 %v4328, %v5018
    %v5094 = vadd.f32 %v4333, %v5023
    %v5095 = vadd.f32 %v4338, %v5028
    %v5096 = vadd.f32 %v4343, %v5033
    %v5097 = vadd.f32 %v4348, %v5038
    %v5098 = vadd.f32 %v4353, %v5043
    %v5099 = vadd.f32 %v4358, %v5048
    %v5100 = vld [vmem:[%s3] sm:$0x1]
    %v5101 = vld [vmem:[%s3 + $0x1] sm:$0x1]
    %v5102 = vsel %vm716, %v5051, 0.0
    %v5103 = vsel %vm716, %v5052, 0.0
    %v5104 = vadd.f32 %v5102, %v5103
    %v5105 = vsel %vm716, %v5053, 0.0
    %v5106 = vadd.f32 %v5104, %v5105
    %v5107 = vsel %vm716, %v5054, 0.0
    %v5108 = vadd.f32 %v5106, %v5107
    %v5109 = vsel %vm716, %v5055, 0.0
    %v5110 = vadd.f32 %v5108, %v5109
    %v5111 = vsel %vm716, %v5056, 0.0
    %v5112 = vadd.f32 %v5110, %v5111
    %v5113 = vsel %vm716, %v5057, 0.0
    %v5114 = vadd.f32 %v5112, %v5113
    %v5115 = vsel %vm716, %v5058, 0.0
    %v5116 = vadd.f32 %v5114, %v5115
    %v5117 = vsel %vm716, %v5059, 0.0
    %v5118 = vadd.f32 %v5116, %v5117
    %v5119 = vsel %vm716, %v5060, 0.0
    %v5120 = vadd.f32 %v5118, %v5119
    %v5121 = vsel %vm716, %v5061, 0.0
    %v5122 = vadd.f32 %v5120, %v5121
    %v5123 = vsel %vm716, %v5062, 0.0
    %v5124 = vadd.f32 %v5122, %v5123
    %v5125 = vsel %vm716, %v5063, 0.0
    %v5126 = vadd.f32 %v5124, %v5125
    %v5127 = vsel %vm716, %v5064, 0.0
    %v5128 = vadd.f32 %v5126, %v5127
    %v5129 = vsel %vm716, %v5065, 0.0
    %v5130 = vadd.f32 %v5128, %v5129
    %v5131 = vsel %vm716, %v5066, 0.0
    %v5132 = vadd.f32 %v5130, %v5131
    %v5133 = vsel %vm716, %v5067, 0.0
    %v5134 = vadd.f32 %v5132, %v5133
    %v5135 = vsel %vm716, %v5068, 0.0
    %v5136 = vadd.f32 %v5134, %v5135
    %v5137 = vsel %vm716, %v5069, 0.0
    %v5138 = vadd.f32 %v5136, %v5137
    %v5139 = vsel %vm716, %v5070, 0.0
    %v5140 = vadd.f32 %v5138, %v5139
    %v5141 = vsel %vm716, %v5071, 0.0
    %v5142 = vadd.f32 %v5140, %v5141
    %v5143 = vsel %vm716, %v5072, 0.0
    %v5144 = vadd.f32 %v5142, %v5143
    %v5145 = vsel %vm716, %v5073, 0.0
    %v5146 = vadd.f32 %v5144, %v5145
    %v5147 = vsel %vm716, %v5074, 0.0
    %v5148 = vadd.f32 %v5146, %v5147
    %v5149 = vsel %vm716, %v5075, 0.0
    %v5150 = vadd.f32 %v5148, %v5149
    %v5151 = vsel %vm716, %v5076, 0.0
    %v5152 = vadd.f32 %v5150, %v5151
    %v5153 = vsel %vm716, %v5077, 0.0
    %v5154 = vadd.f32 %v5152, %v5153
    %v5155 = vsel %vm716, %v5078, 0.0
    %v5156 = vadd.f32 %v5154, %v5155
    %v5157 = vsel %vm716, %v5079, 0.0
    %v5158 = vadd.f32 %v5156, %v5157
    %v5159 = vsel %vm716, %v5080, 0.0
    %v5160 = vadd.f32 %v5158, %v5159
    %v5161 = vsel %vm716, %v5081, 0.0
    %v5162 = vadd.f32 %v5160, %v5161
    %v5163 = vsel %vm716, %v5082, 0.0
    %v5164 = vadd.f32 %v5162, %v5163
    %v5165 = vsel %vm716, %v5083, 0.0
    %v5166 = vadd.f32 %v5164, %v5165
    %v5167 = vsel %vm716, %v5084, 0.0
    %v5168 = vadd.f32 %v5166, %v5167
    %v5169 = vsel %vm716, %v5085, 0.0
    %v5170 = vadd.f32 %v5168, %v5169
    %v5171 = vsel %vm716, %v5086, 0.0
    %v5172 = vadd.f32 %v5170, %v5171
    %v5173 = vsel %vm716, %v5087, 0.0
    %v5174 = vadd.f32 %v5172, %v5173
    %v5175 = vsel %vm716, %v5088, 0.0
    %v5176 = vadd.f32 %v5174, %v5175
    %v5177 = vsel %vm716, %v5089, 0.0
    %v5178 = vadd.f32 %v5176, %v5177
    %v5179 = vsel %vm716, %v5090, 0.0
    %v5180 = vadd.f32 %v5178, %v5179
    %v5181 = vsel %vm716, %v5091, 0.0
    %v5182 = vadd.f32 %v5180, %v5181
    %v5183 = vsel %vm716, %v5092, 0.0
    %v5184 = vadd.f32 %v5182, %v5183
    %v5185 = vsel %vm716, %v5093, 0.0
    %v5186 = vadd.f32 %v5184, %v5185
    %v5187 = vsel %vm716, %v5094, 0.0
    %v5188 = vadd.f32 %v5186, %v5187
    %v5189 = vsel %vm716, %v5095, 0.0
    %v5190 = vadd.f32 %v5188, %v5189
    %v5191 = vsel %vm716, %v5096, 0.0
    %v5192 = vadd.f32 %v5190, %v5191
    %v5193 = vsel %vm716, %v5097, 0.0
    %v5194 = vadd.f32 %v5192, %v5193
    %v5195 = vsel %vm716, %v5098, 0.0
    %v5196 = vadd.f32 %v5194, %v5195
    %v5197 = vsel %vm716, %v5099, 0.0
    %v5198 = vadd.f32 %v5196, %v5197
    %v5199 = vrot.slane %v5198, 4
    %v5200 = vadd.f32 %v5198, %v5199
    %v5201 = vrot.slane %v5200, 2
    %v5202 = vadd.f32 %v5200, %v5201
    %v5203 = vrot.slane %v5202, 1
    %v5204 = vadd.f32 %v5202, %v5203
    %v5205 = vmul.f32 %v5204, 0.0025510204
    %v5206 = vsub.f32 %v5051, %v5205
    %v5207 = vsub.f32 %v5052, %v5205
    %v5208 = vsub.f32 %v5053, %v5205
    %v5209 = vsub.f32 %v5054, %v5205
    %v5210 = vsub.f32 %v5055, %v5205
    %v5211 = vsub.f32 %v5056, %v5205
    %v5212 = vsub.f32 %v5057, %v5205
    %v5213 = vsub.f32 %v5058, %v5205
    %v5214 = vsub.f32 %v5059, %v5205
    %v5215 = vsub.f32 %v5060, %v5205
    %v5216 = vsub.f32 %v5061, %v5205
    %v5217 = vsub.f32 %v5062, %v5205
    %v5218 = vsub.f32 %v5063, %v5205
    %v5219 = vsub.f32 %v5064, %v5205
    %v5220 = vsub.f32 %v5065, %v5205
    %v5221 = vsub.f32 %v5066, %v5205
    %v5222 = vsub.f32 %v5067, %v5205
    %v5223 = vsub.f32 %v5068, %v5205
    %v5224 = vsub.f32 %v5069, %v5205
    %v5225 = vsub.f32 %v5070, %v5205
    %v5226 = vsub.f32 %v5071, %v5205
    %v5227 = vsub.f32 %v5072, %v5205
    %v5228 = vsub.f32 %v5073, %v5205
    %v5229 = vsub.f32 %v5074, %v5205
    %v5230 = vsub.f32 %v5075, %v5205
    %v5231 = vsub.f32 %v5076, %v5205
    %v5232 = vsub.f32 %v5077, %v5205
    %v5233 = vsub.f32 %v5078, %v5205
    %v5234 = vsub.f32 %v5079, %v5205
    %v5235 = vsub.f32 %v5080, %v5205
    %v5236 = vsub.f32 %v5081, %v5205
    %v5237 = vsub.f32 %v5082, %v5205
    %v5238 = vsub.f32 %v5083, %v5205
    %v5239 = vsub.f32 %v5084, %v5205
    %v5240 = vsub.f32 %v5085, %v5205
    %v5241 = vsub.f32 %v5086, %v5205
    %v5242 = vsub.f32 %v5087, %v5205
    %v5243 = vsub.f32 %v5088, %v5205
    %v5244 = vsub.f32 %v5089, %v5205
    %v5245 = vsub.f32 %v5090, %v5205
    %v5246 = vsub.f32 %v5091, %v5205
    %v5247 = vsub.f32 %v5092, %v5205
    %v5248 = vsub.f32 %v5093, %v5205
    %v5249 = vsub.f32 %v5094, %v5205
    %v5250 = vsub.f32 %v5095, %v5205
    %v5251 = vsub.f32 %v5096, %v5205
    %v5252 = vsub.f32 %v5097, %v5205
    %v5253 = vsub.f32 %v5098, %v5205
    %v5254 = vsub.f32 %v5099, %v5205
    %v5255 = vmul.f32 %v5206, %v5206
    %v5256 = vmul.f32 %v5207, %v5207
    %v5257 = vmul.f32 %v5208, %v5208
    %v5258 = vmul.f32 %v5209, %v5209
    %v5259 = vmul.f32 %v5210, %v5210
    %v5260 = vmul.f32 %v5211, %v5211
    %v5261 = vmul.f32 %v5212, %v5212
    %v5262 = vmul.f32 %v5213, %v5213
    %v5263 = vmul.f32 %v5214, %v5214
    %v5264 = vmul.f32 %v5215, %v5215
    %v5265 = vmul.f32 %v5216, %v5216
    %v5266 = vmul.f32 %v5217, %v5217
    %v5267 = vmul.f32 %v5218, %v5218
    %v5268 = vmul.f32 %v5219, %v5219
    %v5269 = vmul.f32 %v5220, %v5220
    %v5270 = vmul.f32 %v5221, %v5221
    %v5271 = vmul.f32 %v5222, %v5222
    %v5272 = vmul.f32 %v5223, %v5223
    %v5273 = vmul.f32 %v5224, %v5224
    %v5274 = vmul.f32 %v5225, %v5225
    %v5275 = vmul.f32 %v5226, %v5226
    %v5276 = vmul.f32 %v5227, %v5227
    %v5277 = vmul.f32 %v5228, %v5228
    %v5278 = vmul.f32 %v5229, %v5229
    %v5279 = vmul.f32 %v5230, %v5230
    %v5280 = vmul.f32 %v5231, %v5231
    %v5281 = vmul.f32 %v5232, %v5232
    %v5282 = vmul.f32 %v5233, %v5233
    %v5283 = vmul.f32 %v5234, %v5234
    %v5284 = vmul.f32 %v5235, %v5235
    %v5285 = vmul.f32 %v5236, %v5236
    %v5286 = vmul.f32 %v5237, %v5237
    %v5287 = vmul.f32 %v5238, %v5238
    %v5288 = vmul.f32 %v5239, %v5239
    %v5289 = vmul.f32 %v5240, %v5240
    %v5290 = vmul.f32 %v5241, %v5241
    %v5291 = vmul.f32 %v5242, %v5242
    %v5292 = vmul.f32 %v5243, %v5243
    %v5293 = vmul.f32 %v5244, %v5244
    %v5294 = vmul.f32 %v5245, %v5245
    %v5295 = vmul.f32 %v5246, %v5246
    %v5296 = vmul.f32 %v5247, %v5247
    %v5297 = vmul.f32 %v5248, %v5248
    %v5298 = vmul.f32 %v5249, %v5249
    %v5299 = vmul.f32 %v5250, %v5250
    %v5300 = vmul.f32 %v5251, %v5251
    %v5301 = vmul.f32 %v5252, %v5252
    %v5302 = vmul.f32 %v5253, %v5253
    %v5303 = vmul.f32 %v5254, %v5254
    %v5304 = vsel %vm716, %v5255, 0.0
    %v5305 = vsel %vm716, %v5256, 0.0
    %v5306 = vadd.f32 %v5304, %v5305
    %v5307 = vsel %vm716, %v5257, 0.0
    %v5308 = vadd.f32 %v5306, %v5307
    %v5309 = vsel %vm716, %v5258, 0.0
    %v5310 = vadd.f32 %v5308, %v5309
    %v5311 = vsel %vm716, %v5259, 0.0
    %v5312 = vadd.f32 %v5310, %v5311
    %v5313 = vsel %vm716, %v5260, 0.0
    %v5314 = vadd.f32 %v5312, %v5313
    %v5315 = vsel %vm716, %v5261, 0.0
    %v5316 = vadd.f32 %v5314, %v5315
    %v5317 = vsel %vm716, %v5262, 0.0
    %v5318 = vadd.f32 %v5316, %v5317
    %v5319 = vsel %vm716, %v5263, 0.0
    %v5320 = vadd.f32 %v5318, %v5319
    %v5321 = vsel %vm716, %v5264, 0.0
    %v5322 = vadd.f32 %v5320, %v5321
    %v5323 = vsel %vm716, %v5265, 0.0
    %v5324 = vadd.f32 %v5322, %v5323
    %v5325 = vsel %vm716, %v5266, 0.0
    %v5326 = vadd.f32 %v5324, %v5325
    %v5327 = vsel %vm716, %v5267, 0.0
    %v5328 = vadd.f32 %v5326, %v5327
    %v5329 = vsel %vm716, %v5268, 0.0
    %v5330 = vadd.f32 %v5328, %v5329
    %v5331 = vsel %vm716, %v5269, 0.0
    %v5332 = vadd.f32 %v5330, %v5331
    %v5333 = vsel %vm716, %v5270, 0.0
    %v5334 = vadd.f32 %v5332, %v5333
    %v5335 = vsel %vm716, %v5271, 0.0
    %v5336 = vadd.f32 %v5334, %v5335
    %v5337 = vsel %vm716, %v5272, 0.0
    %v5338 = vadd.f32 %v5336, %v5337
    %v5339 = vsel %vm716, %v5273, 0.0
    %v5340 = vadd.f32 %v5338, %v5339
    %v5341 = vsel %vm716, %v5274, 0.0
    %v5342 = vadd.f32 %v5340, %v5341
    %v5343 = vsel %vm716, %v5275, 0.0
    %v5344 = vadd.f32 %v5342, %v5343
    %v5345 = vsel %vm716, %v5276, 0.0
    %v5346 = vadd.f32 %v5344, %v5345
    %v5347 = vsel %vm716, %v5277, 0.0
    %v5348 = vadd.f32 %v5346, %v5347
    %v5349 = vsel %vm716, %v5278, 0.0
    %v5350 = vadd.f32 %v5348, %v5349
    %v5351 = vsel %vm716, %v5279, 0.0
    %v5352 = vadd.f32 %v5350, %v5351
    %v5353 = vsel %vm716, %v5280, 0.0
    %v5354 = vadd.f32 %v5352, %v5353
    %v5355 = vsel %vm716, %v5281, 0.0
    %v5356 = vadd.f32 %v5354, %v5355
    %v5357 = vsel %vm716, %v5282, 0.0
    %v5358 = vadd.f32 %v5356, %v5357
    %v5359 = vsel %vm716, %v5283, 0.0
    %v5360 = vadd.f32 %v5358, %v5359
    %v5361 = vsel %vm716, %v5284, 0.0
    %v5362 = vadd.f32 %v5360, %v5361
    %v5363 = vsel %vm716, %v5285, 0.0
    %v5364 = vadd.f32 %v5362, %v5363
    %v5365 = vsel %vm716, %v5286, 0.0
    %v5366 = vadd.f32 %v5364, %v5365
    %v5367 = vsel %vm716, %v5287, 0.0
    %v5368 = vadd.f32 %v5366, %v5367
    %v5369 = vsel %vm716, %v5288, 0.0
    %v5370 = vadd.f32 %v5368, %v5369
    %v5371 = vsel %vm716, %v5289, 0.0
    %v5372 = vadd.f32 %v5370, %v5371
    %v5373 = vsel %vm716, %v5290, 0.0
    %v5374 = vadd.f32 %v5372, %v5373
    %v5375 = vsel %vm716, %v5291, 0.0
    %v5376 = vadd.f32 %v5374, %v5375
    %v5377 = vsel %vm716, %v5292, 0.0
    %v5378 = vadd.f32 %v5376, %v5377
    %v5379 = vsel %vm716, %v5293, 0.0
    %v5380 = vadd.f32 %v5378, %v5379
    %v5381 = vsel %vm716, %v5294, 0.0
    %v5382 = vadd.f32 %v5380, %v5381
    %v5383 = vsel %vm716, %v5295, 0.0
    %v5384 = vadd.f32 %v5382, %v5383
    %v5385 = vsel %vm716, %v5296, 0.0
    %v5386 = vadd.f32 %v5384, %v5385
    %v5387 = vsel %vm716, %v5297, 0.0
    %v5388 = vadd.f32 %v5386, %v5387
    %v5389 = vsel %vm716, %v5298, 0.0
    %v5390 = vadd.f32 %v5388, %v5389
    %v5391 = vsel %vm716, %v5299, 0.0
    %v5392 = vadd.f32 %v5390, %v5391
    %v5393 = vsel %vm716, %v5300, 0.0
    %v5394 = vadd.f32 %v5392, %v5393
    %v5395 = vsel %vm716, %v5301, 0.0
    %v5396 = vadd.f32 %v5394, %v5395
    %v5397 = vsel %vm716, %v5302, 0.0
    %v5398 = vadd.f32 %v5396, %v5397
    %v5399 = vsel %vm716, %v5303, 0.0
    %v5400 = vadd.f32 %v5398, %v5399
    %v5401 = vrot.slane %v5400, 4
    %v5402 = vadd.f32 %v5400, %v5401
    %v5403 = vrot.slane %v5402, 2
    %v5404 = vadd.f32 %v5402, %v5403
    %v5405 = vrot.slane %v5404, 1
    %v5406 = vadd.f32 %v5404, %v5405
    %v5407 = vmul.f32 %v5406, 0.0025510204
    %v5408 = vadd.f32 %v5407, 1e-05
    %v5409 = vrsqrt.pop %v5408
    %v5410 = vmul.f32 %v5100, %v5409
    %v5411 = vlaneseq
    %v5412 = vshrl.u32 %v5411, 7
    %v5413 = vsub.s32 0, %v5412
    %v5414 = vrot.slane %v5410, %v5413
    %v5415 = vmul.f32 %v5206, %v5414
    %v5416 = vmul.f32 %v5207, %v5414
    %v5417 = vmul.f32 %v5208, %v5414
    %v5418 = vmul.f32 %v5209, %v5414
    %v5419 = vmul.f32 %v5210, %v5414
    %v5420 = vmul.f32 %v5211, %v5414
    %v5421 = vmul.f32 %v5212, %v5414
    %v5422 = vmul.f32 %v5213, %v5414
    %v5423 = vmul.f32 %v5214, %v5414
    %v5424 = vmul.f32 %v5215, %v5414
    %v5425 = vmul.f32 %v5216, %v5414
    %v5426 = vmul.f32 %v5217, %v5414
    %v5427 = vmul.f32 %v5218, %v5414
    %v5428 = vmul.f32 %v5219, %v5414
    %v5429 = vmul.f32 %v5220, %v5414
    %v5430 = vmul.f32 %v5221, %v5414
    %v5431 = vmul.f32 %v5222, %v5414
    %v5432 = vmul.f32 %v5223, %v5414
    %v5433 = vmul.f32 %v5224, %v5414
    %v5434 = vmul.f32 %v5225, %v5414
    %v5435 = vmul.f32 %v5226, %v5414
    %v5436 = vmul.f32 %v5227, %v5414
    %v5437 = vmul.f32 %v5228, %v5414
    %v5438 = vmul.f32 %v5229, %v5414
    %v5439 = vmul.f32 %v5230, %v5414
    %v5440 = vmul.f32 %v5231, %v5414
    %v5441 = vmul.f32 %v5232, %v5414
    %v5442 = vmul.f32 %v5233, %v5414
    %v5443 = vmul.f32 %v5234, %v5414
    %v5444 = vmul.f32 %v5235, %v5414
    %v5445 = vmul.f32 %v5236, %v5414
    %v5446 = vmul.f32 %v5237, %v5414
    %v5447 = vmul.f32 %v5238, %v5414
    %v5448 = vmul.f32 %v5239, %v5414
    %v5449 = vmul.f32 %v5240, %v5414
    %v5450 = vmul.f32 %v5241, %v5414
    %v5451 = vmul.f32 %v5242, %v5414
    %v5452 = vmul.f32 %v5243, %v5414
    %v5453 = vmul.f32 %v5244, %v5414
    %v5454 = vmul.f32 %v5245, %v5414
    %v5455 = vmul.f32 %v5246, %v5414
    %v5456 = vmul.f32 %v5247, %v5414
    %v5457 = vmul.f32 %v5248, %v5414
    %v5458 = vmul.f32 %v5249, %v5414
    %v5459 = vmul.f32 %v5250, %v5414
    %v5460 = vmul.f32 %v5251, %v5414
    %v5461 = vmul.f32 %v5252, %v5414
    %v5462 = vmul.f32 %v5253, %v5414
    %v5463 = vmul.f32 %v5254, %v5414
    %v5464 = vlaneseq
    %v5465 = vshrl.u32 %v5464, 7
    %v5466 = vsub.s32 0, %v5465
    %v5467 = vrot.slane %v5101, %v5466
    %v5468 = vadd.f32 %v5415, %v5467
    %v5469 = vadd.f32 %v5416, %v5467
    %v5470 = vadd.f32 %v5417, %v5467
    %v5471 = vadd.f32 %v5418, %v5467
    %v5472 = vadd.f32 %v5419, %v5467
    %v5473 = vadd.f32 %v5420, %v5467
    %v5474 = vadd.f32 %v5421, %v5467
    %v5475 = vadd.f32 %v5422, %v5467
    %v5476 = vadd.f32 %v5423, %v5467
    %v5477 = vadd.f32 %v5424, %v5467
    %v5478 = vadd.f32 %v5425, %v5467
    %v5479 = vadd.f32 %v5426, %v5467
    %v5480 = vadd.f32 %v5427, %v5467
    %v5481 = vadd.f32 %v5428, %v5467
    %v5482 = vadd.f32 %v5429, %v5467
    %v5483 = vadd.f32 %v5430, %v5467
    %v5484 = vadd.f32 %v5431, %v5467
    %v5485 = vadd.f32 %v5432, %v5467
    %v5486 = vadd.f32 %v5433, %v5467
    %v5487 = vadd.f32 %v5434, %v5467
    %v5488 = vadd.f32 %v5435, %v5467
    %v5489 = vadd.f32 %v5436, %v5467
    %v5490 = vadd.f32 %v5437, %v5467
    %v5491 = vadd.f32 %v5438, %v5467
    %v5492 = vadd.f32 %v5439, %v5467
    %v5493 = vadd.f32 %v5440, %v5467
    %v5494 = vadd.f32 %v5441, %v5467
    %v5495 = vadd.f32 %v5442, %v5467
    %v5496 = vadd.f32 %v5443, %v5467
    %v5497 = vadd.f32 %v5444, %v5467
    %v5498 = vadd.f32 %v5445, %v5467
    %v5499 = vadd.f32 %v5446, %v5467
    %v5500 = vadd.f32 %v5447, %v5467
    %v5501 = vadd.f32 %v5448, %v5467
    %v5502 = vadd.f32 %v5449, %v5467
    %v5503 = vadd.f32 %v5450, %v5467
    %v5504 = vadd.f32 %v5451, %v5467
    %v5505 = vadd.f32 %v5452, %v5467
    %v5506 = vadd.f32 %v5453, %v5467
    %v5507 = vadd.f32 %v5454, %v5467
    %v5508 = vadd.f32 %v5455, %v5467
    %v5509 = vadd.f32 %v5456, %v5467
    %v5510 = vadd.f32 %v5457, %v5467
    %v5511 = vadd.f32 %v5458, %v5467
    %v5512 = vadd.f32 %v5459, %v5467
    %v5513 = vadd.f32 %v5460, %v5467
    %v5514 = vadd.f32 %v5461, %v5467
    %v5515 = vadd.f32 %v5462, %v5467
    %v5516 = vadd.f32 %v5463, %v5467
    %v5517 = vmax.f32 %v5468, 0.0
    %v5518 = vmax.f32 %v5469, 0.0
    %v5519 = vmax.f32 %v5470, 0.0
    %v5520 = vmax.f32 %v5471, 0.0
    %v5521 = vmax.f32 %v5472, 0.0
    %v5522 = vmax.f32 %v5473, 0.0
    %v5523 = vmax.f32 %v5474, 0.0
    %v5524 = vmax.f32 %v5475, 0.0
    %v5525 = vmax.f32 %v5476, 0.0
    %v5526 = vmax.f32 %v5477, 0.0
    %v5527 = vmax.f32 %v5478, 0.0
    %v5528 = vmax.f32 %v5479, 0.0
    %v5529 = vmax.f32 %v5480, 0.0
    %v5530 = vmax.f32 %v5481, 0.0
    %v5531 = vmax.f32 %v5482, 0.0
    %v5532 = vmax.f32 %v5483, 0.0
    %v5533 = vmax.f32 %v5484, 0.0
    %v5534 = vmax.f32 %v5485, 0.0
    %v5535 = vmax.f32 %v5486, 0.0
    %v5536 = vmax.f32 %v5487, 0.0
    %v5537 = vmax.f32 %v5488, 0.0
    %v5538 = vmax.f32 %v5489, 0.0
    %v5539 = vmax.f32 %v5490, 0.0
    %v5540 = vmax.f32 %v5491, 0.0
    %v5541 = vmax.f32 %v5492, 0.0
    %v5542 = vmax.f32 %v5493, 0.0
    %v5543 = vmax.f32 %v5494, 0.0
    %v5544 = vmax.f32 %v5495, 0.0
    %v5545 = vmax.f32 %v5496, 0.0
    %v5546 = vmax.f32 %v5497, 0.0
    %v5547 = vmax.f32 %v5498, 0.0
    %v5548 = vmax.f32 %v5499, 0.0
    %v5549 = vmax.f32 %v5500, 0.0
    %v5550 = vmax.f32 %v5501, 0.0
    %v5551 = vmax.f32 %v5502, 0.0
    %v5552 = vmax.f32 %v5503, 0.0
    %v5553 = vmax.f32 %v5504, 0.0
    %v5554 = vmax.f32 %v5505, 0.0
    %v5555 = vmax.f32 %v5506, 0.0
    %v5556 = vmax.f32 %v5507, 0.0
    %v5557 = vmax.f32 %v5508, 0.0
    %v5558 = vmax.f32 %v5509, 0.0
    %v5559 = vmax.f32 %v5510, 0.0
    %v5560 = vmax.f32 %v5511, 0.0
    %v5561 = vmax.f32 %v5512, 0.0
    %v5562 = vmax.f32 %v5513, 0.0
    %v5563 = vmax.f32 %v5514, 0.0
    %v5564 = vmax.f32 %v5515, 0.0
    %v5565 = vmax.f32 %v5516, 0.0
    %v5615 = vcombine.high %v5517, %v5517
    %v5617 = vunpack.c.l.s4 1983009808
    %v5618 = vunpack.c.0.s8 %v5617
    %v5619 = vlaneseq
    %v5620 = vshrl.u32 %v5619, 7
    %v5621 = vsub.s32 %v5618, %v5620
    %v5622 = vrot.slane %v5517, %v5621
    %v5624 = vunpack.c.l.s4 1983009808
    %v5625 = vunpack.c.0.s8 %v5624
    %v5626 = vlaneseq
    %v5627 = vshrl.u32 %v5626, 7
    %v5628 = vsub.s32 %v5625, %v5627
    %v5629 = vrot.slane %v5615, %v5628
    %v5630 = vcombine.high %v5622, %v5622
    %v5631 = vcombine.high %v5629, %v5629
    %v5632 = vcombine.high %v5518, %v5518
    %v5634 = vunpack.c.l.s4 1983009808
    %v5635 = vunpack.c.0.s8 %v5634
    %v5636 = vlaneseq
    %v5637 = vshrl.u32 %v5636, 7
    %v5638 = vsub.s32 %v5635, %v5637
    %v5639 = vrot.slane %v5518, %v5638
    %v5641 = vunpack.c.l.s4 1983009808
    %v5642 = vunpack.c.0.s8 %v5641
    %v5643 = vlaneseq
    %v5644 = vshrl.u32 %v5643, 7
    %v5645 = vsub.s32 %v5642, %v5644
    %v5646 = vrot.slane %v5632, %v5645
    %v5647 = vcombine.high %v5639, %v5639
    %v5648 = vcombine.high %v5646, %v5646
    %v5649 = vcombine.high %v5519, %v5519
    %v5651 = vunpack.c.l.s4 1983009808
    %v5652 = vunpack.c.0.s8 %v5651
    %v5653 = vlaneseq
    %v5654 = vshrl.u32 %v5653, 7
    %v5655 = vsub.s32 %v5652, %v5654
    %v5656 = vrot.slane %v5519, %v5655
    %v5658 = vunpack.c.l.s4 1983009808
    %v5659 = vunpack.c.0.s8 %v5658
    %v5660 = vlaneseq
    %v5661 = vshrl.u32 %v5660, 7
    %v5662 = vsub.s32 %v5659, %v5661
    %v5663 = vrot.slane %v5649, %v5662
    %v5664 = vcombine.high %v5656, %v5656
    %v5665 = vcombine.high %v5663, %v5663
    %v5666 = vcombine.high %v5520, %v5520
    %v5668 = vunpack.c.l.s4 1983009808
    %v5669 = vunpack.c.0.s8 %v5668
    %v5670 = vlaneseq
    %v5671 = vshrl.u32 %v5670, 7
    %v5672 = vsub.s32 %v5669, %v5671
    %v5673 = vrot.slane %v5520, %v5672
    %v5675 = vunpack.c.l.s4 1983009808
    %v5676 = vunpack.c.0.s8 %v5675
    %v5677 = vlaneseq
    %v5678 = vshrl.u32 %v5677, 7
    %v5679 = vsub.s32 %v5676, %v5678
    %v5680 = vrot.slane %v5666, %v5679
    %v5681 = vcombine.high %v5673, %v5673
    %v5682 = vcombine.high %v5680, %v5680
    %v5683 = vcombine.high %v5521, %v5521
    %v5685 = vunpack.c.l.s4 1983009808
    %v5686 = vunpack.c.0.s8 %v5685
    %v5687 = vlaneseq
    %v5688 = vshrl.u32 %v5687, 7
    %v5689 = vsub.s32 %v5686, %v5688
    %v5690 = vrot.slane %v5521, %v5689
    %v5692 = vunpack.c.l.s4 1983009808
    %v5693 = vunpack.c.0.s8 %v5692
    %v5694 = vlaneseq
    %v5695 = vshrl.u32 %v5694, 7
    %v5696 = vsub.s32 %v5693, %v5695
    %v5697 = vrot.slane %v5683, %v5696
    %v5698 = vcombine.high %v5690, %v5690
    %v5699 = vcombine.high %v5697, %v5697
    %v5700 = vcombine.high %v5522, %v5522
    %v5702 = vunpack.c.l.s4 1983009808
    %v5703 = vunpack.c.0.s8 %v5702
    %v5704 = vlaneseq
    %v5705 = vshrl.u32 %v5704, 7
    %v5706 = vsub.s32 %v5703, %v5705
    %v5707 = vrot.slane %v5522, %v5706
    %v5709 = vunpack.c.l.s4 1983009808
    %v5710 = vunpack.c.0.s8 %v5709
    %v5711 = vlaneseq
    %v5712 = vshrl.u32 %v5711, 7
    %v5713 = vsub.s32 %v5710, %v5712
    %v5714 = vrot.slane %v5700, %v5713
    %v5715 = vcombine.high %v5707, %v5707
    %v5716 = vcombine.high %v5714, %v5714
    %v5717 = vcombine.high %v5523, %v5523
    %v5719 = vunpack.c.l.s4 1983009808
    %v5720 = vunpack.c.0.s8 %v5719
    %v5721 = vlaneseq
    %v5722 = vshrl.u32 %v5721, 7
    %v5723 = vsub.s32 %v5720, %v5722
    %v5724 = vrot.slane %v5523, %v5723
    %v5726 = vunpack.c.l.s4 1983009808
    %v5727 = vunpack.c.0.s8 %v5726
    %v5728 = vlaneseq
    %v5729 = vshrl.u32 %v5728, 7
    %v5730 = vsub.s32 %v5727, %v5729
    %v5731 = vrot.slane %v5717, %v5730
    %v5732 = vcombine.high %v5724, %v5724
    %v5733 = vcombine.high %v5731, %v5731
    %v5734 = vcombine.high %v5524, %v5524
    %v5736 = vunpack.c.l.s4 1983009808
    %v5737 = vunpack.c.0.s8 %v5736
    %v5738 = vlaneseq
    %v5739 = vshrl.u32 %v5738, 7
    %v5740 = vsub.s32 %v5737, %v5739
    %v5741 = vrot.slane %v5524, %v5740
    %v5743 = vunpack.c.l.s4 1983009808
    %v5744 = vunpack.c.0.s8 %v5743
    %v5745 = vlaneseq
    %v5746 = vshrl.u32 %v5745, 7
    %v5747 = vsub.s32 %v5744, %v5746
    %v5748 = vrot.slane %v5734, %v5747
    %v5749 = vcombine.high %v5741, %v5741
    %v5750 = vcombine.high %v5748, %v5748
    %v5751 = vcombine.high %v5525, %v5525
    %v5753 = vunpack.c.l.s4 1983009808
    %v5754 = vunpack.c.0.s8 %v5753
    %v5755 = vlaneseq
    %v5756 = vshrl.u32 %v5755, 7
    %v5757 = vsub.s32 %v5754, %v5756
    %v5758 = vrot.slane %v5525, %v5757
    %v5760 = vunpack.c.l.s4 1983009808
    %v5761 = vunpack.c.0.s8 %v5760
    %v5762 = vlaneseq
    %v5763 = vshrl.u32 %v5762, 7
    %v5764 = vsub.s32 %v5761, %v5763
    %v5765 = vrot.slane %v5751, %v5764
    %v5766 = vcombine.high %v5758, %v5758
    %v5767 = vcombine.high %v5765, %v5765
    %v5768 = vcombine.high %v5526, %v5526
    %v5770 = vunpack.c.l.s4 1983009808
    %v5771 = vunpack.c.0.s8 %v5770
    %v5772 = vlaneseq
    %v5773 = vshrl.u32 %v5772, 7
    %v5774 = vsub.s32 %v5771, %v5773
    %v5775 = vrot.slane %v5526, %v5774
    %v5777 = vunpack.c.l.s4 1983009808
    %v5778 = vunpack.c.0.s8 %v5777
    %v5779 = vlaneseq
    %v5780 = vshrl.u32 %v5779, 7
    %v5781 = vsub.s32 %v5778, %v5780
    %v5782 = vrot.slane %v5768, %v5781
    %v5783 = vcombine.high %v5775, %v5775
    %v5784 = vcombine.high %v5782, %v5782
    %v5785 = vcombine.high %v5527, %v5527
    %v5787 = vunpack.c.l.s4 1983009808
    %v5788 = vunpack.c.0.s8 %v5787
    %v5789 = vlaneseq
    %v5790 = vshrl.u32 %v5789, 7
    %v5791 = vsub.s32 %v5788, %v5790
    %v5792 = vrot.slane %v5527, %v5791
    %v5794 = vunpack.c.l.s4 1983009808
    %v5795 = vunpack.c.0.s8 %v5794
    %v5796 = vlaneseq
    %v5797 = vshrl.u32 %v5796, 7
    %v5798 = vsub.s32 %v5795, %v5797
    %v5799 = vrot.slane %v5785, %v5798
    %v5800 = vcombine.high %v5792, %v5792
    %v5801 = vcombine.high %v5799, %v5799
    %v5802 = vcombine.high %v5528, %v5528
    %v5804 = vunpack.c.l.s4 1983009808
    %v5805 = vunpack.c.0.s8 %v5804
    %v5806 = vlaneseq
    %v5807 = vshrl.u32 %v5806, 7
    %v5808 = vsub.s32 %v5805, %v5807
    %v5809 = vrot.slane %v5528, %v5808
    %v5811 = vunpack.c.l.s4 1983009808
    %v5812 = vunpack.c.0.s8 %v5811
    %v5813 = vlaneseq
    %v5814 = vshrl.u32 %v5813, 7
    %v5815 = vsub.s32 %v5812, %v5814
    %v5816 = vrot.slane %v5802, %v5815
    %v5817 = vcombine.high %v5809, %v5809
    %v5818 = vcombine.high %v5816, %v5816
    %v5819 = vcombine.high %v5529, %v5529
    %v5821 = vunpack.c.l.s4 1983009808
    %v5822 = vunpack.c.0.s8 %v5821
    %v5823 = vlaneseq
    %v5824 = vshrl.u32 %v5823, 7
    %v5825 = vsub.s32 %v5822, %v5824
    %v5826 = vrot.slane %v5529, %v5825
    %v5828 = vunpack.c.l.s4 1983009808
    %v5829 = vunpack.c.0.s8 %v5828
    %v5830 = vlaneseq
    %v5831 = vshrl.u32 %v5830, 7
    %v5832 = vsub.s32 %v5829, %v5831
    %v5833 = vrot.slane %v5819, %v5832
    %v5834 = vcombine.high %v5826, %v5826
    %v5835 = vcombine.high %v5833, %v5833
    %v5836 = vcombine.high %v5530, %v5530
    %v5838 = vunpack.c.l.s4 1983009808
    %v5839 = vunpack.c.0.s8 %v5838
    %v5840 = vlaneseq
    %v5841 = vshrl.u32 %v5840, 7
    %v5842 = vsub.s32 %v5839, %v5841
    %v5843 = vrot.slane %v5530, %v5842
    %v5845 = vunpack.c.l.s4 1983009808
    %v5846 = vunpack.c.0.s8 %v5845
    %v5847 = vlaneseq
    %v5848 = vshrl.u32 %v5847, 7
    %v5849 = vsub.s32 %v5846, %v5848
    %v5850 = vrot.slane %v5836, %v5849
    %v5851 = vcombine.high %v5843, %v5843
    %v5852 = vcombine.high %v5850, %v5850
    %v5853 = vcombine.high %v5531, %v5531
    %v5855 = vunpack.c.l.s4 1983009808
    %v5856 = vunpack.c.0.s8 %v5855
    %v5857 = vlaneseq
    %v5858 = vshrl.u32 %v5857, 7
    %v5859 = vsub.s32 %v5856, %v5858
    %v5860 = vrot.slane %v5531, %v5859
    %v5862 = vunpack.c.l.s4 1983009808
    %v5863 = vunpack.c.0.s8 %v5862
    %v5864 = vlaneseq
    %v5865 = vshrl.u32 %v5864, 7
    %v5866 = vsub.s32 %v5863, %v5865
    %v5867 = vrot.slane %v5853, %v5866
    %v5868 = vcombine.high %v5860, %v5860
    %v5869 = vcombine.high %v5867, %v5867
    %v5870 = vcombine.high %v5532, %v5532
    %v5872 = vunpack.c.l.s4 1983009808
    %v5873 = vunpack.c.0.s8 %v5872
    %v5874 = vlaneseq
    %v5875 = vshrl.u32 %v5874, 7
    %v5876 = vsub.s32 %v5873, %v5875
    %v5877 = vrot.slane %v5532, %v5876
    %v5879 = vunpack.c.l.s4 1983009808
    %v5880 = vunpack.c.0.s8 %v5879
    %v5881 = vlaneseq
    %v5882 = vshrl.u32 %v5881, 7
    %v5883 = vsub.s32 %v5880, %v5882
    %v5884 = vrot.slane %v5870, %v5883
    %v5885 = vcombine.high %v5877, %v5877
    %v5886 = vcombine.high %v5884, %v5884
    %v5887 = vcombine.high %v5533, %v5533
    %v5889 = vunpack.c.l.s4 1983009808
    %v5890 = vunpack.c.0.s8 %v5889
    %v5891 = vlaneseq
    %v5892 = vshrl.u32 %v5891, 7
    %v5893 = vsub.s32 %v5890, %v5892
    %v5894 = vrot.slane %v5533, %v5893
    %v5896 = vunpack.c.l.s4 1983009808
    %v5897 = vunpack.c.0.s8 %v5896
    %v5898 = vlaneseq
    %v5899 = vshrl.u32 %v5898, 7
    %v5900 = vsub.s32 %v5897, %v5899
    %v5901 = vrot.slane %v5887, %v5900
    %v5902 = vcombine.high %v5894, %v5894
    %v5903 = vcombine.high %v5901, %v5901
    %v5904 = vcombine.high %v5534, %v5534
    %v5906 = vunpack.c.l.s4 1983009808
    %v5907 = vunpack.c.0.s8 %v5906
    %v5908 = vlaneseq
    %v5909 = vshrl.u32 %v5908, 7
    %v5910 = vsub.s32 %v5907, %v5909
    %v5911 = vrot.slane %v5534, %v5910
    %v5913 = vunpack.c.l.s4 1983009808
    %v5914 = vunpack.c.0.s8 %v5913
    %v5915 = vlaneseq
    %v5916 = vshrl.u32 %v5915, 7
    %v5917 = vsub.s32 %v5914, %v5916
    %v5918 = vrot.slane %v5904, %v5917
    %v5919 = vcombine.high %v5911, %v5911
    %v5920 = vcombine.high %v5918, %v5918
    %v5921 = vcombine.high %v5535, %v5535
    %v5923 = vunpack.c.l.s4 1983009808
    %v5924 = vunpack.c.0.s8 %v5923
    %v5925 = vlaneseq
    %v5926 = vshrl.u32 %v5925, 7
    %v5927 = vsub.s32 %v5924, %v5926
    %v5928 = vrot.slane %v5535, %v5927
    %v5930 = vunpack.c.l.s4 1983009808
    %v5931 = vunpack.c.0.s8 %v5930
    %v5932 = vlaneseq
    %v5933 = vshrl.u32 %v5932, 7
    %v5934 = vsub.s32 %v5931, %v5933
    %v5935 = vrot.slane %v5921, %v5934
    %v5936 = vcombine.high %v5928, %v5928
    %v5937 = vcombine.high %v5935, %v5935
    %v5938 = vcombine.high %v5536, %v5536
    %v5940 = vunpack.c.l.s4 1983009808
    %v5941 = vunpack.c.0.s8 %v5940
    %v5942 = vlaneseq
    %v5943 = vshrl.u32 %v5942, 7
    %v5944 = vsub.s32 %v5941, %v5943
    %v5945 = vrot.slane %v5536, %v5944
    %v5947 = vunpack.c.l.s4 1983009808
    %v5948 = vunpack.c.0.s8 %v5947
    %v5949 = vlaneseq
    %v5950 = vshrl.u32 %v5949, 7
    %v5951 = vsub.s32 %v5948, %v5950
    %v5952 = vrot.slane %v5938, %v5951
    %v5953 = vcombine.high %v5945, %v5945
    %v5954 = vcombine.high %v5952, %v5952
    %v5955 = vcombine.high %v5537, %v5537
    %v5957 = vunpack.c.l.s4 1983009808
    %v5958 = vunpack.c.0.s8 %v5957
    %v5959 = vlaneseq
    %v5960 = vshrl.u32 %v5959, 7
    %v5961 = vsub.s32 %v5958, %v5960
    %v5962 = vrot.slane %v5537, %v5961
    %v5964 = vunpack.c.l.s4 1983009808
    %v5965 = vunpack.c.0.s8 %v5964
    %v5966 = vlaneseq
    %v5967 = vshrl.u32 %v5966, 7
    %v5968 = vsub.s32 %v5965, %v5967
    %v5969 = vrot.slane %v5955, %v5968
    %v5970 = vcombine.high %v5962, %v5962
    %v5971 = vcombine.high %v5969, %v5969
    %v5972 = vcombine.high %v5538, %v5538
    %v5974 = vunpack.c.l.s4 1983009808
    %v5975 = vunpack.c.0.s8 %v5974
    %v5976 = vlaneseq
    %v5977 = vshrl.u32 %v5976, 7
    %v5978 = vsub.s32 %v5975, %v5977
    %v5979 = vrot.slane %v5538, %v5978
    %v5981 = vunpack.c.l.s4 1983009808
    %v5982 = vunpack.c.0.s8 %v5981
    %v5983 = vlaneseq
    %v5984 = vshrl.u32 %v5983, 7
    %v5985 = vsub.s32 %v5982, %v5984
    %v5986 = vrot.slane %v5972, %v5985
    %v5987 = vcombine.high %v5979, %v5979
    %v5988 = vcombine.high %v5986, %v5986
    %v5989 = vcombine.high %v5539, %v5539
    %v5991 = vunpack.c.l.s4 1983009808
    %v5992 = vunpack.c.0.s8 %v5991
    %v5993 = vlaneseq
    %v5994 = vshrl.u32 %v5993, 7
    %v5995 = vsub.s32 %v5992, %v5994
    %v5996 = vrot.slane %v5539, %v5995
    %v5998 = vunpack.c.l.s4 1983009808
    %v5999 = vunpack.c.0.s8 %v5998
    %v6000 = vlaneseq
    %v6001 = vshrl.u32 %v6000, 7
    %v6002 = vsub.s32 %v5999, %v6001
    %v6003 = vrot.slane %v5989, %v6002
    %v6004 = vcombine.high %v5996, %v5996
    %v6005 = vcombine.high %v6003, %v6003
    %v6006 = vcombine.high %v5540, %v5540
    %v6008 = vunpack.c.l.s4 1983009808
    %v6009 = vunpack.c.0.s8 %v6008
    %v6010 = vlaneseq
    %v6011 = vshrl.u32 %v6010, 7
    %v6012 = vsub.s32 %v6009, %v6011
    %v6013 = vrot.slane %v5540, %v6012
    %v6015 = vunpack.c.l.s4 1983009808
    %v6016 = vunpack.c.0.s8 %v6015
    %v6017 = vlaneseq
    %v6018 = vshrl.u32 %v6017, 7
    %v6019 = vsub.s32 %v6016, %v6018
    %v6020 = vrot.slane %v6006, %v6019
    %v6021 = vcombine.high %v6013, %v6013
    %v6022 = vcombine.high %v6020, %v6020
    %v6023 = vcombine.high %v5541, %v5541
    %v6025 = vunpack.c.l.s4 1983009808
    %v6026 = vunpack.c.0.s8 %v6025
    %v6027 = vlaneseq
    %v6028 = vshrl.u32 %v6027, 7
    %v6029 = vsub.s32 %v6026, %v6028
    %v6030 = vrot.slane %v5541, %v6029
    %v6032 = vunpack.c.l.s4 1983009808
    %v6033 = vunpack.c.0.s8 %v6032
    %v6034 = vlaneseq
    %v6035 = vshrl.u32 %v6034, 7
    %v6036 = vsub.s32 %v6033, %v6035
    %v6037 = vrot.slane %v6023, %v6036
    %v6038 = vcombine.high %v6030, %v6030
    %v6039 = vcombine.high %v6037, %v6037
    %v6040 = vcombine.high %v5542, %v5542
    %v6042 = vunpack.c.l.s4 1983009808
    %v6043 = vunpack.c.0.s8 %v6042
    %v6044 = vlaneseq
    %v6045 = vshrl.u32 %v6044, 7
    %v6046 = vsub.s32 %v6043, %v6045
    %v6047 = vrot.slane %v5542, %v6046
    %v6049 = vunpack.c.l.s4 1983009808
    %v6050 = vunpack.c.0.s8 %v6049
    %v6051 = vlaneseq
    %v6052 = vshrl.u32 %v6051, 7
    %v6053 = vsub.s32 %v6050, %v6052
    %v6054 = vrot.slane %v6040, %v6053
    %v6055 = vcombine.high %v6047, %v6047
    %v6056 = vcombine.high %v6054, %v6054
    %v6057 = vcombine.high %v5543, %v5543
    %v6059 = vunpack.c.l.s4 1983009808
    %v6060 = vunpack.c.0.s8 %v6059
    %v6061 = vlaneseq
    %v6062 = vshrl.u32 %v6061, 7
    %v6063 = vsub.s32 %v6060, %v6062
    %v6064 = vrot.slane %v5543, %v6063
    %v6066 = vunpack.c.l.s4 1983009808
    %v6067 = vunpack.c.0.s8 %v6066
    %v6068 = vlaneseq
    %v6069 = vshrl.u32 %v6068, 7
    %v6070 = vsub.s32 %v6067, %v6069
    %v6071 = vrot.slane %v6057, %v6070
    %v6072 = vcombine.high %v6064, %v6064
    %v6073 = vcombine.high %v6071, %v6071
    %v6074 = vcombine.high %v5544, %v5544
    %v6076 = vunpack.c.l.s4 1983009808
    %v6077 = vunpack.c.0.s8 %v6076
    %v6078 = vlaneseq
    %v6079 = vshrl.u32 %v6078, 7
    %v6080 = vsub.s32 %v6077, %v6079
    %v6081 = vrot.slane %v5544, %v6080
    %v6083 = vunpack.c.l.s4 1983009808
    %v6084 = vunpack.c.0.s8 %v6083
    %v6085 = vlaneseq
    %v6086 = vshrl.u32 %v6085, 7
    %v6087 = vsub.s32 %v6084, %v6086
    %v6088 = vrot.slane %v6074, %v6087
    %v6089 = vcombine.high %v6081, %v6081
    %v6090 = vcombine.high %v6088, %v6088
    %v6091 = vcombine.high %v5545, %v5545
    %v6093 = vunpack.c.l.s4 1983009808
    %v6094 = vunpack.c.0.s8 %v6093
    %v6095 = vlaneseq
    %v6096 = vshrl.u32 %v6095, 7
    %v6097 = vsub.s32 %v6094, %v6096
    %v6098 = vrot.slane %v5545, %v6097
    %v6100 = vunpack.c.l.s4 1983009808
    %v6101 = vunpack.c.0.s8 %v6100
    %v6102 = vlaneseq
    %v6103 = vshrl.u32 %v6102, 7
    %v6104 = vsub.s32 %v6101, %v6103
    %v6105 = vrot.slane %v6091, %v6104
    %v6106 = vcombine.high %v6098, %v6098
    %v6107 = vcombine.high %v6105, %v6105
    %v6108 = vcombine.high %v5546, %v5546
    %v6110 = vunpack.c.l.s4 1983009808
    %v6111 = vunpack.c.0.s8 %v6110
    %v6112 = vlaneseq
    %v6113 = vshrl.u32 %v6112, 7
    %v6114 = vsub.s32 %v6111, %v6113
    %v6115 = vrot.slane %v5546, %v6114
    %v6117 = vunpack.c.l.s4 1983009808
    %v6118 = vunpack.c.0.s8 %v6117
    %v6119 = vlaneseq
    %v6120 = vshrl.u32 %v6119, 7
    %v6121 = vsub.s32 %v6118, %v6120
    %v6122 = vrot.slane %v6108, %v6121
    %v6123 = vcombine.high %v6115, %v6115
    %v6124 = vcombine.high %v6122, %v6122
    %v6125 = vcombine.high %v5547, %v5547
    %v6127 = vunpack.c.l.s4 1983009808
    %v6128 = vunpack.c.0.s8 %v6127
    %v6129 = vlaneseq
    %v6130 = vshrl.u32 %v6129, 7
    %v6131 = vsub.s32 %v6128, %v6130
    %v6132 = vrot.slane %v5547, %v6131
    %v6134 = vunpack.c.l.s4 1983009808
    %v6135 = vunpack.c.0.s8 %v6134
    %v6136 = vlaneseq
    %v6137 = vshrl.u32 %v6136, 7
    %v6138 = vsub.s32 %v6135, %v6137
    %v6139 = vrot.slane %v6125, %v6138
    %v6140 = vcombine.high %v6132, %v6132
    %v6141 = vcombine.high %v6139, %v6139
    %v6142 = vcombine.high %v5548, %v5548
    %v6144 = vunpack.c.l.s4 1983009808
    %v6145 = vunpack.c.0.s8 %v6144
    %v6146 = vlaneseq
    %v6147 = vshrl.u32 %v6146, 7
    %v6148 = vsub.s32 %v6145, %v6147
    %v6149 = vrot.slane %v5548, %v6148
    %v6151 = vunpack.c.l.s4 1983009808
    %v6152 = vunpack.c.0.s8 %v6151
    %v6153 = vlaneseq
    %v6154 = vshrl.u32 %v6153, 7
    %v6155 = vsub.s32 %v6152, %v6154
    %v6156 = vrot.slane %v6142, %v6155
    %v6157 = vcombine.high %v6149, %v6149
    %v6158 = vcombine.high %v6156, %v6156
    %v6159 = vcombine.high %v5549, %v5549
    %v6161 = vunpack.c.l.s4 1983009808
    %v6162 = vunpack.c.0.s8 %v6161
    %v6163 = vlaneseq
    %v6164 = vshrl.u32 %v6163, 7
    %v6165 = vsub.s32 %v6162, %v6164
    %v6166 = vrot.slane %v5549, %v6165
    %v6168 = vunpack.c.l.s4 1983009808
    %v6169 = vunpack.c.0.s8 %v6168
    %v6170 = vlaneseq
    %v6171 = vshrl.u32 %v6170, 7
    %v6172 = vsub.s32 %v6169, %v6171
    %v6173 = vrot.slane %v6159, %v6172
    %v6174 = vcombine.high %v6166, %v6166
    %v6175 = vcombine.high %v6173, %v6173
    %v6176 = vcombine.high %v5550, %v5550
    %v6178 = vunpack.c.l.s4 1983009808
    %v6179 = vunpack.c.0.s8 %v6178
    %v6180 = vlaneseq
    %v6181 = vshrl.u32 %v6180, 7
    %v6182 = vsub.s32 %v6179, %v6181
    %v6183 = vrot.slane %v5550, %v6182
    %v6185 = vunpack.c.l.s4 1983009808
    %v6186 = vunpack.c.0.s8 %v6185
    %v6187 = vlaneseq
    %v6188 = vshrl.u32 %v6187, 7
    %v6189 = vsub.s32 %v6186, %v6188
    %v6190 = vrot.slane %v6176, %v6189
    %v6191 = vcombine.high %v6183, %v6183
    %v6192 = vcombine.high %v6190, %v6190
    %v6193 = vcombine.high %v5551, %v5551
    %v6195 = vunpack.c.l.s4 1983009808
    %v6196 = vunpack.c.0.s8 %v6195
    %v6197 = vlaneseq
    %v6198 = vshrl.u32 %v6197, 7
    %v6199 = vsub.s32 %v6196, %v6198
    %v6200 = vrot.slane %v5551, %v6199
    %v6202 = vunpack.c.l.s4 1983009808
    %v6203 = vunpack.c.0.s8 %v6202
    %v6204 = vlaneseq
    %v6205 = vshrl.u32 %v6204, 7
    %v6206 = vsub.s32 %v6203, %v6205
    %v6207 = vrot.slane %v6193, %v6206
    %v6208 = vcombine.high %v6200, %v6200
    %v6209 = vcombine.high %v6207, %v6207
    %v6210 = vcombine.high %v5552, %v5552
    %v6212 = vunpack.c.l.s4 1983009808
    %v6213 = vunpack.c.0.s8 %v6212
    %v6214 = vlaneseq
    %v6215 = vshrl.u32 %v6214, 7
    %v6216 = vsub.s32 %v6213, %v6215
    %v6217 = vrot.slane %v5552, %v6216
    %v6219 = vunpack.c.l.s4 1983009808
    %v6220 = vunpack.c.0.s8 %v6219
    %v6221 = vlaneseq
    %v6222 = vshrl.u32 %v6221, 7
    %v6223 = vsub.s32 %v6220, %v6222
    %v6224 = vrot.slane %v6210, %v6223
    %v6225 = vcombine.high %v6217, %v6217
    %v6226 = vcombine.high %v6224, %v6224
    %v6227 = vcombine.high %v5553, %v5553
    %v6229 = vunpack.c.l.s4 1983009808
    %v6230 = vunpack.c.0.s8 %v6229
    %v6231 = vlaneseq
    %v6232 = vshrl.u32 %v6231, 7
    %v6233 = vsub.s32 %v6230, %v6232
    %v6234 = vrot.slane %v5553, %v6233
    %v6236 = vunpack.c.l.s4 1983009808
    %v6237 = vunpack.c.0.s8 %v6236
    %v6238 = vlaneseq
    %v6239 = vshrl.u32 %v6238, 7
    %v6240 = vsub.s32 %v6237, %v6239
    %v6241 = vrot.slane %v6227, %v6240
    %v6242 = vcombine.high %v6234, %v6234
    %v6243 = vcombine.high %v6241, %v6241
    %v6244 = vcombine.high %v5554, %v5554
    %v6246 = vunpack.c.l.s4 1983009808
    %v6247 = vunpack.c.0.s8 %v6246
    %v6248 = vlaneseq
    %v6249 = vshrl.u32 %v6248, 7
    %v6250 = vsub.s32 %v6247, %v6249
    %v6251 = vrot.slane %v5554, %v6250
    %v6253 = vunpack.c.l.s4 1983009808
    %v6254 = vunpack.c.0.s8 %v6253
    %v6255 = vlaneseq
    %v6256 = vshrl.u32 %v6255, 7
    %v6257 = vsub.s32 %v6254, %v6256
    %v6258 = vrot.slane %v6244, %v6257
    %v6259 = vcombine.high %v6251, %v6251
    %v6260 = vcombine.high %v6258, %v6258
    %v6261 = vcombine.high %v5555, %v5555
    %v6263 = vunpack.c.l.s4 1983009808
    %v6264 = vunpack.c.0.s8 %v6263
    %v6265 = vlaneseq
    %v6266 = vshrl.u32 %v6265, 7
    %v6267 = vsub.s32 %v6264, %v6266
    %v6268 = vrot.slane %v5555, %v6267
    %v6270 = vunpack.c.l.s4 1983009808
    %v6271 = vunpack.c.0.s8 %v6270
    %v6272 = vlaneseq
    %v6273 = vshrl.u32 %v6272, 7
    %v6274 = vsub.s32 %v6271, %v6273
    %v6275 = vrot.slane %v6261, %v6274
    %v6276 = vcombine.high %v6268, %v6268
    %v6277 = vcombine.high %v6275, %v6275
    %v6278 = vcombine.high %v5556, %v5556
    %v6280 = vunpack.c.l.s4 1983009808
    %v6281 = vunpack.c.0.s8 %v6280
    %v6282 = vlaneseq
    %v6283 = vshrl.u32 %v6282, 7
    %v6284 = vsub.s32 %v6281, %v6283
    %v6285 = vrot.slane %v5556, %v6284
    %v6287 = vunpack.c.l.s4 1983009808
    %v6288 = vunpack.c.0.s8 %v6287
    %v6289 = vlaneseq
    %v6290 = vshrl.u32 %v6289, 7
    %v6291 = vsub.s32 %v6288, %v6290
    %v6292 = vrot.slane %v6278, %v6291
    %v6293 = vcombine.high %v6285, %v6285
    %v6294 = vcombine.high %v6292, %v6292
    %v6295 = vcombine.high %v5557, %v5557
    %v6297 = vunpack.c.l.s4 1983009808
    %v6298 = vunpack.c.0.s8 %v6297
    %v6299 = vlaneseq
    %v6300 = vshrl.u32 %v6299, 7
    %v6301 = vsub.s32 %v6298, %v6300
    %v6302 = vrot.slane %v5557, %v6301
    %v6304 = vunpack.c.l.s4 1983009808
    %v6305 = vunpack.c.0.s8 %v6304
    %v6306 = vlaneseq
    %v6307 = vshrl.u32 %v6306, 7
    %v6308 = vsub.s32 %v6305, %v6307
    %v6309 = vrot.slane %v6295, %v6308
    %v6310 = vcombine.high %v6302, %v6302
    %v6311 = vcombine.high %v6309, %v6309
    %v6312 = vcombine.high %v5558, %v5558
    %v6314 = vunpack.c.l.s4 1983009808
    %v6315 = vunpack.c.0.s8 %v6314
    %v6316 = vlaneseq
    %v6317 = vshrl.u32 %v6316, 7
    %v6318 = vsub.s32 %v6315, %v6317
    %v6319 = vrot.slane %v5558, %v6318
    %v6321 = vunpack.c.l.s4 1983009808
    %v6322 = vunpack.c.0.s8 %v6321
    %v6323 = vlaneseq
    %v6324 = vshrl.u32 %v6323, 7
    %v6325 = vsub.s32 %v6322, %v6324
    %v6326 = vrot.slane %v6312, %v6325
    %v6327 = vcombine.high %v6319, %v6319
    %v6328 = vcombine.high %v6326, %v6326
    %v6329 = vcombine.high %v5559, %v5559
    %v6331 = vunpack.c.l.s4 1983009808
    %v6332 = vunpack.c.0.s8 %v6331
    %v6333 = vlaneseq
    %v6334 = vshrl.u32 %v6333, 7
    %v6335 = vsub.s32 %v6332, %v6334
    %v6336 = vrot.slane %v5559, %v6335
    %v6338 = vunpack.c.l.s4 1983009808
    %v6339 = vunpack.c.0.s8 %v6338
    %v6340 = vlaneseq
    %v6341 = vshrl.u32 %v6340, 7
    %v6342 = vsub.s32 %v6339, %v6341
    %v6343 = vrot.slane %v6329, %v6342
    %v6344 = vcombine.high %v6336, %v6336
    %v6345 = vcombine.high %v6343, %v6343
    %v6346 = vcombine.high %v5560, %v5560
    %v6348 = vunpack.c.l.s4 1983009808
    %v6349 = vunpack.c.0.s8 %v6348
    %v6350 = vlaneseq
    %v6351 = vshrl.u32 %v6350, 7
    %v6352 = vsub.s32 %v6349, %v6351
    %v6353 = vrot.slane %v5560, %v6352
    %v6355 = vunpack.c.l.s4 1983009808
    %v6356 = vunpack.c.0.s8 %v6355
    %v6357 = vlaneseq
    %v6358 = vshrl.u32 %v6357, 7
    %v6359 = vsub.s32 %v6356, %v6358
    %v6360 = vrot.slane %v6346, %v6359
    %v6361 = vcombine.high %v6353, %v6353
    %v6362 = vcombine.high %v6360, %v6360
    %v6363 = vcombine.high %v5561, %v5561
    %v6365 = vunpack.c.l.s4 1983009808
    %v6366 = vunpack.c.0.s8 %v6365
    %v6367 = vlaneseq
    %v6368 = vshrl.u32 %v6367, 7
    %v6369 = vsub.s32 %v6366, %v6368
    %v6370 = vrot.slane %v5561, %v6369
    %v6372 = vunpack.c.l.s4 1983009808
    %v6373 = vunpack.c.0.s8 %v6372
    %v6374 = vlaneseq
    %v6375 = vshrl.u32 %v6374, 7
    %v6376 = vsub.s32 %v6373, %v6375
    %v6377 = vrot.slane %v6363, %v6376
    %v6378 = vcombine.high %v6370, %v6370
    %v6379 = vcombine.high %v6377, %v6377
    %v6380 = vcombine.high %v5562, %v5562
    %v6382 = vunpack.c.l.s4 1983009808
    %v6383 = vunpack.c.0.s8 %v6382
    %v6384 = vlaneseq
    %v6385 = vshrl.u32 %v6384, 7
    %v6386 = vsub.s32 %v6383, %v6385
    %v6387 = vrot.slane %v5562, %v6386
    %v6389 = vunpack.c.l.s4 1983009808
    %v6390 = vunpack.c.0.s8 %v6389
    %v6391 = vlaneseq
    %v6392 = vshrl.u32 %v6391, 7
    %v6393 = vsub.s32 %v6390, %v6392
    %v6394 = vrot.slane %v6380, %v6393
    %v6395 = vcombine.high %v6387, %v6387
    %v6396 = vcombine.high %v6394, %v6394
    %v6397 = vcombine.high %v5563, %v5563
    %v6399 = vunpack.c.l.s4 1983009808
    %v6400 = vunpack.c.0.s8 %v6399
    %v6401 = vlaneseq
    %v6402 = vshrl.u32 %v6401, 7
    %v6403 = vsub.s32 %v6400, %v6402
    %v6404 = vrot.slane %v5563, %v6403
    %v6406 = vunpack.c.l.s4 1983009808
    %v6407 = vunpack.c.0.s8 %v6406
    %v6408 = vlaneseq
    %v6409 = vshrl.u32 %v6408, 7
    %v6410 = vsub.s32 %v6407, %v6409
    %v6411 = vrot.slane %v6397, %v6410
    %v6412 = vcombine.high %v6404, %v6404
    %v6413 = vcombine.high %v6411, %v6411
    %v6414 = vcombine.high %v5564, %v5564
    %v6416 = vunpack.c.l.s4 1983009808
    %v6417 = vunpack.c.0.s8 %v6416
    %v6418 = vlaneseq
    %v6419 = vshrl.u32 %v6418, 7
    %v6420 = vsub.s32 %v6417, %v6419
    %v6421 = vrot.slane %v5564, %v6420
    %v6423 = vunpack.c.l.s4 1983009808
    %v6424 = vunpack.c.0.s8 %v6423
    %v6425 = vlaneseq
    %v6426 = vshrl.u32 %v6425, 7
    %v6427 = vsub.s32 %v6424, %v6426
    %v6428 = vrot.slane %v6414, %v6427
    %v6429 = vcombine.high %v6421, %v6421
    %v6430 = vcombine.high %v6428, %v6428
    %v6431 = vcombine.high %v5565, %v5565
    %v6433 = vunpack.c.l.s4 1983009808
    %v6434 = vunpack.c.0.s8 %v6433
    %v6435 = vlaneseq
    %v6436 = vshrl.u32 %v6435, 7
    %v6437 = vsub.s32 %v6434, %v6436
    %v6438 = vrot.slane %v5565, %v6437
    %v6440 = vunpack.c.l.s4 1983009808
    %v6441 = vunpack.c.0.s8 %v6440
    %v6442 = vlaneseq
    %v6443 = vshrl.u32 %v6442, 7
    %v6444 = vsub.s32 %v6441, %v6443
    %v6445 = vrot.slane %v6431, %v6444
    %v6446 = vcombine.high %v6438, %v6438
    %v6447 = vcombine.high %v6445, %v6445
    %v6448 = vcombine.low %v5622, %v5630
    %v6449 = vcombine.low %v5629, %v5631
    %v6451 = vunpack.c.l.s4 1983009808
    %v6452 = vunpack.c.0.s8 %v6451
    %v6453 = vlaneseq
    %v6454 = vshrl.u32 %v6453, 7
    %v6455 = vsub.s32 %v6452, %v6454
    %v6456 = vrot.slane %v6448, %v6455
    %v6458 = vunpack.c.l.s4 1983009808
    %v6459 = vunpack.c.0.s8 %v6458
    %v6460 = vlaneseq
    %v6461 = vshrl.u32 %v6460, 7
    %v6462 = vsub.s32 %v6459, %v6461
    %v6463 = vrot.slane %v6449, %v6462
    %v6464 = vcombine.low %v6456, %v6463
    %v6465 = vcombine.low %v5639, %v5647
    %v6467 = vunpack.c.l.s4 1983009808
    %v6468 = vunpack.c.0.s8 %v6467
    %v6469 = vlaneseq
    %v6470 = vshrl.u32 %v6469, 7
    %v6471 = vsub.s32 %v6468, %v6470
    %v6472 = vrot.slane %v6465, %v6471
    %v6473 = vcombine.low %v5648, %v5656
    %v6474 = vcombine.low %v5664, %v5663
    %v6476 = vunpack.c.l.s4 1983009808
    %v6477 = vunpack.c.0.s8 %v6476
    %v6478 = vlaneseq
    %v6479 = vshrl.u32 %v6478, 7
    %v6480 = vsub.s32 %v6477, %v6479
    %v6481 = vrot.slane %v6473, %v6480
    %v6483 = vunpack.c.l.s4 1983009808
    %v6484 = vunpack.c.0.s8 %v6483
    %v6485 = vlaneseq
    %v6486 = vshrl.u32 %v6485, 7
    %v6487 = vsub.s32 %v6484, %v6486
    %v6488 = vrot.slane %v6474, %v6487
    %v6489 = vcombine.low %v6481, %v6488
    %v6490 = vcombine.low %v5665, %v5673
    %v6492 = vunpack.c.l.s4 1983009808
    %v6493 = vunpack.c.0.s8 %v6492
    %v6494 = vlaneseq
    %v6495 = vshrl.u32 %v6494, 7
    %v6496 = vsub.s32 %v6493, %v6495
    %v6497 = vrot.slane %v6490, %v6496
    %v6498 = vcombine.low %v5680, %v5682
    %v6499 = vcombine.low %v5690, %v5698
    %v6501 = vunpack.c.l.s4 1983009808
    %v6502 = vunpack.c.0.s8 %v6501
    %v6503 = vlaneseq
    %v6504 = vshrl.u32 %v6503, 7
    %v6505 = vsub.s32 %v6502, %v6504
    %v6506 = vrot.slane %v6498, %v6505
    %v6508 = vunpack.c.l.s4 1983009808
    %v6509 = vunpack.c.0.s8 %v6508
    %v6510 = vlaneseq
    %v6511 = vshrl.u32 %v6510, 7
    %v6512 = vsub.s32 %v6509, %v6511
    %v6513 = vrot.slane %v6499, %v6512
    %v6514 = vcombine.low %v6506, %v6513
    %v6515 = vcombine.low %v5697, %v5699
    %v6517 = vunpack.c.l.s4 1983009808
    %v6518 = vunpack.c.0.s8 %v6517
    %v6519 = vlaneseq
    %v6520 = vshrl.u32 %v6519, 7
    %v6521 = vsub.s32 %v6518, %v6520
    %v6522 = vrot.slane %v6515, %v6521
    %v6523 = vcombine.low %v5715, %v5714
    %v6524 = vcombine.low %v5716, %v5724
    %v6526 = vunpack.c.l.s4 1983009808
    %v6527 = vunpack.c.0.s8 %v6526
    %v6528 = vlaneseq
    %v6529 = vshrl.u32 %v6528, 7
    %v6530 = vsub.s32 %v6527, %v6529
    %v6531 = vrot.slane %v6523, %v6530
    %v6533 = vunpack.c.l.s4 1983009808
    %v6534 = vunpack.c.0.s8 %v6533
    %v6535 = vlaneseq
    %v6536 = vshrl.u32 %v6535, 7
    %v6537 = vsub.s32 %v6534, %v6536
    %v6538 = vrot.slane %v6524, %v6537
    %v6539 = vcombine.low %v6531, %v6538
    %v6540 = vcombine.low %v5732, %v5731
    %v6542 = vunpack.c.l.s4 1983009808
    %v6543 = vunpack.c.0.s8 %v6542
    %v6544 = vlaneseq
    %v6545 = vshrl.u32 %v6544, 7
    %v6546 = vsub.s32 %v6543, %v6545
    %v6547 = vrot.slane %v6540, %v6546
    %v6548 = vcombine.low %v5741, %v5749
    %v6549 = vcombine.low %v5748, %v5750
    %v6551 = vunpack.c.l.s4 1983009808
    %v6552 = vunpack.c.0.s8 %v6551
    %v6553 = vlaneseq
    %v6554 = vshrl.u32 %v6553, 7
    %v6555 = vsub.s32 %v6552, %v6554
    %v6556 = vrot.slane %v6548, %v6555
    %v6558 = vunpack.c.l.s4 1983009808
    %v6559 = vunpack.c.0.s8 %v6558
    %v6560 = vlaneseq
    %v6561 = vshrl.u32 %v6560, 7
    %v6562 = vsub.s32 %v6559, %v6561
    %v6563 = vrot.slane %v6549, %v6562
    %v6564 = vcombine.low %v6556, %v6563
    %v6565 = vcombine.low %v5758, %v5766
    %v6567 = vunpack.c.l.s4 1983009808
    %v6568 = vunpack.c.0.s8 %v6567
    %v6569 = vlaneseq
    %v6570 = vshrl.u32 %v6569, 7
    %v6571 = vsub.s32 %v6568, %v6570
    %v6572 = vrot.slane %v6565, %v6571
    %v6573 = vcombine.low %v5767, %v5775
    %v6574 = vcombine.low %v5783, %v5782
    %v6576 = vunpack.c.l.s4 1983009808
    %v6577 = vunpack.c.0.s8 %v6576
    %v6578 = vlaneseq
    %v6579 = vshrl.u32 %v6578, 7
    %v6580 = vsub.s32 %v6577, %v6579
    %v6581 = vrot.slane %v6573, %v6580
    %v6583 = vunpack.c.l.s4 1983009808
    %v6584 = vunpack.c.0.s8 %v6583
    %v6585 = vlaneseq
    %v6586 = vshrl.u32 %v6585, 7
    %v6587 = vsub.s32 %v6584, %v6586
    %v6588 = vrot.slane %v6574, %v6587
    %v6589 = vcombine.low %v6581, %v6588
    %v6590 = vcombine.low %v5784, %v5792
    %v6592 = vunpack.c.l.s4 1983009808
    %v6593 = vunpack.c.0.s8 %v6592
    %v6594 = vlaneseq
    %v6595 = vshrl.u32 %v6594, 7
    %v6596 = vsub.s32 %v6593, %v6595
    %v6597 = vrot.slane %v6590, %v6596
    %v6598 = vcombine.low %v5799, %v5801
    %v6599 = vcombine.low %v5809, %v5817
    %v6601 = vunpack.c.l.s4 1983009808
    %v6602 = vunpack.c.0.s8 %v6601
    %v6603 = vlaneseq
    %v6604 = vshrl.u32 %v6603, 7
    %v6605 = vsub.s32 %v6602, %v6604
    %v6606 = vrot.slane %v6598, %v6605
    %v6608 = vunpack.c.l.s4 1983009808
    %v6609 = vunpack.c.0.s8 %v6608
    %v6610 = vlaneseq
    %v6611 = vshrl.u32 %v6610, 7
    %v6612 = vsub.s32 %v6609, %v6611
    %v6613 = vrot.slane %v6599, %v6612
    %v6614 = vcombine.low %v6606, %v6613
    %v6615 = vcombine.low %v5816, %v5818
    %v6617 = vunpack.c.l.s4 1983009808
    %v6618 = vunpack.c.0.s8 %v6617
    %v6619 = vlaneseq
    %v6620 = vshrl.u32 %v6619, 7
    %v6621 = vsub.s32 %v6618, %v6620
    %v6622 = vrot.slane %v6615, %v6621
    %v6623 = vcombine.low %v5834, %v5833
    %v6624 = vcombine.low %v5835, %v5843
    %v6626 = vunpack.c.l.s4 1983009808
    %v6627 = vunpack.c.0.s8 %v6626
    %v6628 = vlaneseq
    %v6629 = vshrl.u32 %v6628, 7
    %v6630 = vsub.s32 %v6627, %v6629
    %v6631 = vrot.slane %v6623, %v6630
    %v6633 = vunpack.c.l.s4 1983009808
    %v6634 = vunpack.c.0.s8 %v6633
    %v6635 = vlaneseq
    %v6636 = vshrl.u32 %v6635, 7
    %v6637 = vsub.s32 %v6634, %v6636
    %v6638 = vrot.slane %v6624, %v6637
    %v6639 = vcombine.low %v6631, %v6638
    %v6640 = vcombine.low %v5851, %v5850
    %v6642 = vunpack.c.l.s4 1983009808
    %v6643 = vunpack.c.0.s8 %v6642
    %v6644 = vlaneseq
    %v6645 = vshrl.u32 %v6644, 7
    %v6646 = vsub.s32 %v6643, %v6645
    %v6647 = vrot.slane %v6640, %v6646
    %v6648 = vcombine.low %v5860, %v5868
    %v6649 = vcombine.low %v5867, %v5869
    %v6651 = vunpack.c.l.s4 1983009808
    %v6652 = vunpack.c.0.s8 %v6651
    %v6653 = vlaneseq
    %v6654 = vshrl.u32 %v6653, 7
    %v6655 = vsub.s32 %v6652, %v6654
    %v6656 = vrot.slane %v6648, %v6655
    %v6658 = vunpack.c.l.s4 1983009808
    %v6659 = vunpack.c.0.s8 %v6658
    %v6660 = vlaneseq
    %v6661 = vshrl.u32 %v6660, 7
    %v6662 = vsub.s32 %v6659, %v6661
    %v6663 = vrot.slane %v6649, %v6662
    %v6664 = vcombine.low %v6656, %v6663
    %v6665 = vcombine.low %v5877, %v5885
    %v6667 = vunpack.c.l.s4 1983009808
    %v6668 = vunpack.c.0.s8 %v6667
    %v6669 = vlaneseq
    %v6670 = vshrl.u32 %v6669, 7
    %v6671 = vsub.s32 %v6668, %v6670
    %v6672 = vrot.slane %v6665, %v6671
    %v6673 = vcombine.low %v5886, %v5894
    %v6674 = vcombine.low %v5902, %v5901
    %v6676 = vunpack.c.l.s4 1983009808
    %v6677 = vunpack.c.0.s8 %v6676
    %v6678 = vlaneseq
    %v6679 = vshrl.u32 %v6678, 7
    %v6680 = vsub.s32 %v6677, %v6679
    %v6681 = vrot.slane %v6673, %v6680
    %v6683 = vunpack.c.l.s4 1983009808
    %v6684 = vunpack.c.0.s8 %v6683
    %v6685 = vlaneseq
    %v6686 = vshrl.u32 %v6685, 7
    %v6687 = vsub.s32 %v6684, %v6686
    %v6688 = vrot.slane %v6674, %v6687
    %v6689 = vcombine.low %v6681, %v6688
    %v6690 = vcombine.low %v5903, %v5911
    %v6692 = vunpack.c.l.s4 1983009808
    %v6693 = vunpack.c.0.s8 %v6692
    %v6694 = vlaneseq
    %v6695 = vshrl.u32 %v6694, 7
    %v6696 = vsub.s32 %v6693, %v6695
    %v6697 = vrot.slane %v6690, %v6696
    %v6698 = vcombine.low %v5918, %v5920
    %v6699 = vcombine.low %v5928, %v5936
    %v6701 = vunpack.c.l.s4 1983009808
    %v6702 = vunpack.c.0.s8 %v6701
    %v6703 = vlaneseq
    %v6704 = vshrl.u32 %v6703, 7
    %v6705 = vsub.s32 %v6702, %v6704
    %v6706 = vrot.slane %v6698, %v6705
    %v6708 = vunpack.c.l.s4 1983009808
    %v6709 = vunpack.c.0.s8 %v6708
    %v6710 = vlaneseq
    %v6711 = vshrl.u32 %v6710, 7
    %v6712 = vsub.s32 %v6709, %v6711
    %v6713 = vrot.slane %v6699, %v6712
    %v6714 = vcombine.low %v6706, %v6713
    %v6715 = vcombine.low %v5935, %v5937
    %v6717 = vunpack.c.l.s4 1983009808
    %v6718 = vunpack.c.0.s8 %v6717
    %v6719 = vlaneseq
    %v6720 = vshrl.u32 %v6719, 7
    %v6721 = vsub.s32 %v6718, %v6720
    %v6722 = vrot.slane %v6715, %v6721
    %v6723 = vcombine.low %v5953, %v5952
    %v6724 = vcombine.low %v5954, %v5962
    %v6726 = vunpack.c.l.s4 1983009808
    %v6727 = vunpack.c.0.s8 %v6726
    %v6728 = vlaneseq
    %v6729 = vshrl.u32 %v6728, 7
    %v6730 = vsub.s32 %v6727, %v6729
    %v6731 = vrot.slane %v6723, %v6730
    %v6733 = vunpack.c.l.s4 1983009808
    %v6734 = vunpack.c.0.s8 %v6733
    %v6735 = vlaneseq
    %v6736 = vshrl.u32 %v6735, 7
    %v6737 = vsub.s32 %v6734, %v6736
    %v6738 = vrot.slane %v6724, %v6737
    %v6739 = vcombine.low %v6731, %v6738
    %v6740 = vcombine.low %v5970, %v5969
    %v6742 = vunpack.c.l.s4 1983009808
    %v6743 = vunpack.c.0.s8 %v6742
    %v6744 = vlaneseq
    %v6745 = vshrl.u32 %v6744, 7
    %v6746 = vsub.s32 %v6743, %v6745
    %v6747 = vrot.slane %v6740, %v6746
    %v6748 = vcombine.low %v6037, %v6039
    %v6749 = vcombine.low %v6047, %v6055
    %v6751 = vunpack.c.l.s4 1983009808
    %v6752 = vunpack.c.0.s8 %v6751
    %v6753 = vlaneseq
    %v6754 = vshrl.u32 %v6753, 7
    %v6755 = vsub.s32 %v6752, %v6754
    %v6756 = vrot.slane %v6748, %v6755
    %v6758 = vunpack.c.l.s4 1983009808
    %v6759 = vunpack.c.0.s8 %v6758
    %v6760 = vlaneseq
    %v6761 = vshrl.u32 %v6760, 7
    %v6762 = vsub.s32 %v6759, %v6761
    %v6763 = vrot.slane %v6749, %v6762
    %v6764 = vcombine.low %v6756, %v6763
    %v6765 = vcombine.low %v6054, %v6056
    %v6767 = vunpack.c.l.s4 1983009808
    %v6768 = vunpack.c.0.s8 %v6767
    %v6769 = vlaneseq
    %v6770 = vshrl.u32 %v6769, 7
    %v6771 = vsub.s32 %v6768, %v6770
    %v6772 = vrot.slane %v6765, %v6771
    %v6773 = vcombine.low %v6072, %v6071
    %v6774 = vcombine.low %v6073, %v6081
    %v6776 = vunpack.c.l.s4 1983009808
    %v6777 = vunpack.c.0.s8 %v6776
    %v6778 = vlaneseq
    %v6779 = vshrl.u32 %v6778, 7
    %v6780 = vsub.s32 %v6777, %v6779
    %v6781 = vrot.slane %v6773, %v6780
    %v6783 = vunpack.c.l.s4 1983009808
    %v6784 = vunpack.c.0.s8 %v6783
    %v6785 = vlaneseq
    %v6786 = vshrl.u32 %v6785, 7
    %v6787 = vsub.s32 %v6784, %v6786
    %v6788 = vrot.slane %v6774, %v6787
    %v6789 = vcombine.low %v6781, %v6788
    %v6790 = vcombine.low %v6089, %v6088
    %v6792 = vunpack.c.l.s4 1983009808
    %v6793 = vunpack.c.0.s8 %v6792
    %v6794 = vlaneseq
    %v6795 = vshrl.u32 %v6794, 7
    %v6796 = vsub.s32 %v6793, %v6795
    %v6797 = vrot.slane %v6790, %v6796
    %v6798 = vcombine.low %v6098, %v6106
    %v6799 = vcombine.low %v6105, %v6107
    %v6801 = vunpack.c.l.s4 1983009808
    %v6802 = vunpack.c.0.s8 %v6801
    %v6803 = vlaneseq
    %v6804 = vshrl.u32 %v6803, 7
    %v6805 = vsub.s32 %v6802, %v6804
    %v6806 = vrot.slane %v6798, %v6805
    %v6808 = vunpack.c.l.s4 1983009808
    %v6809 = vunpack.c.0.s8 %v6808
    %v6810 = vlaneseq
    %v6811 = vshrl.u32 %v6810, 7
    %v6812 = vsub.s32 %v6809, %v6811
    %v6813 = vrot.slane %v6799, %v6812
    %v6814 = vcombine.low %v6806, %v6813
    %v6815 = vcombine.low %v6115, %v6123
    %v6817 = vunpack.c.l.s4 1983009808
    %v6818 = vunpack.c.0.s8 %v6817
    %v6819 = vlaneseq
    %v6820 = vshrl.u32 %v6819, 7
    %v6821 = vsub.s32 %v6818, %v6820
    %v6822 = vrot.slane %v6815, %v6821
    %v6823 = vcombine.low %v6124, %v6132
    %v6824 = vcombine.low %v6140, %v6139
    %v6826 = vunpack.c.l.s4 1983009808
    %v6827 = vunpack.c.0.s8 %v6826
    %v6828 = vlaneseq
    %v6829 = vshrl.u32 %v6828, 7
    %v6830 = vsub.s32 %v6827, %v6829
    %v6831 = vrot.slane %v6823, %v6830
    %v6833 = vunpack.c.l.s4 1983009808
    %v6834 = vunpack.c.0.s8 %v6833
    %v6835 = vlaneseq
    %v6836 = vshrl.u32 %v6835, 7
    %v6837 = vsub.s32 %v6834, %v6836
    %v6838 = vrot.slane %v6824, %v6837
    %v6839 = vcombine.low %v6831, %v6838
    %v6840 = vcombine.low %v6141, %v6149
    %v6842 = vunpack.c.l.s4 1983009808
    %v6843 = vunpack.c.0.s8 %v6842
    %v6844 = vlaneseq
    %v6845 = vshrl.u32 %v6844, 7
    %v6846 = vsub.s32 %v6843, %v6845
    %v6847 = vrot.slane %v6840, %v6846
    %v6848 = vcombine.low %v6156, %v6158
    %v6849 = vcombine.low %v6166, %v6174
    %v6851 = vunpack.c.l.s4 1983009808
    %v6852 = vunpack.c.0.s8 %v6851
    %v6853 = vlaneseq
    %v6854 = vshrl.u32 %v6853, 7
    %v6855 = vsub.s32 %v6852, %v6854
    %v6856 = vrot.slane %v6848, %v6855
    %v6858 = vunpack.c.l.s4 1983009808
    %v6859 = vunpack.c.0.s8 %v6858
    %v6860 = vlaneseq
    %v6861 = vshrl.u32 %v6860, 7
    %v6862 = vsub.s32 %v6859, %v6861
    %v6863 = vrot.slane %v6849, %v6862
    %v6864 = vcombine.low %v6856, %v6863
    %v6865 = vcombine.low %v6173, %v6175
    %v6867 = vunpack.c.l.s4 1983009808
    %v6868 = vunpack.c.0.s8 %v6867
    %v6869 = vlaneseq
    %v6870 = vshrl.u32 %v6869, 7
    %v6871 = vsub.s32 %v6868, %v6870
    %v6872 = vrot.slane %v6865, %v6871
    %v6873 = vcombine.low %v6191, %v6190
    %v6874 = vcombine.low %v6192, %v6200
    %v6876 = vunpack.c.l.s4 1983009808
    %v6877 = vunpack.c.0.s8 %v6876
    %v6878 = vlaneseq
    %v6879 = vshrl.u32 %v6878, 7
    %v6880 = vsub.s32 %v6877, %v6879
    %v6881 = vrot.slane %v6873, %v6880
    %v6883 = vunpack.c.l.s4 1983009808
    %v6884 = vunpack.c.0.s8 %v6883
    %v6885 = vlaneseq
    %v6886 = vshrl.u32 %v6885, 7
    %v6887 = vsub.s32 %v6884, %v6886
    %v6888 = vrot.slane %v6874, %v6887
    %v6889 = vcombine.low %v6881, %v6888
    %v6890 = vcombine.low %v6208, %v6207
    %v6892 = vunpack.c.l.s4 1983009808
    %v6893 = vunpack.c.0.s8 %v6892
    %v6894 = vlaneseq
    %v6895 = vshrl.u32 %v6894, 7
    %v6896 = vsub.s32 %v6893, %v6895
    %v6897 = vrot.slane %v6890, %v6896
    %v6898 = vcombine.low %v6217, %v6225
    %v6899 = vcombine.low %v6224, %v6226
    %v6901 = vunpack.c.l.s4 1983009808
    %v6902 = vunpack.c.0.s8 %v6901
    %v6903 = vlaneseq
    %v6904 = vshrl.u32 %v6903, 7
    %v6905 = vsub.s32 %v6902, %v6904
    %v6906 = vrot.slane %v6898, %v6905
    %v6908 = vunpack.c.l.s4 1983009808
    %v6909 = vunpack.c.0.s8 %v6908
    %v6910 = vlaneseq
    %v6911 = vshrl.u32 %v6910, 7
    %v6912 = vsub.s32 %v6909, %v6911
    %v6913 = vrot.slane %v6899, %v6912
    %v6914 = vcombine.low %v6906, %v6913
    %v6915 = vcombine.low %v6234, %v6242
    %v6917 = vunpack.c.l.s4 1983009808
    %v6918 = vunpack.c.0.s8 %v6917
    %v6919 = vlaneseq
    %v6920 = vshrl.u32 %v6919, 7
    %v6921 = vsub.s32 %v6918, %v6920
    %v6922 = vrot.slane %v6915, %v6921
    %v6923 = vcombine.low %v6243, %v6251
    %v6924 = vcombine.low %v6259, %v6258
    %v6926 = vunpack.c.l.s4 1983009808
    %v6927 = vunpack.c.0.s8 %v6926
    %v6928 = vlaneseq
    %v6929 = vshrl.u32 %v6928, 7
    %v6930 = vsub.s32 %v6927, %v6929
    %v6931 = vrot.slane %v6923, %v6930
    %v6933 = vunpack.c.l.s4 1983009808
    %v6934 = vunpack.c.0.s8 %v6933
    %v6935 = vlaneseq
    %v6936 = vshrl.u32 %v6935, 7
    %v6937 = vsub.s32 %v6934, %v6936
    %v6938 = vrot.slane %v6924, %v6937
    %v6939 = vcombine.low %v6931, %v6938
    %v6940 = vcombine.low %v6260, %v6268
    %v6942 = vunpack.c.l.s4 1983009808
    %v6943 = vunpack.c.0.s8 %v6942
    %v6944 = vlaneseq
    %v6945 = vshrl.u32 %v6944, 7
    %v6946 = vsub.s32 %v6943, %v6945
    %v6947 = vrot.slane %v6940, %v6946
    %v6948 = vcombine.low %v6275, %v6277
    %v6949 = vcombine.low %v6285, %v6293
    %v6951 = vunpack.c.l.s4 1983009808
    %v6952 = vunpack.c.0.s8 %v6951
    %v6953 = vlaneseq
    %v6954 = vshrl.u32 %v6953, 7
    %v6955 = vsub.s32 %v6952, %v6954
    %v6956 = vrot.slane %v6948, %v6955
    %v6958 = vunpack.c.l.s4 1983009808
    %v6959 = vunpack.c.0.s8 %v6958
    %v6960 = vlaneseq
    %v6961 = vshrl.u32 %v6960, 7
    %v6962 = vsub.s32 %v6959, %v6961
    %v6963 = vrot.slane %v6949, %v6962
    %v6964 = vcombine.low %v6956, %v6963
    %v6965 = vcombine.low %v6292, %v6294
    %v6967 = vunpack.c.l.s4 1983009808
    %v6968 = vunpack.c.0.s8 %v6967
    %v6969 = vlaneseq
    %v6970 = vshrl.u32 %v6969, 7
    %v6971 = vsub.s32 %v6968, %v6970
    %v6972 = vrot.slane %v6965, %v6971
    %v6973 = vcombine.low %v6310, %v6309
    %v6974 = vcombine.low %v6311, %v6319
    %v6976 = vunpack.c.l.s4 1983009808
    %v6977 = vunpack.c.0.s8 %v6976
    %v6978 = vlaneseq
    %v6979 = vshrl.u32 %v6978, 7
    %v6980 = vsub.s32 %v6977, %v6979
    %v6981 = vrot.slane %v6973, %v6980
    %v6983 = vunpack.c.l.s4 1983009808
    %v6984 = vunpack.c.0.s8 %v6983
    %v6985 = vlaneseq
    %v6986 = vshrl.u32 %v6985, 7
    %v6987 = vsub.s32 %v6984, %v6986
    %v6988 = vrot.slane %v6974, %v6987
    %v6989 = vcombine.low %v6981, %v6988
    %v6990 = vcombine.low %v6327, %v6326
    %v6992 = vunpack.c.l.s4 1983009808
    %v6993 = vunpack.c.0.s8 %v6992
    %v6994 = vlaneseq
    %v6995 = vshrl.u32 %v6994, 7
    %v6996 = vsub.s32 %v6993, %v6995
    %v6997 = vrot.slane %v6990, %v6996
    %v6998 = vcombine.low %v6336, %v6344
    %v6999 = vcombine.low %v6343, %v6345
    %v7001 = vunpack.c.l.s4 1983009808
    %v7002 = vunpack.c.0.s8 %v7001
    %v7003 = vlaneseq
    %v7004 = vshrl.u32 %v7003, 7
    %v7005 = vsub.s32 %v7002, %v7004
    %v7006 = vrot.slane %v6998, %v7005
    %v7008 = vunpack.c.l.s4 1983009808
    %v7009 = vunpack.c.0.s8 %v7008
    %v7010 = vlaneseq
    %v7011 = vshrl.u32 %v7010, 7
    %v7012 = vsub.s32 %v7009, %v7011
    %v7013 = vrot.slane %v6999, %v7012
    %v7014 = vcombine.low %v7006, %v7013
    %v7015 = vcombine.low %v6353, %v6361
    %v7017 = vunpack.c.l.s4 1983009808
    %v7018 = vunpack.c.0.s8 %v7017
    %v7019 = vlaneseq
    %v7020 = vshrl.u32 %v7019, 7
    %v7021 = vsub.s32 %v7018, %v7020
    %v7022 = vrot.slane %v7015, %v7021
    %v7023 = vcombine.low %v6362, %v6370
    %v7024 = vcombine.low %v6378, %v6377
    %v7026 = vunpack.c.l.s4 1983009808
    %v7027 = vunpack.c.0.s8 %v7026
    %v7028 = vlaneseq
    %v7029 = vshrl.u32 %v7028, 7
    %v7030 = vsub.s32 %v7027, %v7029
    %v7031 = vrot.slane %v7023, %v7030
    %v7033 = vunpack.c.l.s4 1983009808
    %v7034 = vunpack.c.0.s8 %v7033
    %v7035 = vlaneseq
    %v7036 = vshrl.u32 %v7035, 7
    %v7037 = vsub.s32 %v7034, %v7036
    %v7038 = vrot.slane %v7024, %v7037
    %v7039 = vcombine.low %v7031, %v7038
    %v7040 = vcombine.low %v6379, %v6387
    %v7042 = vunpack.c.l.s4 1983009808
    %v7043 = vunpack.c.0.s8 %v7042
    %v7044 = vlaneseq
    %v7045 = vshrl.u32 %v7044, 7
    %v7046 = vsub.s32 %v7043, %v7045
    %v7047 = vrot.slane %v7040, %v7046
    %v7097 = vunpack.c.l.s4 1983009808
    %v7098 = vunpack.c.0.s8 %v7097
    %v7099 = vlaneseq
    %v7100 = vshrl.u32 %v7099, 7
    %v7101 = vsub.s32 %v7098, %v7100
    %v7102 = vrot.slane %v5646, %v7101
    %v7103 = vcombine.low %v6472, %v7102
    %v7105 = vunpack.c.l.s4 1983009808
    %v7106 = vunpack.c.0.s8 %v7105
    %v7107 = vlaneseq
    %v7108 = vshrl.u32 %v7107, 7
    %v7109 = vsub.s32 %v7106, %v7108
    %v7110 = vrot.slane %v5681, %v7109
    %v7111 = vcombine.low %v6497, %v7110
    %v7113 = vunpack.c.l.s4 1983009808
    %v7114 = vunpack.c.0.s8 %v7113
    %v7115 = vlaneseq
    %v7116 = vshrl.u32 %v7115, 7
    %v7117 = vsub.s32 %v7114, %v7116
    %v7118 = vrot.slane %v5707, %v7117
    %v7119 = vcombine.low %v6522, %v7118
    %v7121 = vunpack.c.l.s4 1983009808
    %v7122 = vunpack.c.0.s8 %v7121
    %v7123 = vlaneseq
    %v7124 = vshrl.u32 %v7123, 7
    %v7125 = vsub.s32 %v7122, %v7124
    %v7126 = vrot.slane %v5733, %v7125
    %v7127 = vcombine.low %v6547, %v7126
    %v7129 = vunpack.c.l.s4 1983009808
    %v7130 = vunpack.c.0.s8 %v7129
    %v7131 = vlaneseq
    %v7132 = vshrl.u32 %v7131, 7
    %v7133 = vsub.s32 %v7130, %v7132
    %v7134 = vrot.slane %v5765, %v7133
    %v7135 = vcombine.low %v6572, %v7134
    %v7137 = vunpack.c.l.s4 1983009808
    %v7138 = vunpack.c.0.s8 %v7137
    %v7139 = vlaneseq
    %v7140 = vshrl.u32 %v7139, 7
    %v7141 = vsub.s32 %v7138, %v7140
    %v7142 = vrot.slane %v5800, %v7141
    %v7143 = vcombine.low %v6597, %v7142
    %v7145 = vunpack.c.l.s4 1983009808
    %v7146 = vunpack.c.0.s8 %v7145
    %v7147 = vlaneseq
    %v7148 = vshrl.u32 %v7147, 7
    %v7149 = vsub.s32 %v7146, %v7148
    %v7150 = vrot.slane %v5826, %v7149
    %v7151 = vcombine.low %v6622, %v7150
    %v7153 = vunpack.c.l.s4 1983009808
    %v7154 = vunpack.c.0.s8 %v7153
    %v7155 = vlaneseq
    %v7156 = vshrl.u32 %v7155, 7
    %v7157 = vsub.s32 %v7154, %v7156
    %v7158 = vrot.slane %v5852, %v7157
    %v7159 = vcombine.low %v6647, %v7158
    %v7161 = vunpack.c.l.s4 1983009808
    %v7162 = vunpack.c.0.s8 %v7161
    %v7163 = vlaneseq
    %v7164 = vshrl.u32 %v7163, 7
    %v7165 = vsub.s32 %v7162, %v7164
    %v7166 = vrot.slane %v5884, %v7165
    %v7167 = vcombine.low %v6672, %v7166
    %v7169 = vunpack.c.l.s4 1983009808
    %v7170 = vunpack.c.0.s8 %v7169
    %v7171 = vlaneseq
    %v7172 = vshrl.u32 %v7171, 7
    %v7173 = vsub.s32 %v7170, %v7172
    %v7174 = vrot.slane %v5919, %v7173
    %v7175 = vcombine.low %v6697, %v7174
    %v7177 = vunpack.c.l.s4 1983009808
    %v7178 = vunpack.c.0.s8 %v7177
    %v7179 = vlaneseq
    %v7180 = vshrl.u32 %v7179, 7
    %v7181 = vsub.s32 %v7178, %v7180
    %v7182 = vrot.slane %v5945, %v7181
    %v7183 = vcombine.low %v6722, %v7182
    %v7185 = vunpack.c.l.s4 1983009808
    %v7186 = vunpack.c.0.s8 %v7185
    %v7187 = vlaneseq
    %v7188 = vshrl.u32 %v7187, 7
    %v7189 = vsub.s32 %v7186, %v7188
    %v7190 = vrot.slane %v5971, %v7189
    %v7191 = vcombine.low %v6747, %v7190
    %v7193 = vunpack.c.l.s4 1983009808
    %v7194 = vunpack.c.0.s8 %v7193
    %v7195 = vlaneseq
    %v7196 = vshrl.u32 %v7195, 7
    %v7197 = vsub.s32 %v7194, %v7196
    %v7198 = vrot.slane %v6064, %v7197
    %v7199 = vcombine.low %v6772, %v7198
    %v7201 = vunpack.c.l.s4 1983009808
    %v7202 = vunpack.c.0.s8 %v7201
    %v7203 = vlaneseq
    %v7204 = vshrl.u32 %v7203, 7
    %v7205 = vsub.s32 %v7202, %v7204
    %v7206 = vrot.slane %v6090, %v7205
    %v7207 = vcombine.low %v6797, %v7206
    %v7209 = vunpack.c.l.s4 1983009808
    %v7210 = vunpack.c.0.s8 %v7209
    %v7211 = vlaneseq
    %v7212 = vshrl.u32 %v7211, 7
    %v7213 = vsub.s32 %v7210, %v7212
    %v7214 = vrot.slane %v6122, %v7213
    %v7215 = vcombine.low %v6822, %v7214
    %v7217 = vunpack.c.l.s4 1983009808
    %v7218 = vunpack.c.0.s8 %v7217
    %v7219 = vlaneseq
    %v7220 = vshrl.u32 %v7219, 7
    %v7221 = vsub.s32 %v7218, %v7220
    %v7222 = vrot.slane %v6157, %v7221
    %v7223 = vcombine.low %v6847, %v7222
    %v7225 = vunpack.c.l.s4 1983009808
    %v7226 = vunpack.c.0.s8 %v7225
    %v7227 = vlaneseq
    %v7228 = vshrl.u32 %v7227, 7
    %v7229 = vsub.s32 %v7226, %v7228
    %v7230 = vrot.slane %v6183, %v7229
    %v7231 = vcombine.low %v6872, %v7230
    %v7233 = vunpack.c.l.s4 1983009808
    %v7234 = vunpack.c.0.s8 %v7233
    %v7235 = vlaneseq
    %v7236 = vshrl.u32 %v7235, 7
    %v7237 = vsub.s32 %v7234, %v7236
    %v7238 = vrot.slane %v6209, %v7237
    %v7239 = vcombine.low %v6897, %v7238
    %v7241 = vunpack.c.l.s4 1983009808
    %v7242 = vunpack.c.0.s8 %v7241
    %v7243 = vlaneseq
    %v7244 = vshrl.u32 %v7243, 7
    %v7245 = vsub.s32 %v7242, %v7244
    %v7246 = vrot.slane %v6241, %v7245
    %v7247 = vcombine.low %v6922, %v7246
    %v7249 = vunpack.c.l.s4 1983009808
    %v7250 = vunpack.c.0.s8 %v7249
    %v7251 = vlaneseq
    %v7252 = vshrl.u32 %v7251, 7
    %v7253 = vsub.s32 %v7250, %v7252
    %v7254 = vrot.slane %v6276, %v7253
    %v7255 = vcombine.low %v6947, %v7254
    %v7257 = vunpack.c.l.s4 1983009808
    %v7258 = vunpack.c.0.s8 %v7257
    %v7259 = vlaneseq
    %v7260 = vshrl.u32 %v7259, 7
    %v7261 = vsub.s32 %v7258, %v7260
    %v7262 = vrot.slane %v6302, %v7261
    %v7263 = vcombine.low %v6972, %v7262
    %v7265 = vunpack.c.l.s4 1983009808
    %v7266 = vunpack.c.0.s8 %v7265
    %v7267 = vlaneseq
    %v7268 = vshrl.u32 %v7267, 7
    %v7269 = vsub.s32 %v7266, %v7268
    %v7270 = vrot.slane %v6328, %v7269
    %v7271 = vcombine.low %v6997, %v7270
    %v7273 = vunpack.c.l.s4 1983009808
    %v7274 = vunpack.c.0.s8 %v7273
    %v7275 = vlaneseq
    %v7276 = vshrl.u32 %v7275, 7
    %v7277 = vsub.s32 %v7274, %v7276
    %v7278 = vrot.slane %v6360, %v7277
    %v7279 = vcombine.low %v7022, %v7278
    %v7281 = vunpack.c.l.s4 1983009808
    %v7282 = vunpack.c.0.s8 %v7281
    %v7283 = vlaneseq
    %v7284 = vshrl.u32 %v7283, 7
    %v7285 = vsub.s32 %v7282, %v7284
    %v7286 = vrot.slane %v6395, %v7285
    %v7287 = vcombine.low %v7047, %v7286
    %v7288 = vrot.slane %v6464, 1
    %v7289 = vrot.slane %v7103, 1
    %v7290 = vsel %vm153, %v7288, %v7289
    %v7291 = vrot.slane %v6489, 1
    %v7292 = vrot.slane %v7111, 1
    %v7293 = vsel %vm153, %v7291, %v7292
    %v7294 = vrot.slane %v6514, 1
    %v7295 = vrot.slane %v7119, 1
    %v7296 = vsel %vm153, %v7294, %v7295
    %v7297 = vrot.slane %v6539, 1
    %v7298 = vrot.slane %v7127, 1
    %v7299 = vsel %vm153, %v7297, %v7298
    %v7300 = vrot.slane %v6564, 1
    %v7301 = vrot.slane %v7135, 1
    %v7302 = vsel %vm153, %v7300, %v7301
    %v7303 = vrot.slane %v6589, 1
    %v7304 = vrot.slane %v7143, 1
    %v7305 = vsel %vm153, %v7303, %v7304
    %v7306 = vrot.slane %v6614, 1
    %v7307 = vrot.slane %v7151, 1
    %v7308 = vsel %vm153, %v7306, %v7307
    %v7309 = vrot.slane %v6639, 1
    %v7310 = vrot.slane %v7159, 1
    %v7311 = vsel %vm153, %v7309, %v7310
    %v7312 = vrot.slane %v6664, 1
    %v7313 = vrot.slane %v7167, 1
    %v7314 = vsel %vm153, %v7312, %v7313
    %v7315 = vrot.slane %v6689, 1
    %v7316 = vrot.slane %v7175, 1
    %v7317 = vsel %vm153, %v7315, %v7316
    %v7318 = vrot.slane %v6714, 1
    %v7319 = vrot.slane %v7183, 1
    %v7320 = vsel %vm153, %v7318, %v7319
    %v7321 = vrot.slane %v6739, 1
    %v7322 = vrot.slane %v7191, 1
    %v7323 = vsel %vm153, %v7321, %v7322
    %v7324 = vrot.slane %v6764, 1
    %v7325 = vrot.slane %v7199, 1
    %v7326 = vsel %vm153, %v7324, %v7325
    %v7327 = vrot.slane %v6789, 1
    %v7328 = vrot.slane %v7207, 1
    %v7329 = vsel %vm153, %v7327, %v7328
    %v7330 = vrot.slane %v6814, 1
    %v7331 = vrot.slane %v7215, 1
    %v7332 = vsel %vm153, %v7330, %v7331
    %v7333 = vrot.slane %v6839, 1
    %v7334 = vrot.slane %v7223, 1
    %v7335 = vsel %vm153, %v7333, %v7334
    %v7336 = vrot.slane %v6864, 1
    %v7337 = vrot.slane %v7231, 1
    %v7338 = vsel %vm153, %v7336, %v7337
    %v7339 = vrot.slane %v6889, 1
    %v7340 = vrot.slane %v7239, 1
    %v7341 = vsel %vm153, %v7339, %v7340
    %v7342 = vrot.slane %v6914, 1
    %v7343 = vrot.slane %v7247, 1
    %v7344 = vsel %vm153, %v7342, %v7343
    %v7345 = vrot.slane %v6939, 1
    %v7346 = vrot.slane %v7255, 1
    %v7347 = vsel %vm153, %v7345, %v7346
    %v7348 = vrot.slane %v6964, 1
    %v7349 = vrot.slane %v7263, 1
    %v7350 = vsel %vm153, %v7348, %v7349
    %v7351 = vrot.slane %v6989, 1
    %v7352 = vrot.slane %v7271, 1
    %v7353 = vsel %vm153, %v7351, %v7352
    %v7354 = vrot.slane %v7014, 1
    %v7355 = vrot.slane %v7279, 1
    %v7356 = vsel %vm153, %v7354, %v7355
    %v7357 = vrot.slane %v7039, 1
    %v7358 = vrot.slane %v7287, 1
    %v7359 = vsel %vm153, %v7357, %v7358
    %7360 = vrot.lane.b32.xlu0 %v7290, 8
    %v7361 = vpop.permute.xlu0 %7360
    %7362 = vrot.lane.b32.xlu0 %v7289, 8
    %v7363 = vpop.permute.xlu0 %7362
    %7364 = vrot.lane.b32.xlu0 %v7293, 8
    %v7365 = vpop.permute.xlu0 %7364
    %7366 = vrot.lane.b32.xlu0 %v7292, 8
    %v7367 = vpop.permute.xlu0 %7366
    %7368 = vrot.lane.b32.xlu0 %v7296, 8
    %v7369 = vpop.permute.xlu0 %7368
    %7370 = vrot.lane.b32.xlu0 %v7295, 8
    %v7371 = vpop.permute.xlu0 %7370
    %7372 = vrot.lane.b32.xlu0 %v7299, 8
    %v7373 = vpop.permute.xlu0 %7372
    %7374 = vrot.lane.b32.xlu0 %v7298, 8
    %v7375 = vpop.permute.xlu0 %7374
    %7376 = vrot.lane.b32.xlu0 %v7302, 8
    %v7377 = vpop.permute.xlu0 %7376
    %7378 = vrot.lane.b32.xlu0 %v7301, 8
    %v7379 = vpop.permute.xlu0 %7378
    %7380 = vrot.lane.b32.xlu0 %v7305, 8
    %v7381 = vpop.permute.xlu0 %7380
    %7382 = vrot.lane.b32.xlu0 %v7304, 8
    %v7383 = vpop.permute.xlu0 %7382
    %7384 = vrot.lane.b32.xlu0 %v7308, 8
    %v7385 = vpop.permute.xlu0 %7384
    %7386 = vrot.lane.b32.xlu0 %v7307, 8
    %v7387 = vpop.permute.xlu0 %7386
    %7388 = vrot.lane.b32.xlu0 %v7311, 8
    %v7389 = vpop.permute.xlu0 %7388
    %7390 = vrot.lane.b32.xlu0 %v7310, 8
    %v7391 = vpop.permute.xlu0 %7390
    %7392 = vrot.lane.b32.xlu0 %v7314, 8
    %v7393 = vpop.permute.xlu0 %7392
    %7394 = vrot.lane.b32.xlu0 %v7313, 8
    %v7395 = vpop.permute.xlu0 %7394
    %7396 = vrot.lane.b32.xlu0 %v7317, 8
    %v7397 = vpop.permute.xlu0 %7396
    %7398 = vrot.lane.b32.xlu0 %v7316, 8
    %v7399 = vpop.permute.xlu0 %7398
    %7400 = vrot.lane.b32.xlu0 %v7320, 8
    %v7401 = vpop.permute.xlu0 %7400
    %7402 = vrot.lane.b32.xlu0 %v7319, 8
    %v7403 = vpop.permute.xlu0 %7402
    %7404 = vrot.lane.b32.xlu0 %v7323, 8
    %v7405 = vpop.permute.xlu0 %7404
    %7406 = vrot.lane.b32.xlu0 %v7322, 8
    %v7407 = vpop.permute.xlu0 %7406
    %7408 = vrot.lane.b32.xlu0 %v7326, 8
    %v7409 = vpop.permute.xlu0 %7408
    %7410 = vrot.lane.b32.xlu0 %v7325, 8
    %v7411 = vpop.permute.xlu0 %7410
    %7412 = vrot.lane.b32.xlu0 %v7329, 8
    %v7413 = vpop.permute.xlu0 %7412
    %7414 = vrot.lane.b32.xlu0 %v7328, 8
    %v7415 = vpop.permute.xlu0 %7414
    %7416 = vrot.lane.b32.xlu0 %v7332, 8
    %v7417 = vpop.permute.xlu0 %7416
    %7418 = vrot.lane.b32.xlu0 %v7331, 8
    %v7419 = vpop.permute.xlu0 %7418
    %7420 = vrot.lane.b32.xlu0 %v7335, 8
    %v7421 = vpop.permute.xlu0 %7420
    %7422 = vrot.lane.b32.xlu0 %v7334, 8
    %v7423 = vpop.permute.xlu0 %7422
    %7424 = vrot.lane.b32.xlu0 %v7338, 8
    %v7425 = vpop.permute.xlu0 %7424
    %7426 = vrot.lane.b32.xlu0 %v7337, 8
    %v7427 = vpop.permute.xlu0 %7426
    %7428 = vrot.lane.b32.xlu0 %v7341, 8
    %v7429 = vpop.permute.xlu0 %7428
    %7430 = vrot.lane.b32.xlu0 %v7340, 8
    %v7431 = vpop.permute.xlu0 %7430
    %7432 = vrot.lane.b32.xlu0 %v7344, 8
    %v7433 = vpop.permute.xlu0 %7432
    %7434 = vrot.lane.b32.xlu0 %v7343, 8
    %v7435 = vpop.permute.xlu0 %7434
    %7436 = vrot.lane.b32.xlu0 %v7347, 8
    %v7437 = vpop.permute.xlu0 %7436
    %7438 = vrot.lane.b32.xlu0 %v7346, 8
    %v7439 = vpop.permute.xlu0 %7438
    %7440 = vrot.lane.b32.xlu0 %v7350, 8
    %v7441 = vpop.permute.xlu0 %7440
    %7442 = vrot.lane.b32.xlu0 %v7349, 8
    %v7443 = vpop.permute.xlu0 %7442
    %7444 = vrot.lane.b32.xlu0 %v7353, 8
    %v7445 = vpop.permute.xlu0 %7444
    %7446 = vrot.lane.b32.xlu0 %v7352, 8
    %v7447 = vpop.permute.xlu0 %7446
    %7448 = vrot.lane.b32.xlu0 %v7356, 8
    %v7449 = vpop.permute.xlu0 %7448
    %7450 = vrot.lane.b32.xlu0 %v7355, 8
    %v7451 = vpop.permute.xlu0 %7450
    %7452 = vrot.lane.b32.xlu0 %v7359, 8
    %v7453 = vpop.permute.xlu0 %7452
    %7454 = vrot.lane.b32.xlu0 %v7358, 8
    %v7455 = vpop.permute.xlu0 %7454
    %v7504 = vcombine.low %v5630, %v5629
    %v7505 = vcombine.low %v5631, %v5639
    %v7507 = vunpack.c.l.s4 1983009808
    %v7508 = vunpack.c.0.s8 %v7507
    %v7509 = vlaneseq
    %v7510 = vshrl.u32 %v7509, 7
    %v7511 = vsub.s32 %v7508, %v7510
    %v7512 = vrot.slane %v7504, %v7511
    %v7514 = vunpack.c.l.s4 1983009808
    %v7515 = vunpack.c.0.s8 %v7514
    %v7516 = vlaneseq
    %v7517 = vshrl.u32 %v7516, 7
    %v7518 = vsub.s32 %v7515, %v7517
    %v7519 = vrot.slane %v7505, %v7518
    %v7520 = vcombine.low %v7512, %v7519
    %v7521 = vcombine.low %v5647, %v5646
    %v7523 = vunpack.c.l.s4 1983009808
    %v7524 = vunpack.c.0.s8 %v7523
    %v7525 = vlaneseq
    %v7526 = vshrl.u32 %v7525, 7
    %v7527 = vsub.s32 %v7524, %v7526
    %v7528 = vrot.slane %v7521, %v7527
    %v7529 = vcombine.low %v5656, %v5664
    %v7530 = vcombine.low %v5663, %v5665
    %v7532 = vunpack.c.l.s4 1983009808
    %v7533 = vunpack.c.0.s8 %v7532
    %v7534 = vlaneseq
    %v7535 = vshrl.u32 %v7534, 7
    %v7536 = vsub.s32 %v7533, %v7535
    %v7537 = vrot.slane %v7529, %v7536
    %v7539 = vunpack.c.l.s4 1983009808
    %v7540 = vunpack.c.0.s8 %v7539
    %v7541 = vlaneseq
    %v7542 = vshrl.u32 %v7541, 7
    %v7543 = vsub.s32 %v7540, %v7542
    %v7544 = vrot.slane %v7530, %v7543
    %v7545 = vcombine.low %v7537, %v7544
    %v7546 = vcombine.low %v5673, %v5681
    %v7548 = vunpack.c.l.s4 1983009808
    %v7549 = vunpack.c.0.s8 %v7548
    %v7550 = vlaneseq
    %v7551 = vshrl.u32 %v7550, 7
    %v7552 = vsub.s32 %v7549, %v7551
    %v7553 = vrot.slane %v7546, %v7552
    %v7554 = vcombine.low %v5682, %v5690
    %v7555 = vcombine.low %v5698, %v5697
    %v7557 = vunpack.c.l.s4 1983009808
    %v7558 = vunpack.c.0.s8 %v7557
    %v7559 = vlaneseq
    %v7560 = vshrl.u32 %v7559, 7
    %v7561 = vsub.s32 %v7558, %v7560
    %v7562 = vrot.slane %v7554, %v7561
    %v7564 = vunpack.c.l.s4 1983009808
    %v7565 = vunpack.c.0.s8 %v7564
    %v7566 = vlaneseq
    %v7567 = vshrl.u32 %v7566, 7
    %v7568 = vsub.s32 %v7565, %v7567
    %v7569 = vrot.slane %v7555, %v7568
    %v7570 = vcombine.low %v7562, %v7569
    %v7571 = vcombine.low %v5699, %v5707
    %v7573 = vunpack.c.l.s4 1983009808
    %v7574 = vunpack.c.0.s8 %v7573
    %v7575 = vlaneseq
    %v7576 = vshrl.u32 %v7575, 7
    %v7577 = vsub.s32 %v7574, %v7576
    %v7578 = vrot.slane %v7571, %v7577
    %v7579 = vcombine.low %v5714, %v5716
    %v7580 = vcombine.low %v5724, %v5732
    %v7582 = vunpack.c.l.s4 1983009808
    %v7583 = vunpack.c.0.s8 %v7582
    %v7584 = vlaneseq
    %v7585 = vshrl.u32 %v7584, 7
    %v7586 = vsub.s32 %v7583, %v7585
    %v7587 = vrot.slane %v7579, %v7586
    %v7589 = vunpack.c.l.s4 1983009808
    %v7590 = vunpack.c.0.s8 %v7589
    %v7591 = vlaneseq
    %v7592 = vshrl.u32 %v7591, 7
    %v7593 = vsub.s32 %v7590, %v7592
    %v7594 = vrot.slane %v7580, %v7593
    %v7595 = vcombine.low %v7587, %v7594
    %v7596 = vcombine.low %v5731, %v5733
    %v7598 = vunpack.c.l.s4 1983009808
    %v7599 = vunpack.c.0.s8 %v7598
    %v7600 = vlaneseq
    %v7601 = vshrl.u32 %v7600, 7
    %v7602 = vsub.s32 %v7599, %v7601
    %v7603 = vrot.slane %v7596, %v7602
    %v7604 = vcombine.low %v5749, %v5748
    %v7605 = vcombine.low %v5750, %v5758
    %v7607 = vunpack.c.l.s4 1983009808
    %v7608 = vunpack.c.0.s8 %v7607
    %v7609 = vlaneseq
    %v7610 = vshrl.u32 %v7609, 7
    %v7611 = vsub.s32 %v7608, %v7610
    %v7612 = vrot.slane %v7604, %v7611
    %v7614 = vunpack.c.l.s4 1983009808
    %v7615 = vunpack.c.0.s8 %v7614
    %v7616 = vlaneseq
    %v7617 = vshrl.u32 %v7616, 7
    %v7618 = vsub.s32 %v7615, %v7617
    %v7619 = vrot.slane %v7605, %v7618
    %v7620 = vcombine.low %v7612, %v7619
    %v7621 = vcombine.low %v5766, %v5765
    %v7623 = vunpack.c.l.s4 1983009808
    %v7624 = vunpack.c.0.s8 %v7623
    %v7625 = vlaneseq
    %v7626 = vshrl.u32 %v7625, 7
    %v7627 = vsub.s32 %v7624, %v7626
    %v7628 = vrot.slane %v7621, %v7627
    %v7629 = vcombine.low %v5775, %v5783
    %v7630 = vcombine.low %v5782, %v5784
    %v7632 = vunpack.c.l.s4 1983009808
    %v7633 = vunpack.c.0.s8 %v7632
    %v7634 = vlaneseq
    %v7635 = vshrl.u32 %v7634, 7
    %v7636 = vsub.s32 %v7633, %v7635
    %v7637 = vrot.slane %v7629, %v7636
    %v7639 = vunpack.c.l.s4 1983009808
    %v7640 = vunpack.c.0.s8 %v7639
    %v7641 = vlaneseq
    %v7642 = vshrl.u32 %v7641, 7
    %v7643 = vsub.s32 %v7640, %v7642
    %v7644 = vrot.slane %v7630, %v7643
    %v7645 = vcombine.low %v7637, %v7644
    %v7646 = vcombine.low %v5792, %v5800
    %v7648 = vunpack.c.l.s4 1983009808
    %v7649 = vunpack.c.0.s8 %v7648
    %v7650 = vlaneseq
    %v7651 = vshrl.u32 %v7650, 7
    %v7652 = vsub.s32 %v7649, %v7651
    %v7653 = vrot.slane %v7646, %v7652
    %v7654 = vcombine.low %v5801, %v5809
    %v7655 = vcombine.low %v5817, %v5816
    %v7657 = vunpack.c.l.s4 1983009808
    %v7658 = vunpack.c.0.s8 %v7657
    %v7659 = vlaneseq
    %v7660 = vshrl.u32 %v7659, 7
    %v7661 = vsub.s32 %v7658, %v7660
    %v7662 = vrot.slane %v7654, %v7661
    %v7664 = vunpack.c.l.s4 1983009808
    %v7665 = vunpack.c.0.s8 %v7664
    %v7666 = vlaneseq
    %v7667 = vshrl.u32 %v7666, 7
    %v7668 = vsub.s32 %v7665, %v7667
    %v7669 = vrot.slane %v7655, %v7668
    %v7670 = vcombine.low %v7662, %v7669
    %v7671 = vcombine.low %v5818, %v5826
    %v7673 = vunpack.c.l.s4 1983009808
    %v7674 = vunpack.c.0.s8 %v7673
    %v7675 = vlaneseq
    %v7676 = vshrl.u32 %v7675, 7
    %v7677 = vsub.s32 %v7674, %v7676
    %v7678 = vrot.slane %v7671, %v7677
    %v7679 = vcombine.low %v5833, %v5835
    %v7680 = vcombine.low %v5843, %v5851
    %v7682 = vunpack.c.l.s4 1983009808
    %v7683 = vunpack.c.0.s8 %v7682
    %v7684 = vlaneseq
    %v7685 = vshrl.u32 %v7684, 7
    %v7686 = vsub.s32 %v7683, %v7685
    %v7687 = vrot.slane %v7679, %v7686
    %v7689 = vunpack.c.l.s4 1983009808
    %v7690 = vunpack.c.0.s8 %v7689
    %v7691 = vlaneseq
    %v7692 = vshrl.u32 %v7691, 7
    %v7693 = vsub.s32 %v7690, %v7692
    %v7694 = vrot.slane %v7680, %v7693
    %v7695 = vcombine.low %v7687, %v7694
    %v7696 = vcombine.low %v5850, %v5852
    %v7698 = vunpack.c.l.s4 1983009808
    %v7699 = vunpack.c.0.s8 %v7698
    %v7700 = vlaneseq
    %v7701 = vshrl.u32 %v7700, 7
    %v7702 = vsub.s32 %v7699, %v7701
    %v7703 = vrot.slane %v7696, %v7702
    %v7704 = vcombine.low %v5868, %v5867
    %v7705 = vcombine.low %v5869, %v5877
    %v7707 = vunpack.c.l.s4 1983009808
    %v7708 = vunpack.c.0.s8 %v7707
    %v7709 = vlaneseq
    %v7710 = vshrl.u32 %v7709, 7
    %v7711 = vsub.s32 %v7708, %v7710
    %v7712 = vrot.slane %v7704, %v7711
    %v7714 = vunpack.c.l.s4 1983009808
    %v7715 = vunpack.c.0.s8 %v7714
    %v7716 = vlaneseq
    %v7717 = vshrl.u32 %v7716, 7
    %v7718 = vsub.s32 %v7715, %v7717
    %v7719 = vrot.slane %v7705, %v7718
    %v7720 = vcombine.low %v7712, %v7719
    %v7721 = vcombine.low %v5885, %v5884
    %v7723 = vunpack.c.l.s4 1983009808
    %v7724 = vunpack.c.0.s8 %v7723
    %v7725 = vlaneseq
    %v7726 = vshrl.u32 %v7725, 7
    %v7727 = vsub.s32 %v7724, %v7726
    %v7728 = vrot.slane %v7721, %v7727
    %v7729 = vcombine.low %v5894, %v5902
    %v7730 = vcombine.low %v5901, %v5903
    %v7732 = vunpack.c.l.s4 1983009808
    %v7733 = vunpack.c.0.s8 %v7732
    %v7734 = vlaneseq
    %v7735 = vshrl.u32 %v7734, 7
    %v7736 = vsub.s32 %v7733, %v7735
    %v7737 = vrot.slane %v7729, %v7736
    %v7739 = vunpack.c.l.s4 1983009808
    %v7740 = vunpack.c.0.s8 %v7739
    %v7741 = vlaneseq
    %v7742 = vshrl.u32 %v7741, 7
    %v7743 = vsub.s32 %v7740, %v7742
    %v7744 = vrot.slane %v7730, %v7743
    %v7745 = vcombine.low %v7737, %v7744
    %v7746 = vcombine.low %v5911, %v5919
    %v7748 = vunpack.c.l.s4 1983009808
    %v7749 = vunpack.c.0.s8 %v7748
    %v7750 = vlaneseq
    %v7751 = vshrl.u32 %v7750, 7
    %v7752 = vsub.s32 %v7749, %v7751
    %v7753 = vrot.slane %v7746, %v7752
    %v7754 = vcombine.low %v5920, %v5928
    %v7755 = vcombine.low %v5936, %v5935
    %v7757 = vunpack.c.l.s4 1983009808
    %v7758 = vunpack.c.0.s8 %v7757
    %v7759 = vlaneseq
    %v7760 = vshrl.u32 %v7759, 7
    %v7761 = vsub.s32 %v7758, %v7760
    %v7762 = vrot.slane %v7754, %v7761
    %v7764 = vunpack.c.l.s4 1983009808
    %v7765 = vunpack.c.0.s8 %v7764
    %v7766 = vlaneseq
    %v7767 = vshrl.u32 %v7766, 7
    %v7768 = vsub.s32 %v7765, %v7767
    %v7769 = vrot.slane %v7755, %v7768
    %v7770 = vcombine.low %v7762, %v7769
    %v7771 = vcombine.low %v5937, %v5945
    %v7773 = vunpack.c.l.s4 1983009808
    %v7774 = vunpack.c.0.s8 %v7773
    %v7775 = vlaneseq
    %v7776 = vshrl.u32 %v7775, 7
    %v7777 = vsub.s32 %v7774, %v7776
    %v7778 = vrot.slane %v7771, %v7777
    %v7779 = vcombine.low %v5952, %v5954
    %v7780 = vcombine.low %v5962, %v5970
    %v7782 = vunpack.c.l.s4 1983009808
    %v7783 = vunpack.c.0.s8 %v7782
    %v7784 = vlaneseq
    %v7785 = vshrl.u32 %v7784, 7
    %v7786 = vsub.s32 %v7783, %v7785
    %v7787 = vrot.slane %v7779, %v7786
    %v7789 = vunpack.c.l.s4 1983009808
    %v7790 = vunpack.c.0.s8 %v7789
    %v7791 = vlaneseq
    %v7792 = vshrl.u32 %v7791, 7
    %v7793 = vsub.s32 %v7790, %v7792
    %v7794 = vrot.slane %v7780, %v7793
    %v7795 = vcombine.low %v7787, %v7794
    %v7796 = vcombine.low %v5969, %v5971
    %v7798 = vunpack.c.l.s4 1983009808
    %v7799 = vunpack.c.0.s8 %v7798
    %v7800 = vlaneseq
    %v7801 = vshrl.u32 %v7800, 7
    %v7802 = vsub.s32 %v7799, %v7801
    %v7803 = vrot.slane %v7796, %v7802
    %v7804 = vcombine.low %v6039, %v6047
    %v7805 = vcombine.low %v6055, %v6054
    %v7807 = vunpack.c.l.s4 1983009808
    %v7808 = vunpack.c.0.s8 %v7807
    %v7809 = vlaneseq
    %v7810 = vshrl.u32 %v7809, 7
    %v7811 = vsub.s32 %v7808, %v7810
    %v7812 = vrot.slane %v7804, %v7811
    %v7814 = vunpack.c.l.s4 1983009808
    %v7815 = vunpack.c.0.s8 %v7814
    %v7816 = vlaneseq
    %v7817 = vshrl.u32 %v7816, 7
    %v7818 = vsub.s32 %v7815, %v7817
    %v7819 = vrot.slane %v7805, %v7818
    %v7820 = vcombine.low %v7812, %v7819
    %v7821 = vcombine.low %v6056, %v6064
    %v7823 = vunpack.c.l.s4 1983009808
    %v7824 = vunpack.c.0.s8 %v7823
    %v7825 = vlaneseq
    %v7826 = vshrl.u32 %v7825, 7
    %v7827 = vsub.s32 %v7824, %v7826
    %v7828 = vrot.slane %v7821, %v7827
    %v7829 = vcombine.low %v6071, %v6073
    %v7830 = vcombine.low %v6081, %v6089
    %v7832 = vunpack.c.l.s4 1983009808
    %v7833 = vunpack.c.0.s8 %v7832
    %v7834 = vlaneseq
    %v7835 = vshrl.u32 %v7834, 7
    %v7836 = vsub.s32 %v7833, %v7835
    %v7837 = vrot.slane %v7829, %v7836
    %v7839 = vunpack.c.l.s4 1983009808
    %v7840 = vunpack.c.0.s8 %v7839
    %v7841 = vlaneseq
    %v7842 = vshrl.u32 %v7841, 7
    %v7843 = vsub.s32 %v7840, %v7842
    %v7844 = vrot.slane %v7830, %v7843
    %v7845 = vcombine.low %v7837, %v7844
    %v7846 = vcombine.low %v6088, %v6090
    %v7848 = vunpack.c.l.s4 1983009808
    %v7849 = vunpack.c.0.s8 %v7848
    %v7850 = vlaneseq
    %v7851 = vshrl.u32 %v7850, 7
    %v7852 = vsub.s32 %v7849, %v7851
    %v7853 = vrot.slane %v7846, %v7852
    %v7854 = vcombine.low %v6106, %v6105
    %v7855 = vcombine.low %v6107, %v6115
    %v7857 = vunpack.c.l.s4 1983009808
    %v7858 = vunpack.c.0.s8 %v7857
    %v7859 = vlaneseq
    %v7860 = vshrl.u32 %v7859, 7
    %v7861 = vsub.s32 %v7858, %v7860
    %v7862 = vrot.slane %v7854, %v7861
    %v7864 = vunpack.c.l.s4 1983009808
    %v7865 = vunpack.c.0.s8 %v7864
    %v7866 = vlaneseq
    %v7867 = vshrl.u32 %v7866, 7
    %v7868 = vsub.s32 %v7865, %v7867
    %v7869 = vrot.slane %v7855, %v7868
    %v7870 = vcombine.low %v7862, %v7869
    %v7871 = vcombine.low %v6123, %v6122
    %v7873 = vunpack.c.l.s4 1983009808
    %v7874 = vunpack.c.0.s8 %v7873
    %v7875 = vlaneseq
    %v7876 = vshrl.u32 %v7875, 7
    %v7877 = vsub.s32 %v7874, %v7876
    %v7878 = vrot.slane %v7871, %v7877
    %v7879 = vcombine.low %v6132, %v6140
    %v7880 = vcombine.low %v6139, %v6141
    %v7882 = vunpack.c.l.s4 1983009808
    %v7883 = vunpack.c.0.s8 %v7882
    %v7884 = vlaneseq
    %v7885 = vshrl.u32 %v7884, 7
    %v7886 = vsub.s32 %v7883, %v7885
    %v7887 = vrot.slane %v7879, %v7886
    %v7889 = vunpack.c.l.s4 1983009808
    %v7890 = vunpack.c.0.s8 %v7889
    %v7891 = vlaneseq
    %v7892 = vshrl.u32 %v7891, 7
    %v7893 = vsub.s32 %v7890, %v7892
    %v7894 = vrot.slane %v7880, %v7893
    %v7895 = vcombine.low %v7887, %v7894
    %v7896 = vcombine.low %v6149, %v6157
    %v7898 = vunpack.c.l.s4 1983009808
    %v7899 = vunpack.c.0.s8 %v7898
    %v7900 = vlaneseq
    %v7901 = vshrl.u32 %v7900, 7
    %v7902 = vsub.s32 %v7899, %v7901
    %v7903 = vrot.slane %v7896, %v7902
    %v7904 = vcombine.low %v6158, %v6166
    %v7905 = vcombine.low %v6174, %v6173
    %v7907 = vunpack.c.l.s4 1983009808
    %v7908 = vunpack.c.0.s8 %v7907
    %v7909 = vlaneseq
    %v7910 = vshrl.u32 %v7909, 7
    %v7911 = vsub.s32 %v7908, %v7910
    %v7912 = vrot.slane %v7904, %v7911
    %v7914 = vunpack.c.l.s4 1983009808
    %v7915 = vunpack.c.0.s8 %v7914
    %v7916 = vlaneseq
    %v7917 = vshrl.u32 %v7916, 7
    %v7918 = vsub.s32 %v7915, %v7917
    %v7919 = vrot.slane %v7905, %v7918
    %v7920 = vcombine.low %v7912, %v7919
    %v7921 = vcombine.low %v6175, %v6183
    %v7923 = vunpack.c.l.s4 1983009808
    %v7924 = vunpack.c.0.s8 %v7923
    %v7925 = vlaneseq
    %v7926 = vshrl.u32 %v7925, 7
    %v7927 = vsub.s32 %v7924, %v7926
    %v7928 = vrot.slane %v7921, %v7927
    %v7929 = vcombine.low %v6190, %v6192
    %v7930 = vcombine.low %v6200, %v6208
    %v7932 = vunpack.c.l.s4 1983009808
    %v7933 = vunpack.c.0.s8 %v7932
    %v7934 = vlaneseq
    %v7935 = vshrl.u32 %v7934, 7
    %v7936 = vsub.s32 %v7933, %v7935
    %v7937 = vrot.slane %v7929, %v7936
    %v7939 = vunpack.c.l.s4 1983009808
    %v7940 = vunpack.c.0.s8 %v7939
    %v7941 = vlaneseq
    %v7942 = vshrl.u32 %v7941, 7
    %v7943 = vsub.s32 %v7940, %v7942
    %v7944 = vrot.slane %v7930, %v7943
    %v7945 = vcombine.low %v7937, %v7944
    %v7946 = vcombine.low %v6207, %v6209
    %v7948 = vunpack.c.l.s4 1983009808
    %v7949 = vunpack.c.0.s8 %v7948
    %v7950 = vlaneseq
    %v7951 = vshrl.u32 %v7950, 7
    %v7952 = vsub.s32 %v7949, %v7951
    %v7953 = vrot.slane %v7946, %v7952
    %v7954 = vcombine.low %v6225, %v6224
    %v7955 = vcombine.low %v6226, %v6234
    %v7957 = vunpack.c.l.s4 1983009808
    %v7958 = vunpack.c.0.s8 %v7957
    %v7959 = vlaneseq
    %v7960 = vshrl.u32 %v7959, 7
    %v7961 = vsub.s32 %v7958, %v7960
    %v7962 = vrot.slane %v7954, %v7961
    %v7964 = vunpack.c.l.s4 1983009808
    %v7965 = vunpack.c.0.s8 %v7964
    %v7966 = vlaneseq
    %v7967 = vshrl.u32 %v7966, 7
    %v7968 = vsub.s32 %v7965, %v7967
    %v7969 = vrot.slane %v7955, %v7968
    %v7970 = vcombine.low %v7962, %v7969
    %v7971 = vcombine.low %v6242, %v6241
    %v7973 = vunpack.c.l.s4 1983009808
    %v7974 = vunpack.c.0.s8 %v7973
    %v7975 = vlaneseq
    %v7976 = vshrl.u32 %v7975, 7
    %v7977 = vsub.s32 %v7974, %v7976
    %v7978 = vrot.slane %v7971, %v7977
    %v7979 = vcombine.low %v6251, %v6259
    %v7980 = vcombine.low %v6258, %v6260
    %v7982 = vunpack.c.l.s4 1983009808
    %v7983 = vunpack.c.0.s8 %v7982
    %v7984 = vlaneseq
    %v7985 = vshrl.u32 %v7984, 7
    %v7986 = vsub.s32 %v7983, %v7985
    %v7987 = vrot.slane %v7979, %v7986
    %v7989 = vunpack.c.l.s4 1983009808
    %v7990 = vunpack.c.0.s8 %v7989
    %v7991 = vlaneseq
    %v7992 = vshrl.u32 %v7991, 7
    %v7993 = vsub.s32 %v7990, %v7992
    %v7994 = vrot.slane %v7980, %v7993
    %v7995 = vcombine.low %v7987, %v7994
    %v7996 = vcombine.low %v6268, %v6276
    %v7998 = vunpack.c.l.s4 1983009808
    %v7999 = vunpack.c.0.s8 %v7998
    %v8000 = vlaneseq
    %v8001 = vshrl.u32 %v8000, 7
    %v8002 = vsub.s32 %v7999, %v8001
    %v8003 = vrot.slane %v7996, %v8002
    %v8004 = vcombine.low %v6277, %v6285
    %v8005 = vcombine.low %v6293, %v6292
    %v8007 = vunpack.c.l.s4 1983009808
    %v8008 = vunpack.c.0.s8 %v8007
    %v8009 = vlaneseq
    %v8010 = vshrl.u32 %v8009, 7
    %v8011 = vsub.s32 %v8008, %v8010
    %v8012 = vrot.slane %v8004, %v8011
    %v8014 = vunpack.c.l.s4 1983009808
    %v8015 = vunpack.c.0.s8 %v8014
    %v8016 = vlaneseq
    %v8017 = vshrl.u32 %v8016, 7
    %v8018 = vsub.s32 %v8015, %v8017
    %v8019 = vrot.slane %v8005, %v8018
    %v8020 = vcombine.low %v8012, %v8019
    %v8021 = vcombine.low %v6294, %v6302
    %v8023 = vunpack.c.l.s4 1983009808
    %v8024 = vunpack.c.0.s8 %v8023
    %v8025 = vlaneseq
    %v8026 = vshrl.u32 %v8025, 7
    %v8027 = vsub.s32 %v8024, %v8026
    %v8028 = vrot.slane %v8021, %v8027
    %v8029 = vcombine.low %v6309, %v6311
    %v8030 = vcombine.low %v6319, %v6327
    %v8032 = vunpack.c.l.s4 1983009808
    %v8033 = vunpack.c.0.s8 %v8032
    %v8034 = vlaneseq
    %v8035 = vshrl.u32 %v8034, 7
    %v8036 = vsub.s32 %v8033, %v8035
    %v8037 = vrot.slane %v8029, %v8036
    %v8039 = vunpack.c.l.s4 1983009808
    %v8040 = vunpack.c.0.s8 %v8039
    %v8041 = vlaneseq
    %v8042 = vshrl.u32 %v8041, 7
    %v8043 = vsub.s32 %v8040, %v8042
    %v8044 = vrot.slane %v8030, %v8043
    %v8045 = vcombine.low %v8037, %v8044
    %v8046 = vcombine.low %v6326, %v6328
    %v8048 = vunpack.c.l.s4 1983009808
    %v8049 = vunpack.c.0.s8 %v8048
    %v8050 = vlaneseq
    %v8051 = vshrl.u32 %v8050, 7
    %v8052 = vsub.s32 %v8049, %v8051
    %v8053 = vrot.slane %v8046, %v8052
    %v8054 = vcombine.low %v6344, %v6343
    %v8055 = vcombine.low %v6345, %v6353
    %v8057 = vunpack.c.l.s4 1983009808
    %v8058 = vunpack.c.0.s8 %v8057
    %v8059 = vlaneseq
    %v8060 = vshrl.u32 %v8059, 7
    %v8061 = vsub.s32 %v8058, %v8060
    %v8062 = vrot.slane %v8054, %v8061
    %v8064 = vunpack.c.l.s4 1983009808
    %v8065 = vunpack.c.0.s8 %v8064
    %v8066 = vlaneseq
    %v8067 = vshrl.u32 %v8066, 7
    %v8068 = vsub.s32 %v8065, %v8067
    %v8069 = vrot.slane %v8055, %v8068
    %v8070 = vcombine.low %v8062, %v8069
    %v8071 = vcombine.low %v6361, %v6360
    %v8073 = vunpack.c.l.s4 1983009808
    %v8074 = vunpack.c.0.s8 %v8073
    %v8075 = vlaneseq
    %v8076 = vshrl.u32 %v8075, 7
    %v8077 = vsub.s32 %v8074, %v8076
    %v8078 = vrot.slane %v8071, %v8077
    %v8079 = vcombine.low %v6370, %v6378
    %v8080 = vcombine.low %v6377, %v6379
    %v8082 = vunpack.c.l.s4 1983009808
    %v8083 = vunpack.c.0.s8 %v8082
    %v8084 = vlaneseq
    %v8085 = vshrl.u32 %v8084, 7
    %v8086 = vsub.s32 %v8083, %v8085
    %v8087 = vrot.slane %v8079, %v8086
    %v8089 = vunpack.c.l.s4 1983009808
    %v8090 = vunpack.c.0.s8 %v8089
    %v8091 = vlaneseq
    %v8092 = vshrl.u32 %v8091, 7
    %v8093 = vsub.s32 %v8090, %v8092
    %v8094 = vrot.slane %v8080, %v8093
    %v8095 = vcombine.low %v8087, %v8094
    %v8096 = vcombine.low %v6387, %v6395
    %v8098 = vunpack.c.l.s4 1983009808
    %v8099 = vunpack.c.0.s8 %v8098
    %v8100 = vlaneseq
    %v8101 = vshrl.u32 %v8100, 7
    %v8102 = vsub.s32 %v8099, %v8101
    %v8103 = vrot.slane %v8096, %v8102
    %8104 = vrot.lane.b32.xlu0 %v7520, 16
    %v8105 = vpop.permute.xlu0 %8104
    %8106 = vrot.lane.b32.xlu0 %v7528, 16
    %v8107 = vpop.permute.xlu0 %8106
    %8108 = vrot.lane.b32.xlu0 %v7545, 16
    %v8109 = vpop.permute.xlu0 %8108
    %8110 = vrot.lane.b32.xlu0 %v7553, 16
    %v8111 = vpop.permute.xlu0 %8110
    %8112 = vrot.lane.b32.xlu0 %v7570, 16
    %v8113 = vpop.permute.xlu0 %8112
    %8114 = vrot.lane.b32.xlu0 %v7578, 16
    %v8115 = vpop.permute.xlu0 %8114
    %8116 = vrot.lane.b32.xlu0 %v7595, 16
    %v8117 = vpop.permute.xlu0 %8116
    %8118 = vrot.lane.b32.xlu0 %v7603, 16
    %v8119 = vpop.permute.xlu0 %8118
    %8120 = vrot.lane.b32.xlu0 %v7620, 16
    %v8121 = vpop.permute.xlu0 %8120
    %8122 = vrot.lane.b32.xlu0 %v7628, 16
    %v8123 = vpop.permute.xlu0 %8122
    %8124 = vrot.lane.b32.xlu0 %v7645, 16
    %v8125 = vpop.permute.xlu0 %8124
    %8126 = vrot.lane.b32.xlu0 %v7653, 16
    %v8127 = vpop.permute.xlu0 %8126
    %8128 = vrot.lane.b32.xlu0 %v7670, 16
    %v8129 = vpop.permute.xlu0 %8128
    %8130 = vrot.lane.b32.xlu0 %v7678, 16
    %v8131 = vpop.permute.xlu0 %8130
    %8132 = vrot.lane.b32.xlu0 %v7695, 16
    %v8133 = vpop.permute.xlu0 %8132
    %8134 = vrot.lane.b32.xlu0 %v7703, 16
    %v8135 = vpop.permute.xlu0 %8134
    %8136 = vrot.lane.b32.xlu0 %v7720, 16
    %v8137 = vpop.permute.xlu0 %8136
    %8138 = vrot.lane.b32.xlu0 %v7728, 16
    %v8139 = vpop.permute.xlu0 %8138
    %8140 = vrot.lane.b32.xlu0 %v7745, 16
    %v8141 = vpop.permute.xlu0 %8140
    %8142 = vrot.lane.b32.xlu0 %v7753, 16
    %v8143 = vpop.permute.xlu0 %8142
    %8144 = vrot.lane.b32.xlu0 %v7770, 16
    %v8145 = vpop.permute.xlu0 %8144
    %8146 = vrot.lane.b32.xlu0 %v7778, 16
    %v8147 = vpop.permute.xlu0 %8146
    %8148 = vrot.lane.b32.xlu0 %v7795, 16
    %v8149 = vpop.permute.xlu0 %8148
    %8150 = vrot.lane.b32.xlu0 %v7803, 16
    %v8151 = vpop.permute.xlu0 %8150
    %8152 = vrot.lane.b32.xlu0 %v7820, 16
    %v8153 = vpop.permute.xlu0 %8152
    %8154 = vrot.lane.b32.xlu0 %v7828, 16
    %v8155 = vpop.permute.xlu0 %8154
    %8156 = vrot.lane.b32.xlu0 %v7845, 16
    %v8157 = vpop.permute.xlu0 %8156
    %8158 = vrot.lane.b32.xlu0 %v7853, 16
    %v8159 = vpop.permute.xlu0 %8158
    %8160 = vrot.lane.b32.xlu0 %v7870, 16
    %v8161 = vpop.permute.xlu0 %8160
    %8162 = vrot.lane.b32.xlu0 %v7878, 16
    %v8163 = vpop.permute.xlu0 %8162
    %8164 = vrot.lane.b32.xlu0 %v7895, 16
    %v8165 = vpop.permute.xlu0 %8164
    %8166 = vrot.lane.b32.xlu0 %v7903, 16
    %v8167 = vpop.permute.xlu0 %8166
    %8168 = vrot.lane.b32.xlu0 %v7920, 16
    %v8169 = vpop.permute.xlu0 %8168
    %8170 = vrot.lane.b32.xlu0 %v7928, 16
    %v8171 = vpop.permute.xlu0 %8170
    %8172 = vrot.lane.b32.xlu0 %v7945, 16
    %v8173 = vpop.permute.xlu0 %8172
    %8174 = vrot.lane.b32.xlu0 %v7953, 16
    %v8175 = vpop.permute.xlu0 %8174
    %8176 = vrot.lane.b32.xlu0 %v7970, 16
    %v8177 = vpop.permute.xlu0 %8176
    %8178 = vrot.lane.b32.xlu0 %v7978, 16
    %v8179 = vpop.permute.xlu0 %8178
    %8180 = vrot.lane.b32.xlu0 %v7995, 16
    %v8181 = vpop.permute.xlu0 %8180
    %8182 = vrot.lane.b32.xlu0 %v8003, 16
    %v8183 = vpop.permute.xlu0 %8182
    %8184 = vrot.lane.b32.xlu0 %v8020, 16
    %v8185 = vpop.permute.xlu0 %8184
    %8186 = vrot.lane.b32.xlu0 %v8028, 16
    %v8187 = vpop.permute.xlu0 %8186
    %8188 = vrot.lane.b32.xlu0 %v8045, 16
    %v8189 = vpop.permute.xlu0 %8188
    %8190 = vrot.lane.b32.xlu0 %v8053, 16
    %v8191 = vpop.permute.xlu0 %8190
    %8192 = vrot.lane.b32.xlu0 %v8070, 16
    %v8193 = vpop.permute.xlu0 %8192
    %8194 = vrot.lane.b32.xlu0 %v8078, 16
    %v8195 = vpop.permute.xlu0 %8194
    %8196 = vrot.lane.b32.xlu0 %v8095, 16
    %v8197 = vpop.permute.xlu0 %8196
    %8198 = vrot.lane.b32.xlu0 %v8103, 16
    %v8199 = vpop.permute.xlu0 %8198
    %v8248 = vsel %vm716, %v6464, %v7361
    %v8249 = vsel %vm716, %v6472, %v7363
    %v8250 = vsel %vm716, %v6489, %v7365
    %v8251 = vsel %vm716, %v6497, %v7367
    %v8252 = vsel %vm716, %v6514, %v7369
    %v8253 = vsel %vm716, %v6522, %v7371
    %v8254 = vsel %vm716, %v6539, %v7373
    %v8255 = vsel %vm716, %v6547, %v7375
    %v8256 = vsel %vm716, %v6564, %v7377
    %v8257 = vsel %vm716, %v6572, %v7379
    %v8258 = vsel %vm716, %v6589, %v7381
    %v8259 = vsel %vm716, %v6597, %v7383
    %v8260 = vsel %vm716, %v6614, %v7385
    %v8261 = vsel %vm716, %v6622, %v7387
    %v8262 = vsel %vm716, %v6639, %v7389
    %v8263 = vsel %vm716, %v6647, %v7391
    %v8264 = vsel %vm716, %v6664, %v7393
    %v8265 = vsel %vm716, %v6672, %v7395
    %v8266 = vsel %vm716, %v6689, %v7397
    %v8267 = vsel %vm716, %v6697, %v7399
    %v8268 = vsel %vm716, %v6714, %v7401
    %v8269 = vsel %vm716, %v6722, %v7403
    %v8270 = vsel %vm716, %v6739, %v7405
    %v8271 = vsel %vm716, %v6747, %v7407
    %v8272 = vsel %vm716, %v6764, %v7409
    %v8273 = vsel %vm716, %v6772, %v7411
    %v8274 = vsel %vm716, %v6789, %v7413
    %v8275 = vsel %vm716, %v6797, %v7415
    %v8276 = vsel %vm716, %v6814, %v7417
    %v8277 = vsel %vm716, %v6822, %v7419
    %v8278 = vsel %vm716, %v6839, %v7421
    %v8279 = vsel %vm716, %v6847, %v7423
    %v8280 = vsel %vm716, %v6864, %v7425
    %v8281 = vsel %vm716, %v6872, %v7427
    %v8282 = vsel %vm716, %v6889, %v7429
    %v8283 = vsel %vm716, %v6897, %v7431
    %v8284 = vsel %vm716, %v6914, %v7433
    %v8285 = vsel %vm716, %v6922, %v7435
    %v8286 = vsel %vm716, %v6939, %v7437
    %v8287 = vsel %vm716, %v6947, %v7439
    %v8288 = vsel %vm716, %v6964, %v7441
    %v8289 = vsel %vm716, %v6972, %v7443
    %v8290 = vsel %vm716, %v6989, %v7445
    %v8291 = vsel %vm716, %v6997, %v7447
    %v8292 = vsel %vm716, %v7014, %v7449
    %v8293 = vsel %vm716, %v7022, %v7451
    %v8294 = vsel %vm716, %v7039, %v7453
    %v8295 = vsel %vm716, %v7047, %v7455
    %vm8296 = vcmask 130048
    %v8297 = vsel %vm8296, %v8248, %v8105
    %v8298 = vsel %vm8296, %v8249, %v8107
    %v8299 = vsel %vm8296, %v8250, %v8109
    %v8300 = vsel %vm8296, %v8251, %v8111
    %v8301 = vsel %vm8296, %v8252, %v8113
    %v8302 = vsel %vm8296, %v8253, %v8115
    %v8303 = vsel %vm8296, %v8254, %v8117
    %v8304 = vsel %vm8296, %v8255, %v8119
    %v8305 = vsel %vm8296, %v8256, %v8121
    %v8306 = vsel %vm8296, %v8257, %v8123
    %v8307 = vsel %vm8296, %v8258, %v8125
    %v8308 = vsel %vm8296, %v8259, %v8127
    %v8309 = vsel %vm8296, %v8260, %v8129
    %v8310 = vsel %vm8296, %v8261, %v8131
    %v8311 = vsel %vm8296, %v8262, %v8133
    %v8312 = vsel %vm8296, %v8263, %v8135
    %v8313 = vsel %vm8296, %v8264, %v8137
    %v8314 = vsel %vm8296, %v8265, %v8139
    %v8315 = vsel %vm8296, %v8266, %v8141
    %v8316 = vsel %vm8296, %v8267, %v8143
    %v8317 = vsel %vm8296, %v8268, %v8145
    %v8318 = vsel %vm8296, %v8269, %v8147
    %v8319 = vsel %vm8296, %v8270, %v8149
    %v8320 = vsel %vm8296, %v8271, %v8151
    %v8321 = vsel %vm8296, %v8272, %v8153
    %v8322 = vsel %vm8296, %v8273, %v8155
    %v8323 = vsel %vm8296, %v8274, %v8157
    %v8324 = vsel %vm8296, %v8275, %v8159
    %v8325 = vsel %vm8296, %v8276, %v8161
    %v8326 = vsel %vm8296, %v8277, %v8163
    %v8327 = vsel %vm8296, %v8278, %v8165
    %v8328 = vsel %vm8296, %v8279, %v8167
    %v8329 = vsel %vm8296, %v8280, %v8169
    %v8330 = vsel %vm8296, %v8281, %v8171
    %v8331 = vsel %vm8296, %v8282, %v8173
    %v8332 = vsel %vm8296, %v8283, %v8175
    %v8333 = vsel %vm8296, %v8284, %v8177
    %v8334 = vsel %vm8296, %v8285, %v8179
    %v8335 = vsel %vm8296, %v8286, %v8181
    %v8336 = vsel %vm8296, %v8287, %v8183
    %v8337 = vsel %vm8296, %v8288, %v8185
    %v8338 = vsel %vm8296, %v8289, %v8187
    %v8339 = vsel %vm8296, %v8290, %v8189
    %v8340 = vsel %vm8296, %v8291, %v8191
    %v8341 = vsel %vm8296, %v8292, %v8193
    %v8342 = vsel %vm8296, %v8293, %v8195
    %v8343 = vsel %vm8296, %v8294, %v8197
    %v8344 = vsel %vm8296, %v8295, %v8199
    %v8393 = vcombine.high %v8297, %v8297
    %v8394 = vcombine.high %v8299, %v8299
    %v8395 = vcombine.high %v8301, %v8301
    %v8396 = vcombine.high %v8303, %v8303
    %v8397 = vcombine.high %v8305, %v8305
    %v8398 = vcombine.high %v8307, %v8307
    %v8399 = vcombine.high %v8309, %v8309
    %v8400 = vcombine.high %v8311, %v8311
    %v8401 = vcombine.high %v8313, %v8313
    %v8402 = vcombine.high %v8315, %v8315
    %v8403 = vcombine.high %v8317, %v8317
    %v8404 = vcombine.high %v8319, %v8319
    %v8405 = vcombine.high %v8321, %v8321
    %v8406 = vcombine.high %v8323, %v8323
    %v8407 = vcombine.high %v8325, %v8325
    %v8408 = vcombine.high %v8327, %v8327
    %v8409 = vcombine.high %v8329, %v8329
    %v8410 = vcombine.high %v8331, %v8331
    %v8411 = vcombine.high %v8333, %v8333
    %v8412 = vcombine.high %v8335, %v8335
    %v8413 = vcombine.high %v8337, %v8337
    %v8414 = vcombine.high %v8339, %v8339
    %v8415 = vcombine.high %v8341, %v8341
    %v8416 = vcombine.high %v8343, %v8343
    %v8417 = vcombine.low %v5979, %v5987
    %v8418 = vcombine.low %v5986, %v5988
    %v8420 = vunpack.c.l.s4 1983009808
    %v8421 = vunpack.c.0.s8 %v8420
    %v8422 = vlaneseq
    %v8423 = vshrl.u32 %v8422, 7
    %v8424 = vsub.s32 %v8421, %v8423
    %v8425 = vrot.slane %v8417, %v8424
    %v8427 = vunpack.c.l.s4 1983009808
    %v8428 = vunpack.c.0.s8 %v8427
    %v8429 = vlaneseq
    %v8430 = vshrl.u32 %v8429, 7
    %v8431 = vsub.s32 %v8428, %v8430
    %v8432 = vrot.slane %v8418, %v8431
    %v8433 = vcombine.low %v8425, %v8432
    %v8434 = vcombine.low %v5996, %v6004
    %v8436 = vunpack.c.l.s4 1983009808
    %v8437 = vunpack.c.0.s8 %v8436
    %v8438 = vlaneseq
    %v8439 = vshrl.u32 %v8438, 7
    %v8440 = vsub.s32 %v8437, %v8439
    %v8441 = vrot.slane %v8434, %v8440
    %v8442 = vcombine.low %v6394, %v6396
    %v8443 = vcombine.low %v6404, %v6412
    %v8445 = vunpack.c.l.s4 1983009808
    %v8446 = vunpack.c.0.s8 %v8445
    %v8447 = vlaneseq
    %v8448 = vshrl.u32 %v8447, 7
    %v8449 = vsub.s32 %v8446, %v8448
    %v8450 = vrot.slane %v8442, %v8449
    %v8452 = vunpack.c.l.s4 1983009808
    %v8453 = vunpack.c.0.s8 %v8452
    %v8454 = vlaneseq
    %v8455 = vshrl.u32 %v8454, 7
    %v8456 = vsub.s32 %v8453, %v8455
    %v8457 = vrot.slane %v8443, %v8456
    %v8458 = vcombine.low %v8450, %v8457
    %v8459 = vcombine.low %v6411, %v6413
    %v8461 = vunpack.c.l.s4 1983009808
    %v8462 = vunpack.c.0.s8 %v8461
    %v8463 = vlaneseq
    %v8464 = vshrl.u32 %v8463, 7
    %v8465 = vsub.s32 %v8462, %v8464
    %v8466 = vrot.slane %v8459, %v8465
    %v8472 = vunpack.c.l.s4 1983009808
    %v8473 = vunpack.c.0.s8 %v8472
    %v8474 = vlaneseq
    %v8475 = vshrl.u32 %v8474, 7
    %v8476 = vsub.s32 %v8473, %v8475
    %v8477 = vrot.slane %v6003, %v8476
    %v8478 = vcombine.low %v8441, %v8477
    %v8480 = vunpack.c.l.s4 1983009808
    %v8481 = vunpack.c.0.s8 %v8480
    %v8482 = vlaneseq
    %v8483 = vshrl.u32 %v8482, 7
    %v8484 = vsub.s32 %v8481, %v8483
    %v8485 = vrot.slane %v6421, %v8484
    %v8486 = vcombine.low %v8466, %v8485
    %v8487 = vrot.slane %v8433, 1
    %v8488 = vrot.slane %v8478, 1
    %v8489 = vsel %vm153, %v8487, %v8488
    %v8490 = vrot.slane %v8458, 1
    %v8491 = vrot.slane %v8486, 1
    %v8492 = vsel %vm153, %v8490, %v8491
    %8493 = vrot.lane.b32.xlu0 %v8489, 8
    %v8494 = vpop.permute.xlu0 %8493
    %8495 = vrot.lane.b32.xlu0 %v8488, 8
    %v8496 = vpop.permute.xlu0 %8495
    %8497 = vrot.lane.b32.xlu0 %v8492, 8
    %v8498 = vpop.permute.xlu0 %8497
    %8499 = vrot.lane.b32.xlu0 %v8491, 8
    %v8500 = vpop.permute.xlu0 %8499
    %v8505 = vcombine.low %v5987, %v5986
    %v8506 = vcombine.low %v5988, %v5996
    %v8508 = vunpack.c.l.s4 1983009808
    %v8509 = vunpack.c.0.s8 %v8508
    %v8510 = vlaneseq
    %v8511 = vshrl.u32 %v8510, 7
    %v8512 = vsub.s32 %v8509, %v8511
    %v8513 = vrot.slane %v8505, %v8512
    %v8515 = vunpack.c.l.s4 1983009808
    %v8516 = vunpack.c.0.s8 %v8515
    %v8517 = vlaneseq
    %v8518 = vshrl.u32 %v8517, 7
    %v8519 = vsub.s32 %v8516, %v8518
    %v8520 = vrot.slane %v8506, %v8519
    %v8521 = vcombine.low %v8513, %v8520
    %v8522 = vcombine.low %v6004, %v6003
    %v8524 = vunpack.c.l.s4 1983009808
    %v8525 = vunpack.c.0.s8 %v8524
    %v8526 = vlaneseq
    %v8527 = vshrl.u32 %v8526, 7
    %v8528 = vsub.s32 %v8525, %v8527
    %v8529 = vrot.slane %v8522, %v8528
    %v8530 = vcombine.low %v6396, %v6404
    %v8531 = vcombine.low %v6412, %v6411
    %v8533 = vunpack.c.l.s4 1983009808
    %v8534 = vunpack.c.0.s8 %v8533
    %v8535 = vlaneseq
    %v8536 = vshrl.u32 %v8535, 7
    %v8537 = vsub.s32 %v8534, %v8536
    %v8538 = vrot.slane %v8530, %v8537
    %v8540 = vunpack.c.l.s4 1983009808
    %v8541 = vunpack.c.0.s8 %v8540
    %v8542 = vlaneseq
    %v8543 = vshrl.u32 %v8542, 7
    %v8544 = vsub.s32 %v8541, %v8543
    %v8545 = vrot.slane %v8531, %v8544
    %v8546 = vcombine.low %v8538, %v8545
    %v8547 = vcombine.low %v6413, %v6421
    %v8549 = vunpack.c.l.s4 1983009808
    %v8550 = vunpack.c.0.s8 %v8549
    %v8551 = vlaneseq
    %v8552 = vshrl.u32 %v8551, 7
    %v8553 = vsub.s32 %v8550, %v8552
    %v8554 = vrot.slane %v8547, %v8553
    %8555 = vrot.lane.b32.xlu0 %v8521, 16
    %v8556 = vpop.permute.xlu0 %8555
    %8557 = vrot.lane.b32.xlu0 %v8529, 16
    %v8558 = vpop.permute.xlu0 %8557
    %8559 = vrot.lane.b32.xlu0 %v8546, 16
    %v8560 = vpop.permute.xlu0 %8559
    %8561 = vrot.lane.b32.xlu0 %v8554, 16
    %v8562 = vpop.permute.xlu0 %8561
    %v8567 = vsel %vm716, %v8433, %v8494
    %v8568 = vsel %vm716, %v8441, %v8496
    %v8569 = vsel %vm716, %v8458, %v8498
    %v8570 = vsel %vm716, %v8466, %v8500
    %v8571 = vsel %vm8296, %v8567, %v8556
    %v8572 = vsel %vm8296, %v8568, %v8558
    %v8573 = vsel %vm8296, %v8569, %v8560
    %v8574 = vsel %vm8296, %v8570, %v8562
    %v8579 = vcombine.high %v8571, %v8571
    %v8580 = vcombine.high %v8573, %v8573
    %v8581 = vcombine.low %v8299, %v8394
    %v8582 = vcombine.low %v8300, %v8301
    %v8583 = vcombine.low %v8395, %v8302
    %v8584 = vcombine.low %v8303, %v8396
    %v8585 = vcombine.low %v8304, %v8305
    %v8586 = vcombine.low %v8397, %v8306
    %v8587 = vcombine.low %v8307, %v8398
    %v8588 = vcombine.low %v8308, %v8309
    %v8589 = vcombine.low %v8399, %v8310
    %v8590 = vcombine.low %v8311, %v8400
    %v8591 = vcombine.low %v8312, %v8313
    %v8592 = vcombine.low %v8401, %v8314
    %v8593 = vcombine.low %v8315, %v8402
    %v8594 = vcombine.low %v8316, %v8317
    %v8595 = vcombine.low %v8403, %v8318
    %v8596 = vcombine.low %v8319, %v8404
    %v8597 = vcombine.low %v8320, %v8571
    %v8598 = vcombine.low %v8579, %v8572
    %v8599 = vcombine.low %v8323, %v8406
    %v8600 = vcombine.low %v8324, %v8325
    %v8601 = vcombine.low %v8407, %v8326
    %v8602 = vcombine.low %v8327, %v8408
    %v8603 = vcombine.low %v8328, %v8329
    %v8604 = vcombine.low %v8409, %v8330
    %v8605 = vcombine.low %v8331, %v8410
    %v8606 = vcombine.low %v8332, %v8333
    %v8607 = vcombine.low %v8411, %v8334
    %v8608 = vcombine.low %v8335, %v8412
    %v8609 = vcombine.low %v8336, %v8337
    %v8610 = vcombine.low %v8413, %v8338
    %v8611 = vcombine.low %v8339, %v8414
    %v8612 = vcombine.low %v8340, %v8341
    %v8613 = vcombine.low %v8415, %v8342
    %v8614 = vcombine.low %v8343, %v8416
    %v8615 = vcombine.low %v8344, %v8573
    %v8616 = vcombine.low %v8580, %v8574
    %vm8617 = vcmask 195584
    %v8618 = vsel %vm8617, %v8581, 0
    %v8620 = vsel %vm8617, %v8582, 0
    %v8622 = vsel %vm8617, %v8583, 0
    %v8624 = vsel %vm8617, %v8584, 0
    %v8626 = vsel %vm8617, %v8585, 0
    %v8628 = vsel %vm8617, %v8586, 0
    %v8630 = vsel %vm8617, %v8587, 0
    %v8632 = vsel %vm8617, %v8588, 0
    %v8634 = vsel %vm8617, %v8589, 0
    %v8636 = vsel %vm8617, %v8590, 0
    %v8638 = vsel %vm8617, %v8591, 0
    %v8640 = vsel %vm8617, %v8592, 0
    %v8642 = vsel %vm8617, %v8593, 0
    %v8644 = vsel %vm8617, %v8594, 0
    %v8646 = vsel %vm8617, %v8595, 0
    %v8648 = vsel %vm8617, %v8596, 0
    %v8650 = vsel %vm8617, %v8597, 0
    %v8652 = vsel %vm8617, %v8598, 0
    %v8654 = vsel %vm8617, %v8599, 0
    %v8656 = vsel %vm8617, %v8600, 0
    %v8658 = vsel %vm8617, %v8601, 0
    %v8660 = vsel %vm8617, %v8602, 0
    %v8662 = vsel %vm8617, %v8603, 0
    %v8664 = vsel %vm8617, %v8604, 0
    %v8666 = vsel %vm8617, %v8605, 0
    %v8668 = vsel %vm8617, %v8606, 0
    %v8670 = vsel %vm8617, %v8607, 0
    %v8672 = vsel %vm8617, %v8608, 0
    %v8674 = vsel %vm8617, %v8609, 0
    %v8676 = vsel %vm8617, %v8610, 0
    %v8678 = vsel %vm8617, %v8611, 0
    %v8680 = vsel %vm8617, %v8612, 0
    %v8682 = vsel %vm8617, %v8613, 0
    %v8684 = vsel %vm8617, %v8614, 0
    %v8686 = vsel %vm8617, %v8615, 0
    %v8688 = vsel %vm8617, %v8616, 0
    %8690 = vmatprep.subr.mxu0 0.0
    %8691 = vmatpush1.msra.mxu0 0.0
    %8692 = vmatprep.subr.mxu0 0.0
    %8693 = vmatpush1.msra.mxu0 0.0
    %8694 = vmatprep.subr.mxu0 0.0
    %8695 = vmatpush1.msra.mxu0 0.0
    %8696 = vmatprep.subr.mxu0 0.0
    %8697 = vmatpush1.msra.mxu0 0.0
    %8698 = vmatprep.subr.mxu0 0.0
    %8699 = vmatpush1.msra.mxu0 0.0
    %8700 = vmatprep.subr.mxu0 0.0
    %8701 = vmatpush1.msra.mxu0 0.0
    %8702 = vmatprep.subr.mxu0 0.0
    %8703 = vmatpush1.msra.mxu0 0.0
    %8704 = vmatprep.subr.mxu0 0.0
    %8705 = vmatpush1.msra.mxu0 0.0
    %8706 = vmatprep.subr.mxu0 0.0
    %8707 = vmatpush1.msra.mxu0 0.0
    %8708 = vmatprep.subr.mxu0 0.0
    %8709 = vmatpush1.msra.mxu0 0.0
    %8710 = vmatprep.subr.mxu0 0.0
    %8711 = vmatpush1.msra.mxu0 0.0
    %8712 = vmatprep.subr.mxu0 0.0
    %8713 = vmatpush1.msra.mxu0 0.0
    %8714 = vmatprep.subr.mxu0 0.0
    %8715 = vmatpush1.msra.mxu0 0.0
    %8716 = vmatprep.subr.mxu0 0.0
    %8717 = vmatpush1.msra.mxu0 %v29
    %8718 = vmatprep.subr.mxu0 0.0
    %8719 = vmatpush1.msra.mxu0 %v28
    %8720 = vmatprep.subr.mxu0 0.0
    %8721 = vmatpush1.msra.mxu0 %v27
    %8722 = vmatprep.subr.mxu0 0.0
    %8723 = vmatpush2.msra.mxu0 0.0
    %8724 = vmatprep.subr.mxu0 0.0
    %8725 = vmatpush2.msra.mxu0 0.0
    %8726 = vmatprep.subr.mxu0 0.0
    %8727 = vmatpush2.msra.mxu0 0.0
    %8728 = vmatprep.subr.mxu0 0.0
    %8729 = vmatpush2.msra.mxu0 0.0
    %8730 = vmatprep.subr.mxu0 0.0
    %8731 = vmatpush2.msra.mxu0 0.0
    %8732 = vmatprep.subr.mxu0 0.0
    %8733 = vmatpush2.msra.mxu0 0.0
    %8734 = vmatprep.subr.mxu0 0.0
    %8735 = vmatpush2.msra.mxu0 0.0
    %8736 = vmatprep.subr.mxu0 0.0
    %8737 = vmatpush2.msra.mxu0 0.0
    %8738 = vmatprep.subr.mxu0 0.0
    %8739 = vmatpush2.msra.mxu0 0.0
    %8740 = vmatprep.subr.mxu0 0.0
    %8741 = vmatpush2.msra.mxu0 0.0
    %8742 = vmatprep.subr.mxu0 0.0
    %8743 = vmatpush2.msra.mxu0 0.0
    %8744 = vmatprep.subr.mxu0 0.0
    %8745 = vmatpush2.msra.mxu0 0.0
    %8746 = vmatprep.subr.mxu0 0.0
    %8747 = vmatpush2.msra.mxu0 0.0
    %8748 = vmatprep.subr.mxu0 0.0
    %8749 = vmatpush2.msra.mxu0 0.0
    %8750 = vmatprep.subr.mxu0 0.0
    %8751 = vmatpush2.msra.mxu0 0.0
    %8752 = vmatprep.subr.mxu0 0.0
    %8753 = vmatpush2.msra.mxu0 0.0
    %8754 = vmatprep.mubr.f32.mxu0 0.0
    %8755 = vmatmul.mubr.f32.gmra.mxu0 %v8618
    %v8756 = vpop.f32.mrf.mxu0
    %v8757 = vadd.f32 0.0, %v8756
    %v8758 = vpop.f32.mrf.mxu0
    %8759 = vmatprep.mubr.f32.mxu0 0.0
    %8760 = vmatmul.mubr.f32.gmra.mxu0 %v8620
    %v8761 = vpop.f32.mrf.mxu0
    %v8762 = vadd.f32 0.0, %v8761
    %v8763 = vpop.f32.mrf.mxu0
    %8764 = vmatprep.mubr.f32.mxu0 0.0
    %8765 = vmatmul.mubr.f32.gmra.mxu0 %v8622
    %v8766 = vpop.f32.mrf.mxu0
    %v8767 = vadd.f32 0.0, %v8766
    %v8768 = vpop.f32.mrf.mxu0
    %8769 = vmatprep.mubr.f32.mxu0 0.0
    %8770 = vmatmul.mubr.f32.gmra.mxu0 %v8624
    %v8771 = vpop.f32.mrf.mxu0
    %v8772 = vadd.f32 0.0, %v8771
    %v8773 = vpop.f32.mrf.mxu0
    %8774 = vmatprep.mubr.f32.mxu0 0.0
    %8775 = vmatmul.mubr.f32.gmra.mxu0 %v8626
    %v8776 = vpop.f32.mrf.mxu0
    %v8777 = vadd.f32 0.0, %v8776
    %v8778 = vpop.f32.mrf.mxu0
    %8779 = vmatprep.mubr.f32.mxu0 0.0
    %8780 = vmatmul.mubr.f32.gmra.mxu0 %v8628
    %v8781 = vpop.f32.mrf.mxu0
    %v8782 = vadd.f32 0.0, %v8781
    %v8783 = vpop.f32.mrf.mxu0
    %8784 = vmatprep.mubr.f32.mxu0 0.0
    %8785 = vmatmul.mubr.f32.gmra.mxu0 %v8630
    %v8786 = vpop.f32.mrf.mxu0
    %v8787 = vadd.f32 0.0, %v8786
    %v8788 = vpop.f32.mrf.mxu0
    %8789 = vmatprep.mubr.f32.mxu0 0.0
    %8790 = vmatmul.mubr.f32.gmra.mxu0 %v8632
    %v8791 = vpop.f32.mrf.mxu0
    %v8792 = vadd.f32 0.0, %v8791
    %v8793 = vpop.f32.mrf.mxu0
    %8794 = vmatprep.mubr.f32.mxu0 0.0
    %8795 = vmatmul.mubr.f32.gmra.mxu0 %v8634
    %v8796 = vpop.f32.mrf.mxu0
    %v8797 = vadd.f32 0.0, %v8796
    %v8798 = vpop.f32.mrf.mxu0
    %8799 = vmatprep.mubr.f32.mxu0 0.0
    %8800 = vmatmul.mubr.f32.gmra.mxu0 %v8636
    %v8801 = vpop.f32.mrf.mxu0
    %v8802 = vadd.f32 0.0, %v8801
    %v8803 = vpop.f32.mrf.mxu0
    %8804 = vmatprep.mubr.f32.mxu0 0.0
    %8805 = vmatmul.mubr.f32.gmra.mxu0 %v8638
    %v8806 = vpop.f32.mrf.mxu0
    %v8807 = vadd.f32 0.0, %v8806
    %v8808 = vpop.f32.mrf.mxu0
    %8809 = vmatprep.mubr.f32.mxu0 0.0
    %8810 = vmatmul.mubr.f32.gmra.mxu0 %v8640
    %v8811 = vpop.f32.mrf.mxu0
    %v8812 = vadd.f32 0.0, %v8811
    %v8813 = vpop.f32.mrf.mxu0
    %8814 = vmatprep.mubr.f32.mxu0 0.0
    %8815 = vmatmul.mubr.f32.gmra.mxu0 %v8642
    %v8816 = vpop.f32.mrf.mxu0
    %v8817 = vadd.f32 0.0, %v8816
    %v8818 = vpop.f32.mrf.mxu0
    %8819 = vmatprep.mubr.f32.mxu0 0.0
    %8820 = vmatmul.mubr.f32.gmra.mxu0 %v8644
    %v8821 = vpop.f32.mrf.mxu0
    %v8822 = vadd.f32 0.0, %v8821
    %v8823 = vpop.f32.mrf.mxu0
    %8824 = vmatprep.mubr.f32.mxu0 0.0
    %8825 = vmatmul.mubr.f32.gmra.mxu0 %v8646
    %v8826 = vpop.f32.mrf.mxu0
    %v8827 = vadd.f32 0.0, %v8826
    %v8828 = vpop.f32.mrf.mxu0
    %8829 = vmatprep.mubr.f32.mxu0 0.0
    %8830 = vmatmul.mubr.f32.gmra.mxu0 %v8648
    %v8831 = vpop.f32.mrf.mxu0
    %v8832 = vadd.f32 0.0, %v8831
    %v8833 = vpop.f32.mrf.mxu0
    %8834 = vmatprep.mubr.f32.mxu0 0.0
    %8835 = vmatmul.mubr.f32.gmra.mxu0 %v8650
    %v8836 = vpop.f32.mrf.mxu0
    %v8837 = vadd.f32 0.0, %v8836
    %v8838 = vpop.f32.mrf.mxu0
    %8839 = vmatprep.mubr.f32.mxu0 0.0
    %8840 = vmatmul.mubr.f32.gmra.mxu0 %v8652
    %v8841 = vpop.f32.mrf.mxu0
    %v8842 = vadd.f32 0.0, %v8841
    %v8843 = vpop.f32.mrf.mxu0
    %8844 = vmatprep.mubr.f32.mxu0 0.0
    %8845 = vmatmul.mubr.f32.gmra.mxu0 %v8654
    %v8846 = vpop.f32.mrf.mxu0
    %v8847 = vadd.f32 0.0, %v8846
    %v8848 = vpop.f32.mrf.mxu0
    %8849 = vmatprep.mubr.f32.mxu0 0.0
    %8850 = vmatmul.mubr.f32.gmra.mxu0 %v8656
    %v8851 = vpop.f32.mrf.mxu0
    %v8852 = vadd.f32 0.0, %v8851
    %v8853 = vpop.f32.mrf.mxu0
    %8854 = vmatprep.mubr.f32.mxu0 0.0
    %8855 = vmatmul.mubr.f32.gmra.mxu0 %v8658
    %v8856 = vpop.f32.mrf.mxu0
    %v8857 = vadd.f32 0.0, %v8856
    %v8858 = vpop.f32.mrf.mxu0
    %8859 = vmatprep.mubr.f32.mxu0 0.0
    %8860 = vmatmul.mubr.f32.gmra.mxu0 %v8660
    %v8861 = vpop.f32.mrf.mxu0
    %v8862 = vadd.f32 0.0, %v8861
    %v8863 = vpop.f32.mrf.mxu0
    %8864 = vmatprep.mubr.f32.mxu0 0.0
    %8865 = vmatmul.mubr.f32.gmra.mxu0 %v8662
    %v8866 = vpop.f32.mrf.mxu0
    %v8867 = vadd.f32 0.0, %v8866
    %v8868 = vpop.f32.mrf.mxu0
    %8869 = vmatprep.mubr.f32.mxu0 0.0
    %8870 = vmatmul.mubr.f32.gmra.mxu0 %v8664
    %v8871 = vpop.f32.mrf.mxu0
    %v8872 = vadd.f32 0.0, %v8871
    %v8873 = vpop.f32.mrf.mxu0
    %8874 = vmatprep.mubr.f32.mxu0 0.0
    %8875 = vmatmul.mubr.f32.gmra.mxu0 %v8666
    %v8876 = vpop.f32.mrf.mxu0
    %v8877 = vadd.f32 0.0, %v8876
    %v8878 = vpop.f32.mrf.mxu0
    %8879 = vmatprep.mubr.f32.mxu0 0.0
    %8880 = vmatmul.mubr.f32.gmra.mxu0 %v8668
    %v8881 = vpop.f32.mrf.mxu0
    %v8882 = vadd.f32 0.0, %v8881
    %v8883 = vpop.f32.mrf.mxu0
    %8884 = vmatprep.mubr.f32.mxu0 0.0
    %8885 = vmatmul.mubr.f32.gmra.mxu0 %v8670
    %v8886 = vpop.f32.mrf.mxu0
    %v8887 = vadd.f32 0.0, %v8886
    %v8888 = vpop.f32.mrf.mxu0
    %8889 = vmatprep.mubr.f32.mxu0 0.0
    %8890 = vmatmul.mubr.f32.gmra.mxu0 %v8672
    %v8891 = vpop.f32.mrf.mxu0
    %v8892 = vadd.f32 0.0, %v8891
    %v8893 = vpop.f32.mrf.mxu0
    %8894 = vmatprep.mubr.f32.mxu0 0.0
    %8895 = vmatmul.mubr.f32.gmra.mxu0 %v8674
    %v8896 = vpop.f32.mrf.mxu0
    %v8897 = vadd.f32 0.0, %v8896
    %v8898 = vpop.f32.mrf.mxu0
    %8899 = vmatprep.mubr.f32.mxu0 0.0
    %8900 = vmatmul.mubr.f32.gmra.mxu0 %v8676
    %v8901 = vpop.f32.mrf.mxu0
    %v8902 = vadd.f32 0.0, %v8901
    %v8903 = vpop.f32.mrf.mxu0
    %8904 = vmatprep.mubr.f32.mxu0 0.0
    %8905 = vmatmul.mubr.f32.gmra.mxu0 %v8678
    %v8906 = vpop.f32.mrf.mxu0
    %v8907 = vadd.f32 0.0, %v8906
    %v8908 = vpop.f32.mrf.mxu0
    %8909 = vmatprep.mubr.f32.mxu0 0.0
    %8910 = vmatmul.mubr.f32.gmra.mxu0 %v8680
    %v8911 = vpop.f32.mrf.mxu0
    %v8912 = vadd.f32 0.0, %v8911
    %v8913 = vpop.f32.mrf.mxu0
    %8914 = vmatprep.mubr.f32.mxu0 0.0
    %8915 = vmatmul.mubr.f32.gmra.mxu0 %v8682
    %v8916 = vpop.f32.mrf.mxu0
    %v8917 = vadd.f32 0.0, %v8916
    %v8918 = vpop.f32.mrf.mxu0
    %8919 = vmatprep.mubr.f32.mxu0 0.0
    %8920 = vmatmul.mubr.f32.gmra.mxu0 %v8684
    %v8921 = vpop.f32.mrf.mxu0
    %v8922 = vadd.f32 0.0, %v8921
    %v8923 = vpop.f32.mrf.mxu0
    %8924 = vmatprep.mubr.f32.mxu0 0.0
    %8925 = vmatmul.mubr.f32.gmra.mxu0 %v8686
    %v8926 = vpop.f32.mrf.mxu0
    %v8927 = vadd.f32 0.0, %v8926
    %v8928 = vpop.f32.mrf.mxu0
    %8929 = vmatprep.mubr.f32.mxu0 0.0
    %8930 = vmatmul.mubr.f32.gmra.mxu0 %v8688
    %v8931 = vpop.f32.mrf.mxu0
    %v8932 = vadd.f32 0.0, %v8931
    %v8933 = vpop.f32.mrf.mxu0
    %8934 = vdwg.mxu0
    %v8935 = vcombine.low %v8297, %v8393
    %v8936 = vcombine.low %v8298, %v8299
    %v8937 = vcombine.low %v8394, %v8300
    %v8938 = vcombine.low %v8301, %v8395
    %v8939 = vcombine.low %v8302, %v8303
    %v8940 = vcombine.low %v8396, %v8304
    %v8941 = vcombine.low %v8305, %v8397
    %v8942 = vcombine.low %v8306, %v8307
    %v8943 = vcombine.low %v8398, %v8308
    %v8944 = vcombine.low %v8309, %v8399
    %v8945 = vcombine.low %v8310, %v8311
    %v8946 = vcombine.low %v8400, %v8312
    %v8947 = vcombine.low %v8313, %v8401
    %v8948 = vcombine.low %v8314, %v8315
    %v8949 = vcombine.low %v8402, %v8316
    %v8950 = vcombine.low %v8317, %v8403
    %v8951 = vcombine.low %v8318, %v8319
    %v8952 = vcombine.low %v8404, %v8320
    %v8953 = vcombine.low %v8321, %v8405
    %v8954 = vcombine.low %v8322, %v8323
    %v8955 = vcombine.low %v8406, %v8324
    %v8956 = vcombine.low %v8325, %v8407
    %v8957 = vcombine.low %v8326, %v8327
    %v8958 = vcombine.low %v8408, %v8328
    %v8959 = vcombine.low %v8329, %v8409
    %v8960 = vcombine.low %v8330, %v8331
    %v8961 = vcombine.low %v8410, %v8332
    %v8962 = vcombine.low %v8333, %v8411
    %v8963 = vcombine.low %v8334, %v8335
    %v8964 = vcombine.low %v8412, %v8336
    %v8965 = vcombine.low %v8337, %v8413
    %v8966 = vcombine.low %v8338, %v8339
    %v8967 = vcombine.low %v8414, %v8340
    %v8968 = vcombine.low %v8341, %v8415
    %v8969 = vcombine.low %v8342, %v8343
    %v8970 = vcombine.low %v8416, %v8344
    %v8971 = vsel %vm8617, %v8935, 0
    %v8973 = vsel %vm8617, %v8936, 0
    %v8975 = vsel %vm8617, %v8937, 0
    %v8977 = vsel %vm8617, %v8938, 0
    %v8979 = vsel %vm8617, %v8939, 0
    %v8981 = vsel %vm8617, %v8940, 0
    %v8983 = vsel %vm8617, %v8941, 0
    %v8985 = vsel %vm8617, %v8942, 0
    %v8987 = vsel %vm8617, %v8943, 0
    %v8989 = vsel %vm8617, %v8944, 0
    %v8991 = vsel %vm8617, %v8945, 0
    %v8993 = vsel %vm8617, %v8946, 0
    %v8995 = vsel %vm8617, %v8947, 0
    %v8997 = vsel %vm8617, %v8948, 0
    %v8999 = vsel %vm8617, %v8949, 0
    %v9001 = vsel %vm8617, %v8950, 0
    %v9003 = vsel %vm8617, %v8951, 0
    %v9005 = vsel %vm8617, %v8952, 0
    %v9007 = vsel %vm8617, %v8953, 0
    %v9009 = vsel %vm8617, %v8954, 0
    %v9011 = vsel %vm8617, %v8955, 0
    %v9013 = vsel %vm8617, %v8956, 0
    %v9015 = vsel %vm8617, %v8957, 0
    %v9017 = vsel %vm8617, %v8958, 0
    %v9019 = vsel %vm8617, %v8959, 0
    %v9021 = vsel %vm8617, %v8960, 0
    %v9023 = vsel %vm8617, %v8961, 0
    %v9025 = vsel %vm8617, %v8962, 0
    %v9027 = vsel %vm8617, %v8963, 0
    %v9029 = vsel %vm8617, %v8964, 0
    %v9031 = vsel %vm8617, %v8965, 0
    %v9033 = vsel %vm8617, %v8966, 0
    %v9035 = vsel %vm8617, %v8967, 0
    %v9037 = vsel %vm8617, %v8968, 0
    %v9039 = vsel %vm8617, %v8969, 0
    %v9041 = vsel %vm8617, %v8970, 0
    %9043 = vmatprep.subr.mxu0 0.0
    %9044 = vmatpush1.msra.mxu0 0.0
    %9045 = vmatprep.subr.mxu0 0.0
    %9046 = vmatpush1.msra.mxu0 0.0
    %9047 = vmatprep.subr.mxu0 0.0
    %9048 = vmatpush1.msra.mxu0 0.0
    %9049 = vmatprep.subr.mxu0 0.0
    %9050 = vmatpush1.msra.mxu0 0.0
    %9051 = vmatprep.subr.mxu0 0.0
    %9052 = vmatpush1.msra.mxu0 0.0
    %9053 = vmatprep.subr.mxu0 0.0
    %9054 = vmatpush1.msra.mxu0 0.0
    %9055 = vmatprep.subr.mxu0 0.0
    %9056 = vmatpush1.msra.mxu0 0.0
    %9057 = vmatprep.subr.mxu0 0.0
    %9058 = vmatpush1.msra.mxu0 0.0
    %9059 = vmatprep.subr.mxu0 0.0
    %9060 = vmatpush1.msra.mxu0 0.0
    %9061 = vmatprep.subr.mxu0 0.0
    %9062 = vmatpush1.msra.mxu0 0.0
    %9063 = vmatprep.subr.mxu0 0.0
    %9064 = vmatpush1.msra.mxu0 0.0
    %9065 = vmatprep.subr.mxu0 0.0
    %9066 = vmatpush1.msra.mxu0 0.0
    %9067 = vmatprep.subr.mxu0 0.0
    %9068 = vmatpush1.msra.mxu0 0.0
    %9069 = vmatprep.subr.mxu0 0.0
    %9070 = vmatpush1.msra.mxu0 %v26
    %9071 = vmatprep.subr.mxu0 0.0
    %9072 = vmatpush1.msra.mxu0 %v25
    %9073 = vmatprep.subr.mxu0 0.0
    %9074 = vmatpush1.msra.mxu0 %v24
    %9075 = vmatprep.subr.mxu0 0.0
    %9076 = vmatpush2.msra.mxu0 0.0
    %9077 = vmatprep.subr.mxu0 0.0
    %9078 = vmatpush2.msra.mxu0 0.0
    %9079 = vmatprep.subr.mxu0 0.0
    %9080 = vmatpush2.msra.mxu0 0.0
    %9081 = vmatprep.subr.mxu0 0.0
    %9082 = vmatpush2.msra.mxu0 0.0
    %9083 = vmatprep.subr.mxu0 0.0
    %9084 = vmatpush2.msra.mxu0 0.0
    %9085 = vmatprep.subr.mxu0 0.0
    %9086 = vmatpush2.msra.mxu0 0.0
    %9087 = vmatprep.subr.mxu0 0.0
    %9088 = vmatpush2.msra.mxu0 0.0
    %9089 = vmatprep.subr.mxu0 0.0
    %9090 = vmatpush2.msra.mxu0 0.0
    %9091 = vmatprep.subr.mxu0 0.0
    %9092 = vmatpush2.msra.mxu0 0.0
    %9093 = vmatprep.subr.mxu0 0.0
    %9094 = vmatpush2.msra.mxu0 0.0
    %9095 = vmatprep.subr.mxu0 0.0
    %9096 = vmatpush2.msra.mxu0 0.0
    %9097 = vmatprep.subr.mxu0 0.0
    %9098 = vmatpush2.msra.mxu0 0.0
    %9099 = vmatprep.subr.mxu0 0.0
    %9100 = vmatpush2.msra.mxu0 0.0
    %9101 = vmatprep.subr.mxu0 0.0
    %9102 = vmatpush2.msra.mxu0 0.0
    %9103 = vmatprep.subr.mxu0 0.0
    %9104 = vmatpush2.msra.mxu0 0.0
    %9105 = vmatprep.subr.mxu0 0.0
    %9106 = vmatpush2.msra.mxu0 0.0
    %9107 = vmatprep.mubr.f32.mxu0 0.0
    %9108 = vmatmul.mubr.f32.gmra.mxu0 %v8971
    %v9109 = vpop.f32.mrf.mxu0
    %v9110 = vadd.f32 %v8757, %v9109
    %v9111 = vpop.f32.mrf.mxu0
    %9112 = vmatprep.mubr.f32.mxu0 0.0
    %9113 = vmatmul.mubr.f32.gmra.mxu0 %v8973
    %v9114 = vpop.f32.mrf.mxu0
    %v9115 = vadd.f32 %v8762, %v9114
    %v9116 = vpop.f32.mrf.mxu0
    %9117 = vmatprep.mubr.f32.mxu0 0.0
    %9118 = vmatmul.mubr.f32.gmra.mxu0 %v8975
    %v9119 = vpop.f32.mrf.mxu0
    %v9120 = vadd.f32 %v8767, %v9119
    %v9121 = vpop.f32.mrf.mxu0
    %9122 = vmatprep.mubr.f32.mxu0 0.0
    %9123 = vmatmul.mubr.f32.gmra.mxu0 %v8977
    %v9124 = vpop.f32.mrf.mxu0
    %v9125 = vadd.f32 %v8772, %v9124
    %v9126 = vpop.f32.mrf.mxu0
    %9127 = vmatprep.mubr.f32.mxu0 0.0
    %9128 = vmatmul.mubr.f32.gmra.mxu0 %v8979
    %v9129 = vpop.f32.mrf.mxu0
    %v9130 = vadd.f32 %v8777, %v9129
    %v9131 = vpop.f32.mrf.mxu0
    %9132 = vmatprep.mubr.f32.mxu0 0.0
    %9133 = vmatmul.mubr.f32.gmra.mxu0 %v8981
    %v9134 = vpop.f32.mrf.mxu0
    %v9135 = vadd.f32 %v8782, %v9134
    %v9136 = vpop.f32.mrf.mxu0
    %9137 = vmatprep.mubr.f32.mxu0 0.0
    %9138 = vmatmul.mubr.f32.gmra.mxu0 %v8983
    %v9139 = vpop.f32.mrf.mxu0
    %v9140 = vadd.f32 %v8787, %v9139
    %v9141 = vpop.f32.mrf.mxu0
    %9142 = vmatprep.mubr.f32.mxu0 0.0
    %9143 = vmatmul.mubr.f32.gmra.mxu0 %v8985
    %v9144 = vpop.f32.mrf.mxu0
    %v9145 = vadd.f32 %v8792, %v9144
    %v9146 = vpop.f32.mrf.mxu0
    %9147 = vmatprep.mubr.f32.mxu0 0.0
    %9148 = vmatmul.mubr.f32.gmra.mxu0 %v8987
    %v9149 = vpop.f32.mrf.mxu0
    %v9150 = vadd.f32 %v8797, %v9149
    %v9151 = vpop.f32.mrf.mxu0
    %9152 = vmatprep.mubr.f32.mxu0 0.0
    %9153 = vmatmul.mubr.f32.gmra.mxu0 %v8989
    %v9154 = vpop.f32.mrf.mxu0
    %v9155 = vadd.f32 %v8802, %v9154
    %v9156 = vpop.f32.mrf.mxu0
    %9157 = vmatprep.mubr.f32.mxu0 0.0
    %9158 = vmatmul.mubr.f32.gmra.mxu0 %v8991
    %v9159 = vpop.f32.mrf.mxu0
    %v9160 = vadd.f32 %v8807, %v9159
    %v9161 = vpop.f32.mrf.mxu0
    %9162 = vmatprep.mubr.f32.mxu0 0.0
    %9163 = vmatmul.mubr.f32.gmra.mxu0 %v8993
    %v9164 = vpop.f32.mrf.mxu0
    %v9165 = vadd.f32 %v8812, %v9164
    %v9166 = vpop.f32.mrf.mxu0
    %9167 = vmatprep.mubr.f32.mxu0 0.0
    %9168 = vmatmul.mubr.f32.gmra.mxu0 %v8995
    %v9169 = vpop.f32.mrf.mxu0
    %v9170 = vadd.f32 %v8817, %v9169
    %v9171 = vpop.f32.mrf.mxu0
    %9172 = vmatprep.mubr.f32.mxu0 0.0
    %9173 = vmatmul.mubr.f32.gmra.mxu0 %v8997
    %v9174 = vpop.f32.mrf.mxu0
    %v9175 = vadd.f32 %v8822, %v9174
    %v9176 = vpop.f32.mrf.mxu0
    %9177 = vmatprep.mubr.f32.mxu0 0.0
    %9178 = vmatmul.mubr.f32.gmra.mxu0 %v8999
    %v9179 = vpop.f32.mrf.mxu0
    %v9180 = vadd.f32 %v8827, %v9179
    %v9181 = vpop.f32.mrf.mxu0
    %9182 = vmatprep.mubr.f32.mxu0 0.0
    %9183 = vmatmul.mubr.f32.gmra.mxu0 %v9001
    %v9184 = vpop.f32.mrf.mxu0
    %v9185 = vadd.f32 %v8832, %v9184
    %v9186 = vpop.f32.mrf.mxu0
    %9187 = vmatprep.mubr.f32.mxu0 0.0
    %9188 = vmatmul.mubr.f32.gmra.mxu0 %v9003
    %v9189 = vpop.f32.mrf.mxu0
    %v9190 = vadd.f32 %v8837, %v9189
    %v9191 = vpop.f32.mrf.mxu0
    %9192 = vmatprep.mubr.f32.mxu0 0.0
    %9193 = vmatmul.mubr.f32.gmra.mxu0 %v9005
    %v9194 = vpop.f32.mrf.mxu0
    %v9195 = vadd.f32 %v8842, %v9194
    %v9196 = vpop.f32.mrf.mxu0
    %9197 = vmatprep.mubr.f32.mxu0 0.0
    %9198 = vmatmul.mubr.f32.gmra.mxu0 %v9007
    %v9199 = vpop.f32.mrf.mxu0
    %v9200 = vadd.f32 %v8847, %v9199
    %v9201 = vpop.f32.mrf.mxu0
    %9202 = vmatprep.mubr.f32.mxu0 0.0
    %9203 = vmatmul.mubr.f32.gmra.mxu0 %v9009
    %v9204 = vpop.f32.mrf.mxu0
    %v9205 = vadd.f32 %v8852, %v9204
    %v9206 = vpop.f32.mrf.mxu0
    %9207 = vmatprep.mubr.f32.mxu0 0.0
    %9208 = vmatmul.mubr.f32.gmra.mxu0 %v9011
    %v9209 = vpop.f32.mrf.mxu0
    %v9210 = vadd.f32 %v8857, %v9209
    %v9211 = vpop.f32.mrf.mxu0
    %9212 = vmatprep.mubr.f32.mxu0 0.0
    %9213 = vmatmul.mubr.f32.gmra.mxu0 %v9013
    %v9214 = vpop.f32.mrf.mxu0
    %v9215 = vadd.f32 %v8862, %v9214
    %v9216 = vpop.f32.mrf.mxu0
    %9217 = vmatprep.mubr.f32.mxu0 0.0
    %9218 = vmatmul.mubr.f32.gmra.mxu0 %v9015
    %v9219 = vpop.f32.mrf.mxu0
    %v9220 = vadd.f32 %v8867, %v9219
    %v9221 = vpop.f32.mrf.mxu0
    %9222 = vmatprep.mubr.f32.mxu0 0.0
    %9223 = vmatmul.mubr.f32.gmra.mxu0 %v9017
    %v9224 = vpop.f32.mrf.mxu0
    %v9225 = vadd.f32 %v8872, %v9224
    %v9226 = vpop.f32.mrf.mxu0
    %9227 = vmatprep.mubr.f32.mxu0 0.0
    %9228 = vmatmul.mubr.f32.gmra.mxu0 %v9019
    %v9229 = vpop.f32.mrf.mxu0
    %v9230 = vadd.f32 %v8877, %v9229
    %v9231 = vpop.f32.mrf.mxu0
    %9232 = vmatprep.mubr.f32.mxu0 0.0
    %9233 = vmatmul.mubr.f32.gmra.mxu0 %v9021
    %v9234 = vpop.f32.mrf.mxu0
    %v9235 = vadd.f32 %v8882, %v9234
    %v9236 = vpop.f32.mrf.mxu0
    %9237 = vmatprep.mubr.f32.mxu0 0.0
    %9238 = vmatmul.mubr.f32.gmra.mxu0 %v9023
    %v9239 = vpop.f32.mrf.mxu0
    %v9240 = vadd.f32 %v8887, %v9239
    %v9241 = vpop.f32.mrf.mxu0
    %9242 = vmatprep.mubr.f32.mxu0 0.0
    %9243 = vmatmul.mubr.f32.gmra.mxu0 %v9025
    %v9244 = vpop.f32.mrf.mxu0
    %v9245 = vadd.f32 %v8892, %v9244
    %v9246 = vpop.f32.mrf.mxu0
    %9247 = vmatprep.mubr.f32.mxu0 0.0
    %9248 = vmatmul.mubr.f32.gmra.mxu0 %v9027
    %v9249 = vpop.f32.mrf.mxu0
    %v9250 = vadd.f32 %v8897, %v9249
    %v9251 = vpop.f32.mrf.mxu0
    %9252 = vmatprep.mubr.f32.mxu0 0.0
    %9253 = vmatmul.mubr.f32.gmra.mxu0 %v9029
    %v9254 = vpop.f32.mrf.mxu0
    %v9255 = vadd.f32 %v8902, %v9254
    %v9256 = vpop.f32.mrf.mxu0
    %9257 = vmatprep.mubr.f32.mxu0 0.0
    %9258 = vmatmul.mubr.f32.gmra.mxu0 %v9031
    %v9259 = vpop.f32.mrf.mxu0
    %v9260 = vadd.f32 %v8907, %v9259
    %v9261 = vpop.f32.mrf.mxu0
    %9262 = vmatprep.mubr.f32.mxu0 0.0
    %9263 = vmatmul.mubr.f32.gmra.mxu0 %v9033
    %v9264 = vpop.f32.mrf.mxu0
    %v9265 = vadd.f32 %v8912, %v9264
    %v9266 = vpop.f32.mrf.mxu0
    %9267 = vmatprep.mubr.f32.mxu0 0.0
    %9268 = vmatmul.mubr.f32.gmra.mxu0 %v9035
    %v9269 = vpop.f32.mrf.mxu0
    %v9270 = vadd.f32 %v8917, %v9269
    %v9271 = vpop.f32.mrf.mxu0
    %9272 = vmatprep.mubr.f32.mxu0 0.0
    %9273 = vmatmul.mubr.f32.gmra.mxu0 %v9037
    %v9274 = vpop.f32.mrf.mxu0
    %v9275 = vadd.f32 %v8922, %v9274
    %v9276 = vpop.f32.mrf.mxu0
    %9277 = vmatprep.mubr.f32.mxu0 0.0
    %9278 = vmatmul.mubr.f32.gmra.mxu0 %v9039
    %v9279 = vpop.f32.mrf.mxu0
    %v9280 = vadd.f32 %v8927, %v9279
    %v9281 = vpop.f32.mrf.mxu0
    %9282 = vmatprep.mubr.f32.mxu0 0.0
    %9283 = vmatmul.mubr.f32.gmra.mxu0 %v9041
    %v9284 = vpop.f32.mrf.mxu0
    %v9285 = vadd.f32 %v8932, %v9284
    %v9286 = vpop.f32.mrf.mxu0
    %9287 = vdwg.mxu0
    %v9288 = vcombine.low %v6005, %v6013
    %v9289 = vcombine.low %v6021, %v6020
    %v9291 = vunpack.c.l.s4 1983009808
    %v9292 = vunpack.c.0.s8 %v9291
    %v9293 = vlaneseq
    %v9294 = vshrl.u32 %v9293, 7
    %v9295 = vsub.s32 %v9292, %v9294
    %v9296 = vrot.slane %v9288, %v9295
    %v9298 = vunpack.c.l.s4 1983009808
    %v9299 = vunpack.c.0.s8 %v9298
    %v9300 = vlaneseq
    %v9301 = vshrl.u32 %v9300, 7
    %v9302 = vsub.s32 %v9299, %v9301
    %v9303 = vrot.slane %v9289, %v9302
    %v9304 = vcombine.low %v9296, %v9303
    %v9305 = vcombine.low %v6022, %v6030
    %v9307 = vunpack.c.l.s4 1983009808
    %v9308 = vunpack.c.0.s8 %v9307
    %v9309 = vlaneseq
    %v9310 = vshrl.u32 %v9309, 7
    %v9311 = vsub.s32 %v9308, %v9310
    %v9312 = vrot.slane %v9305, %v9311
    %v9313 = vcombine.low %v6429, %v6428
    %v9314 = vcombine.low %v6430, %v6438
    %v9316 = vunpack.c.l.s4 1983009808
    %v9317 = vunpack.c.0.s8 %v9316
    %v9318 = vlaneseq
    %v9319 = vshrl.u32 %v9318, 7
    %v9320 = vsub.s32 %v9317, %v9319
    %v9321 = vrot.slane %v9313, %v9320
    %v9323 = vunpack.c.l.s4 1983009808
    %v9324 = vunpack.c.0.s8 %v9323
    %v9325 = vlaneseq
    %v9326 = vshrl.u32 %v9325, 7
    %v9327 = vsub.s32 %v9324, %v9326
    %v9328 = vrot.slane %v9314, %v9327
    %v9329 = vcombine.low %v9321, %v9328
    %v9330 = vcombine.low %v6446, %v6445
    %v9332 = vunpack.c.l.s4 1983009808
    %v9333 = vunpack.c.0.s8 %v9332
    %v9334 = vlaneseq
    %v9335 = vshrl.u32 %v9334, 7
    %v9336 = vsub.s32 %v9333, %v9335
    %v9337 = vrot.slane %v9330, %v9336
    %v9343 = vunpack.c.l.s4 1983009808
    %v9344 = vunpack.c.0.s8 %v9343
    %v9345 = vlaneseq
    %v9346 = vshrl.u32 %v9345, 7
    %v9347 = vsub.s32 %v9344, %v9346
    %v9348 = vrot.slane %v6038, %v9347
    %v9349 = vcombine.low %v9312, %v9348
    %v9351 = vunpack.c.l.s4 1983009808
    %v9352 = vunpack.c.0.s8 %v9351
    %v9353 = vlaneseq
    %v9354 = vshrl.u32 %v9353, 7
    %v9355 = vsub.s32 %v9352, %v9354
    %v9356 = vrot.slane %v6447, %v9355
    %v9357 = vcombine.low %v9337, %v9356
    %v9358 = vrot.slane %v9304, 1
    %v9359 = vrot.slane %v9349, 1
    %v9360 = vsel %vm153, %v9358, %v9359
    %v9361 = vrot.slane %v9329, 1
    %v9362 = vrot.slane %v9357, 1
    %v9363 = vsel %vm153, %v9361, %v9362
    %9364 = vrot.lane.b32.xlu0 %v9360, 8
    %v9365 = vpop.permute.xlu0 %9364
    %9366 = vrot.lane.b32.xlu0 %v9359, 8
    %v9367 = vpop.permute.xlu0 %9366
    %9368 = vrot.lane.b32.xlu0 %v9363, 8
    %v9369 = vpop.permute.xlu0 %9368
    %9370 = vrot.lane.b32.xlu0 %v9362, 8
    %v9371 = vpop.permute.xlu0 %9370
    %v9376 = vcombine.low %v6013, %v6021
    %v9377 = vcombine.low %v6020, %v6022
    %v9379 = vunpack.c.l.s4 1983009808
    %v9380 = vunpack.c.0.s8 %v9379
    %v9381 = vlaneseq
    %v9382 = vshrl.u32 %v9381, 7
    %v9383 = vsub.s32 %v9380, %v9382
    %v9384 = vrot.slane %v9376, %v9383
    %v9386 = vunpack.c.l.s4 1983009808
    %v9387 = vunpack.c.0.s8 %v9386
    %v9388 = vlaneseq
    %v9389 = vshrl.u32 %v9388, 7
    %v9390 = vsub.s32 %v9387, %v9389
    %v9391 = vrot.slane %v9377, %v9390
    %v9392 = vcombine.low %v9384, %v9391
    %v9393 = vcombine.low %v6030, %v6038
    %v9395 = vunpack.c.l.s4 1983009808
    %v9396 = vunpack.c.0.s8 %v9395
    %v9397 = vlaneseq
    %v9398 = vshrl.u32 %v9397, 7
    %v9399 = vsub.s32 %v9396, %v9398
    %v9400 = vrot.slane %v9393, %v9399
    %v9401 = vcombine.low %v6428, %v6430
    %v9402 = vcombine.low %v6438, %v6446
    %v9404 = vunpack.c.l.s4 1983009808
    %v9405 = vunpack.c.0.s8 %v9404
    %v9406 = vlaneseq
    %v9407 = vshrl.u32 %v9406, 7
    %v9408 = vsub.s32 %v9405, %v9407
    %v9409 = vrot.slane %v9401, %v9408
    %v9411 = vunpack.c.l.s4 1983009808
    %v9412 = vunpack.c.0.s8 %v9411
    %v9413 = vlaneseq
    %v9414 = vshrl.u32 %v9413, 7
    %v9415 = vsub.s32 %v9412, %v9414
    %v9416 = vrot.slane %v9402, %v9415
    %v9417 = vcombine.low %v9409, %v9416
    %v9418 = vcombine.low %v6445, %v6447
    %v9420 = vunpack.c.l.s4 1983009808
    %v9421 = vunpack.c.0.s8 %v9420
    %v9422 = vlaneseq
    %v9423 = vshrl.u32 %v9422, 7
    %v9424 = vsub.s32 %v9421, %v9423
    %v9425 = vrot.slane %v9418, %v9424
    %9426 = vrot.lane.b32.xlu0 %v9392, 16
    %v9427 = vpop.permute.xlu0 %9426
    %9428 = vrot.lane.b32.xlu0 %v9400, 16
    %v9429 = vpop.permute.xlu0 %9428
    %9430 = vrot.lane.b32.xlu0 %v9417, 16
    %v9431 = vpop.permute.xlu0 %9430
    %9432 = vrot.lane.b32.xlu0 %v9425, 16
    %v9433 = vpop.permute.xlu0 %9432
    %v9438 = vsel %vm716, %v9304, %v9365
    %v9439 = vsel %vm716, %v9312, %v9367
    %v9440 = vsel %vm716, %v9329, %v9369
    %v9441 = vsel %vm716, %v9337, %v9371
    %v9442 = vsel %vm8296, %v9438, %v9427
    %v9443 = vsel %vm8296, %v9439, %v9429
    %v9444 = vsel %vm8296, %v9440, %v9431
    %v9445 = vsel %vm8296, %v9441, %v9433
    %v9450 = vcombine.high %v9442, %v9442
    %v9451 = vcombine.high %v9444, %v9444
    %v9452 = vcombine.low %v8571, %v8579
    %v9453 = vcombine.low %v8572, %v9442
    %v9454 = vcombine.low %v9450, %v9443
    %v9455 = vcombine.low %v8573, %v8580
    %v9456 = vcombine.low %v8574, %v9444
    %v9457 = vcombine.low %v9451, %v9445
    %v9458 = vsel %vm8617, %v9452, 0
    %v9460 = vsel %vm8617, %v9453, 0
    %v9462 = vsel %vm8617, %v9454, 0
    %v9464 = vsel %vm8617, %v9455, 0
    %v9466 = vsel %vm8617, %v9456, 0
    %v9468 = vsel %vm8617, %v9457, 0
    %9470 = vmatprep.subr.mxu0 0.0
    %9471 = vmatpush1.msra.mxu0 0.0
    %9472 = vmatprep.subr.mxu0 0.0
    %9473 = vmatpush1.msra.mxu0 0.0
    %9474 = vmatprep.subr.mxu0 0.0
    %9475 = vmatpush1.msra.mxu0 0.0
    %9476 = vmatprep.subr.mxu0 0.0
    %9477 = vmatpush1.msra.mxu0 0.0
    %9478 = vmatprep.subr.mxu0 0.0
    %9479 = vmatpush1.msra.mxu0 0.0
    %9480 = vmatprep.subr.mxu0 0.0
    %9481 = vmatpush1.msra.mxu0 0.0
    %9482 = vmatprep.subr.mxu0 0.0
    %9483 = vmatpush1.msra.mxu0 0.0
    %9484 = vmatprep.subr.mxu0 0.0
    %9485 = vmatpush1.msra.mxu0 0.0
    %9486 = vmatprep.subr.mxu0 0.0
    %9487 = vmatpush1.msra.mxu0 0.0
    %9488 = vmatprep.subr.mxu0 0.0
    %9489 = vmatpush1.msra.mxu0 0.0
    %9490 = vmatprep.subr.mxu0 0.0
    %9491 = vmatpush1.msra.mxu0 0.0
    %9492 = vmatprep.subr.mxu0 0.0
    %9493 = vmatpush1.msra.mxu0 0.0
    %9494 = vmatprep.subr.mxu0 0.0
    %9495 = vmatpush1.msra.mxu0 0.0
    %9496 = vmatprep.subr.mxu0 0.0
    %9497 = vmatpush1.msra.mxu0 %v32
    %9498 = vmatprep.subr.mxu0 0.0
    %9499 = vmatpush1.msra.mxu0 %v31
    %9500 = vmatprep.subr.mxu0 0.0
    %9501 = vmatpush1.msra.mxu0 %v30
    %9502 = vmatprep.subr.mxu0 0.0
    %9503 = vmatpush2.msra.mxu0 0.0
    %9504 = vmatprep.subr.mxu0 0.0
    %9505 = vmatpush2.msra.mxu0 0.0
    %9506 = vmatprep.subr.mxu0 0.0
    %9507 = vmatpush2.msra.mxu0 0.0
    %9508 = vmatprep.subr.mxu0 0.0
    %9509 = vmatpush2.msra.mxu0 0.0
    %9510 = vmatprep.subr.mxu0 0.0
    %9511 = vmatpush2.msra.mxu0 0.0
    %9512 = vmatprep.subr.mxu0 0.0
    %9513 = vmatpush2.msra.mxu0 0.0
    %9514 = vmatprep.subr.mxu0 0.0
    %9515 = vmatpush2.msra.mxu0 0.0
    %9516 = vmatprep.subr.mxu0 0.0
    %9517 = vmatpush2.msra.mxu0 0.0
    %9518 = vmatprep.subr.mxu0 0.0
    %9519 = vmatpush2.msra.mxu0 0.0
    %9520 = vmatprep.subr.mxu0 0.0
    %9521 = vmatpush2.msra.mxu0 0.0
    %9522 = vmatprep.subr.mxu0 0.0
    %9523 = vmatpush2.msra.mxu0 0.0
    %9524 = vmatprep.subr.mxu0 0.0
    %9525 = vmatpush2.msra.mxu0 0.0
    %9526 = vmatprep.subr.mxu0 0.0
    %9527 = vmatpush2.msra.mxu0 0.0
    %9528 = vmatprep.subr.mxu0 0.0
    %9529 = vmatpush2.msra.mxu0 0.0
    %9530 = vmatprep.subr.mxu0 0.0
    %9531 = vmatpush2.msra.mxu0 0.0
    %9532 = vmatprep.subr.mxu0 0.0
    %9533 = vmatpush2.msra.mxu0 0.0
    %9534 = vmatprep.mubr.f32.mxu0 0.0
    %9535 = vmatmul.mubr.f32.gmra.mxu0 %v8977
    %v9536 = vpop.f32.mrf.mxu0
    %v9537 = vadd.f32 0.0, %v9536
    %v9538 = vpop.f32.mrf.mxu0
    %9539 = vmatprep.mubr.f32.mxu0 0.0
    %9540 = vmatmul.mubr.f32.gmra.mxu0 %v8979
    %v9541 = vpop.f32.mrf.mxu0
    %v9542 = vadd.f32 0.0, %v9541
    %v9543 = vpop.f32.mrf.mxu0
    %9544 = vmatprep.mubr.f32.mxu0 0.0
    %9545 = vmatmul.mubr.f32.gmra.mxu0 %v8981
    %v9546 = vpop.f32.mrf.mxu0
    %v9547 = vadd.f32 0.0, %v9546
    %v9548 = vpop.f32.mrf.mxu0
    %9549 = vmatprep.mubr.f32.mxu0 0.0
    %9550 = vmatmul.mubr.f32.gmra.mxu0 %v8983
    %v9551 = vpop.f32.mrf.mxu0
    %v9552 = vadd.f32 0.0, %v9551
    %v9553 = vpop.f32.mrf.mxu0
    %9554 = vmatprep.mubr.f32.mxu0 0.0
    %9555 = vmatmul.mubr.f32.gmra.mxu0 %v8985
    %v9556 = vpop.f32.mrf.mxu0
    %v9557 = vadd.f32 0.0, %v9556
    %v9558 = vpop.f32.mrf.mxu0
    %9559 = vmatprep.mubr.f32.mxu0 0.0
    %9560 = vmatmul.mubr.f32.gmra.mxu0 %v8987
    %v9561 = vpop.f32.mrf.mxu0
    %v9562 = vadd.f32 0.0, %v9561
    %v9563 = vpop.f32.mrf.mxu0
    %9564 = vmatprep.mubr.f32.mxu0 0.0
    %9565 = vmatmul.mubr.f32.gmra.mxu0 %v8989
    %v9566 = vpop.f32.mrf.mxu0
    %v9567 = vadd.f32 0.0, %v9566
    %v9568 = vpop.f32.mrf.mxu0
    %9569 = vmatprep.mubr.f32.mxu0 0.0
    %9570 = vmatmul.mubr.f32.gmra.mxu0 %v8991
    %v9571 = vpop.f32.mrf.mxu0
    %v9572 = vadd.f32 0.0, %v9571
    %v9573 = vpop.f32.mrf.mxu0
    %9574 = vmatprep.mubr.f32.mxu0 0.0
    %9575 = vmatmul.mubr.f32.gmra.mxu0 %v8993
    %v9576 = vpop.f32.mrf.mxu0
    %v9577 = vadd.f32 0.0, %v9576
    %v9578 = vpop.f32.mrf.mxu0
    %9579 = vmatprep.mubr.f32.mxu0 0.0
    %9580 = vmatmul.mubr.f32.gmra.mxu0 %v8995
    %v9581 = vpop.f32.mrf.mxu0
    %v9582 = vadd.f32 0.0, %v9581
    %v9583 = vpop.f32.mrf.mxu0
    %9584 = vmatprep.mubr.f32.mxu0 0.0
    %9585 = vmatmul.mubr.f32.gmra.mxu0 %v8997
    %v9586 = vpop.f32.mrf.mxu0
    %v9587 = vadd.f32 0.0, %v9586
    %v9588 = vpop.f32.mrf.mxu0
    %9589 = vmatprep.mubr.f32.mxu0 0.0
    %9590 = vmatmul.mubr.f32.gmra.mxu0 %v8999
    %v9591 = vpop.f32.mrf.mxu0
    %v9592 = vadd.f32 0.0, %v9591
    %v9593 = vpop.f32.mrf.mxu0
    %9594 = vmatprep.mubr.f32.mxu0 0.0
    %9595 = vmatmul.mubr.f32.gmra.mxu0 %v9001
    %v9596 = vpop.f32.mrf.mxu0
    %v9597 = vadd.f32 0.0, %v9596
    %v9598 = vpop.f32.mrf.mxu0
    %9599 = vmatprep.mubr.f32.mxu0 0.0
    %9600 = vmatmul.mubr.f32.gmra.mxu0 %v9003
    %v9601 = vpop.f32.mrf.mxu0
    %v9602 = vadd.f32 0.0, %v9601
    %v9603 = vpop.f32.mrf.mxu0
    %9604 = vmatprep.mubr.f32.mxu0 0.0
    %9605 = vmatmul.mubr.f32.gmra.mxu0 %v9005
    %v9606 = vpop.f32.mrf.mxu0
    %v9607 = vadd.f32 0.0, %v9606
    %v9608 = vpop.f32.mrf.mxu0
    %9609 = vmatprep.mubr.f32.mxu0 0.0
    %9610 = vmatmul.mubr.f32.gmra.mxu0 %v9458
    %v9611 = vpop.f32.mrf.mxu0
    %v9612 = vadd.f32 0.0, %v9611
    %v9613 = vpop.f32.mrf.mxu0
    %9614 = vmatprep.mubr.f32.mxu0 0.0
    %9615 = vmatmul.mubr.f32.gmra.mxu0 %v9460
    %v9616 = vpop.f32.mrf.mxu0
    %v9617 = vadd.f32 0.0, %v9616
    %v9618 = vpop.f32.mrf.mxu0
    %9619 = vmatprep.mubr.f32.mxu0 0.0
    %9620 = vmatmul.mubr.f32.gmra.mxu0 %v9462
    %v9621 = vpop.f32.mrf.mxu0
    %v9622 = vadd.f32 0.0, %v9621
    %v9623 = vpop.f32.mrf.mxu0
    %9624 = vmatprep.mubr.f32.mxu0 0.0
    %9625 = vmatmul.mubr.f32.gmra.mxu0 %v9013
    %v9626 = vpop.f32.mrf.mxu0
    %v9627 = vadd.f32 0.0, %v9626
    %v9628 = vpop.f32.mrf.mxu0
    %9629 = vmatprep.mubr.f32.mxu0 0.0
    %9630 = vmatmul.mubr.f32.gmra.mxu0 %v9015
    %v9631 = vpop.f32.mrf.mxu0
    %v9632 = vadd.f32 0.0, %v9631
    %v9633 = vpop.f32.mrf.mxu0
    %9634 = vmatprep.mubr.f32.mxu0 0.0
    %9635 = vmatmul.mubr.f32.gmra.mxu0 %v9017
    %v9636 = vpop.f32.mrf.mxu0
    %v9637 = vadd.f32 0.0, %v9636
    %v9638 = vpop.f32.mrf.mxu0
    %9639 = vmatprep.mubr.f32.mxu0 0.0
    %9640 = vmatmul.mubr.f32.gmra.mxu0 %v9019
    %v9641 = vpop.f32.mrf.mxu0
    %v9642 = vadd.f32 0.0, %v9641
    %v9643 = vpop.f32.mrf.mxu0
    %9644 = vmatprep.mubr.f32.mxu0 0.0
    %9645 = vmatmul.mubr.f32.gmra.mxu0 %v9021
    %v9646 = vpop.f32.mrf.mxu0
    %v9647 = vadd.f32 0.0, %v9646
    %v9648 = vpop.f32.mrf.mxu0
    %9649 = vmatprep.mubr.f32.mxu0 0.0
    %9650 = vmatmul.mubr.f32.gmra.mxu0 %v9023
    %v9651 = vpop.f32.mrf.mxu0
    %v9652 = vadd.f32 0.0, %v9651
    %v9653 = vpop.f32.mrf.mxu0
    %9654 = vmatprep.mubr.f32.mxu0 0.0
    %9655 = vmatmul.mubr.f32.gmra.mxu0 %v9025
    %v9656 = vpop.f32.mrf.mxu0
    %v9657 = vadd.f32 0.0, %v9656
    %v9658 = vpop.f32.mrf.mxu0
    %9659 = vmatprep.mubr.f32.mxu0 0.0
    %9660 = vmatmul.mubr.f32.gmra.mxu0 %v9027
    %v9661 = vpop.f32.mrf.mxu0
    %v9662 = vadd.f32 0.0, %v9661
    %v9663 = vpop.f32.mrf.mxu0
    %9664 = vmatprep.mubr.f32.mxu0 0.0
    %9665 = vmatmul.mubr.f32.gmra.mxu0 %v9029
    %v9666 = vpop.f32.mrf.mxu0
    %v9667 = vadd.f32 0.0, %v9666
    %v9668 = vpop.f32.mrf.mxu0
    %9669 = vmatprep.mubr.f32.mxu0 0.0
    %9670 = vmatmul.mubr.f32.gmra.mxu0 %v9031
    %v9671 = vpop.f32.mrf.mxu0
    %v9672 = vadd.f32 0.0, %v9671
    %v9673 = vpop.f32.mrf.mxu0
    %9674 = vmatprep.mubr.f32.mxu0 0.0
    %9675 = vmatmul.mubr.f32.gmra.mxu0 %v9033
    %v9676 = vpop.f32.mrf.mxu0
    %v9677 = vadd.f32 0.0, %v9676
    %v9678 = vpop.f32.mrf.mxu0
    %9679 = vmatprep.mubr.f32.mxu0 0.0
    %9680 = vmatmul.mubr.f32.gmra.mxu0 %v9035
    %v9681 = vpop.f32.mrf.mxu0
    %v9682 = vadd.f32 0.0, %v9681
    %v9683 = vpop.f32.mrf.mxu0
    %9684 = vmatprep.mubr.f32.mxu0 0.0
    %9685 = vmatmul.mubr.f32.gmra.mxu0 %v9037
    %v9686 = vpop.f32.mrf.mxu0
    %v9687 = vadd.f32 0.0, %v9686
    %v9688 = vpop.f32.mrf.mxu0
    %9689 = vmatprep.mubr.f32.mxu0 0.0
    %9690 = vmatmul.mubr.f32.gmra.mxu0 %v9039
    %v9691 = vpop.f32.mrf.mxu0
    %v9692 = vadd.f32 0.0, %v9691
    %v9693 = vpop.f32.mrf.mxu0
    %9694 = vmatprep.mubr.f32.mxu0 0.0
    %9695 = vmatmul.mubr.f32.gmra.mxu0 %v9041
    %v9696 = vpop.f32.mrf.mxu0
    %v9697 = vadd.f32 0.0, %v9696
    %v9698 = vpop.f32.mrf.mxu0
    %9699 = vmatprep.mubr.f32.mxu0 0.0
    %9700 = vmatmul.mubr.f32.gmra.mxu0 %v9464
    %v9701 = vpop.f32.mrf.mxu0
    %v9702 = vadd.f32 0.0, %v9701
    %v9703 = vpop.f32.mrf.mxu0
    %9704 = vmatprep.mubr.f32.mxu0 0.0
    %9705 = vmatmul.mubr.f32.gmra.mxu0 %v9466
    %v9706 = vpop.f32.mrf.mxu0
    %v9707 = vadd.f32 0.0, %v9706
    %v9708 = vpop.f32.mrf.mxu0
    %9709 = vmatprep.mubr.f32.mxu0 0.0
    %9710 = vmatmul.mubr.f32.gmra.mxu0 %v9468
    %v9711 = vpop.f32.mrf.mxu0
    %v9712 = vadd.f32 0.0, %v9711
    %v9713 = vpop.f32.mrf.mxu0
    %9714 = vdwg.mxu0
    %v9715 = vadd.f32 %v9110, %v9537
    %v9716 = vadd.f32 %v9115, %v9542
    %v9717 = vadd.f32 %v9120, %v9547
    %v9718 = vadd.f32 %v9125, %v9552
    %v9719 = vadd.f32 %v9130, %v9557
    %v9720 = vadd.f32 %v9135, %v9562
    %v9721 = vadd.f32 %v9140, %v9567
    %v9722 = vadd.f32 %v9145, %v9572
    %v9723 = vadd.f32 %v9150, %v9577
    %v9724 = vadd.f32 %v9155, %v9582
    %v9725 = vadd.f32 %v9160, %v9587
    %v9726 = vadd.f32 %v9165, %v9592
    %v9727 = vadd.f32 %v9170, %v9597
    %v9728 = vadd.f32 %v9175, %v9602
    %v9729 = vadd.f32 %v9180, %v9607
    %v9730 = vadd.f32 %v9185, %v9612
    %v9731 = vadd.f32 %v9190, %v9617
    %v9732 = vadd.f32 %v9195, %v9622
    %v9733 = vadd.f32 %v9200, %v9627
    %v9734 = vadd.f32 %v9205, %v9632
    %v9735 = vadd.f32 %v9210, %v9637
    %v9736 = vadd.f32 %v9215, %v9642
    %v9737 = vadd.f32 %v9220, %v9647
    %v9738 = vadd.f32 %v9225, %v9652
    %v9739 = vadd.f32 %v9230, %v9657
    %v9740 = vadd.f32 %v9235, %v9662
    %v9741 = vadd.f32 %v9240, %v9667
    %v9742 = vadd.f32 %v9245, %v9672
    %v9743 = vadd.f32 %v9250, %v9677
    %v9744 = vadd.f32 %v9255, %v9682
    %v9745 = vadd.f32 %v9260, %v9687
    %v9746 = vadd.f32 %v9265, %v9692
    %v9747 = vadd.f32 %v9270, %v9697
    %v9748 = vadd.f32 %v9275, %v9702
    %v9749 = vadd.f32 %v9280, %v9707
    %v9750 = vadd.f32 %v9285, %v9712
    %v9751 = vld [vmem:[%s3 + $0x2] sm:$0x1]
    %v9752 = vld [vmem:[%s3 + $0x3] sm:$0x1]
    %v9753 = vadd.f32 %v9715, %v9716
    %v9754 = vadd.f32 %v9753, %v9717
    %v9755 = vadd.f32 %v9754, %v9718
    %v9756 = vadd.f32 %v9755, %v9719
    %v9757 = vadd.f32 %v9756, %v9720
    %v9758 = vadd.f32 %v9757, %v9721
    %v9759 = vadd.f32 %v9758, %v9722
    %v9760 = vadd.f32 %v9759, %v9723
    %v9761 = vadd.f32 %v9760, %v9724
    %v9762 = vadd.f32 %v9761, %v9725
    %v9763 = vadd.f32 %v9762, %v9726
    %v9764 = vadd.f32 %v9763, %v9727
    %v9765 = vadd.f32 %v9764, %v9728
    %v9766 = vadd.f32 %v9765, %v9729
    %v9767 = vadd.f32 %v9766, %v9730
    %v9768 = vadd.f32 %v9767, %v9731
    %v9769 = vadd.f32 %v9768, %v9732
    %v9770 = vadd.f32 %v9769, %v9733
    %v9771 = vadd.f32 %v9770, %v9734
    %v9772 = vadd.f32 %v9771, %v9735
    %v9773 = vadd.f32 %v9772, %v9736
    %v9774 = vadd.f32 %v9773, %v9737
    %v9775 = vadd.f32 %v9774, %v9738
    %v9776 = vadd.f32 %v9775, %v9739
    %v9777 = vadd.f32 %v9776, %v9740
    %v9778 = vadd.f32 %v9777, %v9741
    %v9779 = vadd.f32 %v9778, %v9742
    %v9780 = vadd.f32 %v9779, %v9743
    %v9781 = vadd.f32 %v9780, %v9744
    %v9782 = vadd.f32 %v9781, %v9745
    %v9783 = vadd.f32 %v9782, %v9746
    %v9784 = vadd.f32 %v9783, %v9747
    %v9785 = vadd.f32 %v9784, %v9748
    %v9786 = vadd.f32 %v9785, %v9749
    %v9787 = vadd.f32 %v9786, %v9750
    %v9788 = vrot.slane %v9787, 4
    %v9789 = vadd.f32 %v9787, %v9788
    %v9790 = vrot.slane %v9789, 2
    %v9791 = vadd.f32 %v9789, %v9790
    %v9792 = vrot.slane %v9791, 1
    %v9793 = vadd.f32 %v9791, %v9792
    %v9794 = vmul.f32 %v9793, 0.0034722222
    %v9795 = vsub.f32 %v9715, %v9794
    %v9796 = vsub.f32 %v9716, %v9794
    %v9797 = vsub.f32 %v9717, %v9794
    %v9798 = vsub.f32 %v9718, %v9794
    %v9799 = vsub.f32 %v9719, %v9794
    %v9800 = vsub.f32 %v9720, %v9794
    %v9801 = vsub.f32 %v9721, %v9794
    %v9802 = vsub.f32 %v9722, %v9794
    %v9803 = vsub.f32 %v9723, %v9794
    %v9804 = vsub.f32 %v9724, %v9794
    %v9805 = vsub.f32 %v9725, %v9794
    %v9806 = vsub.f32 %v9726, %v9794
    %v9807 = vsub.f32 %v9727, %v9794
    %v9808 = vsub.f32 %v9728, %v9794
    %v9809 = vsub.f32 %v9729, %v9794
    %v9810 = vsub.f32 %v9730, %v9794
    %v9811 = vsub.f32 %v9731, %v9794
    %v9812 = vsub.f32 %v9732, %v9794
    %v9813 = vsub.f32 %v9733, %v9794
    %v9814 = vsub.f32 %v9734, %v9794
    %v9815 = vsub.f32 %v9735, %v9794
    %v9816 = vsub.f32 %v9736, %v9794
    %v9817 = vsub.f32 %v9737, %v9794
    %v9818 = vsub.f32 %v9738, %v9794
    %v9819 = vsub.f32 %v9739, %v9794
    %v9820 = vsub.f32 %v9740, %v9794
    %v9821 = vsub.f32 %v9741, %v9794
    %v9822 = vsub.f32 %v9742, %v9794
    %v9823 = vsub.f32 %v9743, %v9794
    %v9824 = vsub.f32 %v9744, %v9794
    %v9825 = vsub.f32 %v9745, %v9794
    %v9826 = vsub.f32 %v9746, %v9794
    %v9827 = vsub.f32 %v9747, %v9794
    %v9828 = vsub.f32 %v9748, %v9794
    %v9829 = vsub.f32 %v9749, %v9794
    %v9830 = vsub.f32 %v9750, %v9794
    %v9831 = vmul.f32 %v9795, %v9795
    %v9832 = vmul.f32 %v9796, %v9796
    %v9833 = vmul.f32 %v9797, %v9797
    %v9834 = vmul.f32 %v9798, %v9798
    %v9835 = vmul.f32 %v9799, %v9799
    %v9836 = vmul.f32 %v9800, %v9800
    %v9837 = vmul.f32 %v9801, %v9801
    %v9838 = vmul.f32 %v9802, %v9802
    %v9839 = vmul.f32 %v9803, %v9803
    %v9840 = vmul.f32 %v9804, %v9804
    %v9841 = vmul.f32 %v9805, %v9805
    %v9842 = vmul.f32 %v9806, %v9806
    %v9843 = vmul.f32 %v9807, %v9807
    %v9844 = vmul.f32 %v9808, %v9808
    %v9845 = vmul.f32 %v9809, %v9809
    %v9846 = vmul.f32 %v9810, %v9810
    %v9847 = vmul.f32 %v9811, %v9811
    %v9848 = vmul.f32 %v9812, %v9812
    %v9849 = vmul.f32 %v9813, %v9813
    %v9850 = vmul.f32 %v9814, %v9814
    %v9851 = vmul.f32 %v9815, %v9815
    %v9852 = vmul.f32 %v9816, %v9816
    %v9853 = vmul.f32 %v9817, %v9817
    %v9854 = vmul.f32 %v9818, %v9818
    %v9855 = vmul.f32 %v9819, %v9819
    %v9856 = vmul.f32 %v9820, %v9820
    %v9857 = vmul.f32 %v9821, %v9821
    %v9858 = vmul.f32 %v9822, %v9822
    %v9859 = vmul.f32 %v9823, %v9823
    %v9860 = vmul.f32 %v9824, %v9824
    %v9861 = vmul.f32 %v9825, %v9825
    %v9862 = vmul.f32 %v9826, %v9826
    %v9863 = vmul.f32 %v9827, %v9827
    %v9864 = vmul.f32 %v9828, %v9828
    %v9865 = vmul.f32 %v9829, %v9829
    %v9866 = vmul.f32 %v9830, %v9830
    %v9867 = vadd.f32 %v9831, %v9832
    %v9868 = vadd.f32 %v9867, %v9833
    %v9869 = vadd.f32 %v9868, %v9834
    %v9870 = vadd.f32 %v9869, %v9835
    %v9871 = vadd.f32 %v9870, %v9836
    %v9872 = vadd.f32 %v9871, %v9837
    %v9873 = vadd.f32 %v9872, %v9838
    %v9874 = vadd.f32 %v9873, %v9839
    %v9875 = vadd.f32 %v9874, %v9840
    %v9876 = vadd.f32 %v9875, %v9841
    %v9877 = vadd.f32 %v9876, %v9842
    %v9878 = vadd.f32 %v9877, %v9843
    %v9879 = vadd.f32 %v9878, %v9844
    %v9880 = vadd.f32 %v9879, %v9845
    %v9881 = vadd.f32 %v9880, %v9846
    %v9882 = vadd.f32 %v9881, %v9847
    %v9883 = vadd.f32 %v9882, %v9848
    %v9884 = vadd.f32 %v9883, %v9849
    %v9885 = vadd.f32 %v9884, %v9850
    %v9886 = vadd.f32 %v9885, %v9851
    %v9887 = vadd.f32 %v9886, %v9852
    %v9888 = vadd.f32 %v9887, %v9853
    %v9889 = vadd.f32 %v9888, %v9854
    %v9890 = vadd.f32 %v9889, %v9855
    %v9891 = vadd.f32 %v9890, %v9856
    %v9892 = vadd.f32 %v9891, %v9857
    %v9893 = vadd.f32 %v9892, %v9858
    %v9894 = vadd.f32 %v9893, %v9859
    %v9895 = vadd.f32 %v9894, %v9860
    %v9896 = vadd.f32 %v9895, %v9861
    %v9897 = vadd.f32 %v9896, %v9862
    %v9898 = vadd.f32 %v9897, %v9863
    %v9899 = vadd.f32 %v9898, %v9864
    %v9900 = vadd.f32 %v9899, %v9865
    %v9901 = vadd.f32 %v9900, %v9866
    %v9902 = vrot.slane %v9901, 4
    %v9903 = vadd.f32 %v9901, %v9902
    %v9904 = vrot.slane %v9903, 2
    %v9905 = vadd.f32 %v9903, %v9904
    %v9906 = vrot.slane %v9905, 1
    %v9907 = vadd.f32 %v9905, %v9906
    %v9908 = vmul.f32 %v9907, 0.0034722222
    %v9909 = vadd.f32 %v9908, 1e-05
    %v9910 = vrsqrt.pop %v9909
    %v9911 = vmul.f32 %v9751, %v9910
    %v9912 = vlaneseq
    %v9913 = vshrl.u32 %v9912, 7
    %v9914 = vsub.s32 0, %v9913
    %v9915 = vrot.slane %v9911, %v9914
    %v9916 = vmul.f32 %v9795, %v9915
    %v9917 = vmul.f32 %v9796, %v9915
    %v9918 = vmul.f32 %v9797, %v9915
    %v9919 = vmul.f32 %v9798, %v9915
    %v9920 = vmul.f32 %v9799, %v9915
    %v9921 = vmul.f32 %v9800, %v9915
    %v9922 = vmul.f32 %v9801, %v9915
    %v9923 = vmul.f32 %v9802, %v9915
    %v9924 = vmul.f32 %v9803, %v9915
    %v9925 = vmul.f32 %v9804, %v9915
    %v9926 = vmul.f32 %v9805, %v9915
    %v9927 = vmul.f32 %v9806, %v9915
    %v9928 = vmul.f32 %v9807, %v9915
    %v9929 = vmul.f32 %v9808, %v9915
    %v9930 = vmul.f32 %v9809, %v9915
    %v9931 = vmul.f32 %v9810, %v9915
    %v9932 = vmul.f32 %v9811, %v9915
    %v9933 = vmul.f32 %v9812, %v9915
    %v9934 = vmul.f32 %v9813, %v9915
    %v9935 = vmul.f32 %v9814, %v9915
    %v9936 = vmul.f32 %v9815, %v9915
    %v9937 = vmul.f32 %v9816, %v9915
    %v9938 = vmul.f32 %v9817, %v9915
    %v9939 = vmul.f32 %v9818, %v9915
    %v9940 = vmul.f32 %v9819, %v9915
    %v9941 = vmul.f32 %v9820, %v9915
    %v9942 = vmul.f32 %v9821, %v9915
    %v9943 = vmul.f32 %v9822, %v9915
    %v9944 = vmul.f32 %v9823, %v9915
    %v9945 = vmul.f32 %v9824, %v9915
    %v9946 = vmul.f32 %v9825, %v9915
    %v9947 = vmul.f32 %v9826, %v9915
    %v9948 = vmul.f32 %v9827, %v9915
    %v9949 = vmul.f32 %v9828, %v9915
    %v9950 = vmul.f32 %v9829, %v9915
    %v9951 = vmul.f32 %v9830, %v9915
    %v9952 = vlaneseq
    %v9953 = vshrl.u32 %v9952, 7
    %v9954 = vsub.s32 0, %v9953
    %v9955 = vrot.slane %v9752, %v9954
    %v9956 = vadd.f32 %v9916, %v9955
    %v9957 = vadd.f32 %v9917, %v9955
    %v9958 = vadd.f32 %v9918, %v9955
    %v9959 = vadd.f32 %v9919, %v9955
    %v9960 = vadd.f32 %v9920, %v9955
    %v9961 = vadd.f32 %v9921, %v9955
    %v9962 = vadd.f32 %v9922, %v9955
    %v9963 = vadd.f32 %v9923, %v9955
    %v9964 = vadd.f32 %v9924, %v9955
    %v9965 = vadd.f32 %v9925, %v9955
    %v9966 = vadd.f32 %v9926, %v9955
    %v9967 = vadd.f32 %v9927, %v9955
    %v9968 = vadd.f32 %v9928, %v9955
    %v9969 = vadd.f32 %v9929, %v9955
    %v9970 = vadd.f32 %v9930, %v9955
    %v9971 = vadd.f32 %v9931, %v9955
    %v9972 = vadd.f32 %v9932, %v9955
    %v9973 = vadd.f32 %v9933, %v9955
    %v9974 = vadd.f32 %v9934, %v9955
    %v9975 = vadd.f32 %v9935, %v9955
    %v9976 = vadd.f32 %v9936, %v9955
    %v9977 = vadd.f32 %v9937, %v9955
    %v9978 = vadd.f32 %v9938, %v9955
    %v9979 = vadd.f32 %v9939, %v9955
    %v9980 = vadd.f32 %v9940, %v9955
    %v9981 = vadd.f32 %v9941, %v9955
    %v9982 = vadd.f32 %v9942, %v9955
    %v9983 = vadd.f32 %v9943, %v9955
    %v9984 = vadd.f32 %v9944, %v9955
    %v9985 = vadd.f32 %v9945, %v9955
    %v9986 = vadd.f32 %v9946, %v9955
    %v9987 = vadd.f32 %v9947, %v9955
    %v9988 = vadd.f32 %v9948, %v9955
    %v9989 = vadd.f32 %v9949, %v9955
    %v9990 = vadd.f32 %v9950, %v9955
    %v9991 = vadd.f32 %v9951, %v9955
    %v9992 = vmax.f32 %v9956, 0.0
    %v9993 = vmax.f32 %v9957, 0.0
    %v9994 = vmax.f32 %v9958, 0.0
    %v9995 = vmax.f32 %v9959, 0.0
    %v9996 = vmax.f32 %v9960, 0.0
    %v9997 = vmax.f32 %v9961, 0.0
    %v9998 = vmax.f32 %v9962, 0.0
    %v9999 = vmax.f32 %v9963, 0.0
    %v10000 = vmax.f32 %v9964, 0.0
    %v10001 = vmax.f32 %v9965, 0.0
    %v10002 = vmax.f32 %v9966, 0.0
    %v10003 = vmax.f32 %v9967, 0.0
    %v10004 = vmax.f32 %v9968, 0.0
    %v10005 = vmax.f32 %v9969, 0.0
    %v10006 = vmax.f32 %v9970, 0.0
    %v10007 = vmax.f32 %v9971, 0.0
    %v10008 = vmax.f32 %v9972, 0.0
    %v10009 = vmax.f32 %v9973, 0.0
    %v10010 = vmax.f32 %v9974, 0.0
    %v10011 = vmax.f32 %v9975, 0.0
    %v10012 = vmax.f32 %v9976, 0.0
    %v10013 = vmax.f32 %v9977, 0.0
    %v10014 = vmax.f32 %v9978, 0.0
    %v10015 = vmax.f32 %v9979, 0.0
    %v10016 = vmax.f32 %v9980, 0.0
    %v10017 = vmax.f32 %v9981, 0.0
    %v10018 = vmax.f32 %v9982, 0.0
    %v10019 = vmax.f32 %v9983, 0.0
    %v10020 = vmax.f32 %v9984, 0.0
    %v10021 = vmax.f32 %v9985, 0.0
    %v10022 = vmax.f32 %v9986, 0.0
    %v10023 = vmax.f32 %v9987, 0.0
    %v10024 = vmax.f32 %v9988, 0.0
    %v10025 = vmax.f32 %v9989, 0.0
    %v10026 = vmax.f32 %v9990, 0.0
    %v10027 = vmax.f32 %v9991, 0.0
    %10028 = vst [vmem:[#allocation2] sm:$0xff] %v9992
    %10029 = vst [vmem:[#allocation2 + $0x8] sm:$0xff] %v9993
    %10030 = vst [vmem:[#allocation2 + $0x10] sm:$0xff] %v9994
    %10031 = vst [vmem:[#allocation2 + $0x18] sm:$0xff] %v9995
    %10032 = vst [vmem:[#allocation2 + $0x20] sm:$0xff] %v9996
    %10033 = vst [vmem:[#allocation2 + $0x28] sm:$0xff] %v9997
    %10034 = vst [vmem:[#allocation2 + $0x30] sm:$0xff] %v9998
    %10035 = vst [vmem:[#allocation2 + $0x38] sm:$0xff] %v9999
    %10036 = vst [vmem:[#allocation2 + $0x40] sm:$0xff] %v10000
    %10037 = vst [vmem:[#allocation2 + $0x48] sm:$0xff] %v10001
    %10038 = vst [vmem:[#allocation2 + $0x50] sm:$0xff] %v10002
    %10039 = vst [vmem:[#allocation2 + $0x58] sm:$0xff] %v10003
    %10040 = vst [vmem:[#allocation2 + $0x60] sm:$0xff] %v10004
    %10041 = vst [vmem:[#allocation2 + $0x68] sm:$0xff] %v10005
    %10042 = vst [vmem:[#allocation2 + $0x70] sm:$0xff] %v10006
    %10043 = vst [vmem:[#allocation2 + $0x78] sm:$0xff] %v10007
    %10044 = vst [vmem:[#allocation2 + $0x80] sm:$0xff] %v10008
    %10045 = vst [vmem:[#allocation2 + $0x88] sm:$0xff] %v10009
    %10046 = vst [vmem:[#allocation2 + $0x90] sm:$0xff] %v10010
    %10047 = vst [vmem:[#allocation2 + $0x98] sm:$0xff] %v10011
    %10048 = vst [vmem:[#allocation2 + $0xa0] sm:$0xff] %v10012
    %10049 = vst [vmem:[#allocation2 + $0xa8] sm:$0xff] %v10013
    %10050 = vst [vmem:[#allocation2 + $0xb0] sm:$0xff] %v10014
    %10051 = vst [vmem:[#allocation2 + $0xb8] sm:$0xff] %v10015
    %10052 = vst [vmem:[#allocation2 + $0xc0] sm:$0xff] %v10016
    %10053 = vst [vmem:[#allocation2 + $0xc8] sm:$0xff] %v10017
    %10054 = vst [vmem:[#allocation2 + $0xd0] sm:$0xff] %v10018
    %10055 = vst [vmem:[#allocation2 + $0xd8] sm:$0xff] %v10019
    %10056 = vst [vmem:[#allocation2 + $0xe0] sm:$0xff] %v10020
    %10057 = vst [vmem:[#allocation2 + $0xe8] sm:$0xff] %v10021
    %10058 = vst [vmem:[#allocation2 + $0xf0] sm:$0xff] %v10022
    %10059 = vst [vmem:[#allocation2 + $0xf8] sm:$0xff] %v10023
    %10060 = vst [vmem:[#allocation2 + $0x100] sm:$0xff] %v10024
    %10061 = vst [vmem:[#allocation2 + $0x108] sm:$0xff] %v10025
    %10062 = vst [vmem:[#allocation2 + $0x110] sm:$0xff] %v10026
    %10063 = vst [vmem:[#allocation2 + $0x118] sm:$0xff] %v10027
    // Predicated region
    $region18: #{tpu_custom_call.1} parent=1 // pred_check
      _
    $region19: #{tpu_custom_call.1} parent=1 // pred_check_branch
      %10065 = sbr.rel (0) target = $region21
    $region20: #{tpu_custom_call.1} parent=1 // pred_region
      %s10067 = ssub.s32 4608, 4608
      %10068 = vsyncadd [#allocation3], %s10067
      %s10069 = sshll.u32 [#allocation2], 4
      %s10070 = int_to_ptr.vmem [resolvable:$true] %s10069
      %10075 = dma.vmem_to_hbm [thread:$0]  %s10070, 4608, %s4, [#allocation3], 128, 128, 8
    $region21: #{tpu_custom_call.1} parent=1 // pred_fallthru
      _
    // Predicated region
    $region22: #{tpu_custom_call.1} parent=1 // pred_check
      _
    $region23: #{tpu_custom_call.1} parent=1 // pred_check_branch
      %10077 = sbr.rel (0) target = $region25
    $region24: #{tpu_custom_call.1} parent=1 // pred_region
      %10078 = dma.done [#allocation3], 4608
    $region25: #{tpu_custom_call.1} parent=1 // pred_fallthru
      _
    %10079 = vsyncpa [#allocation3], 1

</llo_original>
